<compile_context>
chip_gen: v5e
topology: v5e:2x2
jax: 0.10.0
libtpu: 0.0.40
codegen_flags: <defaults>
</compile_context>

<pallas_src>
import functools

import jax
import jax.numpy as jnp
from jax.experimental import pallas as pl
from jax.experimental.pallas import tpu as pltpu


# ----------------------------------------------------------------------------
# Kernel 1: fused 1x1 conv (+bias) -> depthwise 3x3 conv (+bias), channels-last
# ----------------------------------------------------------------------------

def _pw_dw_kernel(x_ref, w1_ref, b1_ref, dw_ref, db_ref, o_ref, pad_ref):
    # x_ref : (1, H, W, Cin)   f32
    # w1_ref: (Cin, Cout)      f32 (cast to bf16 for the MXU)
    # b1_ref: (1, Cout)        f32
    # dw_ref: (9, Cout)        f32 (3x3 depthwise taps, row-major)
    # db_ref: (1, Cout)        f32
    # o_ref : (1, H, W, Cout)  bf16
    # pad_ref: VMEM scratch (H+2, W+2, Cout) f32 (in-kernel SAME padding)
    H, W, Cout = o_ref.shape[1], o_ref.shape[2], o_ref.shape[3]
    Cin = x_ref.shape[3]

    # 1x1 conv as one big MXU matmul: bf16 operands, f32 accumulation.
    x = x_ref[0].reshape(H * W, Cin)
    y = jnp.dot(x.astype(jnp.bfloat16), w1_ref[...].astype(jnp.bfloat16),
                preferred_element_type=jnp.float32) + b1_ref[...]

    # Zero-padded copy held in VMEM (border zeros == SAME padding).
    pad_ref[...] = jnp.zeros_like(pad_ref)
    pad_ref[1:H + 1, 1:W + 1, :] = y.reshape(H, W, Cout)

    xp = pad_ref[...]
    dw = dw_ref[...]                                   # load all 9 taps once
    acc = jnp.zeros((H, W, Cout), jnp.float32)
    for t in range(9):
        di, dj = t // 3, t % 3
        acc = acc + xp[di:di + H, dj:dj + W, :] * dw[t:t + 1]
    o_ref[0] = (acc + db_ref[...]).astype(o_ref.dtype)


def pw_dw_conv(x, w1, b1, dww, dwb):
    # x: (B, H, W, Cin) f32 -> (B, H, W, Cout) bf16
    B, H, W, Cin = x.shape
    Cout = w1.shape[1]
    return pl.pallas_call(
        _pw_dw_kernel,
        out_shape=jax.ShapeDtypeStruct((B, H, W, Cout), jnp.bfloat16),
        grid=(B,),
        in_specs=[
            pl.BlockSpec((1, H, W, Cin), lambda b: (b, 0, 0, 0)),
            pl.BlockSpec((Cin, Cout), lambda b: (0, 0)),
            pl.BlockSpec((1, Cout), lambda b: (0, 0)),
            pl.BlockSpec((9, Cout), lambda b: (0, 0)),
            pl.BlockSpec((1, Cout), lambda b: (0, 0)),
        ],
        out_specs=pl.BlockSpec((1, H, W, Cout), lambda b: (b, 0, 0, 0)),
        scratch_shapes=[pltpu.VMEM((H + 2, W + 2, Cout), jnp.float32)],
        compiler_params=pltpu.CompilerParams(
            dimension_semantics=("parallel",)),
    )(x, w1, b1.reshape(1, Cout), dww.reshape(9, Cout), dwb.reshape(1, Cout))


# ----------------------------------------------------------------------------
# Kernel 2: channel cross-attention (all heads per step) + fused project_out
# ----------------------------------------------------------------------------

def _attn_proj_kernel(t_ref, q_ref, kv_ref, pw_ref, pb_ref, o_ref, *,
                      num_head, dim):
    # t_ref : SMEM (num_head,) f32 per-head temperature
    # q_ref : (1, HW, dim)     bf16 channels-last (all heads packed on lanes)
    # kv_ref: (1, HW, 2*dim)   bf16 (k | v concatenated along channels)
    # pw_ref: (dim, dim) f32, pb_ref: (1, dim) f32 -> project_out fused here
    # o_ref : (1, HW, dim) f32
    ch = dim // num_head
    eps2 = 1e-24  # (1e-12)^2: rsqrt(max(ss, eps^2)) == 1 / max(||.||, 1e-12)

    q = q_ref[0]            # (HW, dim)
    kv = kv_ref[0]          # (HW, 2*dim)

    outs = []
    for h in range(num_head):
        qh = q[:, h * ch:(h + 1) * ch]                         # (HW, ch)
        kh = kv[:, h * ch:(h + 1) * ch]                        # (HW, ch)
        vh = kv[:, dim + h * ch:dim + (h + 1) * ch]            # (HW, ch)

        # Folded L2 normalization: rsqrt (EUP) instead of sqrt+divide;
        # temperature folded into the same scale.  All broadcasts are lane-wise.
        qf = qh.astype(jnp.float32)
        kf = kh.astype(jnp.float32)
        inv_q = jax.lax.rsqrt(
            jnp.maximum(jnp.sum(qf * qf, axis=0, keepdims=True), eps2))  # (1, ch)
        inv_k = jax.lax.rsqrt(
            jnp.maximum(jnp.sum(kf * kf, axis=0, keepdims=True), eps2))  # (1, ch)
        qn = (qf * (inv_q * t_ref[h])).astype(jnp.bfloat16)

        # Gram matrix over HW on the MXU (bf16 operands, f32 accumulation),
        # then scale columns by the k-side inverse norms.
        s = jax.lax.dot_general(qn, kh, (((0,), (0,)), ((), ())),
                                preferred_element_type=jnp.float32)      # (ch, ch)
        logits = s * inv_k

        # Softmax over the k-channel axis.
        logits = logits - jnp.max(logits, axis=-1, keepdims=True)
        e = jnp.exp(logits)
        p = e * pl.reciprocal(jnp.sum(e, axis=-1, keepdims=True), approx=True)

        # out_h[hw, i] = sum_j p[i, j] * v[hw, j]  -> stays channels-last.
        outs.append(jax.lax.dot_general(
            vh, p.astype(jnp.bfloat16), (((1,), (1,)), ((), ())),
            preferred_element_type=jnp.float32))                         # (HW, ch)

    attn_out = jnp.concatenate(outs, axis=-1)                            # (HW, dim)

    # Fused project_out (1x1 conv) epilogue.
    o_ref[0] = jnp.dot(attn_out.astype(jnp.bfloat16),
                       pw_ref[...].astype(jnp.bfloat16),
                       preferred_element_type=jnp.float32) + pb_ref[...]


def attention_project(q, kv, po_w, po_b, temperature, num_head):
    # q: (B, HW, dim) bf16   kv: (B, HW, 2*dim) bf16   temperature: (num_head,)
    B, HW, dim = q.shape
    kernel = functools.partial(_attn_proj_kernel, num_head=num_head, dim=dim)
    return pl.pallas_call(
        kernel,
        out_shape=jax.ShapeDtypeStruct((B, HW, dim), jnp.float32),
        grid=(B,),
        in_specs=[
            pl.BlockSpec(memory_space=pltpu.MemorySpace.SMEM),   # temperature
            pl.BlockSpec((1, HW, dim), lambda b: (b, 0, 0)),
            pl.BlockSpec((1, HW, 2 * dim), lambda b: (b, 0, 0)),
            pl.BlockSpec((dim, dim), lambda b: (0, 0)),
            pl.BlockSpec((1, dim), lambda b: (0, 0)),
        ],
        out_specs=pl.BlockSpec((1, HW, dim), lambda b: (b, 0, 0)),
        compiler_params=pltpu.CompilerParams(
            dimension_semantics=("parallel",)),
    )(temperature, q, kv, po_w, po_b.reshape(1, dim))


# ----------------------------------------------------------------------------
# Full forward pass (3 pallas_calls, interface-only transposes in JAX)
# ----------------------------------------------------------------------------

@functools.partial(jax.jit, static_argnames=("num_head",))
def chanel_cross_attention(x, y, params, num_head):
    # x, y: (b, dim, h, w) NCHW (matching the PyTorch module's interface)
    b, dim, h, w = x.shape
    hw = h * w

    x_l = jnp.transpose(x, (0, 2, 3, 1))  # NCHW -> NHWC (interface only)
    y_l = jnp.transpose(y, (0, 2, 3, 1))

    # q branch: fused 1x1 conv + depthwise 3x3
    q2 = pw_dw_conv(x_l, params["q_w"], params["q_b"],
                    params["q_dw_w"], params["q_dw_b"])            # (b,h,w,dim) bf16
    # kv branch: fused 1x1 conv (dim -> 2*dim) + depthwise 3x3
    kv2 = pw_dw_conv(y_l, params["kv_w"], params["kv_b"],
                     params["kv_dw_w"], params["kv_dw_b"])         # (b,h,w,2dim) bf16

    # Attention (all heads, k/v sliced in-kernel) + fused project_out.
    out = attention_project(q2.reshape(b, hw, dim),
                            kv2.reshape(b, hw, 2 * dim),
                            params["po_w"], params["po_b"],
                            params["temperature"].reshape(num_head),
                            num_head)                              # (b,hw,dim) f32

    out = out.reshape(b, h, w, dim)
    return jnp.transpose(out, (0, 3, 1, 2))                        # back to NCHW


# ----------------------------------------------------------------------------
# Pure-JAX (f32) reference for validation
# ----------------------------------------------------------------------------

def reference_forward(x, y, params, num_head):
    b, dim, h, w = x.shape
    xl = jnp.transpose(x, (0, 2, 3, 1))
    yl = jnp.transpose(y, (0, 2, 3, 1))

    def c1(t, W, bvec):
        return jnp.einsum("bhwc,cd->bhwd", t, W) + bvec

    def dw(t, W, bvec):
        C = t.shape[-1]
        rhs = W.reshape(3, 3, 1, C)
        out = jax.lax.conv_general_dilated(
            t, rhs, (1, 1), "SAME",
            dimension_numbers=("NHWC", "HWIO", "NHWC"),
            feature_group_count=C)
        return out + bvec

    q = dw(c1(xl, params["q_w"], params["q_b"]),
           params["q_dw_w"], params["q_dw_b"])
    kv = dw(c1(yl, params["kv_w"], params["kv_b"]),
            params["kv_dw_w"], params["kv_dw_b"])
    k_, v_ = kv[..., :dim], kv[..., dim:]

    def heads(t):
        t = jnp.transpose(t.reshape(b, h * w, dim), (0, 2, 1))
        return t.reshape(b, num_head, dim // num_head, h * w)

    qh, kh, vh = heads(q), heads(k_), heads(v_)

    def l2n(t):
        return t / jnp.maximum(
            jnp.sqrt(jnp.sum(t * t, axis=-1, keepdims=True)), 1e-12)

    qh, kh = l2n(qh), l2n(kh)
    attn = jnp.einsum("bhcd,bhed->bhce", qh, kh) * params["temperature"][None]
    attn = jax.nn.softmax(attn, axis=-1)
    out = jnp.einsum("bhce,bhed->bhcd", attn, vh)
    out = jnp.transpose(out.reshape(b, dim, h * w), (0, 2, 1))
    out = jnp.einsum("bnc,cd->bnd", out, params["po_w"]) + params["po_b"]
    return jnp.transpose(out.reshape(b, h, w, dim), (0, 3, 1, 2))


# ----------------------------------------------------------------------------
# Parameter init + main
# ----------------------------------------------------------------------------

def init_params(key, dim, num_head):
    ks = jax.random.split(key, 10)
    s = 0.1
    return {
        "q_w": jax.random.normal(ks[0], (dim, dim), jnp.float32) * s,
        "q_b": jax.random.normal(ks[1], (dim,), jnp.float32) * s,
        "q_dw_w": jax.random.normal(ks[2], (3, 3, dim), jnp.float32) * s,
        "q_dw_b": jax.random.normal(ks[3], (dim,), jnp.float32) * s,
        "kv_w": jax.random.normal(ks[4], (dim, 2 * dim), jnp.float32) * s,
        "kv_b": jax.random.normal(ks[5], (2 * dim,), jnp.float32) * s,
        "kv_dw_w": jax.random.normal(ks[6], (3, 3, 2 * dim), jnp.float32) * s,
        "kv_dw_b": jax.random.normal(ks[7], (2 * dim,), jnp.float32) * s,
        "po_w": jax.random.normal(ks[8], (dim, dim), jnp.float32) * s,
        "po_b": jax.random.normal(ks[9], (dim,), jnp.float32) * s,
        "temperature": jnp.ones((num_head, 1, 1), jnp.float32),
    }


if __name__ == "__main__":
    b, dim, h, w = 2, 16, 16, 16
    num_head = 4

    key = jax.random.PRNGKey(0)
    kx, ky, kp = jax.random.split(key, 3)
    x = jax.random.normal(kx, (b, dim, h, w), jnp.float32)
    y = jax.random.normal(ky, (b, dim, h, w), jnp.float32)
    params = init_params(kp, dim, num_head)

    out = jax.block_until_ready(chanel_cross_attention(x, y, params, num_head))
    ref = jax.block_until_ready(reference_forward(x, y, params, num_head))

    assert out.shape == (b, dim, h, w), out.shape
    # bf16 MXU operands + bf16 storage of the q/kv intermediates -> compare
    # against the pure-f32 reference with a correspondingly relaxed tolerance.
    max_err = float(jnp.max(jnp.abs(out - ref)))
    assert jnp.allclose(out, ref, atol=2e-2, rtol=2e-2), max_err

    print("KERNEL_OK")
</pallas_src>

<mosaic_0001>
module attributes {stable_mosaic.version = 11 : i64} {
  func.func @_pw_dw_kernel(%arg0: i32, %arg1: memref<1x16x16x16xf32, #tpu.memory_space<vmem>>, %arg2: memref<16x16xf32, #tpu.memory_space<vmem>>, %arg3: memref<1x16xf32, #tpu.memory_space<vmem>>, %arg4: memref<9x16xf32, #tpu.memory_space<vmem>>, %arg5: memref<1x16xf32, #tpu.memory_space<vmem>>, %arg6: memref<1x16x16x16xbf16, #tpu.memory_space<vmem>>, %arg7: memref<18x18x16xf32, #tpu.memory_space<vmem>>) attributes {dimension_semantics = [#tpu.dimension_semantics<parallel>], iteration_bounds = array<i64: 2>, scalar_prefetch = 0 : i64, scratch_operands = 1 : i64, tpu.core_type = #tpu.core_type<tc>, window_params = [{transform_indices = @transform_0, window_bounds = array<i64: 1, 16, 16, 16>}, {pipeline_mode = #tpu.pipeline_mode<synchronous>, transform_indices = @transform_1, window_bounds = array<i64: 16, 16>}, {pipeline_mode = #tpu.pipeline_mode<synchronous>, transform_indices = @transform_2, window_bounds = array<i64: 1, 16>}, {pipeline_mode = #tpu.pipeline_mode<synchronous>, transform_indices = @transform_3, window_bounds = array<i64: 9, 16>}, {pipeline_mode = #tpu.pipeline_mode<synchronous>, transform_indices = @transform_4, window_bounds = array<i64: 1, 16>}, {transform_indices = @transform_5, window_bounds = array<i64: 1, 16, 16, 16>}]} {
    %c0 = arith.constant 0 : index
    %c0_0 = arith.constant 0 : index
    %c0_1 = arith.constant 0 : index
    %c0_2 = arith.constant 0 : index
    %0 = vector.load %arg1[%c0, %c0_0, %c0_1, %c0_2] : memref<1x16x16x16xf32, #tpu.memory_space<vmem>>, vector<1x16x16x16xf32>
    %1 = vector.shape_cast %0 : vector<1x16x16x16xf32> to vector<16x16x16xf32>
    %2 = vector.shape_cast %1 : vector<16x16x16xf32> to vector<256x16xf32>
    %3 = arith.truncf %2 : vector<256x16xf32> to vector<256x16xbf16>
    %c0_3 = arith.constant 0 : index
    %c0_4 = arith.constant 0 : index
    %4 = vector.load %arg2[%c0_3, %c0_4] : memref<16x16xf32, #tpu.memory_space<vmem>>, vector<16x16xf32>
    %5 = arith.truncf %4 : vector<16x16xf32> to vector<16x16xbf16>
    %cst = arith.constant dense<0.000000e+00> : vector<256x16xf32>
    %6 = tpu.matmul %3, %5, %cst {dimension_numbers = #tpu.dot_dimension_numbers<[1], [0], [0], [1], [0, 0, 1, 1], [], []>} : vector<256x16xbf16>, vector<16x16xbf16>, vector<256x16xf32> -> vector<256x16xf32>
    %c0_5 = arith.constant 0 : index
    %c0_6 = arith.constant 0 : index
    %7 = vector.load %arg3[%c0_5, %c0_6] : memref<1x16xf32, #tpu.memory_space<vmem>>, vector<1x16xf32>
    %8 = vector.broadcast %7 : vector<1x16xf32> to vector<256x16xf32>
    %9 = arith.addf %6, %8 : vector<256x16xf32>
    %cst_7 = arith.constant 0.000000e+00 : f32
    %10 = vector.broadcast %cst_7 : f32 to vector<18x18x16xf32>
    %c0_8 = arith.constant 0 : index
    %c0_9 = arith.constant 0 : index
    %c0_10 = arith.constant 0 : index
    %11 = vector.load %arg7[%c0_8, %c0_9, %c0_10] : memref<18x18x16xf32, #tpu.memory_space<vmem>>, vector<18x18x16xf32>
    tpu.vector_store %arg7[%c0_8, %c0_9, %c0_10], %10 {strides = array<i32>} : memref<18x18x16xf32, #tpu.memory_space<vmem>>, vector<18x18x16xf32>,
    %12 = vector.shape_cast %9 : vector<256x16xf32> to vector<16x16x16xf32>
    %c1 = arith.constant 1 : index
    %c1_11 = arith.constant 1 : index
    %c0_12 = arith.constant 0 : index
    %13 = vector.load %arg7[%c1, %c1_11, %c0_12] : memref<18x18x16xf32, #tpu.memory_space<vmem>>, vector<16x16x16xf32>
    tpu.vector_store %arg7[%c1, %c1_11, %c0_12], %12 {strides = array<i32>} : memref<18x18x16xf32, #tpu.memory_space<vmem>>, vector<16x16x16xf32>,
    %c0_13 = arith.constant 0 : index
    %c0_14 = arith.constant 0 : index
    %c0_15 = arith.constant 0 : index
    %14 = vector.load %arg7[%c0_13, %c0_14, %c0_15] : memref<18x18x16xf32, #tpu.memory_space<vmem>>, vector<18x18x16xf32>
    %c0_16 = arith.constant 0 : index
    %c0_17 = arith.constant 0 : index
    %15 = vector.load %arg4[%c0_16, %c0_17] : memref<9x16xf32, #tpu.memory_space<vmem>>, vector<9x16xf32>
    %cst_18 = arith.constant 0.000000e+00 : f32
    %16 = vector.broadcast %cst_18 : f32 to vector<16x16x16xf32>
    %17 = vector.extract_strided_slice %14 {offsets = [0, 0, 0], sizes = [16, 16, 16], strides = [1, 1, 1]} : vector<18x18x16xf32> to vector<16x16x16xf32>
    %18 = vector.extract_strided_slice %15 {offsets = [0, 0], sizes = [1, 16], strides = [1, 1]} : vector<9x16xf32> to vector<1x16xf32>
    %19 = vector.shape_cast %18 : vector<1x16xf32> to vector<1x1x16xf32>
    %20 = vector.broadcast %19 : vector<1x1x16xf32> to vector<16x16x16xf32>
    %21 = arith.mulf %17, %20 : vector<16x16x16xf32>
    %22 = arith.addf %16, %21 : vector<16x16x16xf32>
    %23 = vector.extract_strided_slice %14 {offsets = [0, 1, 0], sizes = [16, 16, 16], strides = [1, 1, 1]} : vector<18x18x16xf32> to vector<16x16x16xf32>
    %24 = vector.extract_strided_slice %15 {offsets = [1, 0], sizes = [1, 16], strides = [1, 1]} : vector<9x16xf32> to vector<1x16xf32>
    %25 = vector.shape_cast %24 : vector<1x16xf32> to vector<1x1x16xf32>
    %26 = vector.broadcast %25 : vector<1x1x16xf32> to vector<16x16x16xf32>
    %27 = arith.mulf %23, %26 : vector<16x16x16xf32>
    %28 = arith.addf %22, %27 : vector<16x16x16xf32>
    %29 = vector.extract_strided_slice %14 {offsets = [0, 2, 0], sizes = [16, 16, 16], strides = [1, 1, 1]} : vector<18x18x16xf32> to vector<16x16x16xf32>
    %30 = vector.extract_strided_slice %15 {offsets = [2, 0], sizes = [1, 16], strides = [1, 1]} : vector<9x16xf32> to vector<1x16xf32>
    %31 = vector.shape_cast %30 : vector<1x16xf32> to vector<1x1x16xf32>
    %32 = vector.broadcast %31 : vector<1x1x16xf32> to vector<16x16x16xf32>
    %33 = arith.mulf %29, %32 : vector<16x16x16xf32>
    %34 = arith.addf %28, %33 : vector<16x16x16xf32>
    %35 = vector.extract_strided_slice %14 {offsets = [1, 0, 0], sizes = [16, 16, 16], strides = [1, 1, 1]} : vector<18x18x16xf32> to vector<16x16x16xf32>
    %36 = vector.extract_strided_slice %15 {offsets = [3, 0], sizes = [1, 16], strides = [1, 1]} : vector<9x16xf32> to vector<1x16xf32>
    %37 = vector.shape_cast %36 : vector<1x16xf32> to vector<1x1x16xf32>
    %38 = vector.broadcast %37 : vector<1x1x16xf32> to vector<16x16x16xf32>
    %39 = arith.mulf %35, %38 : vector<16x16x16xf32>
    %40 = arith.addf %34, %39 : vector<16x16x16xf32>
    %41 = vector.extract_strided_slice %14 {offsets = [1, 1, 0], sizes = [16, 16, 16], strides = [1, 1, 1]} : vector<18x18x16xf32> to vector<16x16x16xf32>
    %42 = vector.extract_strided_slice %15 {offsets = [4, 0], sizes = [1, 16], strides = [1, 1]} : vector<9x16xf32> to vector<1x16xf32>
    %43 = vector.shape_cast %42 : vector<1x16xf32> to vector<1x1x16xf32>
    %44 = vector.broadcast %43 : vector<1x1x16xf32> to vector<16x16x16xf32>
    %45 = arith.mulf %41, %44 : vector<16x16x16xf32>
    %46 = arith.addf %40, %45 : vector<16x16x16xf32>
    %47 = vector.extract_strided_slice %14 {offsets = [1, 2, 0], sizes = [16, 16, 16], strides = [1, 1, 1]} : vector<18x18x16xf32> to vector<16x16x16xf32>
    %48 = vector.extract_strided_slice %15 {offsets = [5, 0], sizes = [1, 16], strides = [1, 1]} : vector<9x16xf32> to vector<1x16xf32>
    %49 = vector.shape_cast %48 : vector<1x16xf32> to vector<1x1x16xf32>
    %50 = vector.broadcast %49 : vector<1x1x16xf32> to vector<16x16x16xf32>
    %51 = arith.mulf %47, %50 : vector<16x16x16xf32>
    %52 = arith.addf %46, %51 : vector<16x16x16xf32>
    %53 = vector.extract_strided_slice %14 {offsets = [2, 0, 0], sizes = [16, 16, 16], strides = [1, 1, 1]} : vector<18x18x16xf32> to vector<16x16x16xf32>
    %54 = vector.extract_strided_slice %15 {offsets = [6, 0], sizes = [1, 16], strides = [1, 1]} : vector<9x16xf32> to vector<1x16xf32>
    %55 = vector.shape_cast %54 : vector<1x16xf32> to vector<1x1x16xf32>
    %56 = vector.broadcast %55 : vector<1x1x16xf32> to vector<16x16x16xf32>
    %57 = arith.mulf %53, %56 : vector<16x16x16xf32>
    %58 = arith.addf %52, %57 : vector<16x16x16xf32>
    %59 = vector.extract_strided_slice %14 {offsets = [2, 1, 0], sizes = [16, 16, 16], strides = [1, 1, 1]} : vector<18x18x16xf32> to vector<16x16x16xf32>
    %60 = vector.extract_strided_slice %15 {offsets = [7, 0], sizes = [1, 16], strides = [1, 1]} : vector<9x16xf32> to vector<1x16xf32>
    %61 = vector.shape_cast %60 : vector<1x16xf32> to vector<1x1x16xf32>
    %62 = vector.broadcast %61 : vector<1x1x16xf32> to vector<16x16x16xf32>
    %63 = arith.mulf %59, %62 : vector<16x16x16xf32>
    %64 = arith.addf %58, %63 : vector<16x16x16xf32>
    %65 = vector.extract_strided_slice %14 {offsets = [2, 2, 0], sizes = [16, 16, 16], strides = [1, 1, 1]} : vector<18x18x16xf32> to vector<16x16x16xf32>
    %66 = vector.extract_strided_slice %15 {offsets = [8, 0], sizes = [1, 16], strides = [1, 1]} : vector<9x16xf32> to vector<1x16xf32>
    %67 = vector.shape_cast %66 : vector<1x16xf32> to vector<1x1x16xf32>
    %68 = vector.broadcast %67 : vector<1x1x16xf32> to vector<16x16x16xf32>
    %69 = arith.mulf %65, %68 : vector<16x16x16xf32>
    %70 = arith.addf %64, %69 : vector<16x16x16xf32>
    %c0_19 = arith.constant 0 : index
    %c0_20 = arith.constant 0 : index
    %71 = vector.load %arg5[%c0_19, %c0_20] : memref<1x16xf32, #tpu.memory_space<vmem>>, vector<1x16xf32>
    %72 = vector.shape_cast %71 : vector<1x16xf32> to vector<1x1x16xf32>
    %73 = vector.broadcast %72 : vector<1x1x16xf32> to vector<16x16x16xf32>
    %74 = arith.addf %70, %73 : vector<16x16x16xf32>
    %75 = arith.truncf %74 : vector<16x16x16xf32> to vector<16x16x16xbf16>
    %c0_21 = arith.constant 0 : index
    %c0_22 = arith.constant 0 : index
    %c0_23 = arith.constant 0 : index
    %c0_24 = arith.constant 0 : index
    %76 = vector.load %arg6[%c0_21, %c0_22, %c0_23, %c0_24] : memref<1x16x16x16xbf16, #tpu.memory_space<vmem>>, vector<1x16x16x16xbf16>
    %77 = vector.shape_cast %76 : vector<1x16x16x16xbf16> to vector<16x16x16xbf16>
    %78 = vector.shape_cast %75 : vector<16x16x16xbf16> to vector<1x16x16x16xbf16>
    tpu.vector_store %arg6[%c0_21, %c0_22, %c0_23, %c0_24], %78 {strides = array<i32>} : memref<1x16x16x16xbf16, #tpu.memory_space<vmem>>, vector<1x16x16x16xbf16>,
    return
  }
  func.func @transform_0(%arg0: i32) -> (i32, i32, i32, i32) {
    %c0_i32 = arith.constant 0 : i32
    %c0_i32_0 = arith.constant 0 : i32
    %c0_i32_1 = arith.constant 0 : i32
    %c0_i32_2 = arith.constant 0 : i32
    return %arg0, %c0_i32, %c0_i32_0, %c0_i32_1 : i32, i32, i32, i32
  }
  func.func @transform_1(%arg0: i32) -> (i32, i32) {
    %c0_i32 = arith.constant 0 : i32
    %c0_i32_0 = arith.constant 0 : i32
    %c0_i32_1 = arith.constant 0 : i32
    return %c0_i32, %c0_i32_0 : i32, i32
  }
  func.func @transform_2(%arg0: i32) -> (i32, i32) {
    %c0_i32 = arith.constant 0 : i32
    %c0_i32_0 = arith.constant 0 : i32
    %c0_i32_1 = arith.constant 0 : i32
    return %c0_i32, %c0_i32_0 : i32, i32
  }
  func.func @transform_3(%arg0: i32) -> (i32, i32) {
    %c0_i32 = arith.constant 0 : i32
    %c0_i32_0 = arith.constant 0 : i32
    %c0_i32_1 = arith.constant 0 : i32
    return %c0_i32, %c0_i32_0 : i32, i32
  }
  func.func @transform_4(%arg0: i32) -> (i32, i32) {
    %c0_i32 = arith.constant 0 : i32
    %c0_i32_0 = arith.constant 0 : i32
    %c0_i32_1 = arith.constant 0 : i32
    return %c0_i32, %c0_i32_0 : i32, i32
  }
  func.func @transform_5(%arg0: i32) -> (i32, i32, i32, i32) {
    %c0_i32 = arith.constant 0 : i32
    %c0_i32_0 = arith.constant 0 : i32
    %c0_i32_1 = arith.constant 0 : i32
    %c0_i32_2 = arith.constant 0 : i32
    return %arg0, %c0_i32, %c0_i32_0, %c0_i32_1 : i32, i32, i32, i32
  }
}

module attributes {stable_mosaic.version = 11 : i64} {
  func.func @_pw_dw_kernel(%arg0: i32, %arg1: memref<1x16x16x16xf32, #tpu.memory_space<vmem>>, %arg2: memref<16x32xf32, #tpu.memory_space<vmem>>, %arg3: memref<1x32xf32, #tpu.memory_space<vmem>>, %arg4: memref<9x32xf32, #tpu.memory_space<vmem>>, %arg5: memref<1x32xf32, #tpu.memory_space<vmem>>, %arg6: memref<1x16x16x32xbf16, #tpu.memory_space<vmem>>, %arg7: memref<18x18x32xf32, #tpu.memory_space<vmem>>) attributes {dimension_semantics = [#tpu.dimension_semantics<parallel>], iteration_bounds = array<i64: 2>, scalar_prefetch = 0 : i64, scratch_operands = 1 : i64, tpu.core_type = #tpu.core_type<tc>, window_params = [{transform_indices = @transform_0, window_bounds = array<i64: 1, 16, 16, 16>}, {pipeline_mode = #tpu.pipeline_mode<synchronous>, transform_indices = @transform_1, window_bounds = array<i64: 16, 32>}, {pipeline_mode = #tpu.pipeline_mode<synchronous>, transform_indices = @transform_2, window_bounds = array<i64: 1, 32>}, {pipeline_mode = #tpu.pipeline_mode<synchronous>, transform_indices = @transform_3, window_bounds = array<i64: 9, 32>}, {pipeline_mode = #tpu.pipeline_mode<synchronous>, transform_indices = @transform_4, window_bounds = array<i64: 1, 32>}, {transform_indices = @transform_5, window_bounds = array<i64: 1, 16, 16, 32>}]} {
    %c0 = arith.constant 0 : index
    %c0_0 = arith.constant 0 : index
    %c0_1 = arith.constant 0 : index
    %c0_2 = arith.constant 0 : index
    %0 = vector.load %arg1[%c0, %c0_0, %c0_1, %c0_2] : memref<1x16x16x16xf32, #tpu.memory_space<vmem>>, vector<1x16x16x16xf32>
    %1 = vector.shape_cast %0 : vector<1x16x16x16xf32> to vector<16x16x16xf32>
    %2 = vector.shape_cast %1 : vector<16x16x16xf32> to vector<256x16xf32>
    %3 = arith.truncf %2 : vector<256x16xf32> to vector<256x16xbf16>
    %c0_3 = arith.constant 0 : index
    %c0_4 = arith.constant 0 : index
    %4 = vector.load %arg2[%c0_3, %c0_4] : memref<16x32xf32, #tpu.memory_space<vmem>>, vector<16x32xf32>
    %5 = arith.truncf %4 : vector<16x32xf32> to vector<16x32xbf16>
    %cst = arith.constant dense<0.000000e+00> : vector<256x32xf32>
    %6 = tpu.matmul %3, %5, %cst {dimension_numbers = #tpu.dot_dimension_numbers<[1], [0], [0], [1], [0, 0, 1, 1], [], []>} : vector<256x16xbf16>, vector<16x32xbf16>, vector<256x32xf32> -> vector<256x32xf32>
    %c0_5 = arith.constant 0 : index
    %c0_6 = arith.constant 0 : index
    %7 = vector.load %arg3[%c0_5, %c0_6] : memref<1x32xf32, #tpu.memory_space<vmem>>, vector<1x32xf32>
    %8 = vector.broadcast %7 : vector<1x32xf32> to vector<256x32xf32>
    %9 = arith.addf %6, %8 : vector<256x32xf32>
    %cst_7 = arith.constant 0.000000e+00 : f32
    %10 = vector.broadcast %cst_7 : f32 to vector<18x18x32xf32>
    %c0_8 = arith.constant 0 : index
    %c0_9 = arith.constant 0 : index
    %c0_10 = arith.constant 0 : index
    %11 = vector.load %arg7[%c0_8, %c0_9, %c0_10] : memref<18x18x32xf32, #tpu.memory_space<vmem>>, vector<18x18x32xf32>
    tpu.vector_store %arg7[%c0_8, %c0_9, %c0_10], %10 {strides = array<i32>} : memref<18x18x32xf32, #tpu.memory_space<vmem>>, vector<18x18x32xf32>,
    %12 = vector.shape_cast %9 : vector<256x32xf32> to vector<16x16x32xf32>
    %c1 = arith.constant 1 : index
    %c1_11 = arith.constant 1 : index
    %c0_12 = arith.constant 0 : index
    %13 = vector.load %arg7[%c1, %c1_11, %c0_12] : memref<18x18x32xf32, #tpu.memory_space<vmem>>, vector<16x16x32xf32>
    tpu.vector_store %arg7[%c1, %c1_11, %c0_12], %12 {strides = array<i32>} : memref<18x18x32xf32, #tpu.memory_space<vmem>>, vector<16x16x32xf32>,
    %c0_13 = arith.constant 0 : index
    %c0_14 = arith.constant 0 : index
    %c0_15 = arith.constant 0 : index
    %14 = vector.load %arg7[%c0_13, %c0_14, %c0_15] : memref<18x18x32xf32, #tpu.memory_space<vmem>>, vector<18x18x32xf32>
    %c0_16 = arith.constant 0 : index
    %c0_17 = arith.constant 0 : index
    %15 = vector.load %arg4[%c0_16, %c0_17] : memref<9x32xf32, #tpu.memory_space<vmem>>, vector<9x32xf32>
    %cst_18 = arith.constant 0.000000e+00 : f32
    %16 = vector.broadcast %cst_18 : f32 to vector<16x16x32xf32>
    %17 = vector.extract_strided_slice %14 {offsets = [0, 0, 0], sizes = [16, 16, 32], strides = [1, 1, 1]} : vector<18x18x32xf32> to vector<16x16x32xf32>
    %18 = vector.extract_strided_slice %15 {offsets = [0, 0], sizes = [1, 32], strides = [1, 1]} : vector<9x32xf32> to vector<1x32xf32>
    %19 = vector.shape_cast %18 : vector<1x32xf32> to vector<1x1x32xf32>
    %20 = vector.broadcast %19 : vector<1x1x32xf32> to vector<16x16x32xf32>
    %21 = arith.mulf %17, %20 : vector<16x16x32xf32>
    %22 = arith.addf %16, %21 : vector<16x16x32xf32>
    %23 = vector.extract_strided_slice %14 {offsets = [0, 1, 0], sizes = [16, 16, 32], strides = [1, 1, 1]} : vector<18x18x32xf32> to vector<16x16x32xf32>
    %24 = vector.extract_strided_slice %15 {offsets = [1, 0], sizes = [1, 32], strides = [1, 1]} : vector<9x32xf32> to vector<1x32xf32>
    %25 = vector.shape_cast %24 : vector<1x32xf32> to vector<1x1x32xf32>
    %26 = vector.broadcast %25 : vector<1x1x32xf32> to vector<16x16x32xf32>
    %27 = arith.mulf %23, %26 : vector<16x16x32xf32>
    %28 = arith.addf %22, %27 : vector<16x16x32xf32>
    %29 = vector.extract_strided_slice %14 {offsets = [0, 2, 0], sizes = [16, 16, 32], strides = [1, 1, 1]} : vector<18x18x32xf32> to vector<16x16x32xf32>
    %30 = vector.extract_strided_slice %15 {offsets = [2, 0], sizes = [1, 32], strides = [1, 1]} : vector<9x32xf32> to vector<1x32xf32>
    %31 = vector.shape_cast %30 : vector<1x32xf32> to vector<1x1x32xf32>
    %32 = vector.broadcast %31 : vector<1x1x32xf32> to vector<16x16x32xf32>
    %33 = arith.mulf %29, %32 : vector<16x16x32xf32>
    %34 = arith.addf %28, %33 : vector<16x16x32xf32>
    %35 = vector.extract_strided_slice %14 {offsets = [1, 0, 0], sizes = [16, 16, 32], strides = [1, 1, 1]} : vector<18x18x32xf32> to vector<16x16x32xf32>
    %36 = vector.extract_strided_slice %15 {offsets = [3, 0], sizes = [1, 32], strides = [1, 1]} : vector<9x32xf32> to vector<1x32xf32>
    %37 = vector.shape_cast %36 : vector<1x32xf32> to vector<1x1x32xf32>
    %38 = vector.broadcast %37 : vector<1x1x32xf32> to vector<16x16x32xf32>
    %39 = arith.mulf %35, %38 : vector<16x16x32xf32>
    %40 = arith.addf %34, %39 : vector<16x16x32xf32>
    %41 = vector.extract_strided_slice %14 {offsets = [1, 1, 0], sizes = [16, 16, 32], strides = [1, 1, 1]} : vector<18x18x32xf32> to vector<16x16x32xf32>
    %42 = vector.extract_strided_slice %15 {offsets = [4, 0], sizes = [1, 32], strides = [1, 1]} : vector<9x32xf32> to vector<1x32xf32>
    %43 = vector.shape_cast %42 : vector<1x32xf32> to vector<1x1x32xf32>
    %44 = vector.broadcast %43 : vector<1x1x32xf32> to vector<16x16x32xf32>
    %45 = arith.mulf %41, %44 : vector<16x16x32xf32>
    %46 = arith.addf %40, %45 : vector<16x16x32xf32>
    %47 = vector.extract_strided_slice %14 {offsets = [1, 2, 0], sizes = [16, 16, 32], strides = [1, 1, 1]} : vector<18x18x32xf32> to vector<16x16x32xf32>
    %48 = vector.extract_strided_slice %15 {offsets = [5, 0], sizes = [1, 32], strides = [1, 1]} : vector<9x32xf32> to vector<1x32xf32>
    %49 = vector.shape_cast %48 : vector<1x32xf32> to vector<1x1x32xf32>
    %50 = vector.broadcast %49 : vector<1x1x32xf32> to vector<16x16x32xf32>
    %51 = arith.mulf %47, %50 : vector<16x16x32xf32>
    %52 = arith.addf %46, %51 : vector<16x16x32xf32>
    %53 = vector.extract_strided_slice %14 {offsets = [2, 0, 0], sizes = [16, 16, 32], strides = [1, 1, 1]} : vector<18x18x32xf32> to vector<16x16x32xf32>
    %54 = vector.extract_strided_slice %15 {offsets = [6, 0], sizes = [1, 32], strides = [1, 1]} : vector<9x32xf32> to vector<1x32xf32>
    %55 = vector.shape_cast %54 : vector<1x32xf32> to vector<1x1x32xf32>
    %56 = vector.broadcast %55 : vector<1x1x32xf32> to vector<16x16x32xf32>
    %57 = arith.mulf %53, %56 : vector<16x16x32xf32>
    %58 = arith.addf %52, %57 : vector<16x16x32xf32>
    %59 = vector.extract_strided_slice %14 {offsets = [2, 1, 0], sizes = [16, 16, 32], strides = [1, 1, 1]} : vector<18x18x32xf32> to vector<16x16x32xf32>
    %60 = vector.extract_strided_slice %15 {offsets = [7, 0], sizes = [1, 32], strides = [1, 1]} : vector<9x32xf32> to vector<1x32xf32>
    %61 = vector.shape_cast %60 : vector<1x32xf32> to vector<1x1x32xf32>
    %62 = vector.broadcast %61 : vector<1x1x32xf32> to vector<16x16x32xf32>
    %63 = arith.mulf %59, %62 : vector<16x16x32xf32>
    %64 = arith.addf %58, %63 : vector<16x16x32xf32>
    %65 = vector.extract_strided_slice %14 {offsets = [2, 2, 0], sizes = [16, 16, 32], strides = [1, 1, 1]} : vector<18x18x32xf32> to vector<16x16x32xf32>
    %66 = vector.extract_strided_slice %15 {offsets = [8, 0], sizes = [1, 32], strides = [1, 1]} : vector<9x32xf32> to vector<1x32xf32>
    %67 = vector.shape_cast %66 : vector<1x32xf32> to vector<1x1x32xf32>
    %68 = vector.broadcast %67 : vector<1x1x32xf32> to vector<16x16x32xf32>
    %69 = arith.mulf %65, %68 : vector<16x16x32xf32>
    %70 = arith.addf %64, %69 : vector<16x16x32xf32>
    %c0_19 = arith.constant 0 : index
    %c0_20 = arith.constant 0 : index
    %71 = vector.load %arg5[%c0_19, %c0_20] : memref<1x32xf32, #tpu.memory_space<vmem>>, vector<1x32xf32>
    %72 = vector.shape_cast %71 : vector<1x32xf32> to vector<1x1x32xf32>
    %73 = vector.broadcast %72 : vector<1x1x32xf32> to vector<16x16x32xf32>
    %74 = arith.addf %70, %73 : vector<16x16x32xf32>
    %75 = arith.truncf %74 : vector<16x16x32xf32> to vector<16x16x32xbf16>
    %c0_21 = arith.constant 0 : index
    %c0_22 = arith.constant 0 : index
    %c0_23 = arith.constant 0 : index
    %c0_24 = arith.constant 0 : index
    %76 = vector.load %arg6[%c0_21, %c0_22, %c0_23, %c0_24] : memref<1x16x16x32xbf16, #tpu.memory_space<vmem>>, vector<1x16x16x32xbf16>
    %77 = vector.shape_cast %76 : vector<1x16x16x32xbf16> to vector<16x16x32xbf16>
    %78 = vector.shape_cast %75 : vector<16x16x32xbf16> to vector<1x16x16x32xbf16>
    tpu.vector_store %arg6[%c0_21, %c0_22, %c0_23, %c0_24], %78 {strides = array<i32>} : memref<1x16x16x32xbf16, #tpu.memory_space<vmem>>, vector<1x16x16x32xbf16>,
    return
  }
  func.func @transform_0(%arg0: i32) -> (i32, i32, i32, i32) {
    %c0_i32 = arith.constant 0 : i32
    %c0_i32_0 = arith.constant 0 : i32
    %c0_i32_1 = arith.constant 0 : i32
    %c0_i32_2 = arith.constant 0 : i32
    return %arg0, %c0_i32, %c0_i32_0, %c0_i32_1 : i32, i32, i32, i32
  }
  func.func @transform_1(%arg0: i32) -> (i32, i32) {
    %c0_i32 = arith.constant 0 : i32
    %c0_i32_0 = arith.constant 0 : i32
    %c0_i32_1 = arith.constant 0 : i32
    return %c0_i32, %c0_i32_0 : i32, i32
  }
  func.func @transform_2(%arg0: i32) -> (i32, i32) {
    %c0_i32 = arith.constant 0 : i32
    %c0_i32_0 = arith.constant 0 : i32
    %c0_i32_1 = arith.constant 0 : i32
    return %c0_i32, %c0_i32_0 : i32, i32
  }
  func.func @transform_3(%arg0: i32) -> (i32, i32) {
    %c0_i32 = arith.constant 0 : i32
    %c0_i32_0 = arith.constant 0 : i32
    %c0_i32_1 = arith.constant 0 : i32
    return %c0_i32, %c0_i32_0 : i32, i32
  }
  func.func @transform_4(%arg0: i32) -> (i32, i32) {
    %c0_i32 = arith.constant 0 : i32
    %c0_i32_0 = arith.constant 0 : i32
    %c0_i32_1 = arith.constant 0 : i32
    return %c0_i32, %c0_i32_0 : i32, i32
  }
  func.func @transform_5(%arg0: i32) -> (i32, i32, i32, i32) {
    %c0_i32 = arith.constant 0 : i32
    %c0_i32_0 = arith.constant 0 : i32
    %c0_i32_1 = arith.constant 0 : i32
    %c0_i32_2 = arith.constant 0 : i32
    return %arg0, %c0_i32, %c0_i32_0, %c0_i32_1 : i32, i32, i32, i32
  }
}

module attributes {stable_mosaic.version = 11 : i64} {
  func.func @_attn_proj_kernel(%arg0: i32, %arg1: memref<4xf32, #tpu.memory_space<smem>>, %arg2: memref<1x256x16xbf16, #tpu.memory_space<vmem>>, %arg3: memref<1x256x32xbf16, #tpu.memory_space<vmem>>, %arg4: memref<16x16xf32, #tpu.memory_space<vmem>>, %arg5: memref<1x16xf32, #tpu.memory_space<vmem>>, %arg6: memref<1x256x16xf32, #tpu.memory_space<vmem>>) attributes {dimension_semantics = [#tpu.dimension_semantics<parallel>], iteration_bounds = array<i64: 2>, scalar_prefetch = 0 : i64, scratch_operands = 0 : i64, tpu.core_type = #tpu.core_type<tc>, window_params = [{transform_indices = @transform_0, window_bounds = array<i64: 4>}, {transform_indices = @transform_1, window_bounds = array<i64: 1, 256, 16>}, {transform_indices = @transform_2, window_bounds = array<i64: 1, 256, 32>}, {pipeline_mode = #tpu.pipeline_mode<synchronous>, transform_indices = @transform_3, window_bounds = array<i64: 16, 16>}, {pipeline_mode = #tpu.pipeline_mode<synchronous>, transform_indices = @transform_4, window_bounds = array<i64: 1, 16>}, {transform_indices = @transform_5, window_bounds = array<i64: 1, 256, 16>}]} {
    %c0 = arith.constant 0 : index
    %c0_0 = arith.constant 0 : index
    %c0_1 = arith.constant 0 : index
    %0 = vector.load %arg2[%c0, %c0_0, %c0_1] : memref<1x256x16xbf16, #tpu.memory_space<vmem>>, vector<1x256x16xbf16>
    %1 = vector.shape_cast %0 : vector<1x256x16xbf16> to vector<256x16xbf16>
    %c0_2 = arith.constant 0 : index
    %c0_3 = arith.constant 0 : index
    %c0_4 = arith.constant 0 : index
    %2 = vector.load %arg3[%c0_2, %c0_3, %c0_4] : memref<1x256x32xbf16, #tpu.memory_space<vmem>>, vector<1x256x32xbf16>
    %3 = vector.shape_cast %2 : vector<1x256x32xbf16> to vector<256x32xbf16>
    %4 = vector.extract_strided_slice %1 {offsets = [0, 0], sizes = [256, 4], strides = [1, 1]} : vector<256x16xbf16> to vector<256x4xbf16>
    %5 = vector.extract_strided_slice %3 {offsets = [0, 0], sizes = [256, 4], strides = [1, 1]} : vector<256x32xbf16> to vector<256x4xbf16>
    %6 = vector.extract_strided_slice %3 {offsets = [0, 16], sizes = [256, 4], strides = [1, 1]} : vector<256x32xbf16> to vector<256x4xbf16>
    %7 = arith.extf %4 : vector<256x4xbf16> to vector<256x4xf32>
    %8 = arith.extf %5 : vector<256x4xbf16> to vector<256x4xf32>
    %9 = arith.mulf %7, %7 : vector<256x4xf32>
    %cst = arith.constant dense<0.000000e+00> : vector<4xf32>
    %10 = vector.multi_reduction <add>, %9, %cst [0] : vector<256x4xf32> to vector<4xf32>
    %11 = vector.shape_cast %10 : vector<4xf32> to vector<1x4xf32>
    %cst_5 = arith.constant 1.000000e-24 : f32
    %12 = vector.broadcast %cst_5 : f32 to vector<1x4xf32>
    %13 = arith.maximumf %11, %12 : vector<1x4xf32>
    %14 = math.rsqrt %13 : vector<1x4xf32>
    %15 = arith.mulf %8, %8 : vector<256x4xf32>
    %cst_6 = arith.constant dense<0.000000e+00> : vector<4xf32>
    %16 = vector.multi_reduction <add>, %15, %cst_6 [0] : vector<256x4xf32> to vector<4xf32>
    %17 = vector.shape_cast %16 : vector<4xf32> to vector<1x4xf32>
    %cst_7 = arith.constant 1.000000e-24 : f32
    %18 = vector.broadcast %cst_7 : f32 to vector<1x4xf32>
    %19 = arith.maximumf %17, %18 : vector<1x4xf32>
    %20 = math.rsqrt %19 : vector<1x4xf32>
    %c0_8 = arith.constant 0 : index
    %21 = memref.load %arg1[%c0_8] : memref<4xf32, #tpu.memory_space<smem>>
    %22 = vector.broadcast %21 : f32 to vector<1x4xf32>
    %23 = arith.mulf %14, %22 : vector<1x4xf32>
    %24 = vector.broadcast %23 : vector<1x4xf32> to vector<256x4xf32>
    %25 = arith.mulf %7, %24 : vector<256x4xf32>
    %26 = arith.truncf %25 : vector<256x4xf32> to vector<256x4xbf16>
    %cst_9 = arith.constant dense<0.000000e+00> : vector<4x4xf32>
    %27 = tpu.matmul %26, %5, %cst_9 {dimension_numbers = #tpu.dot_dimension_numbers<[0], [0], [1], [1], [0, 1, 1, 1], [], []>} : vector<256x4xbf16>, vector<256x4xbf16>, vector<4x4xf32> -> vector<4x4xf32>
    %28 = vector.broadcast %20 : vector<1x4xf32> to vector<4x4xf32>
    %29 = arith.mulf %27, %28 : vector<4x4xf32>
    %cst_10 = arith.constant dense<0xFF800000> : vector<4xf32>
    %30 = vector.multi_reduction <maximumf>, %29, %cst_10 [1] : vector<4x4xf32> to vector<4xf32>
    %31 = vector.shape_cast %30 : vector<4xf32> to vector<4x1xf32>
    %32 = vector.broadcast %31 : vector<4x1xf32> to vector<4x4xf32>
    %33 = arith.subf %29, %32 : vector<4x4xf32>
    %34 = math.exp %33 : vector<4x4xf32>
    %cst_11 = arith.constant dense<0.000000e+00> : vector<4xf32>
    %35 = vector.multi_reduction <add>, %34, %cst_11 [1] : vector<4x4xf32> to vector<4xf32>
    %36 = vector.shape_cast %35 : vector<4xf32> to vector<4x1xf32>
    %37 = tpu.reciprocal %36 {approx = true} : vector<4x1xf32> -> vector<4x1xf32>
    %38 = vector.broadcast %37 : vector<4x1xf32> to vector<4x4xf32>
    %39 = arith.mulf %34, %38 : vector<4x4xf32>
    %40 = arith.truncf %39 : vector<4x4xf32> to vector<4x4xbf16>
    %cst_12 = arith.constant dense<0.000000e+00> : vector<256x4xf32>
    %41 = tpu.matmul %6, %40, %cst_12 {dimension_numbers = #tpu.dot_dimension_numbers<[1], [1], [0], [0], [0, 0, 1, 0], [], []>} : vector<256x4xbf16>, vector<4x4xbf16>, vector<256x4xf32> -> vector<256x4xf32>
    %42 = vector.extract_strided_slice %1 {offsets = [0, 4], sizes = [256, 4], strides = [1, 1]} : vector<256x16xbf16> to vector<256x4xbf16>
    %43 = vector.extract_strided_slice %3 {offsets = [0, 4], sizes = [256, 4], strides = [1, 1]} : vector<256x32xbf16> to vector<256x4xbf16>
    %44 = vector.extract_strided_slice %3 {offsets = [0, 20], sizes = [256, 4], strides = [1, 1]} : vector<256x32xbf16> to vector<256x4xbf16>
    %45 = arith.extf %42 : vector<256x4xbf16> to vector<256x4xf32>
    %46 = arith.extf %43 : vector<256x4xbf16> to vector<256x4xf32>
    %47 = arith.mulf %45, %45 : vector<256x4xf32>
    %cst_13 = arith.constant dense<0.000000e+00> : vector<4xf32>
    %48 = vector.multi_reduction <add>, %47, %cst_13 [0] : vector<256x4xf32> to vector<4xf32>
    %49 = vector.shape_cast %48 : vector<4xf32> to vector<1x4xf32>
    %cst_14 = arith.constant 1.000000e-24 : f32
    %50 = vector.broadcast %cst_14 : f32 to vector<1x4xf32>
    %51 = arith.maximumf %49, %50 : vector<1x4xf32>
    %52 = math.rsqrt %51 : vector<1x4xf32>
    %53 = arith.mulf %46, %46 : vector<256x4xf32>
    %cst_15 = arith.constant dense<0.000000e+00> : vector<4xf32>
    %54 = vector.multi_reduction <add>, %53, %cst_15 [0] : vector<256x4xf32> to vector<4xf32>
    %55 = vector.shape_cast %54 : vector<4xf32> to vector<1x4xf32>
    %cst_16 = arith.constant 1.000000e-24 : f32
    %56 = vector.broadcast %cst_16 : f32 to vector<1x4xf32>
    %57 = arith.maximumf %55, %56 : vector<1x4xf32>
    %58 = math.rsqrt %57 : vector<1x4xf32>
    %c1 = arith.constant 1 : index
    %59 = memref.load %arg1[%c1] : memref<4xf32, #tpu.memory_space<smem>>
    %60 = vector.broadcast %59 : f32 to vector<1x4xf32>
    %61 = arith.mulf %52, %60 : vector<1x4xf32>
    %62 = vector.broadcast %61 : vector<1x4xf32> to vector<256x4xf32>
    %63 = arith.mulf %45, %62 : vector<256x4xf32>
    %64 = arith.truncf %63 : vector<256x4xf32> to vector<256x4xbf16>
    %cst_17 = arith.constant dense<0.000000e+00> : vector<4x4xf32>
    %65 = tpu.matmul %64, %43, %cst_17 {dimension_numbers = #tpu.dot_dimension_numbers<[0], [0], [1], [1], [0, 1, 1, 1], [], []>} : vector<256x4xbf16>, vector<256x4xbf16>, vector<4x4xf32> -> vector<4x4xf32>
    %66 = vector.broadcast %58 : vector<1x4xf32> to vector<4x4xf32>
    %67 = arith.mulf %65, %66 : vector<4x4xf32>
    %cst_18 = arith.constant dense<0xFF800000> : vector<4xf32>
    %68 = vector.multi_reduction <maximumf>, %67, %cst_18 [1] : vector<4x4xf32> to vector<4xf32>
    %69 = vector.shape_cast %68 : vector<4xf32> to vector<4x1xf32>
    %70 = vector.broadcast %69 : vector<4x1xf32> to vector<4x4xf32>
    %71 = arith.subf %67, %70 : vector<4x4xf32>
    %72 = math.exp %71 : vector<4x4xf32>
    %cst_19 = arith.constant dense<0.000000e+00> : vector<4xf32>
    %73 = vector.multi_reduction <add>, %72, %cst_19 [1] : vector<4x4xf32> to vector<4xf32>
    %74 = vector.shape_cast %73 : vector<4xf32> to vector<4x1xf32>
    %75 = tpu.reciprocal %74 {approx = true} : vector<4x1xf32> -> vector<4x1xf32>
    %76 = vector.broadcast %75 : vector<4x1xf32> to vector<4x4xf32>
    %77 = arith.mulf %72, %76 : vector<4x4xf32>
    %78 = arith.truncf %77 : vector<4x4xf32> to vector<4x4xbf16>
    %cst_20 = arith.constant dense<0.000000e+00> : vector<256x4xf32>
    %79 = tpu.matmul %44, %78, %cst_20 {dimension_numbers = #tpu.dot_dimension_numbers<[1], [1], [0], [0], [0, 0, 1, 0], [], []>} : vector<256x4xbf16>, vector<4x4xbf16>, vector<256x4xf32> -> vector<256x4xf32>
    %80 = vector.extract_strided_slice %1 {offsets = [0, 8], sizes = [256, 4], strides = [1, 1]} : vector<256x16xbf16> to vector<256x4xbf16>
    %81 = vector.extract_strided_slice %3 {offsets = [0, 8], sizes = [256, 4], strides = [1, 1]} : vector<256x32xbf16> to vector<256x4xbf16>
    %82 = vector.extract_strided_slice %3 {offsets = [0, 24], sizes = [256, 4], strides = [1, 1]} : vector<256x32xbf16> to vector<256x4xbf16>
    %83 = arith.extf %80 : vector<256x4xbf16> to vector<256x4xf32>
    %84 = arith.extf %81 : vector<256x4xbf16> to vector<256x4xf32>
    %85 = arith.mulf %83, %83 : vector<256x4xf32>
    %cst_21 = arith.constant dense<0.000000e+00> : vector<4xf32>
    %86 = vector.multi_reduction <add>, %85, %cst_21 [0] : vector<256x4xf32> to vector<4xf32>
    %87 = vector.shape_cast %86 : vector<4xf32> to vector<1x4xf32>
    %cst_22 = arith.constant 1.000000e-24 : f32
    %88 = vector.broadcast %cst_22 : f32 to vector<1x4xf32>
    %89 = arith.maximumf %87, %88 : vector<1x4xf32>
    %90 = math.rsqrt %89 : vector<1x4xf32>
    %91 = arith.mulf %84, %84 : vector<256x4xf32>
    %cst_23 = arith.constant dense<0.000000e+00> : vector<4xf32>
    %92 = vector.multi_reduction <add>, %91, %cst_23 [0] : vector<256x4xf32> to vector<4xf32>
    %93 = vector.shape_cast %92 : vector<4xf32> to vector<1x4xf32>
    %cst_24 = arith.constant 1.000000e-24 : f32
    %94 = vector.broadcast %cst_24 : f32 to vector<1x4xf32>
    %95 = arith.maximumf %93, %94 : vector<1x4xf32>
    %96 = math.rsqrt %95 : vector<1x4xf32>
    %c2 = arith.constant 2 : index
    %97 = memref.load %arg1[%c2] : memref<4xf32, #tpu.memory_space<smem>>
    %98 = vector.broadcast %97 : f32 to vector<1x4xf32>
    %99 = arith.mulf %90, %98 : vector<1x4xf32>
    %100 = vector.broadcast %99 : vector<1x4xf32> to vector<256x4xf32>
    %101 = arith.mulf %83, %100 : vector<256x4xf32>
    %102 = arith.truncf %101 : vector<256x4xf32> to vector<256x4xbf16>
    %cst_25 = arith.constant dense<0.000000e+00> : vector<4x4xf32>
    %103 = tpu.matmul %102, %81, %cst_25 {dimension_numbers = #tpu.dot_dimension_numbers<[0], [0], [1], [1], [0, 1, 1, 1], [], []>} : vector<256x4xbf16>, vector<256x4xbf16>, vector<4x4xf32> -> vector<4x4xf32>
    %104 = vector.broadcast %96 : vector<1x4xf32> to vector<4x4xf32>
    %105 = arith.mulf %103, %104 : vector<4x4xf32>
    %cst_26 = arith.constant dense<0xFF800000> : vector<4xf32>
    %106 = vector.multi_reduction <maximumf>, %105, %cst_26 [1] : vector<4x4xf32> to vector<4xf32>
    %107 = vector.shape_cast %106 : vector<4xf32> to vector<4x1xf32>
    %108 = vector.broadcast %107 : vector<4x1xf32> to vector<4x4xf32>
    %109 = arith.subf %105, %108 : vector<4x4xf32>
    %110 = math.exp %109 : vector<4x4xf32>
    %cst_27 = arith.constant dense<0.000000e+00> : vector<4xf32>
    %111 = vector.multi_reduction <add>, %110, %cst_27 [1] : vector<4x4xf32> to vector<4xf32>
    %112 = vector.shape_cast %111 : vector<4xf32> to vector<4x1xf32>
    %113 = tpu.reciprocal %112 {approx = true} : vector<4x1xf32> -> vector<4x1xf32>
    %114 = vector.broadcast %113 : vector<4x1xf32> to vector<4x4xf32>
    %115 = arith.mulf %110, %114 : vector<4x4xf32>
    %116 = arith.truncf %115 : vector<4x4xf32> to vector<4x4xbf16>
    %cst_28 = arith.constant dense<0.000000e+00> : vector<256x4xf32>
    %117 = tpu.matmul %82, %116, %cst_28 {dimension_numbers = #tpu.dot_dimension_numbers<[1], [1], [0], [0], [0, 0, 1, 0], [], []>} : vector<256x4xbf16>, vector<4x4xbf16>, vector<256x4xf32> -> vector<256x4xf32>
    %118 = vector.extract_strided_slice %1 {offsets = [0, 12], sizes = [256, 4], strides = [1, 1]} : vector<256x16xbf16> to vector<256x4xbf16>
    %119 = vector.extract_strided_slice %3 {offsets = [0, 12], sizes = [256, 4], strides = [1, 1]} : vector<256x32xbf16> to vector<256x4xbf16>
    %120 = vector.extract_strided_slice %3 {offsets = [0, 28], sizes = [256, 4], strides = [1, 1]} : vector<256x32xbf16> to vector<256x4xbf16>
    %121 = arith.extf %118 : vector<256x4xbf16> to vector<256x4xf32>
    %122 = arith.extf %119 : vector<256x4xbf16> to vector<256x4xf32>
    %123 = arith.mulf %121, %121 : vector<256x4xf32>
    %cst_29 = arith.constant dense<0.000000e+00> : vector<4xf32>
    %124 = vector.multi_reduction <add>, %123, %cst_29 [0] : vector<256x4xf32> to vector<4xf32>
    %125 = vector.shape_cast %124 : vector<4xf32> to vector<1x4xf32>
    %cst_30 = arith.constant 1.000000e-24 : f32
    %126 = vector.broadcast %cst_30 : f32 to vector<1x4xf32>
    %127 = arith.maximumf %125, %126 : vector<1x4xf32>
    %128 = math.rsqrt %127 : vector<1x4xf32>
    %129 = arith.mulf %122, %122 : vector<256x4xf32>
    %cst_31 = arith.constant dense<0.000000e+00> : vector<4xf32>
    %130 = vector.multi_reduction <add>, %129, %cst_31 [0] : vector<256x4xf32> to vector<4xf32>
    %131 = vector.shape_cast %130 : vector<4xf32> to vector<1x4xf32>
    %cst_32 = arith.constant 1.000000e-24 : f32
    %132 = vector.broadcast %cst_32 : f32 to vector<1x4xf32>
    %133 = arith.maximumf %131, %132 : vector<1x4xf32>
    %134 = math.rsqrt %133 : vector<1x4xf32>
    %c3 = arith.constant 3 : index
    %135 = memref.load %arg1[%c3] : memref<4xf32, #tpu.memory_space<smem>>
    %136 = vector.broadcast %135 : f32 to vector<1x4xf32>
    %137 = arith.mulf %128, %136 : vector<1x4xf32>
    %138 = vector.broadcast %137 : vector<1x4xf32> to vector<256x4xf32>
    %139 = arith.mulf %121, %138 : vector<256x4xf32>
    %140 = arith.truncf %139 : vector<256x4xf32> to vector<256x4xbf16>
    %cst_33 = arith.constant dense<0.000000e+00> : vector<4x4xf32>
    %141 = tpu.matmul %140, %119, %cst_33 {dimension_numbers = #tpu.dot_dimension_numbers<[0], [0], [1], [1], [0, 1, 1, 1], [], []>} : vector<256x4xbf16>, vector<256x4xbf16>, vector<4x4xf32> -> vector<4x4xf32>
    %142 = vector.broadcast %134 : vector<1x4xf32> to vector<4x4xf32>
    %143 = arith.mulf %141, %142 : vector<4x4xf32>
    %cst_34 = arith.constant dense<0xFF800000> : vector<4xf32>
    %144 = vector.multi_reduction <maximumf>, %143, %cst_34 [1] : vector<4x4xf32> to vector<4xf32>
    %145 = vector.shape_cast %144 : vector<4xf32> to vector<4x1xf32>
    %146 = vector.broadcast %145 : vector<4x1xf32> to vector<4x4xf32>
    %147 = arith.subf %143, %146 : vector<4x4xf32>
    %148 = math.exp %147 : vector<4x4xf32>
    %cst_35 = arith.constant dense<0.000000e+00> : vector<4xf32>
    %149 = vector.multi_reduction <add>, %148, %cst_35 [1] : vector<4x4xf32> to vector<4xf32>
    %150 = vector.shape_cast %149 : vector<4xf32> to vector<4x1xf32>
    %151 = tpu.reciprocal %150 {approx = true} : vector<4x1xf32> -> vector<4x1xf32>
    %152 = vector.broadcast %151 : vector<4x1xf32> to vector<4x4xf32>
    %153 = arith.mulf %148, %152 : vector<4x4xf32>
    %154 = arith.truncf %153 : vector<4x4xf32> to vector<4x4xbf16>
    %cst_36 = arith.constant dense<0.000000e+00> : vector<256x4xf32>
    %155 = tpu.matmul %120, %154, %cst_36 {dimension_numbers = #tpu.dot_dimension_numbers<[1], [1], [0], [0], [0, 0, 1, 0], [], []>} : vector<256x4xbf16>, vector<4x4xbf16>, vector<256x4xf32> -> vector<256x4xf32>
    %156 = tpu.concatenate %41, %79, %117, %155 in 1 : vector<256x4xf32>, vector<256x4xf32>, vector<256x4xf32>, vector<256x4xf32> -> vector<256x16xf32>
    %157 = arith.truncf %156 : vector<256x16xf32> to vector<256x16xbf16>
    %c0_37 = arith.constant 0 : index
    %c0_38 = arith.constant 0 : index
    %158 = vector.load %arg4[%c0_37, %c0_38] : memref<16x16xf32, #tpu.memory_space<vmem>>, vector<16x16xf32>
    %159 = arith.truncf %158 : vector<16x16xf32> to vector<16x16xbf16>
    %cst_39 = arith.constant dense<0.000000e+00> : vector<256x16xf32>
    %160 = tpu.matmul %157, %159, %cst_39 {dimension_numbers = #tpu.dot_dimension_numbers<[1], [0], [0], [1], [0, 0, 1, 1], [], []>} : vector<256x16xbf16>, vector<16x16xbf16>, vector<256x16xf32> -> vector<256x16xf32>
    %c0_40 = arith.constant 0 : index
    %c0_41 = arith.constant 0 : index
    %161 = vector.load %arg5[%c0_40, %c0_41] : memref<1x16xf32, #tpu.memory_space<vmem>>, vector<1x16xf32>
    %162 = vector.broadcast %161 : vector<1x16xf32> to vector<256x16xf32>
    %163 = arith.addf %160, %162 : vector<256x16xf32>
    %c0_42 = arith.constant 0 : index
    %c0_43 = arith.constant 0 : index
    %c0_44 = arith.constant 0 : index
    %164 = vector.load %arg6[%c0_42, %c0_43, %c0_44] : memref<1x256x16xf32, #tpu.memory_space<vmem>>, vector<1x256x16xf32>
    %165 = vector.shape_cast %164 : vector<1x256x16xf32> to vector<256x16xf32>
    %166 = vector.shape_cast %163 : vector<256x16xf32> to vector<1x256x16xf32>
    tpu.vector_store %arg6[%c0_42, %c0_43, %c0_44], %166 {strides = array<i32>} : memref<1x256x16xf32, #tpu.memory_space<vmem>>, vector<1x256x16xf32>,
    return
  }
  func.func @transform_0(%arg0: i32) -> i32 {
    %c0_i32 = arith.constant 0 : i32
    %c0_i32_0 = arith.constant 0 : i32
    return %c0_i32 : i32
  }
  func.func @transform_1(%arg0: i32) -> (i32, i32, i32) {
    %c0_i32 = arith.constant 0 : i32
    %c0_i32_0 = arith.constant 0 : i32
    %c0_i32_1 = arith.constant 0 : i32
    return %arg0, %c0_i32, %c0_i32_0 : i32, i32, i32
  }
  func.func @transform_2(%arg0: i32) -> (i32, i32, i32) {
    %c0_i32 = arith.constant 0 : i32
    %c0_i32_0 = arith.constant 0 : i32
    %c0_i32_1 = arith.constant 0 : i32
    return %arg0, %c0_i32, %c0_i32_0 : i32, i32, i32
  }
  func.func @transform_3(%arg0: i32) -> (i32, i32) {
    %c0_i32 = arith.constant 0 : i32
    %c0_i32_0 = arith.constant 0 : i32
    %c0_i32_1 = arith.constant 0 : i32
    return %c0_i32, %c0_i32_0 : i32, i32
  }
  func.func @transform_4(%arg0: i32) -> (i32, i32) {
    %c0_i32 = arith.constant 0 : i32
    %c0_i32_0 = arith.constant 0 : i32
    %c0_i32_1 = arith.constant 0 : i32
    return %c0_i32, %c0_i32_0 : i32, i32
  }
  func.func @transform_5(%arg0: i32) -> (i32, i32, i32) {
    %c0_i32 = arith.constant 0 : i32
    %c0_i32_0 = arith.constant 0 : i32
    %c0_i32_1 = arith.constant 0 : i32
    return %arg0, %c0_i32, %c0_i32_0 : i32, i32, i32
  }
}

</mosaic_0001>

<llo_original>
// kernel: chanel_cross_attention.3
$region0: #{chanel_cross_attention.3}
  #allocation0 [shape = 'u32[]', space=smem, size = 0x4, offset = 0x4, fixed_abs, tag = 'smem constant byte address 0x4 - core index']
  #allocation1 [shape = 'u32[72,128]{1,0:T(1,128)}', space=vmem, size = 0x9000, scoped, tag = 'internal scratch']
  #allocation2 [shape = 'f32[18,18,16]{2,1,0:T(8,128)}', space=vmem, size = 0x36000, scoped, tag = 'scratch operand']
  %s0 = inlined_call_operand.vmem [shape: f32[2,16,16,16], index: 0, kind: input, shape index: {}]
  %s1 = inlined_call_operand.vmem [shape: f32[16,16], index: 1, kind: input, shape index: {}]
  %s2 = inlined_call_operand.vmem [shape: f32[1,16], index: 2, kind: input, shape index: {}]
  %s3 = inlined_call_operand.vmem [shape: f32[9,16], index: 3, kind: input, shape index: {}]
  %s4 = inlined_call_operand.vmem [shape: f32[1,16], index: 4, kind: input, shape index: {}]
  %s5 = inlined_call_operand.vmem [shape: bf16[2,16,16,16], index: 5, kind: output, shape index: {}]
  %s6 = sld [smem:[#allocation0]]
  $region53: #{chanel_cross_attention.3} parent=0
    _
  %s8 = ssub.s32 1, %s6
  %s9 = scalar_select 0, %s8, %s6
  loop: start=0, step=1, limit=4
  $region2: #{chanel_cross_attention.3} parent=0 // loop_pre_header
    _
  $region3: #{chanel_cross_attention.3} parent=0 // loop_header
    %s11 = sphi 0, %s15
    %p12 = scmp.ge.s32.totalorder %s11, 4
    %s21 = sphi 0, %s23
    %s24 = sphi 0, %s21
    %s25 = sphi 0, %s24
    %s41 = sphi 0, %s25
    %s45 = sphi 0, %s45
    %s47 = sphi 0, %s45
    %s48 = sphi 0, %s47
    %s62 = sphi 0, %s48
    %s66 = sphi 0, %s66
    %s68 = sphi 0, %s66
    %s69 = sphi 0, %s68
    %s83 = sphi 0, %s69
    %s87 = sphi 0, %s87
    %s89 = sphi 0, %s87
    %s90 = sphi 0, %s89
    %s104 = sphi 0, %s90
    %s108 = sphi 0, %s108
    %s110 = sphi 0, %s108
    %s111 = sphi 0, %s110
    %s125 = sphi 0, %s111
    %s131 = sphi 0, %s133
    %s134 = sphi 0, %s131
    %s135 = sphi 0, %s134
    %s151 = sphi 0, %s135
  $region4: #{chanel_cross_attention.3} parent=0 // loop_header_branch
    %14 = sbr.rel (%p12) target = $region8
  $region5: #{chanel_cross_attention.3} parent=0 // loop_body
    %s16 = ssub.s32 %s11, 1
    %s17 = ssub.s32 %s11, 2
    %s18 = sadd.s32 %s11, 1
    %s19 = ssub.s32 %s11, %s18
    %p20 = scmp.eq.s32.totalorder %s19, 0
    %s22 = sadd.s32 %s21, 1
    %s23 = scalar_select %p20, %s21, %s22
    %p26 = pneg %p20
    %p27 = scmp.eq.s32.totalorder %s11, 1
    %p28 = por %p26, %p27
    %p29 = scmp.ne.s32.totalorder %s21, %s24
    %p30 = scmp.eq.s32.totalorder %s11, 0
    %p31 = por %p29, %p30
    %p32 = scmp.ne.s32.totalorder %s21, %s24
    %p33 = scmp.eq.s32.totalorder %s16, 1
    %p34 = por %p32, %p33
    %p35 = scmp.ne.s32.totalorder %s24, %s25
    %p36 = scmp.eq.s32.totalorder %s16, 0
    %p37 = por %p35, %p36
    %p38 = scmp.ne.s32.totalorder %s24, %s25
    %p39 = scmp.eq.s32.totalorder %s17, 1
    %p40 = por %p38, %p39
    %p42 = scmp.ne.s32.totalorder %s25, %s41
    %p43 = scmp.eq.s32.totalorder %s17, 0
    %p44 = por %p42, %p43
    %s46 = sadd.s32 %s45, 1
    %p49 = scmp.eq.s32.totalorder %s11, 1
    %p50 = scmp.ne.s32.totalorder %s45, %s47
    %p51 = scmp.eq.s32.totalorder %s11, 0
    %p52 = por %p50, %p51
    %p53 = scmp.ne.s32.totalorder %s45, %s47
    %p54 = scmp.eq.s32.totalorder %s16, 1
    %p55 = por %p53, %p54
    %p56 = scmp.ne.s32.totalorder %s47, %s48
    %p57 = scmp.eq.s32.totalorder %s16, 0
    %p58 = por %p56, %p57
    %p59 = scmp.ne.s32.totalorder %s47, %s48
    %p60 = scmp.eq.s32.totalorder %s17, 1
    %p61 = por %p59, %p60
    %p63 = scmp.ne.s32.totalorder %s48, %s62
    %p64 = scmp.eq.s32.totalorder %s17, 0
    %p65 = por %p63, %p64
    %s67 = sadd.s32 %s66, 1
    %p70 = scmp.eq.s32.totalorder %s11, 1
    %p71 = scmp.ne.s32.totalorder %s66, %s68
    %p72 = scmp.eq.s32.totalorder %s11, 0
    %p73 = por %p71, %p72
    %p74 = scmp.ne.s32.totalorder %s66, %s68
    %p75 = scmp.eq.s32.totalorder %s16, 1
    %p76 = por %p74, %p75
    %p77 = scmp.ne.s32.totalorder %s68, %s69
    %p78 = scmp.eq.s32.totalorder %s16, 0
    %p79 = por %p77, %p78
    %p80 = scmp.ne.s32.totalorder %s68, %s69
    %p81 = scmp.eq.s32.totalorder %s17, 1
    %p82 = por %p80, %p81
    %p84 = scmp.ne.s32.totalorder %s69, %s83
    %p85 = scmp.eq.s32.totalorder %s17, 0
    %p86 = por %p84, %p85
    %s88 = sadd.s32 %s87, 1
    %p91 = scmp.eq.s32.totalorder %s11, 1
    %p92 = scmp.ne.s32.totalorder %s87, %s89
    %p93 = scmp.eq.s32.totalorder %s11, 0
    %p94 = por %p92, %p93
    %p95 = scmp.ne.s32.totalorder %s87, %s89
    %p96 = scmp.eq.s32.totalorder %s16, 1
    %p97 = por %p95, %p96
    %p98 = scmp.ne.s32.totalorder %s89, %s90
    %p99 = scmp.eq.s32.totalorder %s16, 0
    %p100 = por %p98, %p99
    %p101 = scmp.ne.s32.totalorder %s89, %s90
    %p102 = scmp.eq.s32.totalorder %s17, 1
    %p103 = por %p101, %p102
    %p105 = scmp.ne.s32.totalorder %s90, %s104
    %p106 = scmp.eq.s32.totalorder %s17, 0
    %p107 = por %p105, %p106
    %s109 = sadd.s32 %s108, 1
    %p112 = scmp.eq.s32.totalorder %s11, 1
    %p113 = scmp.ne.s32.totalorder %s108, %s110
    %p114 = scmp.eq.s32.totalorder %s11, 0
    %p115 = por %p113, %p114
    %p116 = scmp.ne.s32.totalorder %s108, %s110
    %p117 = scmp.eq.s32.totalorder %s16, 1
    %p118 = por %p116, %p117
    %p119 = scmp.ne.s32.totalorder %s110, %s111
    %p120 = scmp.eq.s32.totalorder %s16, 0
    %p121 = por %p119, %p120
    %p122 = scmp.ne.s32.totalorder %s110, %s111
    %p123 = scmp.eq.s32.totalorder %s17, 1
    %p124 = por %p122, %p123
    %p126 = scmp.ne.s32.totalorder %s111, %s125
    %p127 = scmp.eq.s32.totalorder %s17, 0
    %p128 = por %p126, %p127
    %s129 = ssub.s32 %s11, %s18
    %p130 = scmp.eq.s32.totalorder %s129, 0
    %s132 = sadd.s32 %s131, 1
    %s133 = scalar_select %p130, %s131, %s132
    %p136 = pneg %p130
    %p137 = scmp.eq.s32.totalorder %s11, 1
    %p138 = por %p136, %p137
    %p139 = scmp.ne.s32.totalorder %s131, %s134
    %p140 = scmp.eq.s32.totalorder %s11, 0
    %p141 = por %p139, %p140
    %p142 = scmp.ne.s32.totalorder %s131, %s134
    %p143 = scmp.eq.s32.totalorder %s16, 1
    %p144 = por %p142, %p143
    %p145 = scmp.ne.s32.totalorder %s134, %s135
    %p146 = scmp.eq.s32.totalorder %s16, 0
    %p147 = por %p145, %p146
    %p148 = scmp.ne.s32.totalorder %s134, %s135
    %p149 = scmp.eq.s32.totalorder %s17, 1
    %p150 = por %p148, %p149
    %p152 = scmp.ne.s32.totalorder %s135, %s151
    %p153 = scmp.eq.s32.totalorder %s17, 0
    %p154 = por %p152, %p153
    %p155 = scmp.le.s32.totalorder 1, %s11
    %p156 = scmp.lt.s32.totalorder %s11, 3
    %p157 = pnand %p155, %p156
    %p158 = pneg %p157
    // Predicated region
    $region9: #{chanel_cross_attention.3} parent=5 // pred_check
      _
    $region10: #{chanel_cross_attention.3} parent=5 // pred_check_branch
      %160 = sbr.rel (%p157) target = $region12
    $region11: #{chanel_cross_attention.3} parent=5 // pred_region
      %s161 = ssub.s32 %s11, 1
      // Predicated region
      $region13: #{chanel_cross_attention.3} parent=11 // pred_check
        %p162 = pneg %p58
      $region14: #{chanel_cross_attention.3} parent=11 // pred_check_branch
        %164 = sbr.rel (%p162) target = $region16
      $region15: #{chanel_cross_attention.3} parent=11 // pred_region
        _
      $region16: #{chanel_cross_attention.3} parent=11 // pred_fallthru
        _
      // Predicated region
      $region17: #{chanel_cross_attention.3} parent=11 // pred_check
        %p165 = pneg %p79
      $region18: #{chanel_cross_attention.3} parent=11 // pred_check_branch
        %167 = sbr.rel (%p165) target = $region20
      $region19: #{chanel_cross_attention.3} parent=11 // pred_region
        _
      $region20: #{chanel_cross_attention.3} parent=11 // pred_fallthru
        _
      // Predicated region
      $region21: #{chanel_cross_attention.3} parent=11 // pred_check
        %p168 = pneg %p100
      $region22: #{chanel_cross_attention.3} parent=11 // pred_check_branch
        %170 = sbr.rel (%p168) target = $region24
      $region23: #{chanel_cross_attention.3} parent=11 // pred_region
        _
      $region24: #{chanel_cross_attention.3} parent=11 // pred_fallthru
        _
      // Predicated region
      $region25: #{chanel_cross_attention.3} parent=11 // pred_check
        %p171 = pneg %p121
      $region26: #{chanel_cross_attention.3} parent=11 // pred_check_branch
        %173 = sbr.rel (%p171) target = $region28
      $region27: #{chanel_cross_attention.3} parent=11 // pred_region
        _
      $region28: #{chanel_cross_attention.3} parent=11 // pred_fallthru
        _
    $region12: #{chanel_cross_attention.3} parent=5 // pred_fallthru
      _
    %p174 = scmp.lt.s32.totalorder %s11, 2
    // Predicated region
    $region29: #{chanel_cross_attention.3} parent=5 // pred_check
      %p175 = pneg %p174
    $region30: #{chanel_cross_attention.3} parent=5 // pred_check_branch
      %177 = sbr.rel (%p175) target = $region32
    $region31: #{chanel_cross_attention.3} parent=5 // pred_region
      // Predicated region
      $region33: #{chanel_cross_attention.3} parent=31 // pred_check
        %p178 = pneg %p31
      $region34: #{chanel_cross_attention.3} parent=31 // pred_check_branch
        %180 = sbr.rel (%p178) target = $region36
      $region35: #{chanel_cross_attention.3} parent=31 // pred_region
        %p181 = scmp.lt.s32.totalorder %s11, 1
        %s182 = scalar_select %p181, %s11, 1
        %s183 = smul.addr %s182, 32
        %s184 = smul.addr %s183, 8
        %s185 = scalar_lea.vmem %s0, %s184
      $region36: #{chanel_cross_attention.3} parent=31 // pred_fallthru
        _
    $region32: #{chanel_cross_attention.3} parent=5 // pred_fallthru
      _
    %p186 = scmp.le.s32.totalorder 1, %s11
    %p187 = scmp.lt.s32.totalorder %s11, 3
    %p188 = pnand %p186, %p187
    %p189 = pneg %p188
    // Predicated region
    $region37: #{chanel_cross_attention.3} parent=5 // pred_check
      _
    $region38: #{chanel_cross_attention.3} parent=5 // pred_check_branch
      %191 = sbr.rel (%p188) target = $region40
    $region39: #{chanel_cross_attention.3} parent=5 // pred_region
      %s192 = ssub.s32 %s11, 1
      %p193 = scmp.lt.s32.totalorder %s16, 1
      %s194 = scalar_select %p193, %s16, 1
      %s195 = smul.addr %s194, 32
      %s196 = smul.addr %s195, 8
      %s197 = scalar_lea.vmem %s0, %s196
      %p198 = pneg %p37
      %p199 = pneg %p34
      %p200 = pneg %p58
      %p201 = pneg %p55
      %p202 = pneg %p79
      %p203 = pneg %p76
      %p204 = pneg %p100
      %p205 = pneg %p97
      %p206 = pneg %p121
      %p207 = pneg %p118
      %p208 = pneg %p147
      %p209 = pneg %p144
      %p210 = scmp.lt.s32.totalorder %s16, 1
      %s211 = scalar_select %p210, %s16, 1
      %s212 = smul.addr %s211, 32
      %s213 = smul.addr %s212, 4
      %s214 = scalar_lea.vmem %s5, %s213
      %p215 = scmp.lt.s32.totalorder %s16, 1
      %s216 = scalar_select %p215, %s16, 1
      %s217 = smul.addr %s216, 32
      %s218 = smul.addr %s217, 8
      %s219 = scalar_lea.vmem %s0, %s218
      %p220 = scmp.lt.s32.totalorder %s16, 1
      %s221 = scalar_select %p220, %s16, 1
      %s222 = smul.addr %s221, 32
      %s223 = smul.addr %s222, 4
      %s224 = scalar_lea.vmem %s5, %s223
      %v226 = vld [vmem:[%s219] sm:$0xff]
      %v227 = vld [vmem:[%s219 + $0x8] sm:$0xff]
      %v228 = vld [vmem:[%s219 + $0x10] sm:$0xff]
      %v229 = vld [vmem:[%s219 + $0x18] sm:$0xff]
      %v230 = vld [vmem:[%s219 + $0x20] sm:$0xff]
      %v231 = vld [vmem:[%s219 + $0x28] sm:$0xff]
      %v232 = vld [vmem:[%s219 + $0x30] sm:$0xff]
      %v233 = vld [vmem:[%s219 + $0x38] sm:$0xff]
      %v234 = vld [vmem:[%s219 + $0x40] sm:$0xff]
      %v235 = vld [vmem:[%s219 + $0x48] sm:$0xff]
      %v236 = vld [vmem:[%s219 + $0x50] sm:$0xff]
      %v237 = vld [vmem:[%s219 + $0x58] sm:$0xff]
      %v238 = vld [vmem:[%s219 + $0x60] sm:$0xff]
      %v239 = vld [vmem:[%s219 + $0x68] sm:$0xff]
      %v240 = vld [vmem:[%s219 + $0x70] sm:$0xff]
      %v241 = vld [vmem:[%s219 + $0x78] sm:$0xff]
      %v242 = vld [vmem:[%s219 + $0x80] sm:$0xff]
      %v243 = vld [vmem:[%s219 + $0x88] sm:$0xff]
      %v244 = vld [vmem:[%s219 + $0x90] sm:$0xff]
      %v245 = vld [vmem:[%s219 + $0x98] sm:$0xff]
      %v246 = vld [vmem:[%s219 + $0xa0] sm:$0xff]
      %v247 = vld [vmem:[%s219 + $0xa8] sm:$0xff]
      %v248 = vld [vmem:[%s219 + $0xb0] sm:$0xff]
      %v249 = vld [vmem:[%s219 + $0xb8] sm:$0xff]
      %v250 = vld [vmem:[%s219 + $0xc0] sm:$0xff]
      %v251 = vld [vmem:[%s219 + $0xc8] sm:$0xff]
      %v252 = vld [vmem:[%s219 + $0xd0] sm:$0xff]
      %v253 = vld [vmem:[%s219 + $0xd8] sm:$0xff]
      %v254 = vld [vmem:[%s219 + $0xe0] sm:$0xff]
      %v255 = vld [vmem:[%s219 + $0xe8] sm:$0xff]
      %v256 = vld [vmem:[%s219 + $0xf0] sm:$0xff]
      %v257 = vld [vmem:[%s219 + $0xf8] sm:$0xff]
      %v258 = vpack.c.bf16 %v227, %v226
      %v259 = vpack.c.bf16 %v229, %v228
      %v260 = vpack.c.bf16 %v231, %v230
      %v261 = vpack.c.bf16 %v233, %v232
      %v262 = vpack.c.bf16 %v235, %v234
      %v263 = vpack.c.bf16 %v237, %v236
      %v264 = vpack.c.bf16 %v239, %v238
      %v265 = vpack.c.bf16 %v241, %v240
      %v266 = vpack.c.bf16 %v243, %v242
      %v267 = vpack.c.bf16 %v245, %v244
      %v268 = vpack.c.bf16 %v247, %v246
      %v269 = vpack.c.bf16 %v249, %v248
      %v270 = vpack.c.bf16 %v251, %v250
      %v271 = vpack.c.bf16 %v253, %v252
      %v272 = vpack.c.bf16 %v255, %v254
      %v273 = vpack.c.bf16 %v257, %v256
      %v274 = vld [vmem:[%s1] sm:$0xff]
      %v275 = vld [vmem:[%s1 + $0x8] sm:$0xff]
      %v276 = vpack.c.bf16 %v275, %v274
      %v277 = vld [vmem:[%s2] sm:$0x1]
      %v279 = vperm.slane %v277, 0
      %vm281 = vcmask 130048
      %v283 = vsel %vm281, %v258, 0
      %v286 = vsel %vm281, %v259, 0
      %v289 = vsel %vm281, %v260, 0
      %v292 = vsel %vm281, %v261, 0
      %v295 = vsel %vm281, %v262, 0
      %v298 = vsel %vm281, %v263, 0
      %v301 = vsel %vm281, %v264, 0
      %v304 = vsel %vm281, %v265, 0
      %v307 = vsel %vm281, %v266, 0
      %v310 = vsel %vm281, %v267, 0
      %v313 = vsel %vm281, %v268, 0
      %v316 = vsel %vm281, %v269, 0
      %v319 = vsel %vm281, %v270, 0
      %v322 = vsel %vm281, %v271, 0
      %v325 = vsel %vm281, %v272, 0
      %v328 = vsel %vm281, %v273, 0
      %330 = vmatpush.bf16.msra.mxu0 0
      %331 = vmatpush.bf16.msra.mxu0 0
      %332 = vmatpush.bf16.msra.mxu0 0
      %333 = vmatpush.bf16.msra.mxu0 0
      %334 = vmatpush.bf16.msra.mxu0 0
      %335 = vmatpush.bf16.msra.mxu0 0
      %336 = vmatpush.bf16.msra.mxu0 0
      %337 = vmatpush.bf16.msra.mxu0 %v276
      %338 = vmatmul.bf16.gmra.mxu0 %v283
      %v339 = vpop.f32.mrf.mxu0
      %v340 = vadd.f32 %v279, %v339
      %v341 = vpop.f32.mrf.mxu0
      %v342 = vadd.f32 %v279, %v341
      %343 = vmatmul.bf16.gmra.mxu0 %v286
      %v344 = vpop.f32.mrf.mxu0
      %v345 = vadd.f32 %v279, %v344
      %v346 = vpop.f32.mrf.mxu0
      %v347 = vadd.f32 %v279, %v346
      %348 = vmatmul.bf16.gmra.mxu0 %v289
      %v349 = vpop.f32.mrf.mxu0
      %v350 = vadd.f32 %v279, %v349
      %v351 = vpop.f32.mrf.mxu0
      %v352 = vadd.f32 %v279, %v351
      %353 = vmatmul.bf16.gmra.mxu0 %v292
      %v354 = vpop.f32.mrf.mxu0
      %v355 = vadd.f32 %v279, %v354
      %v356 = vpop.f32.mrf.mxu0
      %v357 = vadd.f32 %v279, %v356
      %358 = vmatmul.bf16.gmra.mxu0 %v295
      %v359 = vpop.f32.mrf.mxu0
      %v360 = vadd.f32 %v279, %v359
      %v361 = vpop.f32.mrf.mxu0
      %v362 = vadd.f32 %v279, %v361
      %363 = vmatmul.bf16.gmra.mxu0 %v298
      %v364 = vpop.f32.mrf.mxu0
      %v365 = vadd.f32 %v279, %v364
      %v366 = vpop.f32.mrf.mxu0
      %v367 = vadd.f32 %v279, %v366
      %368 = vmatmul.bf16.gmra.mxu0 %v301
      %v369 = vpop.f32.mrf.mxu0
      %v370 = vadd.f32 %v279, %v369
      %v371 = vpop.f32.mrf.mxu0
      %v372 = vadd.f32 %v279, %v371
      %373 = vmatmul.bf16.gmra.mxu0 %v304
      %v374 = vpop.f32.mrf.mxu0
      %v375 = vadd.f32 %v279, %v374
      %v376 = vpop.f32.mrf.mxu0
      %v377 = vadd.f32 %v279, %v376
      %378 = vmatmul.bf16.gmra.mxu0 %v307
      %v379 = vpop.f32.mrf.mxu0
      %v380 = vadd.f32 %v279, %v379
      %v381 = vpop.f32.mrf.mxu0
      %v382 = vadd.f32 %v279, %v381
      %383 = vmatmul.bf16.gmra.mxu0 %v310
      %v384 = vpop.f32.mrf.mxu0
      %v385 = vadd.f32 %v279, %v384
      %v386 = vpop.f32.mrf.mxu0
      %v387 = vadd.f32 %v279, %v386
      %388 = vmatmul.bf16.gmra.mxu0 %v313
      %v389 = vpop.f32.mrf.mxu0
      %v390 = vadd.f32 %v279, %v389
      %v391 = vpop.f32.mrf.mxu0
      %v392 = vadd.f32 %v279, %v391
      %393 = vmatmul.bf16.gmra.mxu0 %v316
      %v394 = vpop.f32.mrf.mxu0
      %v395 = vadd.f32 %v279, %v394
      %v396 = vpop.f32.mrf.mxu0
      %v397 = vadd.f32 %v279, %v396
      %398 = vmatmul.bf16.gmra.mxu0 %v319
      %v399 = vpop.f32.mrf.mxu0
      %v400 = vadd.f32 %v279, %v399
      %v401 = vpop.f32.mrf.mxu0
      %v402 = vadd.f32 %v279, %v401
      %403 = vmatmul.bf16.gmra.mxu0 %v322
      %v404 = vpop.f32.mrf.mxu0
      %v405 = vadd.f32 %v279, %v404
      %v406 = vpop.f32.mrf.mxu0
      %v407 = vadd.f32 %v279, %v406
      %408 = vmatmul.bf16.gmra.mxu0 %v325
      %v409 = vpop.f32.mrf.mxu0
      %v410 = vadd.f32 %v279, %v409
      %v411 = vpop.f32.mrf.mxu0
      %v412 = vadd.f32 %v279, %v411
      %413 = vmatmul.bf16.gmra.mxu0 %v328
      %v414 = vpop.f32.mrf.mxu0
      %v415 = vadd.f32 %v279, %v414
      %v416 = vpop.f32.mrf.mxu0
      %v417 = vadd.f32 %v279, %v416
      %418 = vdwg.mxu0
      %419 = vst.msk [vmem:[#allocation2] sm:$0xff] %vm281, 0.0
      %420 = vst.msk [vmem:[#allocation2 + $0x8] sm:$0xff] %vm281, 0.0
      %vm421 = vcmask 123904
      %422 = vst.msk [vmem:[#allocation2 + $0x10] sm:$0x3] %vm421, 0.0
      %423 = vst.msk [vmem:[#allocation2 + $0x18] sm:$0xff] %vm281, 0.0
      %424 = vst.msk [vmem:[#allocation2 + $0x20] sm:$0xff] %vm281, 0.0
      %425 = vst.msk [vmem:[#allocation2 + $0x28] sm:$0x3] %vm421, 0.0
      %426 = vst.msk [vmem:[#allocation2 + $0x30] sm:$0xff] %vm281, 0.0
      %427 = vst.msk [vmem:[#allocation2 + $0x38] sm:$0xff] %vm281, 0.0
      %428 = vst.msk [vmem:[#allocation2 + $0x40] sm:$0x3] %vm421, 0.0
      %429 = vst.msk [vmem:[#allocation2 + $0x48] sm:$0xff] %vm281, 0.0
      %430 = vst.msk [vmem:[#allocation2 + $0x50] sm:$0xff] %vm281, 0.0
      %431 = vst.msk [vmem:[#allocation2 + $0x58] sm:$0x3] %vm421, 0.0
      %432 = vst.msk [vmem:[#allocation2 + $0x60] sm:$0xff] %vm281, 0.0
      %433 = vst.msk [vmem:[#allocation2 + $0x68] sm:$0xff] %vm281, 0.0
      %434 = vst.msk [vmem:[#allocation2 + $0x70] sm:$0x3] %vm421, 0.0
      %435 = vst.msk [vmem:[#allocation2 + $0x78] sm:$0xff] %vm281, 0.0
      %436 = vst.msk [vmem:[#allocation2 + $0x80] sm:$0xff] %vm281, 0.0
      %437 = vst.msk [vmem:[#allocation2 + $0x88] sm:$0x3] %vm421, 0.0
      %438 = vst.msk [vmem:[#allocation2 + $0x90] sm:$0xff] %vm281, 0.0
      %439 = vst.msk [vmem:[#allocation2 + $0x98] sm:$0xff] %vm281, 0.0
      %440 = vst.msk [vmem:[#allocation2 + $0xa0] sm:$0x3] %vm421, 0.0
      %441 = vst.msk [vmem:[#allocation2 + $0xa8] sm:$0xff] %vm281, 0.0
      %442 = vst.msk [vmem:[#allocation2 + $0xb0] sm:$0xff] %vm281, 0.0
      %443 = vst.msk [vmem:[#allocation2 + $0xb8] sm:$0x3] %vm421, 0.0
      %444 = vst.msk [vmem:[#allocation2 + $0xc0] sm:$0xff] %vm281, 0.0
      %445 = vst.msk [vmem:[#allocation2 + $0xc8] sm:$0xff] %vm281, 0.0
      %446 = vst.msk [vmem:[#allocation2 + $0xd0] sm:$0x3] %vm421, 0.0
      %447 = vst.msk [vmem:[#allocation2 + $0xd8] sm:$0xff] %vm281, 0.0
      %448 = vst.msk [vmem:[#allocation2 + $0xe0] sm:$0xff] %vm281, 0.0
      %449 = vst.msk [vmem:[#allocation2 + $0xe8] sm:$0x3] %vm421, 0.0
      %450 = vst.msk [vmem:[#allocation2 + $0xf0] sm:$0xff] %vm281, 0.0
      %451 = vst.msk [vmem:[#allocation2 + $0xf8] sm:$0xff] %vm281, 0.0
      %452 = vst.msk [vmem:[#allocation2 + $0x100] sm:$0x3] %vm421, 0.0
      %453 = vst.msk [vmem:[#allocation2 + $0x108] sm:$0xff] %vm281, 0.0
      %454 = vst.msk [vmem:[#allocation2 + $0x110] sm:$0xff] %vm281, 0.0
      %455 = vst.msk [vmem:[#allocation2 + $0x118] sm:$0x3] %vm421, 0.0
      %456 = vst.msk [vmem:[#allocation2 + $0x120] sm:$0xff] %vm281, 0.0
      %457 = vst.msk [vmem:[#allocation2 + $0x128] sm:$0xff] %vm281, 0.0
      %458 = vst.msk [vmem:[#allocation2 + $0x130] sm:$0x3] %vm421, 0.0
      %459 = vst.msk [vmem:[#allocation2 + $0x138] sm:$0xff] %vm281, 0.0
      %460 = vst.msk [vmem:[#allocation2 + $0x140] sm:$0xff] %vm281, 0.0
      %461 = vst.msk [vmem:[#allocation2 + $0x148] sm:$0x3] %vm421, 0.0
      %462 = vst.msk [vmem:[#allocation2 + $0x150] sm:$0xff] %vm281, 0.0
      %463 = vst.msk [vmem:[#allocation2 + $0x158] sm:$0xff] %vm281, 0.0
      %464 = vst.msk [vmem:[#allocation2 + $0x160] sm:$0x3] %vm421, 0.0
      %465 = vst.msk [vmem:[#allocation2 + $0x168] sm:$0xff] %vm281, 0.0
      %466 = vst.msk [vmem:[#allocation2 + $0x170] sm:$0xff] %vm281, 0.0
      %467 = vst.msk [vmem:[#allocation2 + $0x178] sm:$0x3] %vm421, 0.0
      %468 = vst.msk [vmem:[#allocation2 + $0x180] sm:$0xff] %vm281, 0.0
      %469 = vst.msk [vmem:[#allocation2 + $0x188] sm:$0xff] %vm281, 0.0
      %470 = vst.msk [vmem:[#allocation2 + $0x190] sm:$0x3] %vm421, 0.0
      %471 = vst.msk [vmem:[#allocation2 + $0x198] sm:$0xff] %vm281, 0.0
      %472 = vst.msk [vmem:[#allocation2 + $0x1a0] sm:$0xff] %vm281, 0.0
      %473 = vst.msk [vmem:[#allocation2 + $0x1a8] sm:$0x3] %vm421, 0.0
      %s474 = scalar_lea.vmem [#allocation2], 24
      %475 = vst.msk [vmem:[%s474 + $0x1] sm:$0xff] %vm281, %v340
      %476 = vst.msk [vmem:[%s474 + $0x9] sm:$0xff] %vm281, %v342
      %477 = vst.msk [vmem:[%s474 + $0x19] sm:$0xff] %vm281, %v345
      %478 = vst.msk [vmem:[%s474 + $0x21] sm:$0xff] %vm281, %v347
      %479 = vst.msk [vmem:[%s474 + $0x31] sm:$0xff] %vm281, %v350
      %480 = vst.msk [vmem:[%s474 + $0x39] sm:$0xff] %vm281, %v352
      %481 = vst.msk [vmem:[%s474 + $0x49] sm:$0xff] %vm281, %v355
      %482 = vst.msk [vmem:[%s474 + $0x51] sm:$0xff] %vm281, %v357
      %483 = vst.msk [vmem:[%s474 + $0x61] sm:$0xff] %vm281, %v360
      %484 = vst.msk [vmem:[%s474 + $0x69] sm:$0xff] %vm281, %v362
      %485 = vst.msk [vmem:[%s474 + $0x79] sm:$0xff] %vm281, %v365
      %486 = vst.msk [vmem:[%s474 + $0x81] sm:$0xff] %vm281, %v367
      %487 = vst.msk [vmem:[%s474 + $0x91] sm:$0xff] %vm281, %v370
      %488 = vst.msk [vmem:[%s474 + $0x99] sm:$0xff] %vm281, %v372
      %489 = vst.msk [vmem:[%s474 + $0xa9] sm:$0xff] %vm281, %v375
      %490 = vst.msk [vmem:[%s474 + $0xb1] sm:$0xff] %vm281, %v377
      %491 = vst.msk [vmem:[%s474 + $0xc1] sm:$0xff] %vm281, %v380
      %492 = vst.msk [vmem:[%s474 + $0xc9] sm:$0xff] %vm281, %v382
      %493 = vst.msk [vmem:[%s474 + $0xd9] sm:$0xff] %vm281, %v385
      %494 = vst.msk [vmem:[%s474 + $0xe1] sm:$0xff] %vm281, %v387
      %495 = vst.msk [vmem:[%s474 + $0xf1] sm:$0xff] %vm281, %v390
      %496 = vst.msk [vmem:[%s474 + $0xf9] sm:$0xff] %vm281, %v392
      %497 = vst.msk [vmem:[%s474 + $0x109] sm:$0xff] %vm281, %v395
      %498 = vst.msk [vmem:[%s474 + $0x111] sm:$0xff] %vm281, %v397
      %499 = vst.msk [vmem:[%s474 + $0x121] sm:$0xff] %vm281, %v400
      %500 = vst.msk [vmem:[%s474 + $0x129] sm:$0xff] %vm281, %v402
      %501 = vst.msk [vmem:[%s474 + $0x139] sm:$0xff] %vm281, %v405
      %502 = vst.msk [vmem:[%s474 + $0x141] sm:$0xff] %vm281, %v407
      %503 = vst.msk [vmem:[%s474 + $0x151] sm:$0xff] %vm281, %v410
      %504 = vst.msk [vmem:[%s474 + $0x159] sm:$0xff] %vm281, %v412
      %505 = vst.msk [vmem:[%s474 + $0x169] sm:$0xff] %vm281, %v415
      %506 = vst.msk [vmem:[%s474 + $0x171] sm:$0xff] %vm281, %v417
      %v507 = vld [vmem:[#allocation2] sm:$0xff]
      %v508 = vld [vmem:[#allocation2 + $0x8] sm:$0xff]
      %v509 = vld [vmem:[#allocation2 + $0x10] sm:$0x3]
      %v510 = vld [vmem:[#allocation2 + $0x18] sm:$0xff]
      %v511 = vld [vmem:[#allocation2 + $0x20] sm:$0xff]
      %v512 = vld [vmem:[#allocation2 + $0x28] sm:$0x3]
      %v513 = vld [vmem:[#allocation2 + $0x30] sm:$0xff]
      %v514 = vld [vmem:[#allocation2 + $0x38] sm:$0xff]
      %v515 = vld [vmem:[#allocation2 + $0x40] sm:$0x3]
      %v516 = vld [vmem:[#allocation2 + $0x48] sm:$0xff]
      %v517 = vld [vmem:[#allocation2 + $0x50] sm:$0xff]
      %v518 = vld [vmem:[#allocation2 + $0x58] sm:$0x3]
      %v519 = vld [vmem:[#allocation2 + $0x60] sm:$0xff]
      %v520 = vld [vmem:[#allocation2 + $0x68] sm:$0xff]
      %v521 = vld [vmem:[#allocation2 + $0x70] sm:$0x3]
      %v522 = vld [vmem:[#allocation2 + $0x78] sm:$0xff]
      %v523 = vld [vmem:[#allocation2 + $0x80] sm:$0xff]
      %v524 = vld [vmem:[#allocation2 + $0x88] sm:$0x3]
      %v525 = vld [vmem:[#allocation2 + $0x90] sm:$0xff]
      %v526 = vld [vmem:[#allocation2 + $0x98] sm:$0xff]
      %v527 = vld [vmem:[#allocation2 + $0xa0] sm:$0x3]
      %v528 = vld [vmem:[#allocation2 + $0xa8] sm:$0xff]
      %v529 = vld [vmem:[#allocation2 + $0xb0] sm:$0xff]
      %v530 = vld [vmem:[#allocation2 + $0xb8] sm:$0x3]
      %v531 = vld [vmem:[#allocation2 + $0xc0] sm:$0xff]
      %v532 = vld [vmem:[#allocation2 + $0xc8] sm:$0xff]
      %v533 = vld [vmem:[#allocation2 + $0xd0] sm:$0x3]
      %v534 = vld [vmem:[#allocation2 + $0xd8] sm:$0xff]
      %v535 = vld [vmem:[#allocation2 + $0xe0] sm:$0xff]
      %v536 = vld [vmem:[#allocation2 + $0xe8] sm:$0x3]
      %v537 = vld [vmem:[#allocation2 + $0xf0] sm:$0xff]
      %v538 = vld [vmem:[#allocation2 + $0xf8] sm:$0xff]
      %v539 = vld [vmem:[#allocation2 + $0x100] sm:$0x3]
      %v540 = vld [vmem:[#allocation2 + $0x108] sm:$0xff]
      %v541 = vld [vmem:[#allocation2 + $0x110] sm:$0xff]
      %v542 = vld [vmem:[#allocation2 + $0x118] sm:$0x3]
      %v543 = vld [vmem:[#allocation2 + $0x120] sm:$0xff]
      %v544 = vld [vmem:[#allocation2 + $0x128] sm:$0xff]
      %v545 = vld [vmem:[#allocation2 + $0x130] sm:$0x3]
      %v546 = vld [vmem:[#allocation2 + $0x138] sm:$0xff]
      %v547 = vld [vmem:[#allocation2 + $0x140] sm:$0xff]
      %v548 = vld [vmem:[#allocation2 + $0x148] sm:$0x3]
      %v549 = vld [vmem:[#allocation2 + $0x150] sm:$0xff]
      %v550 = vld [vmem:[#allocation2 + $0x158] sm:$0xff]
      %v551 = vld [vmem:[#allocation2 + $0x160] sm:$0x3]
      %v552 = vld [vmem:[#allocation2 + $0x168] sm:$0xff]
      %v553 = vld [vmem:[#allocation2 + $0x170] sm:$0xff]
      %v554 = vld [vmem:[#allocation2 + $0x178] sm:$0x3]
      %v555 = vld [vmem:[#allocation2 + $0x180] sm:$0xff]
      %v556 = vld [vmem:[#allocation2 + $0x188] sm:$0xff]
      %v557 = vld [vmem:[#allocation2 + $0x190] sm:$0x3]
      %v558 = vld [vmem:[#allocation2 + $0x198] sm:$0xff]
      %v559 = vld [vmem:[#allocation2 + $0x1a0] sm:$0xff]
      %v560 = vld [vmem:[#allocation2 + $0x1a8] sm:$0x3]
      %v561 = vld [vmem:[%s3] sm:$0xff]
      %v562 = vld [vmem:[%s3 + $0x8] sm:$0x1]
      %v563 = vperm.slane %v561, 0
      %v564 = vmul.f32 %v507, %v563
      %v565 = vmul.f32 %v508, %v563
      %v566 = vmul.f32 %v510, %v563
      %v567 = vmul.f32 %v511, %v563
      %v568 = vmul.f32 %v513, %v563
      %v569 = vmul.f32 %v514, %v563
      %v570 = vmul.f32 %v516, %v563
      %v571 = vmul.f32 %v517, %v563
      %v572 = vmul.f32 %v519, %v563
      %v573 = vmul.f32 %v520, %v563
      %v574 = vmul.f32 %v522, %v563
      %v575 = vmul.f32 %v523, %v563
      %v576 = vmul.f32 %v525, %v563
      %v577 = vmul.f32 %v526, %v563
      %v578 = vmul.f32 %v528, %v563
      %v579 = vmul.f32 %v529, %v563
      %v580 = vmul.f32 %v531, %v563
      %v581 = vmul.f32 %v532, %v563
      %v582 = vmul.f32 %v534, %v563
      %v583 = vmul.f32 %v535, %v563
      %v584 = vmul.f32 %v537, %v563
      %v585 = vmul.f32 %v538, %v563
      %v586 = vmul.f32 %v540, %v563
      %v587 = vmul.f32 %v541, %v563
      %v588 = vmul.f32 %v543, %v563
      %v589 = vmul.f32 %v544, %v563
      %v590 = vmul.f32 %v546, %v563
      %v591 = vmul.f32 %v547, %v563
      %v592 = vmul.f32 %v549, %v563
      %v593 = vmul.f32 %v550, %v563
      %v594 = vmul.f32 %v552, %v563
      %v595 = vmul.f32 %v553, %v563
      %v596 = vadd.f32 %v564, 0.0
      %v597 = vadd.f32 %v565, 0.0
      %v598 = vadd.f32 %v566, 0.0
      %v599 = vadd.f32 %v567, 0.0
      %v600 = vadd.f32 %v568, 0.0
      %v601 = vadd.f32 %v569, 0.0
      %v602 = vadd.f32 %v570, 0.0
      %v603 = vadd.f32 %v571, 0.0
      %v604 = vadd.f32 %v572, 0.0
      %v605 = vadd.f32 %v573, 0.0
      %v606 = vadd.f32 %v574, 0.0
      %v607 = vadd.f32 %v575, 0.0
      %v608 = vadd.f32 %v576, 0.0
      %v609 = vadd.f32 %v577, 0.0
      %v610 = vadd.f32 %v578, 0.0
      %v611 = vadd.f32 %v579, 0.0
      %v612 = vadd.f32 %v580, 0.0
      %v613 = vadd.f32 %v581, 0.0
      %v614 = vadd.f32 %v582, 0.0
      %v615 = vadd.f32 %v583, 0.0
      %v616 = vadd.f32 %v584, 0.0
      %v617 = vadd.f32 %v585, 0.0
      %v618 = vadd.f32 %v586, 0.0
      %v619 = vadd.f32 %v587, 0.0
      %v620 = vadd.f32 %v588, 0.0
      %v621 = vadd.f32 %v589, 0.0
      %v622 = vadd.f32 %v590, 0.0
      %v623 = vadd.f32 %v591, 0.0
      %v624 = vadd.f32 %v592, 0.0
      %v625 = vadd.f32 %v593, 0.0
      %v626 = vadd.f32 %v594, 0.0
      %v627 = vadd.f32 %v595, 0.0
      %v628 = vperm.slane %v561, 1
      %v629 = vmul.f32 %v507, %v628
      %v630 = vmul.f32 %v508, %v628
      %v631 = vmul.f32 %v509, %v628
      %v632 = vmul.f32 %v510, %v628
      %v633 = vmul.f32 %v511, %v628
      %v634 = vmul.f32 %v512, %v628
      %v635 = vmul.f32 %v513, %v628
      %v636 = vmul.f32 %v514, %v628
      %v637 = vmul.f32 %v515, %v628
      %v638 = vmul.f32 %v516, %v628
      %v639 = vmul.f32 %v517, %v628
      %v640 = vmul.f32 %v518, %v628
      %v641 = vmul.f32 %v519, %v628
      %v642 = vmul.f32 %v520, %v628
      %v643 = vmul.f32 %v521, %v628
      %v644 = vmul.f32 %v522, %v628
      %v645 = vmul.f32 %v523, %v628
      %v646 = vmul.f32 %v524, %v628
      %v647 = vmul.f32 %v525, %v628
      %v648 = vmul.f32 %v526, %v628
      %v649 = vmul.f32 %v527, %v628
      %v650 = vmul.f32 %v528, %v628
      %v651 = vmul.f32 %v529, %v628
      %v652 = vmul.f32 %v530, %v628
      %v653 = vmul.f32 %v531, %v628
      %v654 = vmul.f32 %v532, %v628
      %v655 = vmul.f32 %v533, %v628
      %v656 = vmul.f32 %v534, %v628
      %v657 = vmul.f32 %v535, %v628
      %v658 = vmul.f32 %v536, %v628
      %v659 = vmul.f32 %v537, %v628
      %v660 = vmul.f32 %v538, %v628
      %v661 = vmul.f32 %v539, %v628
      %v662 = vmul.f32 %v540, %v628
      %v663 = vmul.f32 %v541, %v628
      %v664 = vmul.f32 %v542, %v628
      %v665 = vmul.f32 %v543, %v628
      %v666 = vmul.f32 %v544, %v628
      %v667 = vmul.f32 %v545, %v628
      %v668 = vmul.f32 %v546, %v628
      %v669 = vmul.f32 %v547, %v628
      %v670 = vmul.f32 %v548, %v628
      %v671 = vmul.f32 %v549, %v628
      %v672 = vmul.f32 %v550, %v628
      %v673 = vmul.f32 %v551, %v628
      %v674 = vmul.f32 %v552, %v628
      %v675 = vmul.f32 %v553, %v628
      %v676 = vmul.f32 %v554, %v628
      %vm725 = vcmask 1046528
      %v726 = vrot.slane %v629, 1
      %v727 = vrot.slane %v630, 1
      %v728 = vsel %vm725, %v726, %v727
      %v729 = vrot.slane %v631, 1
      %v730 = vsel %vm725, %v727, %v729
      %v731 = vrot.slane %v632, 1
      %v732 = vrot.slane %v633, 1
      %v733 = vsel %vm725, %v731, %v732
      %v734 = vrot.slane %v634, 1
      %v735 = vsel %vm725, %v732, %v734
      %v736 = vrot.slane %v635, 1
      %v737 = vrot.slane %v636, 1
      %v738 = vsel %vm725, %v736, %v737
      %v739 = vrot.slane %v637, 1
      %v740 = vsel %vm725, %v737, %v739
      %v741 = vrot.slane %v638, 1
      %v742 = vrot.slane %v639, 1
      %v743 = vsel %vm725, %v741, %v742
      %v744 = vrot.slane %v640, 1
      %v745 = vsel %vm725, %v742, %v744
      %v746 = vrot.slane %v641, 1
      %v747 = vrot.slane %v642, 1
      %v748 = vsel %vm725, %v746, %v747
      %v749 = vrot.slane %v643, 1
      %v750 = vsel %vm725, %v747, %v749
      %v751 = vrot.slane %v644, 1
      %v752 = vrot.slane %v645, 1
      %v753 = vsel %vm725, %v751, %v752
      %v754 = vrot.slane %v646, 1
      %v755 = vsel %vm725, %v752, %v754
      %v756 = vrot.slane %v647, 1
      %v757 = vrot.slane %v648, 1
      %v758 = vsel %vm725, %v756, %v757
      %v759 = vrot.slane %v649, 1
      %v760 = vsel %vm725, %v757, %v759
      %v761 = vrot.slane %v650, 1
      %v762 = vrot.slane %v651, 1
      %v763 = vsel %vm725, %v761, %v762
      %v764 = vrot.slane %v652, 1
      %v765 = vsel %vm725, %v762, %v764
      %v766 = vrot.slane %v653, 1
      %v767 = vrot.slane %v654, 1
      %v768 = vsel %vm725, %v766, %v767
      %v769 = vrot.slane %v655, 1
      %v770 = vsel %vm725, %v767, %v769
      %v771 = vrot.slane %v656, 1
      %v772 = vrot.slane %v657, 1
      %v773 = vsel %vm725, %v771, %v772
      %v774 = vrot.slane %v658, 1
      %v775 = vsel %vm725, %v772, %v774
      %v776 = vrot.slane %v659, 1
      %v777 = vrot.slane %v660, 1
      %v778 = vsel %vm725, %v776, %v777
      %v779 = vrot.slane %v661, 1
      %v780 = vsel %vm725, %v777, %v779
      %v781 = vrot.slane %v662, 1
      %v782 = vrot.slane %v663, 1
      %v783 = vsel %vm725, %v781, %v782
      %v784 = vrot.slane %v664, 1
      %v785 = vsel %vm725, %v782, %v784
      %v786 = vrot.slane %v665, 1
      %v787 = vrot.slane %v666, 1
      %v788 = vsel %vm725, %v786, %v787
      %v789 = vrot.slane %v667, 1
      %v790 = vsel %vm725, %v787, %v789
      %v791 = vrot.slane %v668, 1
      %v792 = vrot.slane %v669, 1
      %v793 = vsel %vm725, %v791, %v792
      %v794 = vrot.slane %v670, 1
      %v795 = vsel %vm725, %v792, %v794
      %v796 = vrot.slane %v671, 1
      %v797 = vrot.slane %v672, 1
      %v798 = vsel %vm725, %v796, %v797
      %v799 = vrot.slane %v673, 1
      %v800 = vsel %vm725, %v797, %v799
      %v801 = vrot.slane %v674, 1
      %v802 = vrot.slane %v675, 1
      %v803 = vsel %vm725, %v801, %v802
      %v804 = vrot.slane %v676, 1
      %v805 = vsel %vm725, %v802, %v804
      %v838 = vadd.f32 %v596, %v728
      %v839 = vadd.f32 %v597, %v730
      %v840 = vadd.f32 %v598, %v733
      %v841 = vadd.f32 %v599, %v735
      %v842 = vadd.f32 %v600, %v738
      %v843 = vadd.f32 %v601, %v740
      %v844 = vadd.f32 %v602, %v743
      %v845 = vadd.f32 %v603, %v745
      %v846 = vadd.f32 %v604, %v748
      %v847 = vadd.f32 %v605, %v750
      %v848 = vadd.f32 %v606, %v753
      %v849 = vadd.f32 %v607, %v755
      %v850 = vadd.f32 %v608, %v758
      %v851 = vadd.f32 %v609, %v760
      %v852 = vadd.f32 %v610, %v763
      %v853 = vadd.f32 %v611, %v765
      %v854 = vadd.f32 %v612, %v768
      %v855 = vadd.f32 %v613, %v770
      %v856 = vadd.f32 %v614, %v773
      %v857 = vadd.f32 %v615, %v775
      %v858 = vadd.f32 %v616, %v778
      %v859 = vadd.f32 %v617, %v780
      %v860 = vadd.f32 %v618, %v783
      %v861 = vadd.f32 %v619, %v785
      %v862 = vadd.f32 %v620, %v788
      %v863 = vadd.f32 %v621, %v790
      %v864 = vadd.f32 %v622, %v793
      %v865 = vadd.f32 %v623, %v795
      %v866 = vadd.f32 %v624, %v798
      %v867 = vadd.f32 %v625, %v800
      %v868 = vadd.f32 %v626, %v803
      %v869 = vadd.f32 %v627, %v805
      %v870 = vperm.slane %v561, 2
      %v871 = vmul.f32 %v507, %v870
      %v872 = vmul.f32 %v508, %v870
      %v873 = vmul.f32 %v509, %v870
      %v874 = vmul.f32 %v510, %v870
      %v875 = vmul.f32 %v511, %v870
      %v876 = vmul.f32 %v512, %v870
      %v877 = vmul.f32 %v513, %v870
      %v878 = vmul.f32 %v514, %v870
      %v879 = vmul.f32 %v515, %v870
      %v880 = vmul.f32 %v516, %v870
      %v881 = vmul.f32 %v517, %v870
      %v882 = vmul.f32 %v518, %v870
      %v883 = vmul.f32 %v519, %v870
      %v884 = vmul.f32 %v520, %v870
      %v885 = vmul.f32 %v521, %v870
      %v886 = vmul.f32 %v522, %v870
      %v887 = vmul.f32 %v523, %v870
      %v888 = vmul.f32 %v524, %v870
      %v889 = vmul.f32 %v525, %v870
      %v890 = vmul.f32 %v526, %v870
      %v891 = vmul.f32 %v527, %v870
      %v892 = vmul.f32 %v528, %v870
      %v893 = vmul.f32 %v529, %v870
      %v894 = vmul.f32 %v530, %v870
      %v895 = vmul.f32 %v531, %v870
      %v896 = vmul.f32 %v532, %v870
      %v897 = vmul.f32 %v533, %v870
      %v898 = vmul.f32 %v534, %v870
      %v899 = vmul.f32 %v535, %v870
      %v900 = vmul.f32 %v536, %v870
      %v901 = vmul.f32 %v537, %v870
      %v902 = vmul.f32 %v538, %v870
      %v903 = vmul.f32 %v539, %v870
      %v904 = vmul.f32 %v540, %v870
      %v905 = vmul.f32 %v541, %v870
      %v906 = vmul.f32 %v542, %v870
      %v907 = vmul.f32 %v543, %v870
      %v908 = vmul.f32 %v544, %v870
      %v909 = vmul.f32 %v545, %v870
      %v910 = vmul.f32 %v546, %v870
      %v911 = vmul.f32 %v547, %v870
      %v912 = vmul.f32 %v548, %v870
      %v913 = vmul.f32 %v549, %v870
      %v914 = vmul.f32 %v550, %v870
      %v915 = vmul.f32 %v551, %v870
      %v916 = vmul.f32 %v552, %v870
      %v917 = vmul.f32 %v553, %v870
      %v918 = vmul.f32 %v554, %v870
      %vm967 = vcmask 1045504
      %v968 = vrot.slane %v871, 2
      %v969 = vrot.slane %v872, 2
      %v970 = vsel %vm967, %v968, %v969
      %v971 = vrot.slane %v873, 2
      %v972 = vsel %vm967, %v969, %v971
      %v973 = vrot.slane %v874, 2
      %v974 = vrot.slane %v875, 2
      %v975 = vsel %vm967, %v973, %v974
      %v976 = vrot.slane %v876, 2
      %v977 = vsel %vm967, %v974, %v976
      %v978 = vrot.slane %v877, 2
      %v979 = vrot.slane %v878, 2
      %v980 = vsel %vm967, %v978, %v979
      %v981 = vrot.slane %v879, 2
      %v982 = vsel %vm967, %v979, %v981
      %v983 = vrot.slane %v880, 2
      %v984 = vrot.slane %v881, 2
      %v985 = vsel %vm967, %v983, %v984
      %v986 = vrot.slane %v882, 2
      %v987 = vsel %vm967, %v984, %v986
      %v988 = vrot.slane %v883, 2
      %v989 = vrot.slane %v884, 2
      %v990 = vsel %vm967, %v988, %v989
      %v991 = vrot.slane %v885, 2
      %v992 = vsel %vm967, %v989, %v991
      %v993 = vrot.slane %v886, 2
      %v994 = vrot.slane %v887, 2
      %v995 = vsel %vm967, %v993, %v994
      %v996 = vrot.slane %v888, 2
      %v997 = vsel %vm967, %v994, %v996
      %v998 = vrot.slane %v889, 2
      %v999 = vrot.slane %v890, 2
      %v1000 = vsel %vm967, %v998, %v999
      %v1001 = vrot.slane %v891, 2
      %v1002 = vsel %vm967, %v999, %v1001
      %v1003 = vrot.slane %v892, 2
      %v1004 = vrot.slane %v893, 2
      %v1005 = vsel %vm967, %v1003, %v1004
      %v1006 = vrot.slane %v894, 2
      %v1007 = vsel %vm967, %v1004, %v1006
      %v1008 = vrot.slane %v895, 2
      %v1009 = vrot.slane %v896, 2
      %v1010 = vsel %vm967, %v1008, %v1009
      %v1011 = vrot.slane %v897, 2
      %v1012 = vsel %vm967, %v1009, %v1011
      %v1013 = vrot.slane %v898, 2
      %v1014 = vrot.slane %v899, 2
      %v1015 = vsel %vm967, %v1013, %v1014
      %v1016 = vrot.slane %v900, 2
      %v1017 = vsel %vm967, %v1014, %v1016
      %v1018 = vrot.slane %v901, 2
      %v1019 = vrot.slane %v902, 2
      %v1020 = vsel %vm967, %v1018, %v1019
      %v1021 = vrot.slane %v903, 2
      %v1022 = vsel %vm967, %v1019, %v1021
      %v1023 = vrot.slane %v904, 2
      %v1024 = vrot.slane %v905, 2
      %v1025 = vsel %vm967, %v1023, %v1024
      %v1026 = vrot.slane %v906, 2
      %v1027 = vsel %vm967, %v1024, %v1026
      %v1028 = vrot.slane %v907, 2
      %v1029 = vrot.slane %v908, 2
      %v1030 = vsel %vm967, %v1028, %v1029
      %v1031 = vrot.slane %v909, 2
      %v1032 = vsel %vm967, %v1029, %v1031
      %v1033 = vrot.slane %v910, 2
      %v1034 = vrot.slane %v911, 2
      %v1035 = vsel %vm967, %v1033, %v1034
      %v1036 = vrot.slane %v912, 2
      %v1037 = vsel %vm967, %v1034, %v1036
      %v1038 = vrot.slane %v913, 2
      %v1039 = vrot.slane %v914, 2
      %v1040 = vsel %vm967, %v1038, %v1039
      %v1041 = vrot.slane %v915, 2
      %v1042 = vsel %vm967, %v1039, %v1041
      %v1043 = vrot.slane %v916, 2
      %v1044 = vrot.slane %v917, 2
      %v1045 = vsel %vm967, %v1043, %v1044
      %v1046 = vrot.slane %v918, 2
      %v1047 = vsel %vm967, %v1044, %v1046
      %v1080 = vadd.f32 %v838, %v970
      %v1081 = vadd.f32 %v839, %v972
      %v1082 = vadd.f32 %v840, %v975
      %v1083 = vadd.f32 %v841, %v977
      %v1084 = vadd.f32 %v842, %v980
      %v1085 = vadd.f32 %v843, %v982
      %v1086 = vadd.f32 %v844, %v985
      %v1087 = vadd.f32 %v845, %v987
      %v1088 = vadd.f32 %v846, %v990
      %v1089 = vadd.f32 %v847, %v992
      %v1090 = vadd.f32 %v848, %v995
      %v1091 = vadd.f32 %v849, %v997
      %v1092 = vadd.f32 %v850, %v1000
      %v1093 = vadd.f32 %v851, %v1002
      %v1094 = vadd.f32 %v852, %v1005
      %v1095 = vadd.f32 %v853, %v1007
      %v1096 = vadd.f32 %v854, %v1010
      %v1097 = vadd.f32 %v855, %v1012
      %v1098 = vadd.f32 %v856, %v1015
      %v1099 = vadd.f32 %v857, %v1017
      %v1100 = vadd.f32 %v858, %v1020
      %v1101 = vadd.f32 %v859, %v1022
      %v1102 = vadd.f32 %v860, %v1025
      %v1103 = vadd.f32 %v861, %v1027
      %v1104 = vadd.f32 %v862, %v1030
      %v1105 = vadd.f32 %v863, %v1032
      %v1106 = vadd.f32 %v864, %v1035
      %v1107 = vadd.f32 %v865, %v1037
      %v1108 = vadd.f32 %v866, %v1040
      %v1109 = vadd.f32 %v867, %v1042
      %v1110 = vadd.f32 %v868, %v1045
      %v1111 = vadd.f32 %v869, %v1047
      %v1112 = vperm.slane %v561, 3
      %v1113 = vmul.f32 %v510, %v1112
      %v1114 = vmul.f32 %v511, %v1112
      %v1115 = vmul.f32 %v513, %v1112
      %v1116 = vmul.f32 %v514, %v1112
      %v1117 = vmul.f32 %v516, %v1112
      %v1118 = vmul.f32 %v517, %v1112
      %v1119 = vmul.f32 %v519, %v1112
      %v1120 = vmul.f32 %v520, %v1112
      %v1121 = vmul.f32 %v522, %v1112
      %v1122 = vmul.f32 %v523, %v1112
      %v1123 = vmul.f32 %v525, %v1112
      %v1124 = vmul.f32 %v526, %v1112
      %v1125 = vmul.f32 %v528, %v1112
      %v1126 = vmul.f32 %v529, %v1112
      %v1127 = vmul.f32 %v531, %v1112
      %v1128 = vmul.f32 %v532, %v1112
      %v1129 = vmul.f32 %v534, %v1112
      %v1130 = vmul.f32 %v535, %v1112
      %v1131 = vmul.f32 %v537, %v1112
      %v1132 = vmul.f32 %v538, %v1112
      %v1133 = vmul.f32 %v540, %v1112
      %v1134 = vmul.f32 %v541, %v1112
      %v1135 = vmul.f32 %v543, %v1112
      %v1136 = vmul.f32 %v544, %v1112
      %v1137 = vmul.f32 %v546, %v1112
      %v1138 = vmul.f32 %v547, %v1112
      %v1139 = vmul.f32 %v549, %v1112
      %v1140 = vmul.f32 %v550, %v1112
      %v1141 = vmul.f32 %v552, %v1112
      %v1142 = vmul.f32 %v553, %v1112
      %v1143 = vmul.f32 %v555, %v1112
      %v1144 = vmul.f32 %v556, %v1112
      %v1145 = vadd.f32 %v1080, %v1113
      %v1146 = vadd.f32 %v1081, %v1114
      %v1147 = vadd.f32 %v1082, %v1115
      %v1148 = vadd.f32 %v1083, %v1116
      %v1149 = vadd.f32 %v1084, %v1117
      %v1150 = vadd.f32 %v1085, %v1118
      %v1151 = vadd.f32 %v1086, %v1119
      %v1152 = vadd.f32 %v1087, %v1120
      %v1153 = vadd.f32 %v1088, %v1121
      %v1154 = vadd.f32 %v1089, %v1122
      %v1155 = vadd.f32 %v1090, %v1123
      %v1156 = vadd.f32 %v1091, %v1124
      %v1157 = vadd.f32 %v1092, %v1125
      %v1158 = vadd.f32 %v1093, %v1126
      %v1159 = vadd.f32 %v1094, %v1127
      %v1160 = vadd.f32 %v1095, %v1128
      %v1161 = vadd.f32 %v1096, %v1129
      %v1162 = vadd.f32 %v1097, %v1130
      %v1163 = vadd.f32 %v1098, %v1131
      %v1164 = vadd.f32 %v1099, %v1132
      %v1165 = vadd.f32 %v1100, %v1133
      %v1166 = vadd.f32 %v1101, %v1134
      %v1167 = vadd.f32 %v1102, %v1135
      %v1168 = vadd.f32 %v1103, %v1136
      %v1169 = vadd.f32 %v1104, %v1137
      %v1170 = vadd.f32 %v1105, %v1138
      %v1171 = vadd.f32 %v1106, %v1139
      %v1172 = vadd.f32 %v1107, %v1140
      %v1173 = vadd.f32 %v1108, %v1141
      %v1174 = vadd.f32 %v1109, %v1142
      %v1175 = vadd.f32 %v1110, %v1143
      %v1176 = vadd.f32 %v1111, %v1144
      %v1177 = vperm.slane %v561, 4
      %v1178 = vmul.f32 %v510, %v1177
      %v1179 = vmul.f32 %v511, %v1177
      %v1180 = vmul.f32 %v512, %v1177
      %v1181 = vmul.f32 %v513, %v1177
      %v1182 = vmul.f32 %v514, %v1177
      %v1183 = vmul.f32 %v515, %v1177
      %v1184 = vmul.f32 %v516, %v1177
      %v1185 = vmul.f32 %v517, %v1177
      %v1186 = vmul.f32 %v518, %v1177
      %v1187 = vmul.f32 %v519, %v1177
      %v1188 = vmul.f32 %v520, %v1177
      %v1189 = vmul.f32 %v521, %v1177
      %v1190 = vmul.f32 %v522, %v1177
      %v1191 = vmul.f32 %v523, %v1177
      %v1192 = vmul.f32 %v524, %v1177
      %v1193 = vmul.f32 %v525, %v1177
      %v1194 = vmul.f32 %v526, %v1177
      %v1195 = vmul.f32 %v527, %v1177
      %v1196 = vmul.f32 %v528, %v1177
      %v1197 = vmul.f32 %v529, %v1177
      %v1198 = vmul.f32 %v530, %v1177
      %v1199 = vmul.f32 %v531, %v1177
      %v1200 = vmul.f32 %v532, %v1177
      %v1201 = vmul.f32 %v533, %v1177
      %v1202 = vmul.f32 %v534, %v1177
      %v1203 = vmul.f32 %v535, %v1177
      %v1204 = vmul.f32 %v536, %v1177
      %v1205 = vmul.f32 %v537, %v1177
      %v1206 = vmul.f32 %v538, %v1177
      %v1207 = vmul.f32 %v539, %v1177
      %v1208 = vmul.f32 %v540, %v1177
      %v1209 = vmul.f32 %v541, %v1177
      %v1210 = vmul.f32 %v542, %v1177
      %v1211 = vmul.f32 %v543, %v1177
      %v1212 = vmul.f32 %v544, %v1177
      %v1213 = vmul.f32 %v545, %v1177
      %v1214 = vmul.f32 %v546, %v1177
      %v1215 = vmul.f32 %v547, %v1177
      %v1216 = vmul.f32 %v548, %v1177
      %v1217 = vmul.f32 %v549, %v1177
      %v1218 = vmul.f32 %v550, %v1177
      %v1219 = vmul.f32 %v551, %v1177
      %v1220 = vmul.f32 %v552, %v1177
      %v1221 = vmul.f32 %v553, %v1177
      %v1222 = vmul.f32 %v554, %v1177
      %v1223 = vmul.f32 %v555, %v1177
      %v1224 = vmul.f32 %v556, %v1177
      %v1225 = vmul.f32 %v557, %v1177
      %v1274 = vrot.slane %v1178, 1
      %v1275 = vrot.slane %v1179, 1
      %v1276 = vsel %vm725, %v1274, %v1275
      %v1277 = vrot.slane %v1180, 1
      %v1278 = vsel %vm725, %v1275, %v1277
      %v1279 = vrot.slane %v1181, 1
      %v1280 = vrot.slane %v1182, 1
      %v1281 = vsel %vm725, %v1279, %v1280
      %v1282 = vrot.slane %v1183, 1
      %v1283 = vsel %vm725, %v1280, %v1282
      %v1284 = vrot.slane %v1184, 1
      %v1285 = vrot.slane %v1185, 1
      %v1286 = vsel %vm725, %v1284, %v1285
      %v1287 = vrot.slane %v1186, 1
      %v1288 = vsel %vm725, %v1285, %v1287
      %v1289 = vrot.slane %v1187, 1
      %v1290 = vrot.slane %v1188, 1
      %v1291 = vsel %vm725, %v1289, %v1290
      %v1292 = vrot.slane %v1189, 1
      %v1293 = vsel %vm725, %v1290, %v1292
      %v1294 = vrot.slane %v1190, 1
      %v1295 = vrot.slane %v1191, 1
      %v1296 = vsel %vm725, %v1294, %v1295
      %v1297 = vrot.slane %v1192, 1
      %v1298 = vsel %vm725, %v1295, %v1297
      %v1299 = vrot.slane %v1193, 1
      %v1300 = vrot.slane %v1194, 1
      %v1301 = vsel %vm725, %v1299, %v1300
      %v1302 = vrot.slane %v1195, 1
      %v1303 = vsel %vm725, %v1300, %v1302
      %v1304 = vrot.slane %v1196, 1
      %v1305 = vrot.slane %v1197, 1
      %v1306 = vsel %vm725, %v1304, %v1305
      %v1307 = vrot.slane %v1198, 1
      %v1308 = vsel %vm725, %v1305, %v1307
      %v1309 = vrot.slane %v1199, 1
      %v1310 = vrot.slane %v1200, 1
      %v1311 = vsel %vm725, %v1309, %v1310
      %v1312 = vrot.slane %v1201, 1
      %v1313 = vsel %vm725, %v1310, %v1312
      %v1314 = vrot.slane %v1202, 1
      %v1315 = vrot.slane %v1203, 1
      %v1316 = vsel %vm725, %v1314, %v1315
      %v1317 = vrot.slane %v1204, 1
      %v1318 = vsel %vm725, %v1315, %v1317
      %v1319 = vrot.slane %v1205, 1
      %v1320 = vrot.slane %v1206, 1
      %v1321 = vsel %vm725, %v1319, %v1320
      %v1322 = vrot.slane %v1207, 1
      %v1323 = vsel %vm725, %v1320, %v1322
      %v1324 = vrot.slane %v1208, 1
      %v1325 = vrot.slane %v1209, 1
      %v1326 = vsel %vm725, %v1324, %v1325
      %v1327 = vrot.slane %v1210, 1
      %v1328 = vsel %vm725, %v1325, %v1327
      %v1329 = vrot.slane %v1211, 1
      %v1330 = vrot.slane %v1212, 1
      %v1331 = vsel %vm725, %v1329, %v1330
      %v1332 = vrot.slane %v1213, 1
      %v1333 = vsel %vm725, %v1330, %v1332
      %v1334 = vrot.slane %v1214, 1
      %v1335 = vrot.slane %v1215, 1
      %v1336 = vsel %vm725, %v1334, %v1335
      %v1337 = vrot.slane %v1216, 1
      %v1338 = vsel %vm725, %v1335, %v1337
      %v1339 = vrot.slane %v1217, 1
      %v1340 = vrot.slane %v1218, 1
      %v1341 = vsel %vm725, %v1339, %v1340
      %v1342 = vrot.slane %v1219, 1
      %v1343 = vsel %vm725, %v1340, %v1342
      %v1344 = vrot.slane %v1220, 1
      %v1345 = vrot.slane %v1221, 1
      %v1346 = vsel %vm725, %v1344, %v1345
      %v1347 = vrot.slane %v1222, 1
      %v1348 = vsel %vm725, %v1345, %v1347
      %v1349 = vrot.slane %v1223, 1
      %v1350 = vrot.slane %v1224, 1
      %v1351 = vsel %vm725, %v1349, %v1350
      %v1352 = vrot.slane %v1225, 1
      %v1353 = vsel %vm725, %v1350, %v1352
      %v1386 = vadd.f32 %v1145, %v1276
      %v1387 = vadd.f32 %v1146, %v1278
      %v1388 = vadd.f32 %v1147, %v1281
      %v1389 = vadd.f32 %v1148, %v1283
      %v1390 = vadd.f32 %v1149, %v1286
      %v1391 = vadd.f32 %v1150, %v1288
      %v1392 = vadd.f32 %v1151, %v1291
      %v1393 = vadd.f32 %v1152, %v1293
      %v1394 = vadd.f32 %v1153, %v1296
      %v1395 = vadd.f32 %v1154, %v1298
      %v1396 = vadd.f32 %v1155, %v1301
      %v1397 = vadd.f32 %v1156, %v1303
      %v1398 = vadd.f32 %v1157, %v1306
      %v1399 = vadd.f32 %v1158, %v1308
      %v1400 = vadd.f32 %v1159, %v1311
      %v1401 = vadd.f32 %v1160, %v1313
      %v1402 = vadd.f32 %v1161, %v1316
      %v1403 = vadd.f32 %v1162, %v1318
      %v1404 = vadd.f32 %v1163, %v1321
      %v1405 = vadd.f32 %v1164, %v1323
      %v1406 = vadd.f32 %v1165, %v1326
      %v1407 = vadd.f32 %v1166, %v1328
      %v1408 = vadd.f32 %v1167, %v1331
      %v1409 = vadd.f32 %v1168, %v1333
      %v1410 = vadd.f32 %v1169, %v1336
      %v1411 = vadd.f32 %v1170, %v1338
      %v1412 = vadd.f32 %v1171, %v1341
      %v1413 = vadd.f32 %v1172, %v1343
      %v1414 = vadd.f32 %v1173, %v1346
      %v1415 = vadd.f32 %v1174, %v1348
      %v1416 = vadd.f32 %v1175, %v1351
      %v1417 = vadd.f32 %v1176, %v1353
      %v1418 = vperm.slane %v561, 5
      %v1419 = vmul.f32 %v510, %v1418
      %v1420 = vmul.f32 %v511, %v1418
      %v1421 = vmul.f32 %v512, %v1418
      %v1422 = vmul.f32 %v513, %v1418
      %v1423 = vmul.f32 %v514, %v1418
      %v1424 = vmul.f32 %v515, %v1418
      %v1425 = vmul.f32 %v516, %v1418
      %v1426 = vmul.f32 %v517, %v1418
      %v1427 = vmul.f32 %v518, %v1418
      %v1428 = vmul.f32 %v519, %v1418
      %v1429 = vmul.f32 %v520, %v1418
      %v1430 = vmul.f32 %v521, %v1418
      %v1431 = vmul.f32 %v522, %v1418
      %v1432 = vmul.f32 %v523, %v1418
      %v1433 = vmul.f32 %v524, %v1418
      %v1434 = vmul.f32 %v525, %v1418
      %v1435 = vmul.f32 %v526, %v1418
      %v1436 = vmul.f32 %v527, %v1418
      %v1437 = vmul.f32 %v528, %v1418
      %v1438 = vmul.f32 %v529, %v1418
      %v1439 = vmul.f32 %v530, %v1418
      %v1440 = vmul.f32 %v531, %v1418
      %v1441 = vmul.f32 %v532, %v1418
      %v1442 = vmul.f32 %v533, %v1418
      %v1443 = vmul.f32 %v534, %v1418
      %v1444 = vmul.f32 %v535, %v1418
      %v1445 = vmul.f32 %v536, %v1418
      %v1446 = vmul.f32 %v537, %v1418
      %v1447 = vmul.f32 %v538, %v1418
      %v1448 = vmul.f32 %v539, %v1418
      %v1449 = vmul.f32 %v540, %v1418
      %v1450 = vmul.f32 %v541, %v1418
      %v1451 = vmul.f32 %v542, %v1418
      %v1452 = vmul.f32 %v543, %v1418
      %v1453 = vmul.f32 %v544, %v1418
      %v1454 = vmul.f32 %v545, %v1418
      %v1455 = vmul.f32 %v546, %v1418
      %v1456 = vmul.f32 %v547, %v1418
      %v1457 = vmul.f32 %v548, %v1418
      %v1458 = vmul.f32 %v549, %v1418
      %v1459 = vmul.f32 %v550, %v1418
      %v1460 = vmul.f32 %v551, %v1418
      %v1461 = vmul.f32 %v552, %v1418
      %v1462 = vmul.f32 %v553, %v1418
      %v1463 = vmul.f32 %v554, %v1418
      %v1464 = vmul.f32 %v555, %v1418
      %v1465 = vmul.f32 %v556, %v1418
      %v1466 = vmul.f32 %v557, %v1418
      %v1515 = vrot.slane %v1419, 2
      %v1516 = vrot.slane %v1420, 2
      %v1517 = vsel %vm967, %v1515, %v1516
      %v1518 = vrot.slane %v1421, 2
      %v1519 = vsel %vm967, %v1516, %v1518
      %v1520 = vrot.slane %v1422, 2
      %v1521 = vrot.slane %v1423, 2
      %v1522 = vsel %vm967, %v1520, %v1521
      %v1523 = vrot.slane %v1424, 2
      %v1524 = vsel %vm967, %v1521, %v1523
      %v1525 = vrot.slane %v1425, 2
      %v1526 = vrot.slane %v1426, 2
      %v1527 = vsel %vm967, %v1525, %v1526
      %v1528 = vrot.slane %v1427, 2
      %v1529 = vsel %vm967, %v1526, %v1528
      %v1530 = vrot.slane %v1428, 2
      %v1531 = vrot.slane %v1429, 2
      %v1532 = vsel %vm967, %v1530, %v1531
      %v1533 = vrot.slane %v1430, 2
      %v1534 = vsel %vm967, %v1531, %v1533
      %v1535 = vrot.slane %v1431, 2
      %v1536 = vrot.slane %v1432, 2
      %v1537 = vsel %vm967, %v1535, %v1536
      %v1538 = vrot.slane %v1433, 2
      %v1539 = vsel %vm967, %v1536, %v1538
      %v1540 = vrot.slane %v1434, 2
      %v1541 = vrot.slane %v1435, 2
      %v1542 = vsel %vm967, %v1540, %v1541
      %v1543 = vrot.slane %v1436, 2
      %v1544 = vsel %vm967, %v1541, %v1543
      %v1545 = vrot.slane %v1437, 2
      %v1546 = vrot.slane %v1438, 2
      %v1547 = vsel %vm967, %v1545, %v1546
      %v1548 = vrot.slane %v1439, 2
      %v1549 = vsel %vm967, %v1546, %v1548
      %v1550 = vrot.slane %v1440, 2
      %v1551 = vrot.slane %v1441, 2
      %v1552 = vsel %vm967, %v1550, %v1551
      %v1553 = vrot.slane %v1442, 2
      %v1554 = vsel %vm967, %v1551, %v1553
      %v1555 = vrot.slane %v1443, 2
      %v1556 = vrot.slane %v1444, 2
      %v1557 = vsel %vm967, %v1555, %v1556
      %v1558 = vrot.slane %v1445, 2
      %v1559 = vsel %vm967, %v1556, %v1558
      %v1560 = vrot.slane %v1446, 2
      %v1561 = vrot.slane %v1447, 2
      %v1562 = vsel %vm967, %v1560, %v1561
      %v1563 = vrot.slane %v1448, 2
      %v1564 = vsel %vm967, %v1561, %v1563
      %v1565 = vrot.slane %v1449, 2
      %v1566 = vrot.slane %v1450, 2
      %v1567 = vsel %vm967, %v1565, %v1566
      %v1568 = vrot.slane %v1451, 2
      %v1569 = vsel %vm967, %v1566, %v1568
      %v1570 = vrot.slane %v1452, 2
      %v1571 = vrot.slane %v1453, 2
      %v1572 = vsel %vm967, %v1570, %v1571
      %v1573 = vrot.slane %v1454, 2
      %v1574 = vsel %vm967, %v1571, %v1573
      %v1575 = vrot.slane %v1455, 2
      %v1576 = vrot.slane %v1456, 2
      %v1577 = vsel %vm967, %v1575, %v1576
      %v1578 = vrot.slane %v1457, 2
      %v1579 = vsel %vm967, %v1576, %v1578
      %v1580 = vrot.slane %v1458, 2
      %v1581 = vrot.slane %v1459, 2
      %v1582 = vsel %vm967, %v1580, %v1581
      %v1583 = vrot.slane %v1460, 2
      %v1584 = vsel %vm967, %v1581, %v1583
      %v1585 = vrot.slane %v1461, 2
      %v1586 = vrot.slane %v1462, 2
      %v1587 = vsel %vm967, %v1585, %v1586
      %v1588 = vrot.slane %v1463, 2
      %v1589 = vsel %vm967, %v1586, %v1588
      %v1590 = vrot.slane %v1464, 2
      %v1591 = vrot.slane %v1465, 2
      %v1592 = vsel %vm967, %v1590, %v1591
      %v1593 = vrot.slane %v1466, 2
      %v1594 = vsel %vm967, %v1591, %v1593
      %v1627 = vadd.f32 %v1386, %v1517
      %v1628 = vadd.f32 %v1387, %v1519
      %v1629 = vadd.f32 %v1388, %v1522
      %v1630 = vadd.f32 %v1389, %v1524
      %v1631 = vadd.f32 %v1390, %v1527
      %v1632 = vadd.f32 %v1391, %v1529
      %v1633 = vadd.f32 %v1392, %v1532
      %v1634 = vadd.f32 %v1393, %v1534
      %v1635 = vadd.f32 %v1394, %v1537
      %v1636 = vadd.f32 %v1395, %v1539
      %v1637 = vadd.f32 %v1396, %v1542
      %v1638 = vadd.f32 %v1397, %v1544
      %v1639 = vadd.f32 %v1398, %v1547
      %v1640 = vadd.f32 %v1399, %v1549
      %v1641 = vadd.f32 %v1400, %v1552
      %v1642 = vadd.f32 %v1401, %v1554
      %v1643 = vadd.f32 %v1402, %v1557
      %v1644 = vadd.f32 %v1403, %v1559
      %v1645 = vadd.f32 %v1404, %v1562
      %v1646 = vadd.f32 %v1405, %v1564
      %v1647 = vadd.f32 %v1406, %v1567
      %v1648 = vadd.f32 %v1407, %v1569
      %v1649 = vadd.f32 %v1408, %v1572
      %v1650 = vadd.f32 %v1409, %v1574
      %v1651 = vadd.f32 %v1410, %v1577
      %v1652 = vadd.f32 %v1411, %v1579
      %v1653 = vadd.f32 %v1412, %v1582
      %v1654 = vadd.f32 %v1413, %v1584
      %v1655 = vadd.f32 %v1414, %v1587
      %v1656 = vadd.f32 %v1415, %v1589
      %v1657 = vadd.f32 %v1416, %v1592
      %v1658 = vadd.f32 %v1417, %v1594
      %v1659 = vperm.slane %v561, 6
      %v1660 = vmul.f32 %v513, %v1659
      %v1661 = vmul.f32 %v514, %v1659
      %v1662 = vmul.f32 %v516, %v1659
      %v1663 = vmul.f32 %v517, %v1659
      %v1664 = vmul.f32 %v519, %v1659
      %v1665 = vmul.f32 %v520, %v1659
      %v1666 = vmul.f32 %v522, %v1659
      %v1667 = vmul.f32 %v523, %v1659
      %v1668 = vmul.f32 %v525, %v1659
      %v1669 = vmul.f32 %v526, %v1659
      %v1670 = vmul.f32 %v528, %v1659
      %v1671 = vmul.f32 %v529, %v1659
      %v1672 = vmul.f32 %v531, %v1659
      %v1673 = vmul.f32 %v532, %v1659
      %v1674 = vmul.f32 %v534, %v1659
      %v1675 = vmul.f32 %v535, %v1659
      %v1676 = vmul.f32 %v537, %v1659
      %v1677 = vmul.f32 %v538, %v1659
      %v1678 = vmul.f32 %v540, %v1659
      %v1679 = vmul.f32 %v541, %v1659
      %v1680 = vmul.f32 %v543, %v1659
      %v1681 = vmul.f32 %v544, %v1659
      %v1682 = vmul.f32 %v546, %v1659
      %v1683 = vmul.f32 %v547, %v1659
      %v1684 = vmul.f32 %v549, %v1659
      %v1685 = vmul.f32 %v550, %v1659
      %v1686 = vmul.f32 %v552, %v1659
      %v1687 = vmul.f32 %v553, %v1659
      %v1688 = vmul.f32 %v555, %v1659
      %v1689 = vmul.f32 %v556, %v1659
      %v1690 = vmul.f32 %v558, %v1659
      %v1691 = vmul.f32 %v559, %v1659
      %v1692 = vadd.f32 %v1627, %v1660
      %v1693 = vadd.f32 %v1628, %v1661
      %v1694 = vadd.f32 %v1629, %v1662
      %v1695 = vadd.f32 %v1630, %v1663
      %v1696 = vadd.f32 %v1631, %v1664
      %v1697 = vadd.f32 %v1632, %v1665
      %v1698 = vadd.f32 %v1633, %v1666
      %v1699 = vadd.f32 %v1634, %v1667
      %v1700 = vadd.f32 %v1635, %v1668
      %v1701 = vadd.f32 %v1636, %v1669
      %v1702 = vadd.f32 %v1637, %v1670
      %v1703 = vadd.f32 %v1638, %v1671
      %v1704 = vadd.f32 %v1639, %v1672
      %v1705 = vadd.f32 %v1640, %v1673
      %v1706 = vadd.f32 %v1641, %v1674
      %v1707 = vadd.f32 %v1642, %v1675
      %v1708 = vadd.f32 %v1643, %v1676
      %v1709 = vadd.f32 %v1644, %v1677
      %v1710 = vadd.f32 %v1645, %v1678
      %v1711 = vadd.f32 %v1646, %v1679
      %v1712 = vadd.f32 %v1647, %v1680
      %v1713 = vadd.f32 %v1648, %v1681
      %v1714 = vadd.f32 %v1649, %v1682
      %v1715 = vadd.f32 %v1650, %v1683
      %v1716 = vadd.f32 %v1651, %v1684
      %v1717 = vadd.f32 %v1652, %v1685
      %v1718 = vadd.f32 %v1653, %v1686
      %v1719 = vadd.f32 %v1654, %v1687
      %v1720 = vadd.f32 %v1655, %v1688
      %v1721 = vadd.f32 %v1656, %v1689
      %v1722 = vadd.f32 %v1657, %v1690
      %v1723 = vadd.f32 %v1658, %v1691
      %v1724 = vperm.slane %v561, 7
      %v1725 = vmul.f32 %v513, %v1724
      %v1726 = vmul.f32 %v514, %v1724
      %v1727 = vmul.f32 %v515, %v1724
      %v1728 = vmul.f32 %v516, %v1724
      %v1729 = vmul.f32 %v517, %v1724
      %v1730 = vmul.f32 %v518, %v1724
      %v1731 = vmul.f32 %v519, %v1724
      %v1732 = vmul.f32 %v520, %v1724
      %v1733 = vmul.f32 %v521, %v1724
      %v1734 = vmul.f32 %v522, %v1724
      %v1735 = vmul.f32 %v523, %v1724
      %v1736 = vmul.f32 %v524, %v1724
      %v1737 = vmul.f32 %v525, %v1724
      %v1738 = vmul.f32 %v526, %v1724
      %v1739 = vmul.f32 %v527, %v1724
      %v1740 = vmul.f32 %v528, %v1724
      %v1741 = vmul.f32 %v529, %v1724
      %v1742 = vmul.f32 %v530, %v1724
      %v1743 = vmul.f32 %v531, %v1724
      %v1744 = vmul.f32 %v532, %v1724
      %v1745 = vmul.f32 %v533, %v1724
      %v1746 = vmul.f32 %v534, %v1724
      %v1747 = vmul.f32 %v535, %v1724
      %v1748 = vmul.f32 %v536, %v1724
      %v1749 = vmul.f32 %v537, %v1724
      %v1750 = vmul.f32 %v538, %v1724
      %v1751 = vmul.f32 %v539, %v1724
      %v1752 = vmul.f32 %v540, %v1724
      %v1753 = vmul.f32 %v541, %v1724
      %v1754 = vmul.f32 %v542, %v1724
      %v1755 = vmul.f32 %v543, %v1724
      %v1756 = vmul.f32 %v544, %v1724
      %v1757 = vmul.f32 %v545, %v1724
      %v1758 = vmul.f32 %v546, %v1724
      %v1759 = vmul.f32 %v547, %v1724
      %v1760 = vmul.f32 %v548, %v1724
      %v1761 = vmul.f32 %v549, %v1724
      %v1762 = vmul.f32 %v550, %v1724
      %v1763 = vmul.f32 %v551, %v1724
      %v1764 = vmul.f32 %v552, %v1724
      %v1765 = vmul.f32 %v553, %v1724
      %v1766 = vmul.f32 %v554, %v1724
      %v1767 = vmul.f32 %v555, %v1724
      %v1768 = vmul.f32 %v556, %v1724
      %v1769 = vmul.f32 %v557, %v1724
      %v1770 = vmul.f32 %v558, %v1724
      %v1771 = vmul.f32 %v559, %v1724
      %v1772 = vmul.f32 %v560, %v1724
      %v1821 = vrot.slane %v1725, 1
      %v1822 = vrot.slane %v1726, 1
      %v1823 = vsel %vm725, %v1821, %v1822
      %v1824 = vrot.slane %v1727, 1
      %v1825 = vsel %vm725, %v1822, %v1824
      %v1826 = vrot.slane %v1728, 1
      %v1827 = vrot.slane %v1729, 1
      %v1828 = vsel %vm725, %v1826, %v1827
      %v1829 = vrot.slane %v1730, 1
      %v1830 = vsel %vm725, %v1827, %v1829
      %v1831 = vrot.slane %v1731, 1
      %v1832 = vrot.slane %v1732, 1
      %v1833 = vsel %vm725, %v1831, %v1832
      %v1834 = vrot.slane %v1733, 1
      %v1835 = vsel %vm725, %v1832, %v1834
      %v1836 = vrot.slane %v1734, 1
      %v1837 = vrot.slane %v1735, 1
      %v1838 = vsel %vm725, %v1836, %v1837
      %v1839 = vrot.slane %v1736, 1
      %v1840 = vsel %vm725, %v1837, %v1839
      %v1841 = vrot.slane %v1737, 1
      %v1842 = vrot.slane %v1738, 1
      %v1843 = vsel %vm725, %v1841, %v1842
      %v1844 = vrot.slane %v1739, 1
      %v1845 = vsel %vm725, %v1842, %v1844
      %v1846 = vrot.slane %v1740, 1
      %v1847 = vrot.slane %v1741, 1
      %v1848 = vsel %vm725, %v1846, %v1847
      %v1849 = vrot.slane %v1742, 1
      %v1850 = vsel %vm725, %v1847, %v1849
      %v1851 = vrot.slane %v1743, 1
      %v1852 = vrot.slane %v1744, 1
      %v1853 = vsel %vm725, %v1851, %v1852
      %v1854 = vrot.slane %v1745, 1
      %v1855 = vsel %vm725, %v1852, %v1854
      %v1856 = vrot.slane %v1746, 1
      %v1857 = vrot.slane %v1747, 1
      %v1858 = vsel %vm725, %v1856, %v1857
      %v1859 = vrot.slane %v1748, 1
      %v1860 = vsel %vm725, %v1857, %v1859
      %v1861 = vrot.slane %v1749, 1
      %v1862 = vrot.slane %v1750, 1
      %v1863 = vsel %vm725, %v1861, %v1862
      %v1864 = vrot.slane %v1751, 1
      %v1865 = vsel %vm725, %v1862, %v1864
      %v1866 = vrot.slane %v1752, 1
      %v1867 = vrot.slane %v1753, 1
      %v1868 = vsel %vm725, %v1866, %v1867
      %v1869 = vrot.slane %v1754, 1
      %v1870 = vsel %vm725, %v1867, %v1869
      %v1871 = vrot.slane %v1755, 1
      %v1872 = vrot.slane %v1756, 1
      %v1873 = vsel %vm725, %v1871, %v1872
      %v1874 = vrot.slane %v1757, 1
      %v1875 = vsel %vm725, %v1872, %v1874
      %v1876 = vrot.slane %v1758, 1
      %v1877 = vrot.slane %v1759, 1
      %v1878 = vsel %vm725, %v1876, %v1877
      %v1879 = vrot.slane %v1760, 1
      %v1880 = vsel %vm725, %v1877, %v1879
      %v1881 = vrot.slane %v1761, 1
      %v1882 = vrot.slane %v1762, 1
      %v1883 = vsel %vm725, %v1881, %v1882
      %v1884 = vrot.slane %v1763, 1
      %v1885 = vsel %vm725, %v1882, %v1884
      %v1886 = vrot.slane %v1764, 1
      %v1887 = vrot.slane %v1765, 1
      %v1888 = vsel %vm725, %v1886, %v1887
      %v1889 = vrot.slane %v1766, 1
      %v1890 = vsel %vm725, %v1887, %v1889
      %v1891 = vrot.slane %v1767, 1
      %v1892 = vrot.slane %v1768, 1
      %v1893 = vsel %vm725, %v1891, %v1892
      %v1894 = vrot.slane %v1769, 1
      %v1895 = vsel %vm725, %v1892, %v1894
      %v1896 = vrot.slane %v1770, 1
      %v1897 = vrot.slane %v1771, 1
      %v1898 = vsel %vm725, %v1896, %v1897
      %v1899 = vrot.slane %v1772, 1
      %v1900 = vsel %vm725, %v1897, %v1899
      %v1933 = vadd.f32 %v1692, %v1823
      %v1934 = vadd.f32 %v1693, %v1825
      %v1935 = vadd.f32 %v1694, %v1828
      %v1936 = vadd.f32 %v1695, %v1830
      %v1937 = vadd.f32 %v1696, %v1833
      %v1938 = vadd.f32 %v1697, %v1835
      %v1939 = vadd.f32 %v1698, %v1838
      %v1940 = vadd.f32 %v1699, %v1840
      %v1941 = vadd.f32 %v1700, %v1843
      %v1942 = vadd.f32 %v1701, %v1845
      %v1943 = vadd.f32 %v1702, %v1848
      %v1944 = vadd.f32 %v1703, %v1850
      %v1945 = vadd.f32 %v1704, %v1853
      %v1946 = vadd.f32 %v1705, %v1855
      %v1947 = vadd.f32 %v1706, %v1858
      %v1948 = vadd.f32 %v1707, %v1860
      %v1949 = vadd.f32 %v1708, %v1863
      %v1950 = vadd.f32 %v1709, %v1865
      %v1951 = vadd.f32 %v1710, %v1868
      %v1952 = vadd.f32 %v1711, %v1870
      %v1953 = vadd.f32 %v1712, %v1873
      %v1954 = vadd.f32 %v1713, %v1875
      %v1955 = vadd.f32 %v1714, %v1878
      %v1956 = vadd.f32 %v1715, %v1880
      %v1957 = vadd.f32 %v1716, %v1883
      %v1958 = vadd.f32 %v1717, %v1885
      %v1959 = vadd.f32 %v1718, %v1888
      %v1960 = vadd.f32 %v1719, %v1890
      %v1961 = vadd.f32 %v1720, %v1893
      %v1962 = vadd.f32 %v1721, %v1895
      %v1963 = vadd.f32 %v1722, %v1898
      %v1964 = vadd.f32 %v1723, %v1900
      %v1965 = vperm.slane %v562, 0
      %v1966 = vmul.f32 %v513, %v1965
      %v1967 = vmul.f32 %v514, %v1965
      %v1968 = vmul.f32 %v515, %v1965
      %v1969 = vmul.f32 %v516, %v1965
      %v1970 = vmul.f32 %v517, %v1965
      %v1971 = vmul.f32 %v518, %v1965
      %v1972 = vmul.f32 %v519, %v1965
      %v1973 = vmul.f32 %v520, %v1965
      %v1974 = vmul.f32 %v521, %v1965
      %v1975 = vmul.f32 %v522, %v1965
      %v1976 = vmul.f32 %v523, %v1965
      %v1977 = vmul.f32 %v524, %v1965
      %v1978 = vmul.f32 %v525, %v1965
      %v1979 = vmul.f32 %v526, %v1965
      %v1980 = vmul.f32 %v527, %v1965
      %v1981 = vmul.f32 %v528, %v1965
      %v1982 = vmul.f32 %v529, %v1965
      %v1983 = vmul.f32 %v530, %v1965
      %v1984 = vmul.f32 %v531, %v1965
      %v1985 = vmul.f32 %v532, %v1965
      %v1986 = vmul.f32 %v533, %v1965
      %v1987 = vmul.f32 %v534, %v1965
      %v1988 = vmul.f32 %v535, %v1965
      %v1989 = vmul.f32 %v536, %v1965
      %v1990 = vmul.f32 %v537, %v1965
      %v1991 = vmul.f32 %v538, %v1965
      %v1992 = vmul.f32 %v539, %v1965
      %v1993 = vmul.f32 %v540, %v1965
      %v1994 = vmul.f32 %v541, %v1965
      %v1995 = vmul.f32 %v542, %v1965
      %v1996 = vmul.f32 %v543, %v1965
      %v1997 = vmul.f32 %v544, %v1965
      %v1998 = vmul.f32 %v545, %v1965
      %v1999 = vmul.f32 %v546, %v1965
      %v2000 = vmul.f32 %v547, %v1965
      %v2001 = vmul.f32 %v548, %v1965
      %v2002 = vmul.f32 %v549, %v1965
      %v2003 = vmul.f32 %v550, %v1965
      %v2004 = vmul.f32 %v551, %v1965
      %v2005 = vmul.f32 %v552, %v1965
      %v2006 = vmul.f32 %v553, %v1965
      %v2007 = vmul.f32 %v554, %v1965
      %v2008 = vmul.f32 %v555, %v1965
      %v2009 = vmul.f32 %v556, %v1965
      %v2010 = vmul.f32 %v557, %v1965
      %v2011 = vmul.f32 %v558, %v1965
      %v2012 = vmul.f32 %v559, %v1965
      %v2013 = vmul.f32 %v560, %v1965
      %v2062 = vrot.slane %v1966, 2
      %v2063 = vrot.slane %v1967, 2
      %v2064 = vsel %vm967, %v2062, %v2063
      %v2065 = vrot.slane %v1968, 2
      %v2066 = vsel %vm967, %v2063, %v2065
      %v2067 = vrot.slane %v1969, 2
      %v2068 = vrot.slane %v1970, 2
      %v2069 = vsel %vm967, %v2067, %v2068
      %v2070 = vrot.slane %v1971, 2
      %v2071 = vsel %vm967, %v2068, %v2070
      %v2072 = vrot.slane %v1972, 2
      %v2073 = vrot.slane %v1973, 2
      %v2074 = vsel %vm967, %v2072, %v2073
      %v2075 = vrot.slane %v1974, 2
      %v2076 = vsel %vm967, %v2073, %v2075
      %v2077 = vrot.slane %v1975, 2
      %v2078 = vrot.slane %v1976, 2
      %v2079 = vsel %vm967, %v2077, %v2078
      %v2080 = vrot.slane %v1977, 2
      %v2081 = vsel %vm967, %v2078, %v2080
      %v2082 = vrot.slane %v1978, 2
      %v2083 = vrot.slane %v1979, 2
      %v2084 = vsel %vm967, %v2082, %v2083
      %v2085 = vrot.slane %v1980, 2
      %v2086 = vsel %vm967, %v2083, %v2085
      %v2087 = vrot.slane %v1981, 2
      %v2088 = vrot.slane %v1982, 2
      %v2089 = vsel %vm967, %v2087, %v2088
      %v2090 = vrot.slane %v1983, 2
      %v2091 = vsel %vm967, %v2088, %v2090
      %v2092 = vrot.slane %v1984, 2
      %v2093 = vrot.slane %v1985, 2
      %v2094 = vsel %vm967, %v2092, %v2093
      %v2095 = vrot.slane %v1986, 2
      %v2096 = vsel %vm967, %v2093, %v2095
      %v2097 = vrot.slane %v1987, 2
      %v2098 = vrot.slane %v1988, 2
      %v2099 = vsel %vm967, %v2097, %v2098
      %v2100 = vrot.slane %v1989, 2
      %v2101 = vsel %vm967, %v2098, %v2100
      %v2102 = vrot.slane %v1990, 2
      %v2103 = vrot.slane %v1991, 2
      %v2104 = vsel %vm967, %v2102, %v2103
      %v2105 = vrot.slane %v1992, 2
      %v2106 = vsel %vm967, %v2103, %v2105
      %v2107 = vrot.slane %v1993, 2
      %v2108 = vrot.slane %v1994, 2
      %v2109 = vsel %vm967, %v2107, %v2108
      %v2110 = vrot.slane %v1995, 2
      %v2111 = vsel %vm967, %v2108, %v2110
      %v2112 = vrot.slane %v1996, 2
      %v2113 = vrot.slane %v1997, 2
      %v2114 = vsel %vm967, %v2112, %v2113
      %v2115 = vrot.slane %v1998, 2
      %v2116 = vsel %vm967, %v2113, %v2115
      %v2117 = vrot.slane %v1999, 2
      %v2118 = vrot.slane %v2000, 2
      %v2119 = vsel %vm967, %v2117, %v2118
      %v2120 = vrot.slane %v2001, 2
      %v2121 = vsel %vm967, %v2118, %v2120
      %v2122 = vrot.slane %v2002, 2
      %v2123 = vrot.slane %v2003, 2
      %v2124 = vsel %vm967, %v2122, %v2123
      %v2125 = vrot.slane %v2004, 2
      %v2126 = vsel %vm967, %v2123, %v2125
      %v2127 = vrot.slane %v2005, 2
      %v2128 = vrot.slane %v2006, 2
      %v2129 = vsel %vm967, %v2127, %v2128
      %v2130 = vrot.slane %v2007, 2
      %v2131 = vsel %vm967, %v2128, %v2130
      %v2132 = vrot.slane %v2008, 2
      %v2133 = vrot.slane %v2009, 2
      %v2134 = vsel %vm967, %v2132, %v2133
      %v2135 = vrot.slane %v2010, 2
      %v2136 = vsel %vm967, %v2133, %v2135
      %v2137 = vrot.slane %v2011, 2
      %v2138 = vrot.slane %v2012, 2
      %v2139 = vsel %vm967, %v2137, %v2138
      %v2140 = vrot.slane %v2013, 2
      %v2141 = vsel %vm967, %v2138, %v2140
      %v2174 = vadd.f32 %v1933, %v2064
      %v2175 = vadd.f32 %v1934, %v2066
      %v2176 = vadd.f32 %v1935, %v2069
      %v2177 = vadd.f32 %v1936, %v2071
      %v2178 = vadd.f32 %v1937, %v2074
      %v2179 = vadd.f32 %v1938, %v2076
      %v2180 = vadd.f32 %v1939, %v2079
      %v2181 = vadd.f32 %v1940, %v2081
      %v2182 = vadd.f32 %v1941, %v2084
      %v2183 = vadd.f32 %v1942, %v2086
      %v2184 = vadd.f32 %v1943, %v2089
      %v2185 = vadd.f32 %v1944, %v2091
      %v2186 = vadd.f32 %v1945, %v2094
      %v2187 = vadd.f32 %v1946, %v2096
      %v2188 = vadd.f32 %v1947, %v2099
      %v2189 = vadd.f32 %v1948, %v2101
      %v2190 = vadd.f32 %v1949, %v2104
      %v2191 = vadd.f32 %v1950, %v2106
      %v2192 = vadd.f32 %v1951, %v2109
      %v2193 = vadd.f32 %v1952, %v2111
      %v2194 = vadd.f32 %v1953, %v2114
      %v2195 = vadd.f32 %v1954, %v2116
      %v2196 = vadd.f32 %v1955, %v2119
      %v2197 = vadd.f32 %v1956, %v2121
      %v2198 = vadd.f32 %v1957, %v2124
      %v2199 = vadd.f32 %v1958, %v2126
      %v2200 = vadd.f32 %v1959, %v2129
      %v2201 = vadd.f32 %v1960, %v2131
      %v2202 = vadd.f32 %v1961, %v2134
      %v2203 = vadd.f32 %v1962, %v2136
      %v2204 = vadd.f32 %v1963, %v2139
      %v2205 = vadd.f32 %v1964, %v2141
      %v2206 = vld [vmem:[%s4] sm:$0x1]
      %v2208 = vperm.slane %v2206, 0
      %v2210 = vadd.f32 %v2174, %v2208
      %v2211 = vadd.f32 %v2175, %v2208
      %v2212 = vadd.f32 %v2176, %v2208
      %v2213 = vadd.f32 %v2177, %v2208
      %v2214 = vadd.f32 %v2178, %v2208
      %v2215 = vadd.f32 %v2179, %v2208
      %v2216 = vadd.f32 %v2180, %v2208
      %v2217 = vadd.f32 %v2181, %v2208
      %v2218 = vadd.f32 %v2182, %v2208
      %v2219 = vadd.f32 %v2183, %v2208
      %v2220 = vadd.f32 %v2184, %v2208
      %v2221 = vadd.f32 %v2185, %v2208
      %v2222 = vadd.f32 %v2186, %v2208
      %v2223 = vadd.f32 %v2187, %v2208
      %v2224 = vadd.f32 %v2188, %v2208
      %v2225 = vadd.f32 %v2189, %v2208
      %v2226 = vadd.f32 %v2190, %v2208
      %v2227 = vadd.f32 %v2191, %v2208
      %v2228 = vadd.f32 %v2192, %v2208
      %v2229 = vadd.f32 %v2193, %v2208
      %v2230 = vadd.f32 %v2194, %v2208
      %v2231 = vadd.f32 %v2195, %v2208
      %v2232 = vadd.f32 %v2196, %v2208
      %v2233 = vadd.f32 %v2197, %v2208
      %v2234 = vadd.f32 %v2198, %v2208
      %v2235 = vadd.f32 %v2199, %v2208
      %v2236 = vadd.f32 %v2200, %v2208
      %v2237 = vadd.f32 %v2201, %v2208
      %v2238 = vadd.f32 %v2202, %v2208
      %v2239 = vadd.f32 %v2203, %v2208
      %v2240 = vadd.f32 %v2204, %v2208
      %v2241 = vadd.f32 %v2205, %v2208
      %v2242 = vpack.c.bf16 %v2210, %v2210
      %v2243 = vpack.c.bf16 %v2211, %v2211
      %v2244 = vpack.c.bf16 %v2212, %v2212
      %v2245 = vpack.c.bf16 %v2213, %v2213
      %v2246 = vpack.c.bf16 %v2214, %v2214
      %v2247 = vpack.c.bf16 %v2215, %v2215
      %v2248 = vpack.c.bf16 %v2216, %v2216
      %v2249 = vpack.c.bf16 %v2217, %v2217
      %v2250 = vpack.c.bf16 %v2218, %v2218
      %v2251 = vpack.c.bf16 %v2219, %v2219
      %v2252 = vpack.c.bf16 %v2220, %v2220
      %v2253 = vpack.c.bf16 %v2221, %v2221
      %v2254 = vpack.c.bf16 %v2222, %v2222
      %v2255 = vpack.c.bf16 %v2223, %v2223
      %v2256 = vpack.c.bf16 %v2224, %v2224
      %v2257 = vpack.c.bf16 %v2225, %v2225
      %v2258 = vpack.c.bf16 %v2226, %v2226
      %v2259 = vpack.c.bf16 %v2227, %v2227
      %v2260 = vpack.c.bf16 %v2228, %v2228
      %v2261 = vpack.c.bf16 %v2229, %v2229
      %v2262 = vpack.c.bf16 %v2230, %v2230
      %v2263 = vpack.c.bf16 %v2231, %v2231
      %v2264 = vpack.c.bf16 %v2232, %v2232
      %v2265 = vpack.c.bf16 %v2233, %v2233
      %v2266 = vpack.c.bf16 %v2234, %v2234
      %v2267 = vpack.c.bf16 %v2235, %v2235
      %v2268 = vpack.c.bf16 %v2236, %v2236
      %v2269 = vpack.c.bf16 %v2237, %v2237
      %v2270 = vpack.c.bf16 %v2238, %v2238
      %v2271 = vpack.c.bf16 %v2239, %v2239
      %v2272 = vpack.c.bf16 %v2240, %v2240
      %v2273 = vpack.c.bf16 %v2241, %v2241
      %vm2274 = vcmask 125952
      %2275 = vst.msk [vmem:[%s224] sm:$0xf] %vm2274, %v2242
      %2276 = vst.msk [vmem:[%s224 + $0x4] sm:$0xf] %vm2274, %v2243
      %2277 = vst.msk [vmem:[%s224 + $0x8] sm:$0xf] %vm2274, %v2244
      %2278 = vst.msk [vmem:[%s224 + $0xc] sm:$0xf] %vm2274, %v2245
      %2279 = vst.msk [vmem:[%s224 + $0x10] sm:$0xf] %vm2274, %v2246
      %2280 = vst.msk [vmem:[%s224 + $0x14] sm:$0xf] %vm2274, %v2247
      %2281 = vst.msk [vmem:[%s224 + $0x18] sm:$0xf] %vm2274, %v2248
      %2282 = vst.msk [vmem:[%s224 + $0x1c] sm:$0xf] %vm2274, %v2249
      %2283 = vst.msk [vmem:[%s224 + $0x20] sm:$0xf] %vm2274, %v2250
      %2284 = vst.msk [vmem:[%s224 + $0x24] sm:$0xf] %vm2274, %v2251
      %2285 = vst.msk [vmem:[%s224 + $0x28] sm:$0xf] %vm2274, %v2252
      %2286 = vst.msk [vmem:[%s224 + $0x2c] sm:$0xf] %vm2274, %v2253
      %2287 = vst.msk [vmem:[%s224 + $0x30] sm:$0xf] %vm2274, %v2254
      %2288 = vst.msk [vmem:[%s224 + $0x34] sm:$0xf] %vm2274, %v2255
      %2289 = vst.msk [vmem:[%s224 + $0x38] sm:$0xf] %vm2274, %v2256
      %2290 = vst.msk [vmem:[%s224 + $0x3c] sm:$0xf] %vm2274, %v2257
      %2291 = vst.msk [vmem:[%s224 + $0x40] sm:$0xf] %vm2274, %v2258
      %2292 = vst.msk [vmem:[%s224 + $0x44] sm:$0xf] %vm2274, %v2259
      %2293 = vst.msk [vmem:[%s224 + $0x48] sm:$0xf] %vm2274, %v2260
      %2294 = vst.msk [vmem:[%s224 + $0x4c] sm:$0xf] %vm2274, %v2261
      %2295 = vst.msk [vmem:[%s224 + $0x50] sm:$0xf] %vm2274, %v2262
      %2296 = vst.msk [vmem:[%s224 + $0x54] sm:$0xf] %vm2274, %v2263
      %2297 = vst.msk [vmem:[%s224 + $0x58] sm:$0xf] %vm2274, %v2264
      %2298 = vst.msk [vmem:[%s224 + $0x5c] sm:$0xf] %vm2274, %v2265
      %2299 = vst.msk [vmem:[%s224 + $0x60] sm:$0xf] %vm2274, %v2266
      %2300 = vst.msk [vmem:[%s224 + $0x64] sm:$0xf] %vm2274, %v2267
      %2301 = vst.msk [vmem:[%s224 + $0x68] sm:$0xf] %vm2274, %v2268
      %2302 = vst.msk [vmem:[%s224 + $0x6c] sm:$0xf] %vm2274, %v2269
      %2303 = vst.msk [vmem:[%s224 + $0x70] sm:$0xf] %vm2274, %v2270
      %2304 = vst.msk [vmem:[%s224 + $0x74] sm:$0xf] %vm2274, %v2271
      %2305 = vst.msk [vmem:[%s224 + $0x78] sm:$0xf] %vm2274, %v2272
      %2306 = vst.msk [vmem:[%s224 + $0x7c] sm:$0xf] %vm2274, %v2273
      %p2307 = scmp.lt.s32.totalorder %s16, 1
      %s2308 = scalar_select %p2307, %s16, 1
      %s2309 = smul.addr %s2308, 32
      %s2310 = smul.addr %s2309, 4
      %s2311 = scalar_lea.vmem %s5, %s2310
      // Predicated region
      $region41: #{chanel_cross_attention.3} parent=39 // pred_check
        %p2312 = pneg %p144
      $region42: #{chanel_cross_attention.3} parent=39 // pred_check_branch
        %2314 = sbr.rel (%p2312) target = $region44
      $region43: #{chanel_cross_attention.3} parent=39 // pred_region
        _
      $region44: #{chanel_cross_attention.3} parent=39 // pred_fallthru
        _
    $region40: #{chanel_cross_attention.3} parent=5 // pred_fallthru
      _
    %p2315 = scmp.le.s32.totalorder 2, %s11
    // Predicated region
    $region45: #{chanel_cross_attention.3} parent=5 // pred_check
      %p2316 = pneg %p2315
    $region46: #{chanel_cross_attention.3} parent=5 // pred_check_branch
      %2318 = sbr.rel (%p2316) target = $region48
    $region47: #{chanel_cross_attention.3} parent=5 // pred_region
      %s2319 = ssub.s32 %s11, 2
      // Predicated region
      $region49: #{chanel_cross_attention.3} parent=47 // pred_check
        %p2320 = pneg %p150
      $region50: #{chanel_cross_attention.3} parent=47 // pred_check_branch
        %2322 = sbr.rel (%p2320) target = $region52
      $region51: #{chanel_cross_attention.3} parent=47 // pred_region
        %p2323 = scmp.lt.s32.totalorder %s17, 1
        %s2324 = scalar_select %p2323, %s17, 1
        %s2325 = smul.addr %s2324, 32
        %s2326 = smul.addr %s2325, 4
        %s2327 = scalar_lea.vmem %s5, %s2326
      $region52: #{chanel_cross_attention.3} parent=47 // pred_fallthru
        _
    $region48: #{chanel_cross_attention.3} parent=5 // pred_fallthru
      _
  $region6: #{chanel_cross_attention.3} parent=0 // loop_footer
    %s15 = sadd.s32 1, %s11
  $region7: #{chanel_cross_attention.3} parent=0 // loop_footer_branch
    %10 = sbr.rel target = $region3
  $region8: #{chanel_cross_attention.3} parent=0 // loop_exit
    _

// kernel: chanel_cross_attention.4
$region0: #{chanel_cross_attention.4}
  #allocation0 [shape = 'u32[]', space=smem, size = 0x4, offset = 0x4, fixed_abs, tag = 'smem constant byte address 0x4 - core index']
  #allocation1 [shape = 'u32[72,128]{1,0:T(1,128)}', space=vmem, size = 0x9000, scoped, tag = 'internal scratch']
  #allocation2 [shape = 'f32[18,18,32]{2,1,0:T(8,128)}', space=vmem, size = 0x36000, scoped, tag = 'scratch operand']
  %s0 = inlined_call_operand.vmem [shape: f32[2,16,16,16], index: 0, kind: input, shape index: {}]
  %s1 = inlined_call_operand.vmem [shape: f32[16,32], index: 1, kind: input, shape index: {}]
  %s2 = inlined_call_operand.vmem [shape: f32[1,32], index: 2, kind: input, shape index: {}]
  %s3 = inlined_call_operand.vmem [shape: f32[9,32], index: 3, kind: input, shape index: {}]
  %s4 = inlined_call_operand.vmem [shape: f32[1,32], index: 4, kind: input, shape index: {}]
  %s5 = inlined_call_operand.vmem [shape: bf16[2,16,16,32], index: 5, kind: output, shape index: {}]
  %s6 = sld [smem:[#allocation0]]
  $region53: #{chanel_cross_attention.4} parent=0
    _
  %s8 = ssub.s32 1, %s6
  %s9 = scalar_select 0, %s8, %s6
  loop: start=0, step=1, limit=4
  $region2: #{chanel_cross_attention.4} parent=0 // loop_pre_header
    _
  $region3: #{chanel_cross_attention.4} parent=0 // loop_header
    %s11 = sphi 0, %s15
    %p12 = scmp.ge.s32.totalorder %s11, 4
    %s21 = sphi 0, %s23
    %s24 = sphi 0, %s21
    %s25 = sphi 0, %s24
    %s41 = sphi 0, %s25
    %s45 = sphi 0, %s45
    %s47 = sphi 0, %s45
    %s48 = sphi 0, %s47
    %s62 = sphi 0, %s48
    %s66 = sphi 0, %s66
    %s68 = sphi 0, %s66
    %s69 = sphi 0, %s68
    %s83 = sphi 0, %s69
    %s87 = sphi 0, %s87
    %s89 = sphi 0, %s87
    %s90 = sphi 0, %s89
    %s104 = sphi 0, %s90
    %s108 = sphi 0, %s108
    %s110 = sphi 0, %s108
    %s111 = sphi 0, %s110
    %s125 = sphi 0, %s111
    %s131 = sphi 0, %s133
    %s134 = sphi 0, %s131
    %s135 = sphi 0, %s134
    %s151 = sphi 0, %s135
  $region4: #{chanel_cross_attention.4} parent=0 // loop_header_branch
    %14 = sbr.rel (%p12) target = $region8
  $region5: #{chanel_cross_attention.4} parent=0 // loop_body
    %s16 = ssub.s32 %s11, 1
    %s17 = ssub.s32 %s11, 2
    %s18 = sadd.s32 %s11, 1
    %s19 = ssub.s32 %s11, %s18
    %p20 = scmp.eq.s32.totalorder %s19, 0
    %s22 = sadd.s32 %s21, 1
    %s23 = scalar_select %p20, %s21, %s22
    %p26 = pneg %p20
    %p27 = scmp.eq.s32.totalorder %s11, 1
    %p28 = por %p26, %p27
    %p29 = scmp.ne.s32.totalorder %s21, %s24
    %p30 = scmp.eq.s32.totalorder %s11, 0
    %p31 = por %p29, %p30
    %p32 = scmp.ne.s32.totalorder %s21, %s24
    %p33 = scmp.eq.s32.totalorder %s16, 1
    %p34 = por %p32, %p33
    %p35 = scmp.ne.s32.totalorder %s24, %s25
    %p36 = scmp.eq.s32.totalorder %s16, 0
    %p37 = por %p35, %p36
    %p38 = scmp.ne.s32.totalorder %s24, %s25
    %p39 = scmp.eq.s32.totalorder %s17, 1
    %p40 = por %p38, %p39
    %p42 = scmp.ne.s32.totalorder %s25, %s41
    %p43 = scmp.eq.s32.totalorder %s17, 0
    %p44 = por %p42, %p43
    %s46 = sadd.s32 %s45, 1
    %p49 = scmp.eq.s32.totalorder %s11, 1
    %p50 = scmp.ne.s32.totalorder %s45, %s47
    %p51 = scmp.eq.s32.totalorder %s11, 0
    %p52 = por %p50, %p51
    %p53 = scmp.ne.s32.totalorder %s45, %s47
    %p54 = scmp.eq.s32.totalorder %s16, 1
    %p55 = por %p53, %p54
    %p56 = scmp.ne.s32.totalorder %s47, %s48
    %p57 = scmp.eq.s32.totalorder %s16, 0
    %p58 = por %p56, %p57
    %p59 = scmp.ne.s32.totalorder %s47, %s48
    %p60 = scmp.eq.s32.totalorder %s17, 1
    %p61 = por %p59, %p60
    %p63 = scmp.ne.s32.totalorder %s48, %s62
    %p64 = scmp.eq.s32.totalorder %s17, 0
    %p65 = por %p63, %p64
    %s67 = sadd.s32 %s66, 1
    %p70 = scmp.eq.s32.totalorder %s11, 1
    %p71 = scmp.ne.s32.totalorder %s66, %s68
    %p72 = scmp.eq.s32.totalorder %s11, 0
    %p73 = por %p71, %p72
    %p74 = scmp.ne.s32.totalorder %s66, %s68
    %p75 = scmp.eq.s32.totalorder %s16, 1
    %p76 = por %p74, %p75
    %p77 = scmp.ne.s32.totalorder %s68, %s69
    %p78 = scmp.eq.s32.totalorder %s16, 0
    %p79 = por %p77, %p78
    %p80 = scmp.ne.s32.totalorder %s68, %s69
    %p81 = scmp.eq.s32.totalorder %s17, 1
    %p82 = por %p80, %p81
    %p84 = scmp.ne.s32.totalorder %s69, %s83
    %p85 = scmp.eq.s32.totalorder %s17, 0
    %p86 = por %p84, %p85
    %s88 = sadd.s32 %s87, 1
    %p91 = scmp.eq.s32.totalorder %s11, 1
    %p92 = scmp.ne.s32.totalorder %s87, %s89
    %p93 = scmp.eq.s32.totalorder %s11, 0
    %p94 = por %p92, %p93
    %p95 = scmp.ne.s32.totalorder %s87, %s89
    %p96 = scmp.eq.s32.totalorder %s16, 1
    %p97 = por %p95, %p96
    %p98 = scmp.ne.s32.totalorder %s89, %s90
    %p99 = scmp.eq.s32.totalorder %s16, 0
    %p100 = por %p98, %p99
    %p101 = scmp.ne.s32.totalorder %s89, %s90
    %p102 = scmp.eq.s32.totalorder %s17, 1
    %p103 = por %p101, %p102
    %p105 = scmp.ne.s32.totalorder %s90, %s104
    %p106 = scmp.eq.s32.totalorder %s17, 0
    %p107 = por %p105, %p106
    %s109 = sadd.s32 %s108, 1
    %p112 = scmp.eq.s32.totalorder %s11, 1
    %p113 = scmp.ne.s32.totalorder %s108, %s110
    %p114 = scmp.eq.s32.totalorder %s11, 0
    %p115 = por %p113, %p114
    %p116 = scmp.ne.s32.totalorder %s108, %s110
    %p117 = scmp.eq.s32.totalorder %s16, 1
    %p118 = por %p116, %p117
    %p119 = scmp.ne.s32.totalorder %s110, %s111
    %p120 = scmp.eq.s32.totalorder %s16, 0
    %p121 = por %p119, %p120
    %p122 = scmp.ne.s32.totalorder %s110, %s111
    %p123 = scmp.eq.s32.totalorder %s17, 1
    %p124 = por %p122, %p123
    %p126 = scmp.ne.s32.totalorder %s111, %s125
    %p127 = scmp.eq.s32.totalorder %s17, 0
    %p128 = por %p126, %p127
    %s129 = ssub.s32 %s11, %s18
    %p130 = scmp.eq.s32.totalorder %s129, 0
    %s132 = sadd.s32 %s131, 1
    %s133 = scalar_select %p130, %s131, %s132
    %p136 = pneg %p130
    %p137 = scmp.eq.s32.totalorder %s11, 1
    %p138 = por %p136, %p137
    %p139 = scmp.ne.s32.totalorder %s131, %s134
    %p140 = scmp.eq.s32.totalorder %s11, 0
    %p141 = por %p139, %p140
    %p142 = scmp.ne.s32.totalorder %s131, %s134
    %p143 = scmp.eq.s32.totalorder %s16, 1
    %p144 = por %p142, %p143
    %p145 = scmp.ne.s32.totalorder %s134, %s135
    %p146 = scmp.eq.s32.totalorder %s16, 0
    %p147 = por %p145, %p146
    %p148 = scmp.ne.s32.totalorder %s134, %s135
    %p149 = scmp.eq.s32.totalorder %s17, 1
    %p150 = por %p148, %p149
    %p152 = scmp.ne.s32.totalorder %s135, %s151
    %p153 = scmp.eq.s32.totalorder %s17, 0
    %p154 = por %p152, %p153
    %p155 = scmp.le.s32.totalorder 1, %s11
    %p156 = scmp.lt.s32.totalorder %s11, 3
    %p157 = pnand %p155, %p156
    %p158 = pneg %p157
    // Predicated region
    $region9: #{chanel_cross_attention.4} parent=5 // pred_check
      _
    $region10: #{chanel_cross_attention.4} parent=5 // pred_check_branch
      %160 = sbr.rel (%p157) target = $region12
    $region11: #{chanel_cross_attention.4} parent=5 // pred_region
      %s161 = ssub.s32 %s11, 1
      // Predicated region
      $region13: #{chanel_cross_attention.4} parent=11 // pred_check
        %p162 = pneg %p58
      $region14: #{chanel_cross_attention.4} parent=11 // pred_check_branch
        %164 = sbr.rel (%p162) target = $region16
      $region15: #{chanel_cross_attention.4} parent=11 // pred_region
        _
      $region16: #{chanel_cross_attention.4} parent=11 // pred_fallthru
        _
      // Predicated region
      $region17: #{chanel_cross_attention.4} parent=11 // pred_check
        %p165 = pneg %p79
      $region18: #{chanel_cross_attention.4} parent=11 // pred_check_branch
        %167 = sbr.rel (%p165) target = $region20
      $region19: #{chanel_cross_attention.4} parent=11 // pred_region
        _
      $region20: #{chanel_cross_attention.4} parent=11 // pred_fallthru
        _
      // Predicated region
      $region21: #{chanel_cross_attention.4} parent=11 // pred_check
        %p168 = pneg %p100
      $region22: #{chanel_cross_attention.4} parent=11 // pred_check_branch
        %170 = sbr.rel (%p168) target = $region24
      $region23: #{chanel_cross_attention.4} parent=11 // pred_region
        _
      $region24: #{chanel_cross_attention.4} parent=11 // pred_fallthru
        _
      // Predicated region
      $region25: #{chanel_cross_attention.4} parent=11 // pred_check
        %p171 = pneg %p121
      $region26: #{chanel_cross_attention.4} parent=11 // pred_check_branch
        %173 = sbr.rel (%p171) target = $region28
      $region27: #{chanel_cross_attention.4} parent=11 // pred_region
        _
      $region28: #{chanel_cross_attention.4} parent=11 // pred_fallthru
        _
    $region12: #{chanel_cross_attention.4} parent=5 // pred_fallthru
      _
    %p174 = scmp.lt.s32.totalorder %s11, 2
    // Predicated region
    $region29: #{chanel_cross_attention.4} parent=5 // pred_check
      %p175 = pneg %p174
    $region30: #{chanel_cross_attention.4} parent=5 // pred_check_branch
      %177 = sbr.rel (%p175) target = $region32
    $region31: #{chanel_cross_attention.4} parent=5 // pred_region
      // Predicated region
      $region33: #{chanel_cross_attention.4} parent=31 // pred_check
        %p178 = pneg %p31
      $region34: #{chanel_cross_attention.4} parent=31 // pred_check_branch
        %180 = sbr.rel (%p178) target = $region36
      $region35: #{chanel_cross_attention.4} parent=31 // pred_region
        %p181 = scmp.lt.s32.totalorder %s11, 1
        %s182 = scalar_select %p181, %s11, 1
        %s183 = smul.addr %s182, 32
        %s184 = smul.addr %s183, 8
        %s185 = scalar_lea.vmem %s0, %s184
      $region36: #{chanel_cross_attention.4} parent=31 // pred_fallthru
        _
    $region32: #{chanel_cross_attention.4} parent=5 // pred_fallthru
      _
    %p186 = scmp.le.s32.totalorder 1, %s11
    %p187 = scmp.lt.s32.totalorder %s11, 3
    %p188 = pnand %p186, %p187
    %p189 = pneg %p188
    // Predicated region
    $region37: #{chanel_cross_attention.4} parent=5 // pred_check
      _
    $region38: #{chanel_cross_attention.4} parent=5 // pred_check_branch
      %191 = sbr.rel (%p188) target = $region40
    $region39: #{chanel_cross_attention.4} parent=5 // pred_region
      %s192 = ssub.s32 %s11, 1
      %p193 = scmp.lt.s32.totalorder %s16, 1
      %s194 = scalar_select %p193, %s16, 1
      %s195 = smul.addr %s194, 32
      %s196 = smul.addr %s195, 8
      %s197 = scalar_lea.vmem %s0, %s196
      %p198 = pneg %p37
      %p199 = pneg %p34
      %p200 = pneg %p58
      %p201 = pneg %p55
      %p202 = pneg %p79
      %p203 = pneg %p76
      %p204 = pneg %p100
      %p205 = pneg %p97
      %p206 = pneg %p121
      %p207 = pneg %p118
      %p208 = pneg %p147
      %p209 = pneg %p144
      %p210 = scmp.lt.s32.totalorder %s16, 1
      %s211 = scalar_select %p210, %s16, 1
      %s212 = smul.addr %s211, 32
      %s213 = smul.addr %s212, 4
      %s214 = scalar_lea.vmem %s5, %s213
      %p215 = scmp.lt.s32.totalorder %s16, 1
      %s216 = scalar_select %p215, %s16, 1
      %s217 = smul.addr %s216, 32
      %s218 = smul.addr %s217, 8
      %s219 = scalar_lea.vmem %s0, %s218
      %p220 = scmp.lt.s32.totalorder %s16, 1
      %s221 = scalar_select %p220, %s16, 1
      %s222 = smul.addr %s221, 32
      %s223 = smul.addr %s222, 4
      %s224 = scalar_lea.vmem %s5, %s223
      %v226 = vld [vmem:[%s219] sm:$0xff]
      %v227 = vld [vmem:[%s219 + $0x8] sm:$0xff]
      %v228 = vld [vmem:[%s219 + $0x10] sm:$0xff]
      %v229 = vld [vmem:[%s219 + $0x18] sm:$0xff]
      %v230 = vld [vmem:[%s219 + $0x20] sm:$0xff]
      %v231 = vld [vmem:[%s219 + $0x28] sm:$0xff]
      %v232 = vld [vmem:[%s219 + $0x30] sm:$0xff]
      %v233 = vld [vmem:[%s219 + $0x38] sm:$0xff]
      %v234 = vld [vmem:[%s219 + $0x40] sm:$0xff]
      %v235 = vld [vmem:[%s219 + $0x48] sm:$0xff]
      %v236 = vld [vmem:[%s219 + $0x50] sm:$0xff]
      %v237 = vld [vmem:[%s219 + $0x58] sm:$0xff]
      %v238 = vld [vmem:[%s219 + $0x60] sm:$0xff]
      %v239 = vld [vmem:[%s219 + $0x68] sm:$0xff]
      %v240 = vld [vmem:[%s219 + $0x70] sm:$0xff]
      %v241 = vld [vmem:[%s219 + $0x78] sm:$0xff]
      %v242 = vld [vmem:[%s219 + $0x80] sm:$0xff]
      %v243 = vld [vmem:[%s219 + $0x88] sm:$0xff]
      %v244 = vld [vmem:[%s219 + $0x90] sm:$0xff]
      %v245 = vld [vmem:[%s219 + $0x98] sm:$0xff]
      %v246 = vld [vmem:[%s219 + $0xa0] sm:$0xff]
      %v247 = vld [vmem:[%s219 + $0xa8] sm:$0xff]
      %v248 = vld [vmem:[%s219 + $0xb0] sm:$0xff]
      %v249 = vld [vmem:[%s219 + $0xb8] sm:$0xff]
      %v250 = vld [vmem:[%s219 + $0xc0] sm:$0xff]
      %v251 = vld [vmem:[%s219 + $0xc8] sm:$0xff]
      %v252 = vld [vmem:[%s219 + $0xd0] sm:$0xff]
      %v253 = vld [vmem:[%s219 + $0xd8] sm:$0xff]
      %v254 = vld [vmem:[%s219 + $0xe0] sm:$0xff]
      %v255 = vld [vmem:[%s219 + $0xe8] sm:$0xff]
      %v256 = vld [vmem:[%s219 + $0xf0] sm:$0xff]
      %v257 = vld [vmem:[%s219 + $0xf8] sm:$0xff]
      %v258 = vpack.c.bf16 %v227, %v226
      %v259 = vpack.c.bf16 %v229, %v228
      %v260 = vpack.c.bf16 %v231, %v230
      %v261 = vpack.c.bf16 %v233, %v232
      %v262 = vpack.c.bf16 %v235, %v234
      %v263 = vpack.c.bf16 %v237, %v236
      %v264 = vpack.c.bf16 %v239, %v238
      %v265 = vpack.c.bf16 %v241, %v240
      %v266 = vpack.c.bf16 %v243, %v242
      %v267 = vpack.c.bf16 %v245, %v244
      %v268 = vpack.c.bf16 %v247, %v246
      %v269 = vpack.c.bf16 %v249, %v248
      %v270 = vpack.c.bf16 %v251, %v250
      %v271 = vpack.c.bf16 %v253, %v252
      %v272 = vpack.c.bf16 %v255, %v254
      %v273 = vpack.c.bf16 %v257, %v256
      %v274 = vld [vmem:[%s1] sm:$0xff]
      %v275 = vld [vmem:[%s1 + $0x8] sm:$0xff]
      %v276 = vpack.c.bf16 %v275, %v274
      %v277 = vld [vmem:[%s2] sm:$0x1]
      %v279 = vperm.slane %v277, 0
      %vm281 = vcmask 130048
      %v283 = vsel %vm281, %v258, 0
      %v286 = vsel %vm281, %v259, 0
      %v289 = vsel %vm281, %v260, 0
      %v292 = vsel %vm281, %v261, 0
      %v295 = vsel %vm281, %v262, 0
      %v298 = vsel %vm281, %v263, 0
      %v301 = vsel %vm281, %v264, 0
      %v304 = vsel %vm281, %v265, 0
      %v307 = vsel %vm281, %v266, 0
      %v310 = vsel %vm281, %v267, 0
      %v313 = vsel %vm281, %v268, 0
      %v316 = vsel %vm281, %v269, 0
      %v319 = vsel %vm281, %v270, 0
      %v322 = vsel %vm281, %v271, 0
      %v325 = vsel %vm281, %v272, 0
      %v328 = vsel %vm281, %v273, 0
      %330 = vmatpush.bf16.msra.mxu0 0
      %331 = vmatpush.bf16.msra.mxu0 0
      %332 = vmatpush.bf16.msra.mxu0 0
      %333 = vmatpush.bf16.msra.mxu0 0
      %334 = vmatpush.bf16.msra.mxu0 0
      %335 = vmatpush.bf16.msra.mxu0 0
      %336 = vmatpush.bf16.msra.mxu0 0
      %337 = vmatpush.bf16.msra.mxu0 %v276
      %338 = vmatmul.bf16.gmra.mxu0 %v283
      %v339 = vpop.f32.mrf.mxu0
      %v340 = vadd.f32 %v279, %v339
      %v341 = vpop.f32.mrf.mxu0
      %v342 = vadd.f32 %v279, %v341
      %343 = vmatmul.bf16.gmra.mxu0 %v286
      %v344 = vpop.f32.mrf.mxu0
      %v345 = vadd.f32 %v279, %v344
      %v346 = vpop.f32.mrf.mxu0
      %v347 = vadd.f32 %v279, %v346
      %348 = vmatmul.bf16.gmra.mxu0 %v289
      %v349 = vpop.f32.mrf.mxu0
      %v350 = vadd.f32 %v279, %v349
      %v351 = vpop.f32.mrf.mxu0
      %v352 = vadd.f32 %v279, %v351
      %353 = vmatmul.bf16.gmra.mxu0 %v292
      %v354 = vpop.f32.mrf.mxu0
      %v355 = vadd.f32 %v279, %v354
      %v356 = vpop.f32.mrf.mxu0
      %v357 = vadd.f32 %v279, %v356
      %358 = vmatmul.bf16.gmra.mxu0 %v295
      %v359 = vpop.f32.mrf.mxu0
      %v360 = vadd.f32 %v279, %v359
      %v361 = vpop.f32.mrf.mxu0
      %v362 = vadd.f32 %v279, %v361
      %363 = vmatmul.bf16.gmra.mxu0 %v298
      %v364 = vpop.f32.mrf.mxu0
      %v365 = vadd.f32 %v279, %v364
      %v366 = vpop.f32.mrf.mxu0
      %v367 = vadd.f32 %v279, %v366
      %368 = vmatmul.bf16.gmra.mxu0 %v301
      %v369 = vpop.f32.mrf.mxu0
      %v370 = vadd.f32 %v279, %v369
      %v371 = vpop.f32.mrf.mxu0
      %v372 = vadd.f32 %v279, %v371
      %373 = vmatmul.bf16.gmra.mxu0 %v304
      %v374 = vpop.f32.mrf.mxu0
      %v375 = vadd.f32 %v279, %v374
      %v376 = vpop.f32.mrf.mxu0
      %v377 = vadd.f32 %v279, %v376
      %378 = vmatmul.bf16.gmra.mxu0 %v307
      %v379 = vpop.f32.mrf.mxu0
      %v380 = vadd.f32 %v279, %v379
      %v381 = vpop.f32.mrf.mxu0
      %v382 = vadd.f32 %v279, %v381
      %383 = vmatmul.bf16.gmra.mxu0 %v310
      %v384 = vpop.f32.mrf.mxu0
      %v385 = vadd.f32 %v279, %v384
      %v386 = vpop.f32.mrf.mxu0
      %v387 = vadd.f32 %v279, %v386
      %388 = vmatmul.bf16.gmra.mxu0 %v313
      %v389 = vpop.f32.mrf.mxu0
      %v390 = vadd.f32 %v279, %v389
      %v391 = vpop.f32.mrf.mxu0
      %v392 = vadd.f32 %v279, %v391
      %393 = vmatmul.bf16.gmra.mxu0 %v316
      %v394 = vpop.f32.mrf.mxu0
      %v395 = vadd.f32 %v279, %v394
      %v396 = vpop.f32.mrf.mxu0
      %v397 = vadd.f32 %v279, %v396
      %398 = vmatmul.bf16.gmra.mxu0 %v319
      %v399 = vpop.f32.mrf.mxu0
      %v400 = vadd.f32 %v279, %v399
      %v401 = vpop.f32.mrf.mxu0
      %v402 = vadd.f32 %v279, %v401
      %403 = vmatmul.bf16.gmra.mxu0 %v322
      %v404 = vpop.f32.mrf.mxu0
      %v405 = vadd.f32 %v279, %v404
      %v406 = vpop.f32.mrf.mxu0
      %v407 = vadd.f32 %v279, %v406
      %408 = vmatmul.bf16.gmra.mxu0 %v325
      %v409 = vpop.f32.mrf.mxu0
      %v410 = vadd.f32 %v279, %v409
      %v411 = vpop.f32.mrf.mxu0
      %v412 = vadd.f32 %v279, %v411
      %413 = vmatmul.bf16.gmra.mxu0 %v328
      %v414 = vpop.f32.mrf.mxu0
      %v415 = vadd.f32 %v279, %v414
      %v416 = vpop.f32.mrf.mxu0
      %v417 = vadd.f32 %v279, %v416
      %418 = vdwg.mxu0
      %vm419 = vcmask 261120
      %420 = vst.msk [vmem:[#allocation2] sm:$0xff] %vm419, 0.0
      %421 = vst.msk [vmem:[#allocation2 + $0x8] sm:$0xff] %vm419, 0.0
      %vm422 = vcmask 254976
      %423 = vst.msk [vmem:[#allocation2 + $0x10] sm:$0x3] %vm422, 0.0
      %424 = vst.msk [vmem:[#allocation2 + $0x18] sm:$0xff] %vm419, 0.0
      %425 = vst.msk [vmem:[#allocation2 + $0x20] sm:$0xff] %vm419, 0.0
      %426 = vst.msk [vmem:[#allocation2 + $0x28] sm:$0x3] %vm422, 0.0
      %427 = vst.msk [vmem:[#allocation2 + $0x30] sm:$0xff] %vm419, 0.0
      %428 = vst.msk [vmem:[#allocation2 + $0x38] sm:$0xff] %vm419, 0.0
      %429 = vst.msk [vmem:[#allocation2 + $0x40] sm:$0x3] %vm422, 0.0
      %430 = vst.msk [vmem:[#allocation2 + $0x48] sm:$0xff] %vm419, 0.0
      %431 = vst.msk [vmem:[#allocation2 + $0x50] sm:$0xff] %vm419, 0.0
      %432 = vst.msk [vmem:[#allocation2 + $0x58] sm:$0x3] %vm422, 0.0
      %433 = vst.msk [vmem:[#allocation2 + $0x60] sm:$0xff] %vm419, 0.0
      %434 = vst.msk [vmem:[#allocation2 + $0x68] sm:$0xff] %vm419, 0.0
      %435 = vst.msk [vmem:[#allocation2 + $0x70] sm:$0x3] %vm422, 0.0
      %436 = vst.msk [vmem:[#allocation2 + $0x78] sm:$0xff] %vm419, 0.0
      %437 = vst.msk [vmem:[#allocation2 + $0x80] sm:$0xff] %vm419, 0.0
      %438 = vst.msk [vmem:[#allocation2 + $0x88] sm:$0x3] %vm422, 0.0
      %439 = vst.msk [vmem:[#allocation2 + $0x90] sm:$0xff] %vm419, 0.0
      %440 = vst.msk [vmem:[#allocation2 + $0x98] sm:$0xff] %vm419, 0.0
      %441 = vst.msk [vmem:[#allocation2 + $0xa0] sm:$0x3] %vm422, 0.0
      %442 = vst.msk [vmem:[#allocation2 + $0xa8] sm:$0xff] %vm419, 0.0
      %443 = vst.msk [vmem:[#allocation2 + $0xb0] sm:$0xff] %vm419, 0.0
      %444 = vst.msk [vmem:[#allocation2 + $0xb8] sm:$0x3] %vm422, 0.0
      %445 = vst.msk [vmem:[#allocation2 + $0xc0] sm:$0xff] %vm419, 0.0
      %446 = vst.msk [vmem:[#allocation2 + $0xc8] sm:$0xff] %vm419, 0.0
      %447 = vst.msk [vmem:[#allocation2 + $0xd0] sm:$0x3] %vm422, 0.0
      %448 = vst.msk [vmem:[#allocation2 + $0xd8] sm:$0xff] %vm419, 0.0
      %449 = vst.msk [vmem:[#allocation2 + $0xe0] sm:$0xff] %vm419, 0.0
      %450 = vst.msk [vmem:[#allocation2 + $0xe8] sm:$0x3] %vm422, 0.0
      %451 = vst.msk [vmem:[#allocation2 + $0xf0] sm:$0xff] %vm419, 0.0
      %452 = vst.msk [vmem:[#allocation2 + $0xf8] sm:$0xff] %vm419, 0.0
      %453 = vst.msk [vmem:[#allocation2 + $0x100] sm:$0x3] %vm422, 0.0
      %454 = vst.msk [vmem:[#allocation2 + $0x108] sm:$0xff] %vm419, 0.0
      %455 = vst.msk [vmem:[#allocation2 + $0x110] sm:$0xff] %vm419, 0.0
      %456 = vst.msk [vmem:[#allocation2 + $0x118] sm:$0x3] %vm422, 0.0
      %457 = vst.msk [vmem:[#allocation2 + $0x120] sm:$0xff] %vm419, 0.0
      %458 = vst.msk [vmem:[#allocation2 + $0x128] sm:$0xff] %vm419, 0.0
      %459 = vst.msk [vmem:[#allocation2 + $0x130] sm:$0x3] %vm422, 0.0
      %460 = vst.msk [vmem:[#allocation2 + $0x138] sm:$0xff] %vm419, 0.0
      %461 = vst.msk [vmem:[#allocation2 + $0x140] sm:$0xff] %vm419, 0.0
      %462 = vst.msk [vmem:[#allocation2 + $0x148] sm:$0x3] %vm422, 0.0
      %463 = vst.msk [vmem:[#allocation2 + $0x150] sm:$0xff] %vm419, 0.0
      %464 = vst.msk [vmem:[#allocation2 + $0x158] sm:$0xff] %vm419, 0.0
      %465 = vst.msk [vmem:[#allocation2 + $0x160] sm:$0x3] %vm422, 0.0
      %466 = vst.msk [vmem:[#allocation2 + $0x168] sm:$0xff] %vm419, 0.0
      %467 = vst.msk [vmem:[#allocation2 + $0x170] sm:$0xff] %vm419, 0.0
      %468 = vst.msk [vmem:[#allocation2 + $0x178] sm:$0x3] %vm422, 0.0
      %469 = vst.msk [vmem:[#allocation2 + $0x180] sm:$0xff] %vm419, 0.0
      %470 = vst.msk [vmem:[#allocation2 + $0x188] sm:$0xff] %vm419, 0.0
      %471 = vst.msk [vmem:[#allocation2 + $0x190] sm:$0x3] %vm422, 0.0
      %472 = vst.msk [vmem:[#allocation2 + $0x198] sm:$0xff] %vm419, 0.0
      %473 = vst.msk [vmem:[#allocation2 + $0x1a0] sm:$0xff] %vm419, 0.0
      %474 = vst.msk [vmem:[#allocation2 + $0x1a8] sm:$0x3] %vm422, 0.0
      %s475 = scalar_lea.vmem [#allocation2], 24
      %476 = vst.msk [vmem:[%s475 + $0x1] sm:$0xff] %vm419, %v340
      %477 = vst.msk [vmem:[%s475 + $0x9] sm:$0xff] %vm419, %v342
      %478 = vst.msk [vmem:[%s475 + $0x19] sm:$0xff] %vm419, %v345
      %479 = vst.msk [vmem:[%s475 + $0x21] sm:$0xff] %vm419, %v347
      %480 = vst.msk [vmem:[%s475 + $0x31] sm:$0xff] %vm419, %v350
      %481 = vst.msk [vmem:[%s475 + $0x39] sm:$0xff] %vm419, %v352
      %482 = vst.msk [vmem:[%s475 + $0x49] sm:$0xff] %vm419, %v355
      %483 = vst.msk [vmem:[%s475 + $0x51] sm:$0xff] %vm419, %v357
      %484 = vst.msk [vmem:[%s475 + $0x61] sm:$0xff] %vm419, %v360
      %485 = vst.msk [vmem:[%s475 + $0x69] sm:$0xff] %vm419, %v362
      %486 = vst.msk [vmem:[%s475 + $0x79] sm:$0xff] %vm419, %v365
      %487 = vst.msk [vmem:[%s475 + $0x81] sm:$0xff] %vm419, %v367
      %488 = vst.msk [vmem:[%s475 + $0x91] sm:$0xff] %vm419, %v370
      %489 = vst.msk [vmem:[%s475 + $0x99] sm:$0xff] %vm419, %v372
      %490 = vst.msk [vmem:[%s475 + $0xa9] sm:$0xff] %vm419, %v375
      %491 = vst.msk [vmem:[%s475 + $0xb1] sm:$0xff] %vm419, %v377
      %492 = vst.msk [vmem:[%s475 + $0xc1] sm:$0xff] %vm419, %v380
      %493 = vst.msk [vmem:[%s475 + $0xc9] sm:$0xff] %vm419, %v382
      %494 = vst.msk [vmem:[%s475 + $0xd9] sm:$0xff] %vm419, %v385
      %495 = vst.msk [vmem:[%s475 + $0xe1] sm:$0xff] %vm419, %v387
      %496 = vst.msk [vmem:[%s475 + $0xf1] sm:$0xff] %vm419, %v390
      %497 = vst.msk [vmem:[%s475 + $0xf9] sm:$0xff] %vm419, %v392
      %498 = vst.msk [vmem:[%s475 + $0x109] sm:$0xff] %vm419, %v395
      %499 = vst.msk [vmem:[%s475 + $0x111] sm:$0xff] %vm419, %v397
      %500 = vst.msk [vmem:[%s475 + $0x121] sm:$0xff] %vm419, %v400
      %501 = vst.msk [vmem:[%s475 + $0x129] sm:$0xff] %vm419, %v402
      %502 = vst.msk [vmem:[%s475 + $0x139] sm:$0xff] %vm419, %v405
      %503 = vst.msk [vmem:[%s475 + $0x141] sm:$0xff] %vm419, %v407
      %504 = vst.msk [vmem:[%s475 + $0x151] sm:$0xff] %vm419, %v410
      %505 = vst.msk [vmem:[%s475 + $0x159] sm:$0xff] %vm419, %v412
      %506 = vst.msk [vmem:[%s475 + $0x169] sm:$0xff] %vm419, %v415
      %507 = vst.msk [vmem:[%s475 + $0x171] sm:$0xff] %vm419, %v417
      %v508 = vld [vmem:[#allocation2] sm:$0xff]
      %v509 = vld [vmem:[#allocation2 + $0x8] sm:$0xff]
      %v510 = vld [vmem:[#allocation2 + $0x10] sm:$0x3]
      %v511 = vld [vmem:[#allocation2 + $0x18] sm:$0xff]
      %v512 = vld [vmem:[#allocation2 + $0x20] sm:$0xff]
      %v513 = vld [vmem:[#allocation2 + $0x28] sm:$0x3]
      %v514 = vld [vmem:[#allocation2 + $0x30] sm:$0xff]
      %v515 = vld [vmem:[#allocation2 + $0x38] sm:$0xff]
      %v516 = vld [vmem:[#allocation2 + $0x40] sm:$0x3]
      %v517 = vld [vmem:[#allocation2 + $0x48] sm:$0xff]
      %v518 = vld [vmem:[#allocation2 + $0x50] sm:$0xff]
      %v519 = vld [vmem:[#allocation2 + $0x58] sm:$0x3]
      %v520 = vld [vmem:[#allocation2 + $0x60] sm:$0xff]
      %v521 = vld [vmem:[#allocation2 + $0x68] sm:$0xff]
      %v522 = vld [vmem:[#allocation2 + $0x70] sm:$0x3]
      %v523 = vld [vmem:[#allocation2 + $0x78] sm:$0xff]
      %v524 = vld [vmem:[#allocation2 + $0x80] sm:$0xff]
      %v525 = vld [vmem:[#allocation2 + $0x88] sm:$0x3]
      %v526 = vld [vmem:[#allocation2 + $0x90] sm:$0xff]
      %v527 = vld [vmem:[#allocation2 + $0x98] sm:$0xff]
      %v528 = vld [vmem:[#allocation2 + $0xa0] sm:$0x3]
      %v529 = vld [vmem:[#allocation2 + $0xa8] sm:$0xff]
      %v530 = vld [vmem:[#allocation2 + $0xb0] sm:$0xff]
      %v531 = vld [vmem:[#allocation2 + $0xb8] sm:$0x3]
      %v532 = vld [vmem:[#allocation2 + $0xc0] sm:$0xff]
      %v533 = vld [vmem:[#allocation2 + $0xc8] sm:$0xff]
      %v534 = vld [vmem:[#allocation2 + $0xd0] sm:$0x3]
      %v535 = vld [vmem:[#allocation2 + $0xd8] sm:$0xff]
      %v536 = vld [vmem:[#allocation2 + $0xe0] sm:$0xff]
      %v537 = vld [vmem:[#allocation2 + $0xe8] sm:$0x3]
      %v538 = vld [vmem:[#allocation2 + $0xf0] sm:$0xff]
      %v539 = vld [vmem:[#allocation2 + $0xf8] sm:$0xff]
      %v540 = vld [vmem:[#allocation2 + $0x100] sm:$0x3]
      %v541 = vld [vmem:[#allocation2 + $0x108] sm:$0xff]
      %v542 = vld [vmem:[#allocation2 + $0x110] sm:$0xff]
      %v543 = vld [vmem:[#allocation2 + $0x118] sm:$0x3]
      %v544 = vld [vmem:[#allocation2 + $0x120] sm:$0xff]
      %v545 = vld [vmem:[#allocation2 + $0x128] sm:$0xff]
      %v546 = vld [vmem:[#allocation2 + $0x130] sm:$0x3]
      %v547 = vld [vmem:[#allocation2 + $0x138] sm:$0xff]
      %v548 = vld [vmem:[#allocation2 + $0x140] sm:$0xff]
      %v549 = vld [vmem:[#allocation2 + $0x148] sm:$0x3]
      %v550 = vld [vmem:[#allocation2 + $0x150] sm:$0xff]
      %v551 = vld [vmem:[#allocation2 + $0x158] sm:$0xff]
      %v552 = vld [vmem:[#allocation2 + $0x160] sm:$0x3]
      %v553 = vld [vmem:[#allocation2 + $0x168] sm:$0xff]
      %v554 = vld [vmem:[#allocation2 + $0x170] sm:$0xff]
      %v555 = vld [vmem:[#allocation2 + $0x178] sm:$0x3]
      %v556 = vld [vmem:[#allocation2 + $0x180] sm:$0xff]
      %v557 = vld [vmem:[#allocation2 + $0x188] sm:$0xff]
      %v558 = vld [vmem:[#allocation2 + $0x190] sm:$0x3]
      %v559 = vld [vmem:[#allocation2 + $0x198] sm:$0xff]
      %v560 = vld [vmem:[#allocation2 + $0x1a0] sm:$0xff]
      %v561 = vld [vmem:[#allocation2 + $0x1a8] sm:$0x3]
      %v562 = vld [vmem:[%s3] sm:$0xff]
      %v563 = vld [vmem:[%s3 + $0x8] sm:$0x1]
      %v564 = vperm.slane %v562, 0
      %v565 = vmul.f32 %v508, %v564
      %v566 = vmul.f32 %v509, %v564
      %v567 = vmul.f32 %v511, %v564
      %v568 = vmul.f32 %v512, %v564
      %v569 = vmul.f32 %v514, %v564
      %v570 = vmul.f32 %v515, %v564
      %v571 = vmul.f32 %v517, %v564
      %v572 = vmul.f32 %v518, %v564
      %v573 = vmul.f32 %v520, %v564
      %v574 = vmul.f32 %v521, %v564
      %v575 = vmul.f32 %v523, %v564
      %v576 = vmul.f32 %v524, %v564
      %v577 = vmul.f32 %v526, %v564
      %v578 = vmul.f32 %v527, %v564
      %v579 = vmul.f32 %v529, %v564
      %v580 = vmul.f32 %v530, %v564
      %v581 = vmul.f32 %v532, %v564
      %v582 = vmul.f32 %v533, %v564
      %v583 = vmul.f32 %v535, %v564
      %v584 = vmul.f32 %v536, %v564
      %v585 = vmul.f32 %v538, %v564
      %v586 = vmul.f32 %v539, %v564
      %v587 = vmul.f32 %v541, %v564
      %v588 = vmul.f32 %v542, %v564
      %v589 = vmul.f32 %v544, %v564
      %v590 = vmul.f32 %v545, %v564
      %v591 = vmul.f32 %v547, %v564
      %v592 = vmul.f32 %v548, %v564
      %v593 = vmul.f32 %v550, %v564
      %v594 = vmul.f32 %v551, %v564
      %v595 = vmul.f32 %v553, %v564
      %v596 = vmul.f32 %v554, %v564
      %v597 = vadd.f32 %v565, 0.0
      %v598 = vadd.f32 %v566, 0.0
      %v599 = vadd.f32 %v567, 0.0
      %v600 = vadd.f32 %v568, 0.0
      %v601 = vadd.f32 %v569, 0.0
      %v602 = vadd.f32 %v570, 0.0
      %v603 = vadd.f32 %v571, 0.0
      %v604 = vadd.f32 %v572, 0.0
      %v605 = vadd.f32 %v573, 0.0
      %v606 = vadd.f32 %v574, 0.0
      %v607 = vadd.f32 %v575, 0.0
      %v608 = vadd.f32 %v576, 0.0
      %v609 = vadd.f32 %v577, 0.0
      %v610 = vadd.f32 %v578, 0.0
      %v611 = vadd.f32 %v579, 0.0
      %v612 = vadd.f32 %v580, 0.0
      %v613 = vadd.f32 %v581, 0.0
      %v614 = vadd.f32 %v582, 0.0
      %v615 = vadd.f32 %v583, 0.0
      %v616 = vadd.f32 %v584, 0.0
      %v617 = vadd.f32 %v585, 0.0
      %v618 = vadd.f32 %v586, 0.0
      %v619 = vadd.f32 %v587, 0.0
      %v620 = vadd.f32 %v588, 0.0
      %v621 = vadd.f32 %v589, 0.0
      %v622 = vadd.f32 %v590, 0.0
      %v623 = vadd.f32 %v591, 0.0
      %v624 = vadd.f32 %v592, 0.0
      %v625 = vadd.f32 %v593, 0.0
      %v626 = vadd.f32 %v594, 0.0
      %v627 = vadd.f32 %v595, 0.0
      %v628 = vadd.f32 %v596, 0.0
      %v629 = vperm.slane %v562, 1
      %v630 = vmul.f32 %v508, %v629
      %v631 = vmul.f32 %v509, %v629
      %v632 = vmul.f32 %v510, %v629
      %v633 = vmul.f32 %v511, %v629
      %v634 = vmul.f32 %v512, %v629
      %v635 = vmul.f32 %v513, %v629
      %v636 = vmul.f32 %v514, %v629
      %v637 = vmul.f32 %v515, %v629
      %v638 = vmul.f32 %v516, %v629
      %v639 = vmul.f32 %v517, %v629
      %v640 = vmul.f32 %v518, %v629
      %v641 = vmul.f32 %v519, %v629
      %v642 = vmul.f32 %v520, %v629
      %v643 = vmul.f32 %v521, %v629
      %v644 = vmul.f32 %v522, %v629
      %v645 = vmul.f32 %v523, %v629
      %v646 = vmul.f32 %v524, %v629
      %v647 = vmul.f32 %v525, %v629
      %v648 = vmul.f32 %v526, %v629
      %v649 = vmul.f32 %v527, %v629
      %v650 = vmul.f32 %v528, %v629
      %v651 = vmul.f32 %v529, %v629
      %v652 = vmul.f32 %v530, %v629
      %v653 = vmul.f32 %v531, %v629
      %v654 = vmul.f32 %v532, %v629
      %v655 = vmul.f32 %v533, %v629
      %v656 = vmul.f32 %v534, %v629
      %v657 = vmul.f32 %v535, %v629
      %v658 = vmul.f32 %v536, %v629
      %v659 = vmul.f32 %v537, %v629
      %v660 = vmul.f32 %v538, %v629
      %v661 = vmul.f32 %v539, %v629
      %v662 = vmul.f32 %v540, %v629
      %v663 = vmul.f32 %v541, %v629
      %v664 = vmul.f32 %v542, %v629
      %v665 = vmul.f32 %v543, %v629
      %v666 = vmul.f32 %v544, %v629
      %v667 = vmul.f32 %v545, %v629
      %v668 = vmul.f32 %v546, %v629
      %v669 = vmul.f32 %v547, %v629
      %v670 = vmul.f32 %v548, %v629
      %v671 = vmul.f32 %v549, %v629
      %v672 = vmul.f32 %v550, %v629
      %v673 = vmul.f32 %v551, %v629
      %v674 = vmul.f32 %v552, %v629
      %v675 = vmul.f32 %v553, %v629
      %v676 = vmul.f32 %v554, %v629
      %v677 = vmul.f32 %v555, %v629
      %vm726 = vcmask 1046528
      %v727 = vrot.slane %v630, 1
      %v728 = vrot.slane %v631, 1
      %v729 = vsel %vm726, %v727, %v728
      %v730 = vrot.slane %v632, 1
      %v731 = vsel %vm726, %v728, %v730
      %v732 = vrot.slane %v633, 1
      %v733 = vrot.slane %v634, 1
      %v734 = vsel %vm726, %v732, %v733
      %v735 = vrot.slane %v635, 1
      %v736 = vsel %vm726, %v733, %v735
      %v737 = vrot.slane %v636, 1
      %v738 = vrot.slane %v637, 1
      %v739 = vsel %vm726, %v737, %v738
      %v740 = vrot.slane %v638, 1
      %v741 = vsel %vm726, %v738, %v740
      %v742 = vrot.slane %v639, 1
      %v743 = vrot.slane %v640, 1
      %v744 = vsel %vm726, %v742, %v743
      %v745 = vrot.slane %v641, 1
      %v746 = vsel %vm726, %v743, %v745
      %v747 = vrot.slane %v642, 1
      %v748 = vrot.slane %v643, 1
      %v749 = vsel %vm726, %v747, %v748
      %v750 = vrot.slane %v644, 1
      %v751 = vsel %vm726, %v748, %v750
      %v752 = vrot.slane %v645, 1
      %v753 = vrot.slane %v646, 1
      %v754 = vsel %vm726, %v752, %v753
      %v755 = vrot.slane %v647, 1
      %v756 = vsel %vm726, %v753, %v755
      %v757 = vrot.slane %v648, 1
      %v758 = vrot.slane %v649, 1
      %v759 = vsel %vm726, %v757, %v758
      %v760 = vrot.slane %v650, 1
      %v761 = vsel %vm726, %v758, %v760
      %v762 = vrot.slane %v651, 1
      %v763 = vrot.slane %v652, 1
      %v764 = vsel %vm726, %v762, %v763
      %v765 = vrot.slane %v653, 1
      %v766 = vsel %vm726, %v763, %v765
      %v767 = vrot.slane %v654, 1
      %v768 = vrot.slane %v655, 1
      %v769 = vsel %vm726, %v767, %v768
      %v770 = vrot.slane %v656, 1
      %v771 = vsel %vm726, %v768, %v770
      %v772 = vrot.slane %v657, 1
      %v773 = vrot.slane %v658, 1
      %v774 = vsel %vm726, %v772, %v773
      %v775 = vrot.slane %v659, 1
      %v776 = vsel %vm726, %v773, %v775
      %v777 = vrot.slane %v660, 1
      %v778 = vrot.slane %v661, 1
      %v779 = vsel %vm726, %v777, %v778
      %v780 = vrot.slane %v662, 1
      %v781 = vsel %vm726, %v778, %v780
      %v782 = vrot.slane %v663, 1
      %v783 = vrot.slane %v664, 1
      %v784 = vsel %vm726, %v782, %v783
      %v785 = vrot.slane %v665, 1
      %v786 = vsel %vm726, %v783, %v785
      %v787 = vrot.slane %v666, 1
      %v788 = vrot.slane %v667, 1
      %v789 = vsel %vm726, %v787, %v788
      %v790 = vrot.slane %v668, 1
      %v791 = vsel %vm726, %v788, %v790
      %v792 = vrot.slane %v669, 1
      %v793 = vrot.slane %v670, 1
      %v794 = vsel %vm726, %v792, %v793
      %v795 = vrot.slane %v671, 1
      %v796 = vsel %vm726, %v793, %v795
      %v797 = vrot.slane %v672, 1
      %v798 = vrot.slane %v673, 1
      %v799 = vsel %vm726, %v797, %v798
      %v800 = vrot.slane %v674, 1
      %v801 = vsel %vm726, %v798, %v800
      %v802 = vrot.slane %v675, 1
      %v803 = vrot.slane %v676, 1
      %v804 = vsel %vm726, %v802, %v803
      %v805 = vrot.slane %v677, 1
      %v806 = vsel %vm726, %v803, %v805
      %v839 = vadd.f32 %v597, %v729
      %v840 = vadd.f32 %v598, %v731
      %v841 = vadd.f32 %v599, %v734
      %v842 = vadd.f32 %v600, %v736
      %v843 = vadd.f32 %v601, %v739
      %v844 = vadd.f32 %v602, %v741
      %v845 = vadd.f32 %v603, %v744
      %v846 = vadd.f32 %v604, %v746
      %v847 = vadd.f32 %v605, %v749
      %v848 = vadd.f32 %v606, %v751
      %v849 = vadd.f32 %v607, %v754
      %v850 = vadd.f32 %v608, %v756
      %v851 = vadd.f32 %v609, %v759
      %v852 = vadd.f32 %v610, %v761
      %v853 = vadd.f32 %v611, %v764
      %v854 = vadd.f32 %v612, %v766
      %v855 = vadd.f32 %v613, %v769
      %v856 = vadd.f32 %v614, %v771
      %v857 = vadd.f32 %v615, %v774
      %v858 = vadd.f32 %v616, %v776
      %v859 = vadd.f32 %v617, %v779
      %v860 = vadd.f32 %v618, %v781
      %v861 = vadd.f32 %v619, %v784
      %v862 = vadd.f32 %v620, %v786
      %v863 = vadd.f32 %v621, %v789
      %v864 = vadd.f32 %v622, %v791
      %v865 = vadd.f32 %v623, %v794
      %v866 = vadd.f32 %v624, %v796
      %v867 = vadd.f32 %v625, %v799
      %v868 = vadd.f32 %v626, %v801
      %v869 = vadd.f32 %v627, %v804
      %v870 = vadd.f32 %v628, %v806
      %v871 = vperm.slane %v562, 2
      %v872 = vmul.f32 %v508, %v871
      %v873 = vmul.f32 %v509, %v871
      %v874 = vmul.f32 %v510, %v871
      %v875 = vmul.f32 %v511, %v871
      %v876 = vmul.f32 %v512, %v871
      %v877 = vmul.f32 %v513, %v871
      %v878 = vmul.f32 %v514, %v871
      %v879 = vmul.f32 %v515, %v871
      %v880 = vmul.f32 %v516, %v871
      %v881 = vmul.f32 %v517, %v871
      %v882 = vmul.f32 %v518, %v871
      %v883 = vmul.f32 %v519, %v871
      %v884 = vmul.f32 %v520, %v871
      %v885 = vmul.f32 %v521, %v871
      %v886 = vmul.f32 %v522, %v871
      %v887 = vmul.f32 %v523, %v871
      %v888 = vmul.f32 %v524, %v871
      %v889 = vmul.f32 %v525, %v871
      %v890 = vmul.f32 %v526, %v871
      %v891 = vmul.f32 %v527, %v871
      %v892 = vmul.f32 %v528, %v871
      %v893 = vmul.f32 %v529, %v871
      %v894 = vmul.f32 %v530, %v871
      %v895 = vmul.f32 %v531, %v871
      %v896 = vmul.f32 %v532, %v871
      %v897 = vmul.f32 %v533, %v871
      %v898 = vmul.f32 %v534, %v871
      %v899 = vmul.f32 %v535, %v871
      %v900 = vmul.f32 %v536, %v871
      %v901 = vmul.f32 %v537, %v871
      %v902 = vmul.f32 %v538, %v871
      %v903 = vmul.f32 %v539, %v871
      %v904 = vmul.f32 %v540, %v871
      %v905 = vmul.f32 %v541, %v871
      %v906 = vmul.f32 %v542, %v871
      %v907 = vmul.f32 %v543, %v871
      %v908 = vmul.f32 %v544, %v871
      %v909 = vmul.f32 %v545, %v871
      %v910 = vmul.f32 %v546, %v871
      %v911 = vmul.f32 %v547, %v871
      %v912 = vmul.f32 %v548, %v871
      %v913 = vmul.f32 %v549, %v871
      %v914 = vmul.f32 %v550, %v871
      %v915 = vmul.f32 %v551, %v871
      %v916 = vmul.f32 %v552, %v871
      %v917 = vmul.f32 %v553, %v871
      %v918 = vmul.f32 %v554, %v871
      %v919 = vmul.f32 %v555, %v871
      %vm968 = vcmask 1045504
      %v969 = vrot.slane %v872, 2
      %v970 = vrot.slane %v873, 2
      %v971 = vsel %vm968, %v969, %v970
      %v972 = vrot.slane %v874, 2
      %v973 = vsel %vm968, %v970, %v972
      %v974 = vrot.slane %v875, 2
      %v975 = vrot.slane %v876, 2
      %v976 = vsel %vm968, %v974, %v975
      %v977 = vrot.slane %v877, 2
      %v978 = vsel %vm968, %v975, %v977
      %v979 = vrot.slane %v878, 2
      %v980 = vrot.slane %v879, 2
      %v981 = vsel %vm968, %v979, %v980
      %v982 = vrot.slane %v880, 2
      %v983 = vsel %vm968, %v980, %v982
      %v984 = vrot.slane %v881, 2
      %v985 = vrot.slane %v882, 2
      %v986 = vsel %vm968, %v984, %v985
      %v987 = vrot.slane %v883, 2
      %v988 = vsel %vm968, %v985, %v987
      %v989 = vrot.slane %v884, 2
      %v990 = vrot.slane %v885, 2
      %v991 = vsel %vm968, %v989, %v990
      %v992 = vrot.slane %v886, 2
      %v993 = vsel %vm968, %v990, %v992
      %v994 = vrot.slane %v887, 2
      %v995 = vrot.slane %v888, 2
      %v996 = vsel %vm968, %v994, %v995
      %v997 = vrot.slane %v889, 2
      %v998 = vsel %vm968, %v995, %v997
      %v999 = vrot.slane %v890, 2
      %v1000 = vrot.slane %v891, 2
      %v1001 = vsel %vm968, %v999, %v1000
      %v1002 = vrot.slane %v892, 2
      %v1003 = vsel %vm968, %v1000, %v1002
      %v1004 = vrot.slane %v893, 2
      %v1005 = vrot.slane %v894, 2
      %v1006 = vsel %vm968, %v1004, %v1005
      %v1007 = vrot.slane %v895, 2
      %v1008 = vsel %vm968, %v1005, %v1007
      %v1009 = vrot.slane %v896, 2
      %v1010 = vrot.slane %v897, 2
      %v1011 = vsel %vm968, %v1009, %v1010
      %v1012 = vrot.slane %v898, 2
      %v1013 = vsel %vm968, %v1010, %v1012
      %v1014 = vrot.slane %v899, 2
      %v1015 = vrot.slane %v900, 2
      %v1016 = vsel %vm968, %v1014, %v1015
      %v1017 = vrot.slane %v901, 2
      %v1018 = vsel %vm968, %v1015, %v1017
      %v1019 = vrot.slane %v902, 2
      %v1020 = vrot.slane %v903, 2
      %v1021 = vsel %vm968, %v1019, %v1020
      %v1022 = vrot.slane %v904, 2
      %v1023 = vsel %vm968, %v1020, %v1022
      %v1024 = vrot.slane %v905, 2
      %v1025 = vrot.slane %v906, 2
      %v1026 = vsel %vm968, %v1024, %v1025
      %v1027 = vrot.slane %v907, 2
      %v1028 = vsel %vm968, %v1025, %v1027
      %v1029 = vrot.slane %v908, 2
      %v1030 = vrot.slane %v909, 2
      %v1031 = vsel %vm968, %v1029, %v1030
      %v1032 = vrot.slane %v910, 2
      %v1033 = vsel %vm968, %v1030, %v1032
      %v1034 = vrot.slane %v911, 2
      %v1035 = vrot.slane %v912, 2
      %v1036 = vsel %vm968, %v1034, %v1035
      %v1037 = vrot.slane %v913, 2
      %v1038 = vsel %vm968, %v1035, %v1037
      %v1039 = vrot.slane %v914, 2
      %v1040 = vrot.slane %v915, 2
      %v1041 = vsel %vm968, %v1039, %v1040
      %v1042 = vrot.slane %v916, 2
      %v1043 = vsel %vm968, %v1040, %v1042
      %v1044 = vrot.slane %v917, 2
      %v1045 = vrot.slane %v918, 2
      %v1046 = vsel %vm968, %v1044, %v1045
      %v1047 = vrot.slane %v919, 2
      %v1048 = vsel %vm968, %v1045, %v1047
      %v1081 = vadd.f32 %v839, %v971
      %v1082 = vadd.f32 %v840, %v973
      %v1083 = vadd.f32 %v841, %v976
      %v1084 = vadd.f32 %v842, %v978
      %v1085 = vadd.f32 %v843, %v981
      %v1086 = vadd.f32 %v844, %v983
      %v1087 = vadd.f32 %v845, %v986
      %v1088 = vadd.f32 %v846, %v988
      %v1089 = vadd.f32 %v847, %v991
      %v1090 = vadd.f32 %v848, %v993
      %v1091 = vadd.f32 %v849, %v996
      %v1092 = vadd.f32 %v850, %v998
      %v1093 = vadd.f32 %v851, %v1001
      %v1094 = vadd.f32 %v852, %v1003
      %v1095 = vadd.f32 %v853, %v1006
      %v1096 = vadd.f32 %v854, %v1008
      %v1097 = vadd.f32 %v855, %v1011
      %v1098 = vadd.f32 %v856, %v1013
      %v1099 = vadd.f32 %v857, %v1016
      %v1100 = vadd.f32 %v858, %v1018
      %v1101 = vadd.f32 %v859, %v1021
      %v1102 = vadd.f32 %v860, %v1023
      %v1103 = vadd.f32 %v861, %v1026
      %v1104 = vadd.f32 %v862, %v1028
      %v1105 = vadd.f32 %v863, %v1031
      %v1106 = vadd.f32 %v864, %v1033
      %v1107 = vadd.f32 %v865, %v1036
      %v1108 = vadd.f32 %v866, %v1038
      %v1109 = vadd.f32 %v867, %v1041
      %v1110 = vadd.f32 %v868, %v1043
      %v1111 = vadd.f32 %v869, %v1046
      %v1112 = vadd.f32 %v870, %v1048
      %v1113 = vperm.slane %v562, 3
      %v1114 = vmul.f32 %v511, %v1113
      %v1115 = vmul.f32 %v512, %v1113
      %v1116 = vmul.f32 %v514, %v1113
      %v1117 = vmul.f32 %v515, %v1113
      %v1118 = vmul.f32 %v517, %v1113
      %v1119 = vmul.f32 %v518, %v1113
      %v1120 = vmul.f32 %v520, %v1113
      %v1121 = vmul.f32 %v521, %v1113
      %v1122 = vmul.f32 %v523, %v1113
      %v1123 = vmul.f32 %v524, %v1113
      %v1124 = vmul.f32 %v526, %v1113
      %v1125 = vmul.f32 %v527, %v1113
      %v1126 = vmul.f32 %v529, %v1113
      %v1127 = vmul.f32 %v530, %v1113
      %v1128 = vmul.f32 %v532, %v1113
      %v1129 = vmul.f32 %v533, %v1113
      %v1130 = vmul.f32 %v535, %v1113
      %v1131 = vmul.f32 %v536, %v1113
      %v1132 = vmul.f32 %v538, %v1113
      %v1133 = vmul.f32 %v539, %v1113
      %v1134 = vmul.f32 %v541, %v1113
      %v1135 = vmul.f32 %v542, %v1113
      %v1136 = vmul.f32 %v544, %v1113
      %v1137 = vmul.f32 %v545, %v1113
      %v1138 = vmul.f32 %v547, %v1113
      %v1139 = vmul.f32 %v548, %v1113
      %v1140 = vmul.f32 %v550, %v1113
      %v1141 = vmul.f32 %v551, %v1113
      %v1142 = vmul.f32 %v553, %v1113
      %v1143 = vmul.f32 %v554, %v1113
      %v1144 = vmul.f32 %v556, %v1113
      %v1145 = vmul.f32 %v557, %v1113
      %v1146 = vadd.f32 %v1081, %v1114
      %v1147 = vadd.f32 %v1082, %v1115
      %v1148 = vadd.f32 %v1083, %v1116
      %v1149 = vadd.f32 %v1084, %v1117
      %v1150 = vadd.f32 %v1085, %v1118
      %v1151 = vadd.f32 %v1086, %v1119
      %v1152 = vadd.f32 %v1087, %v1120
      %v1153 = vadd.f32 %v1088, %v1121
      %v1154 = vadd.f32 %v1089, %v1122
      %v1155 = vadd.f32 %v1090, %v1123
      %v1156 = vadd.f32 %v1091, %v1124
      %v1157 = vadd.f32 %v1092, %v1125
      %v1158 = vadd.f32 %v1093, %v1126
      %v1159 = vadd.f32 %v1094, %v1127
      %v1160 = vadd.f32 %v1095, %v1128
      %v1161 = vadd.f32 %v1096, %v1129
      %v1162 = vadd.f32 %v1097, %v1130
      %v1163 = vadd.f32 %v1098, %v1131
      %v1164 = vadd.f32 %v1099, %v1132
      %v1165 = vadd.f32 %v1100, %v1133
      %v1166 = vadd.f32 %v1101, %v1134
      %v1167 = vadd.f32 %v1102, %v1135
      %v1168 = vadd.f32 %v1103, %v1136
      %v1169 = vadd.f32 %v1104, %v1137
      %v1170 = vadd.f32 %v1105, %v1138
      %v1171 = vadd.f32 %v1106, %v1139
      %v1172 = vadd.f32 %v1107, %v1140
      %v1173 = vadd.f32 %v1108, %v1141
      %v1174 = vadd.f32 %v1109, %v1142
      %v1175 = vadd.f32 %v1110, %v1143
      %v1176 = vadd.f32 %v1111, %v1144
      %v1177 = vadd.f32 %v1112, %v1145
      %v1178 = vperm.slane %v562, 4
      %v1179 = vmul.f32 %v511, %v1178
      %v1180 = vmul.f32 %v512, %v1178
      %v1181 = vmul.f32 %v513, %v1178
      %v1182 = vmul.f32 %v514, %v1178
      %v1183 = vmul.f32 %v515, %v1178
      %v1184 = vmul.f32 %v516, %v1178
      %v1185 = vmul.f32 %v517, %v1178
      %v1186 = vmul.f32 %v518, %v1178
      %v1187 = vmul.f32 %v519, %v1178
      %v1188 = vmul.f32 %v520, %v1178
      %v1189 = vmul.f32 %v521, %v1178
      %v1190 = vmul.f32 %v522, %v1178
      %v1191 = vmul.f32 %v523, %v1178
      %v1192 = vmul.f32 %v524, %v1178
      %v1193 = vmul.f32 %v525, %v1178
      %v1194 = vmul.f32 %v526, %v1178
      %v1195 = vmul.f32 %v527, %v1178
      %v1196 = vmul.f32 %v528, %v1178
      %v1197 = vmul.f32 %v529, %v1178
      %v1198 = vmul.f32 %v530, %v1178
      %v1199 = vmul.f32 %v531, %v1178
      %v1200 = vmul.f32 %v532, %v1178
      %v1201 = vmul.f32 %v533, %v1178
      %v1202 = vmul.f32 %v534, %v1178
      %v1203 = vmul.f32 %v535, %v1178
      %v1204 = vmul.f32 %v536, %v1178
      %v1205 = vmul.f32 %v537, %v1178
      %v1206 = vmul.f32 %v538, %v1178
      %v1207 = vmul.f32 %v539, %v1178
      %v1208 = vmul.f32 %v540, %v1178
      %v1209 = vmul.f32 %v541, %v1178
      %v1210 = vmul.f32 %v542, %v1178
      %v1211 = vmul.f32 %v543, %v1178
      %v1212 = vmul.f32 %v544, %v1178
      %v1213 = vmul.f32 %v545, %v1178
      %v1214 = vmul.f32 %v546, %v1178
      %v1215 = vmul.f32 %v547, %v1178
      %v1216 = vmul.f32 %v548, %v1178
      %v1217 = vmul.f32 %v549, %v1178
      %v1218 = vmul.f32 %v550, %v1178
      %v1219 = vmul.f32 %v551, %v1178
      %v1220 = vmul.f32 %v552, %v1178
      %v1221 = vmul.f32 %v553, %v1178
      %v1222 = vmul.f32 %v554, %v1178
      %v1223 = vmul.f32 %v555, %v1178
      %v1224 = vmul.f32 %v556, %v1178
      %v1225 = vmul.f32 %v557, %v1178
      %v1226 = vmul.f32 %v558, %v1178
      %v1275 = vrot.slane %v1179, 1
      %v1276 = vrot.slane %v1180, 1
      %v1277 = vsel %vm726, %v1275, %v1276
      %v1278 = vrot.slane %v1181, 1
      %v1279 = vsel %vm726, %v1276, %v1278
      %v1280 = vrot.slane %v1182, 1
      %v1281 = vrot.slane %v1183, 1
      %v1282 = vsel %vm726, %v1280, %v1281
      %v1283 = vrot.slane %v1184, 1
      %v1284 = vsel %vm726, %v1281, %v1283
      %v1285 = vrot.slane %v1185, 1
      %v1286 = vrot.slane %v1186, 1
      %v1287 = vsel %vm726, %v1285, %v1286
      %v1288 = vrot.slane %v1187, 1
      %v1289 = vsel %vm726, %v1286, %v1288
      %v1290 = vrot.slane %v1188, 1
      %v1291 = vrot.slane %v1189, 1
      %v1292 = vsel %vm726, %v1290, %v1291
      %v1293 = vrot.slane %v1190, 1
      %v1294 = vsel %vm726, %v1291, %v1293
      %v1295 = vrot.slane %v1191, 1
      %v1296 = vrot.slane %v1192, 1
      %v1297 = vsel %vm726, %v1295, %v1296
      %v1298 = vrot.slane %v1193, 1
      %v1299 = vsel %vm726, %v1296, %v1298
      %v1300 = vrot.slane %v1194, 1
      %v1301 = vrot.slane %v1195, 1
      %v1302 = vsel %vm726, %v1300, %v1301
      %v1303 = vrot.slane %v1196, 1
      %v1304 = vsel %vm726, %v1301, %v1303
      %v1305 = vrot.slane %v1197, 1
      %v1306 = vrot.slane %v1198, 1
      %v1307 = vsel %vm726, %v1305, %v1306
      %v1308 = vrot.slane %v1199, 1
      %v1309 = vsel %vm726, %v1306, %v1308
      %v1310 = vrot.slane %v1200, 1
      %v1311 = vrot.slane %v1201, 1
      %v1312 = vsel %vm726, %v1310, %v1311
      %v1313 = vrot.slane %v1202, 1
      %v1314 = vsel %vm726, %v1311, %v1313
      %v1315 = vrot.slane %v1203, 1
      %v1316 = vrot.slane %v1204, 1
      %v1317 = vsel %vm726, %v1315, %v1316
      %v1318 = vrot.slane %v1205, 1
      %v1319 = vsel %vm726, %v1316, %v1318
      %v1320 = vrot.slane %v1206, 1
      %v1321 = vrot.slane %v1207, 1
      %v1322 = vsel %vm726, %v1320, %v1321
      %v1323 = vrot.slane %v1208, 1
      %v1324 = vsel %vm726, %v1321, %v1323
      %v1325 = vrot.slane %v1209, 1
      %v1326 = vrot.slane %v1210, 1
      %v1327 = vsel %vm726, %v1325, %v1326
      %v1328 = vrot.slane %v1211, 1
      %v1329 = vsel %vm726, %v1326, %v1328
      %v1330 = vrot.slane %v1212, 1
      %v1331 = vrot.slane %v1213, 1
      %v1332 = vsel %vm726, %v1330, %v1331
      %v1333 = vrot.slane %v1214, 1
      %v1334 = vsel %vm726, %v1331, %v1333
      %v1335 = vrot.slane %v1215, 1
      %v1336 = vrot.slane %v1216, 1
      %v1337 = vsel %vm726, %v1335, %v1336
      %v1338 = vrot.slane %v1217, 1
      %v1339 = vsel %vm726, %v1336, %v1338
      %v1340 = vrot.slane %v1218, 1
      %v1341 = vrot.slane %v1219, 1
      %v1342 = vsel %vm726, %v1340, %v1341
      %v1343 = vrot.slane %v1220, 1
      %v1344 = vsel %vm726, %v1341, %v1343
      %v1345 = vrot.slane %v1221, 1
      %v1346 = vrot.slane %v1222, 1
      %v1347 = vsel %vm726, %v1345, %v1346
      %v1348 = vrot.slane %v1223, 1
      %v1349 = vsel %vm726, %v1346, %v1348
      %v1350 = vrot.slane %v1224, 1
      %v1351 = vrot.slane %v1225, 1
      %v1352 = vsel %vm726, %v1350, %v1351
      %v1353 = vrot.slane %v1226, 1
      %v1354 = vsel %vm726, %v1351, %v1353
      %v1387 = vadd.f32 %v1146, %v1277
      %v1388 = vadd.f32 %v1147, %v1279
      %v1389 = vadd.f32 %v1148, %v1282
      %v1390 = vadd.f32 %v1149, %v1284
      %v1391 = vadd.f32 %v1150, %v1287
      %v1392 = vadd.f32 %v1151, %v1289
      %v1393 = vadd.f32 %v1152, %v1292
      %v1394 = vadd.f32 %v1153, %v1294
      %v1395 = vadd.f32 %v1154, %v1297
      %v1396 = vadd.f32 %v1155, %v1299
      %v1397 = vadd.f32 %v1156, %v1302
      %v1398 = vadd.f32 %v1157, %v1304
      %v1399 = vadd.f32 %v1158, %v1307
      %v1400 = vadd.f32 %v1159, %v1309
      %v1401 = vadd.f32 %v1160, %v1312
      %v1402 = vadd.f32 %v1161, %v1314
      %v1403 = vadd.f32 %v1162, %v1317
      %v1404 = vadd.f32 %v1163, %v1319
      %v1405 = vadd.f32 %v1164, %v1322
      %v1406 = vadd.f32 %v1165, %v1324
      %v1407 = vadd.f32 %v1166, %v1327
      %v1408 = vadd.f32 %v1167, %v1329
      %v1409 = vadd.f32 %v1168, %v1332
      %v1410 = vadd.f32 %v1169, %v1334
      %v1411 = vadd.f32 %v1170, %v1337
      %v1412 = vadd.f32 %v1171, %v1339
      %v1413 = vadd.f32 %v1172, %v1342
      %v1414 = vadd.f32 %v1173, %v1344
      %v1415 = vadd.f32 %v1174, %v1347
      %v1416 = vadd.f32 %v1175, %v1349
      %v1417 = vadd.f32 %v1176, %v1352
      %v1418 = vadd.f32 %v1177, %v1354
      %v1419 = vperm.slane %v562, 5
      %v1420 = vmul.f32 %v511, %v1419
      %v1421 = vmul.f32 %v512, %v1419
      %v1422 = vmul.f32 %v513, %v1419
      %v1423 = vmul.f32 %v514, %v1419
      %v1424 = vmul.f32 %v515, %v1419
      %v1425 = vmul.f32 %v516, %v1419
      %v1426 = vmul.f32 %v517, %v1419
      %v1427 = vmul.f32 %v518, %v1419
      %v1428 = vmul.f32 %v519, %v1419
      %v1429 = vmul.f32 %v520, %v1419
      %v1430 = vmul.f32 %v521, %v1419
      %v1431 = vmul.f32 %v522, %v1419
      %v1432 = vmul.f32 %v523, %v1419
      %v1433 = vmul.f32 %v524, %v1419
      %v1434 = vmul.f32 %v525, %v1419
      %v1435 = vmul.f32 %v526, %v1419
      %v1436 = vmul.f32 %v527, %v1419
      %v1437 = vmul.f32 %v528, %v1419
      %v1438 = vmul.f32 %v529, %v1419
      %v1439 = vmul.f32 %v530, %v1419
      %v1440 = vmul.f32 %v531, %v1419
      %v1441 = vmul.f32 %v532, %v1419
      %v1442 = vmul.f32 %v533, %v1419
      %v1443 = vmul.f32 %v534, %v1419
      %v1444 = vmul.f32 %v535, %v1419
      %v1445 = vmul.f32 %v536, %v1419
      %v1446 = vmul.f32 %v537, %v1419
      %v1447 = vmul.f32 %v538, %v1419
      %v1448 = vmul.f32 %v539, %v1419
      %v1449 = vmul.f32 %v540, %v1419
      %v1450 = vmul.f32 %v541, %v1419
      %v1451 = vmul.f32 %v542, %v1419
      %v1452 = vmul.f32 %v543, %v1419
      %v1453 = vmul.f32 %v544, %v1419
      %v1454 = vmul.f32 %v545, %v1419
      %v1455 = vmul.f32 %v546, %v1419
      %v1456 = vmul.f32 %v547, %v1419
      %v1457 = vmul.f32 %v548, %v1419
      %v1458 = vmul.f32 %v549, %v1419
      %v1459 = vmul.f32 %v550, %v1419
      %v1460 = vmul.f32 %v551, %v1419
      %v1461 = vmul.f32 %v552, %v1419
      %v1462 = vmul.f32 %v553, %v1419
      %v1463 = vmul.f32 %v554, %v1419
      %v1464 = vmul.f32 %v555, %v1419
      %v1465 = vmul.f32 %v556, %v1419
      %v1466 = vmul.f32 %v557, %v1419
      %v1467 = vmul.f32 %v558, %v1419
      %v1516 = vrot.slane %v1420, 2
      %v1517 = vrot.slane %v1421, 2
      %v1518 = vsel %vm968, %v1516, %v1517
      %v1519 = vrot.slane %v1422, 2
      %v1520 = vsel %vm968, %v1517, %v1519
      %v1521 = vrot.slane %v1423, 2
      %v1522 = vrot.slane %v1424, 2
      %v1523 = vsel %vm968, %v1521, %v1522
      %v1524 = vrot.slane %v1425, 2
      %v1525 = vsel %vm968, %v1522, %v1524
      %v1526 = vrot.slane %v1426, 2
      %v1527 = vrot.slane %v1427, 2
      %v1528 = vsel %vm968, %v1526, %v1527
      %v1529 = vrot.slane %v1428, 2
      %v1530 = vsel %vm968, %v1527, %v1529
      %v1531 = vrot.slane %v1429, 2
      %v1532 = vrot.slane %v1430, 2
      %v1533 = vsel %vm968, %v1531, %v1532
      %v1534 = vrot.slane %v1431, 2
      %v1535 = vsel %vm968, %v1532, %v1534
      %v1536 = vrot.slane %v1432, 2
      %v1537 = vrot.slane %v1433, 2
      %v1538 = vsel %vm968, %v1536, %v1537
      %v1539 = vrot.slane %v1434, 2
      %v1540 = vsel %vm968, %v1537, %v1539
      %v1541 = vrot.slane %v1435, 2
      %v1542 = vrot.slane %v1436, 2
      %v1543 = vsel %vm968, %v1541, %v1542
      %v1544 = vrot.slane %v1437, 2
      %v1545 = vsel %vm968, %v1542, %v1544
      %v1546 = vrot.slane %v1438, 2
      %v1547 = vrot.slane %v1439, 2
      %v1548 = vsel %vm968, %v1546, %v1547
      %v1549 = vrot.slane %v1440, 2
      %v1550 = vsel %vm968, %v1547, %v1549
      %v1551 = vrot.slane %v1441, 2
      %v1552 = vrot.slane %v1442, 2
      %v1553 = vsel %vm968, %v1551, %v1552
      %v1554 = vrot.slane %v1443, 2
      %v1555 = vsel %vm968, %v1552, %v1554
      %v1556 = vrot.slane %v1444, 2
      %v1557 = vrot.slane %v1445, 2
      %v1558 = vsel %vm968, %v1556, %v1557
      %v1559 = vrot.slane %v1446, 2
      %v1560 = vsel %vm968, %v1557, %v1559
      %v1561 = vrot.slane %v1447, 2
      %v1562 = vrot.slane %v1448, 2
      %v1563 = vsel %vm968, %v1561, %v1562
      %v1564 = vrot.slane %v1449, 2
      %v1565 = vsel %vm968, %v1562, %v1564
      %v1566 = vrot.slane %v1450, 2
      %v1567 = vrot.slane %v1451, 2
      %v1568 = vsel %vm968, %v1566, %v1567
      %v1569 = vrot.slane %v1452, 2
      %v1570 = vsel %vm968, %v1567, %v1569
      %v1571 = vrot.slane %v1453, 2
      %v1572 = vrot.slane %v1454, 2
      %v1573 = vsel %vm968, %v1571, %v1572
      %v1574 = vrot.slane %v1455, 2
      %v1575 = vsel %vm968, %v1572, %v1574
      %v1576 = vrot.slane %v1456, 2
      %v1577 = vrot.slane %v1457, 2
      %v1578 = vsel %vm968, %v1576, %v1577
      %v1579 = vrot.slane %v1458, 2
      %v1580 = vsel %vm968, %v1577, %v1579
      %v1581 = vrot.slane %v1459, 2
      %v1582 = vrot.slane %v1460, 2
      %v1583 = vsel %vm968, %v1581, %v1582
      %v1584 = vrot.slane %v1461, 2
      %v1585 = vsel %vm968, %v1582, %v1584
      %v1586 = vrot.slane %v1462, 2
      %v1587 = vrot.slane %v1463, 2
      %v1588 = vsel %vm968, %v1586, %v1587
      %v1589 = vrot.slane %v1464, 2
      %v1590 = vsel %vm968, %v1587, %v1589
      %v1591 = vrot.slane %v1465, 2
      %v1592 = vrot.slane %v1466, 2
      %v1593 = vsel %vm968, %v1591, %v1592
      %v1594 = vrot.slane %v1467, 2
      %v1595 = vsel %vm968, %v1592, %v1594
      %v1628 = vadd.f32 %v1387, %v1518
      %v1629 = vadd.f32 %v1388, %v1520
      %v1630 = vadd.f32 %v1389, %v1523
      %v1631 = vadd.f32 %v1390, %v1525
      %v1632 = vadd.f32 %v1391, %v1528
      %v1633 = vadd.f32 %v1392, %v1530
      %v1634 = vadd.f32 %v1393, %v1533
      %v1635 = vadd.f32 %v1394, %v1535
      %v1636 = vadd.f32 %v1395, %v1538
      %v1637 = vadd.f32 %v1396, %v1540
      %v1638 = vadd.f32 %v1397, %v1543
      %v1639 = vadd.f32 %v1398, %v1545
      %v1640 = vadd.f32 %v1399, %v1548
      %v1641 = vadd.f32 %v1400, %v1550
      %v1642 = vadd.f32 %v1401, %v1553
      %v1643 = vadd.f32 %v1402, %v1555
      %v1644 = vadd.f32 %v1403, %v1558
      %v1645 = vadd.f32 %v1404, %v1560
      %v1646 = vadd.f32 %v1405, %v1563
      %v1647 = vadd.f32 %v1406, %v1565
      %v1648 = vadd.f32 %v1407, %v1568
      %v1649 = vadd.f32 %v1408, %v1570
      %v1650 = vadd.f32 %v1409, %v1573
      %v1651 = vadd.f32 %v1410, %v1575
      %v1652 = vadd.f32 %v1411, %v1578
      %v1653 = vadd.f32 %v1412, %v1580
      %v1654 = vadd.f32 %v1413, %v1583
      %v1655 = vadd.f32 %v1414, %v1585
      %v1656 = vadd.f32 %v1415, %v1588
      %v1657 = vadd.f32 %v1416, %v1590
      %v1658 = vadd.f32 %v1417, %v1593
      %v1659 = vadd.f32 %v1418, %v1595
      %v1660 = vperm.slane %v562, 6
      %v1661 = vmul.f32 %v514, %v1660
      %v1662 = vmul.f32 %v515, %v1660
      %v1663 = vmul.f32 %v517, %v1660
      %v1664 = vmul.f32 %v518, %v1660
      %v1665 = vmul.f32 %v520, %v1660
      %v1666 = vmul.f32 %v521, %v1660
      %v1667 = vmul.f32 %v523, %v1660
      %v1668 = vmul.f32 %v524, %v1660
      %v1669 = vmul.f32 %v526, %v1660
      %v1670 = vmul.f32 %v527, %v1660
      %v1671 = vmul.f32 %v529, %v1660
      %v1672 = vmul.f32 %v530, %v1660
      %v1673 = vmul.f32 %v532, %v1660
      %v1674 = vmul.f32 %v533, %v1660
      %v1675 = vmul.f32 %v535, %v1660
      %v1676 = vmul.f32 %v536, %v1660
      %v1677 = vmul.f32 %v538, %v1660
      %v1678 = vmul.f32 %v539, %v1660
      %v1679 = vmul.f32 %v541, %v1660
      %v1680 = vmul.f32 %v542, %v1660
      %v1681 = vmul.f32 %v544, %v1660
      %v1682 = vmul.f32 %v545, %v1660
      %v1683 = vmul.f32 %v547, %v1660
      %v1684 = vmul.f32 %v548, %v1660
      %v1685 = vmul.f32 %v550, %v1660
      %v1686 = vmul.f32 %v551, %v1660
      %v1687 = vmul.f32 %v553, %v1660
      %v1688 = vmul.f32 %v554, %v1660
      %v1689 = vmul.f32 %v556, %v1660
      %v1690 = vmul.f32 %v557, %v1660
      %v1691 = vmul.f32 %v559, %v1660
      %v1692 = vmul.f32 %v560, %v1660
      %v1693 = vadd.f32 %v1628, %v1661
      %v1694 = vadd.f32 %v1629, %v1662
      %v1695 = vadd.f32 %v1630, %v1663
      %v1696 = vadd.f32 %v1631, %v1664
      %v1697 = vadd.f32 %v1632, %v1665
      %v1698 = vadd.f32 %v1633, %v1666
      %v1699 = vadd.f32 %v1634, %v1667
      %v1700 = vadd.f32 %v1635, %v1668
      %v1701 = vadd.f32 %v1636, %v1669
      %v1702 = vadd.f32 %v1637, %v1670
      %v1703 = vadd.f32 %v1638, %v1671
      %v1704 = vadd.f32 %v1639, %v1672
      %v1705 = vadd.f32 %v1640, %v1673
      %v1706 = vadd.f32 %v1641, %v1674
      %v1707 = vadd.f32 %v1642, %v1675
      %v1708 = vadd.f32 %v1643, %v1676
      %v1709 = vadd.f32 %v1644, %v1677
      %v1710 = vadd.f32 %v1645, %v1678
      %v1711 = vadd.f32 %v1646, %v1679
      %v1712 = vadd.f32 %v1647, %v1680
      %v1713 = vadd.f32 %v1648, %v1681
      %v1714 = vadd.f32 %v1649, %v1682
      %v1715 = vadd.f32 %v1650, %v1683
      %v1716 = vadd.f32 %v1651, %v1684
      %v1717 = vadd.f32 %v1652, %v1685
      %v1718 = vadd.f32 %v1653, %v1686
      %v1719 = vadd.f32 %v1654, %v1687
      %v1720 = vadd.f32 %v1655, %v1688
      %v1721 = vadd.f32 %v1656, %v1689
      %v1722 = vadd.f32 %v1657, %v1690
      %v1723 = vadd.f32 %v1658, %v1691
      %v1724 = vadd.f32 %v1659, %v1692
      %v1725 = vperm.slane %v562, 7
      %v1726 = vmul.f32 %v514, %v1725
      %v1727 = vmul.f32 %v515, %v1725
      %v1728 = vmul.f32 %v516, %v1725
      %v1729 = vmul.f32 %v517, %v1725
      %v1730 = vmul.f32 %v518, %v1725
      %v1731 = vmul.f32 %v519, %v1725
      %v1732 = vmul.f32 %v520, %v1725
      %v1733 = vmul.f32 %v521, %v1725
      %v1734 = vmul.f32 %v522, %v1725
      %v1735 = vmul.f32 %v523, %v1725
      %v1736 = vmul.f32 %v524, %v1725
      %v1737 = vmul.f32 %v525, %v1725
      %v1738 = vmul.f32 %v526, %v1725
      %v1739 = vmul.f32 %v527, %v1725
      %v1740 = vmul.f32 %v528, %v1725
      %v1741 = vmul.f32 %v529, %v1725
      %v1742 = vmul.f32 %v530, %v1725
      %v1743 = vmul.f32 %v531, %v1725
      %v1744 = vmul.f32 %v532, %v1725
      %v1745 = vmul.f32 %v533, %v1725
      %v1746 = vmul.f32 %v534, %v1725
      %v1747 = vmul.f32 %v535, %v1725
      %v1748 = vmul.f32 %v536, %v1725
      %v1749 = vmul.f32 %v537, %v1725
      %v1750 = vmul.f32 %v538, %v1725
      %v1751 = vmul.f32 %v539, %v1725
      %v1752 = vmul.f32 %v540, %v1725
      %v1753 = vmul.f32 %v541, %v1725
      %v1754 = vmul.f32 %v542, %v1725
      %v1755 = vmul.f32 %v543, %v1725
      %v1756 = vmul.f32 %v544, %v1725
      %v1757 = vmul.f32 %v545, %v1725
      %v1758 = vmul.f32 %v546, %v1725
      %v1759 = vmul.f32 %v547, %v1725
      %v1760 = vmul.f32 %v548, %v1725
      %v1761 = vmul.f32 %v549, %v1725
      %v1762 = vmul.f32 %v550, %v1725
      %v1763 = vmul.f32 %v551, %v1725
      %v1764 = vmul.f32 %v552, %v1725
      %v1765 = vmul.f32 %v553, %v1725
      %v1766 = vmul.f32 %v554, %v1725
      %v1767 = vmul.f32 %v555, %v1725
      %v1768 = vmul.f32 %v556, %v1725
      %v1769 = vmul.f32 %v557, %v1725
      %v1770 = vmul.f32 %v558, %v1725
      %v1771 = vmul.f32 %v559, %v1725
      %v1772 = vmul.f32 %v560, %v1725
      %v1773 = vmul.f32 %v561, %v1725
      %v1822 = vrot.slane %v1726, 1
      %v1823 = vrot.slane %v1727, 1
      %v1824 = vsel %vm726, %v1822, %v1823
      %v1825 = vrot.slane %v1728, 1
      %v1826 = vsel %vm726, %v1823, %v1825
      %v1827 = vrot.slane %v1729, 1
      %v1828 = vrot.slane %v1730, 1
      %v1829 = vsel %vm726, %v1827, %v1828
      %v1830 = vrot.slane %v1731, 1
      %v1831 = vsel %vm726, %v1828, %v1830
      %v1832 = vrot.slane %v1732, 1
      %v1833 = vrot.slane %v1733, 1
      %v1834 = vsel %vm726, %v1832, %v1833
      %v1835 = vrot.slane %v1734, 1
      %v1836 = vsel %vm726, %v1833, %v1835
      %v1837 = vrot.slane %v1735, 1
      %v1838 = vrot.slane %v1736, 1
      %v1839 = vsel %vm726, %v1837, %v1838
      %v1840 = vrot.slane %v1737, 1
      %v1841 = vsel %vm726, %v1838, %v1840
      %v1842 = vrot.slane %v1738, 1
      %v1843 = vrot.slane %v1739, 1
      %v1844 = vsel %vm726, %v1842, %v1843
      %v1845 = vrot.slane %v1740, 1
      %v1846 = vsel %vm726, %v1843, %v1845
      %v1847 = vrot.slane %v1741, 1
      %v1848 = vrot.slane %v1742, 1
      %v1849 = vsel %vm726, %v1847, %v1848
      %v1850 = vrot.slane %v1743, 1
      %v1851 = vsel %vm726, %v1848, %v1850
      %v1852 = vrot.slane %v1744, 1
      %v1853 = vrot.slane %v1745, 1
      %v1854 = vsel %vm726, %v1852, %v1853
      %v1855 = vrot.slane %v1746, 1
      %v1856 = vsel %vm726, %v1853, %v1855
      %v1857 = vrot.slane %v1747, 1
      %v1858 = vrot.slane %v1748, 1
      %v1859 = vsel %vm726, %v1857, %v1858
      %v1860 = vrot.slane %v1749, 1
      %v1861 = vsel %vm726, %v1858, %v1860
      %v1862 = vrot.slane %v1750, 1
      %v1863 = vrot.slane %v1751, 1
      %v1864 = vsel %vm726, %v1862, %v1863
      %v1865 = vrot.slane %v1752, 1
      %v1866 = vsel %vm726, %v1863, %v1865
      %v1867 = vrot.slane %v1753, 1
      %v1868 = vrot.slane %v1754, 1
      %v1869 = vsel %vm726, %v1867, %v1868
      %v1870 = vrot.slane %v1755, 1
      %v1871 = vsel %vm726, %v1868, %v1870
      %v1872 = vrot.slane %v1756, 1
      %v1873 = vrot.slane %v1757, 1
      %v1874 = vsel %vm726, %v1872, %v1873
      %v1875 = vrot.slane %v1758, 1
      %v1876 = vsel %vm726, %v1873, %v1875
      %v1877 = vrot.slane %v1759, 1
      %v1878 = vrot.slane %v1760, 1
      %v1879 = vsel %vm726, %v1877, %v1878
      %v1880 = vrot.slane %v1761, 1
      %v1881 = vsel %vm726, %v1878, %v1880
      %v1882 = vrot.slane %v1762, 1
      %v1883 = vrot.slane %v1763, 1
      %v1884 = vsel %vm726, %v1882, %v1883
      %v1885 = vrot.slane %v1764, 1
      %v1886 = vsel %vm726, %v1883, %v1885
      %v1887 = vrot.slane %v1765, 1
      %v1888 = vrot.slane %v1766, 1
      %v1889 = vsel %vm726, %v1887, %v1888
      %v1890 = vrot.slane %v1767, 1
      %v1891 = vsel %vm726, %v1888, %v1890
      %v1892 = vrot.slane %v1768, 1
      %v1893 = vrot.slane %v1769, 1
      %v1894 = vsel %vm726, %v1892, %v1893
      %v1895 = vrot.slane %v1770, 1
      %v1896 = vsel %vm726, %v1893, %v1895
      %v1897 = vrot.slane %v1771, 1
      %v1898 = vrot.slane %v1772, 1
      %v1899 = vsel %vm726, %v1897, %v1898
      %v1900 = vrot.slane %v1773, 1
      %v1901 = vsel %vm726, %v1898, %v1900
      %v1934 = vadd.f32 %v1693, %v1824
      %v1935 = vadd.f32 %v1694, %v1826
      %v1936 = vadd.f32 %v1695, %v1829
      %v1937 = vadd.f32 %v1696, %v1831
      %v1938 = vadd.f32 %v1697, %v1834
      %v1939 = vadd.f32 %v1698, %v1836
      %v1940 = vadd.f32 %v1699, %v1839
      %v1941 = vadd.f32 %v1700, %v1841
      %v1942 = vadd.f32 %v1701, %v1844
      %v1943 = vadd.f32 %v1702, %v1846
      %v1944 = vadd.f32 %v1703, %v1849
      %v1945 = vadd.f32 %v1704, %v1851
      %v1946 = vadd.f32 %v1705, %v1854
      %v1947 = vadd.f32 %v1706, %v1856
      %v1948 = vadd.f32 %v1707, %v1859
      %v1949 = vadd.f32 %v1708, %v1861
      %v1950 = vadd.f32 %v1709, %v1864
      %v1951 = vadd.f32 %v1710, %v1866
      %v1952 = vadd.f32 %v1711, %v1869
      %v1953 = vadd.f32 %v1712, %v1871
      %v1954 = vadd.f32 %v1713, %v1874
      %v1955 = vadd.f32 %v1714, %v1876
      %v1956 = vadd.f32 %v1715, %v1879
      %v1957 = vadd.f32 %v1716, %v1881
      %v1958 = vadd.f32 %v1717, %v1884
      %v1959 = vadd.f32 %v1718, %v1886
      %v1960 = vadd.f32 %v1719, %v1889
      %v1961 = vadd.f32 %v1720, %v1891
      %v1962 = vadd.f32 %v1721, %v1894
      %v1963 = vadd.f32 %v1722, %v1896
      %v1964 = vadd.f32 %v1723, %v1899
      %v1965 = vadd.f32 %v1724, %v1901
      %v1966 = vperm.slane %v563, 0
      %v1967 = vmul.f32 %v514, %v1966
      %v1968 = vmul.f32 %v515, %v1966
      %v1969 = vmul.f32 %v516, %v1966
      %v1970 = vmul.f32 %v517, %v1966
      %v1971 = vmul.f32 %v518, %v1966
      %v1972 = vmul.f32 %v519, %v1966
      %v1973 = vmul.f32 %v520, %v1966
      %v1974 = vmul.f32 %v521, %v1966
      %v1975 = vmul.f32 %v522, %v1966
      %v1976 = vmul.f32 %v523, %v1966
      %v1977 = vmul.f32 %v524, %v1966
      %v1978 = vmul.f32 %v525, %v1966
      %v1979 = vmul.f32 %v526, %v1966
      %v1980 = vmul.f32 %v527, %v1966
      %v1981 = vmul.f32 %v528, %v1966
      %v1982 = vmul.f32 %v529, %v1966
      %v1983 = vmul.f32 %v530, %v1966
      %v1984 = vmul.f32 %v531, %v1966
      %v1985 = vmul.f32 %v532, %v1966
      %v1986 = vmul.f32 %v533, %v1966
      %v1987 = vmul.f32 %v534, %v1966
      %v1988 = vmul.f32 %v535, %v1966
      %v1989 = vmul.f32 %v536, %v1966
      %v1990 = vmul.f32 %v537, %v1966
      %v1991 = vmul.f32 %v538, %v1966
      %v1992 = vmul.f32 %v539, %v1966
      %v1993 = vmul.f32 %v540, %v1966
      %v1994 = vmul.f32 %v541, %v1966
      %v1995 = vmul.f32 %v542, %v1966
      %v1996 = vmul.f32 %v543, %v1966
      %v1997 = vmul.f32 %v544, %v1966
      %v1998 = vmul.f32 %v545, %v1966
      %v1999 = vmul.f32 %v546, %v1966
      %v2000 = vmul.f32 %v547, %v1966
      %v2001 = vmul.f32 %v548, %v1966
      %v2002 = vmul.f32 %v549, %v1966
      %v2003 = vmul.f32 %v550, %v1966
      %v2004 = vmul.f32 %v551, %v1966
      %v2005 = vmul.f32 %v552, %v1966
      %v2006 = vmul.f32 %v553, %v1966
      %v2007 = vmul.f32 %v554, %v1966
      %v2008 = vmul.f32 %v555, %v1966
      %v2009 = vmul.f32 %v556, %v1966
      %v2010 = vmul.f32 %v557, %v1966
      %v2011 = vmul.f32 %v558, %v1966
      %v2012 = vmul.f32 %v559, %v1966
      %v2013 = vmul.f32 %v560, %v1966
      %v2014 = vmul.f32 %v561, %v1966
      %v2063 = vrot.slane %v1967, 2
      %v2064 = vrot.slane %v1968, 2
      %v2065 = vsel %vm968, %v2063, %v2064
      %v2066 = vrot.slane %v1969, 2
      %v2067 = vsel %vm968, %v2064, %v2066
      %v2068 = vrot.slane %v1970, 2
      %v2069 = vrot.slane %v1971, 2
      %v2070 = vsel %vm968, %v2068, %v2069
      %v2071 = vrot.slane %v1972, 2
      %v2072 = vsel %vm968, %v2069, %v2071
      %v2073 = vrot.slane %v1973, 2
      %v2074 = vrot.slane %v1974, 2
      %v2075 = vsel %vm968, %v2073, %v2074
      %v2076 = vrot.slane %v1975, 2
      %v2077 = vsel %vm968, %v2074, %v2076
      %v2078 = vrot.slane %v1976, 2
      %v2079 = vrot.slane %v1977, 2
      %v2080 = vsel %vm968, %v2078, %v2079
      %v2081 = vrot.slane %v1978, 2
      %v2082 = vsel %vm968, %v2079, %v2081
      %v2083 = vrot.slane %v1979, 2
      %v2084 = vrot.slane %v1980, 2
      %v2085 = vsel %vm968, %v2083, %v2084
      %v2086 = vrot.slane %v1981, 2
      %v2087 = vsel %vm968, %v2084, %v2086
      %v2088 = vrot.slane %v1982, 2
      %v2089 = vrot.slane %v1983, 2
      %v2090 = vsel %vm968, %v2088, %v2089
      %v2091 = vrot.slane %v1984, 2
      %v2092 = vsel %vm968, %v2089, %v2091
      %v2093 = vrot.slane %v1985, 2
      %v2094 = vrot.slane %v1986, 2
      %v2095 = vsel %vm968, %v2093, %v2094
      %v2096 = vrot.slane %v1987, 2
      %v2097 = vsel %vm968, %v2094, %v2096
      %v2098 = vrot.slane %v1988, 2
      %v2099 = vrot.slane %v1989, 2
      %v2100 = vsel %vm968, %v2098, %v2099
      %v2101 = vrot.slane %v1990, 2
      %v2102 = vsel %vm968, %v2099, %v2101
      %v2103 = vrot.slane %v1991, 2
      %v2104 = vrot.slane %v1992, 2
      %v2105 = vsel %vm968, %v2103, %v2104
      %v2106 = vrot.slane %v1993, 2
      %v2107 = vsel %vm968, %v2104, %v2106
      %v2108 = vrot.slane %v1994, 2
      %v2109 = vrot.slane %v1995, 2
      %v2110 = vsel %vm968, %v2108, %v2109
      %v2111 = vrot.slane %v1996, 2
      %v2112 = vsel %vm968, %v2109, %v2111
      %v2113 = vrot.slane %v1997, 2
      %v2114 = vrot.slane %v1998, 2
      %v2115 = vsel %vm968, %v2113, %v2114
      %v2116 = vrot.slane %v1999, 2
      %v2117 = vsel %vm968, %v2114, %v2116
      %v2118 = vrot.slane %v2000, 2
      %v2119 = vrot.slane %v2001, 2
      %v2120 = vsel %vm968, %v2118, %v2119
      %v2121 = vrot.slane %v2002, 2
      %v2122 = vsel %vm968, %v2119, %v2121
      %v2123 = vrot.slane %v2003, 2
      %v2124 = vrot.slane %v2004, 2
      %v2125 = vsel %vm968, %v2123, %v2124
      %v2126 = vrot.slane %v2005, 2
      %v2127 = vsel %vm968, %v2124, %v2126
      %v2128 = vrot.slane %v2006, 2
      %v2129 = vrot.slane %v2007, 2
      %v2130 = vsel %vm968, %v2128, %v2129
      %v2131 = vrot.slane %v2008, 2
      %v2132 = vsel %vm968, %v2129, %v2131
      %v2133 = vrot.slane %v2009, 2
      %v2134 = vrot.slane %v2010, 2
      %v2135 = vsel %vm968, %v2133, %v2134
      %v2136 = vrot.slane %v2011, 2
      %v2137 = vsel %vm968, %v2134, %v2136
      %v2138 = vrot.slane %v2012, 2
      %v2139 = vrot.slane %v2013, 2
      %v2140 = vsel %vm968, %v2138, %v2139
      %v2141 = vrot.slane %v2014, 2
      %v2142 = vsel %vm968, %v2139, %v2141
      %v2175 = vadd.f32 %v1934, %v2065
      %v2176 = vadd.f32 %v1935, %v2067
      %v2177 = vadd.f32 %v1936, %v2070
      %v2178 = vadd.f32 %v1937, %v2072
      %v2179 = vadd.f32 %v1938, %v2075
      %v2180 = vadd.f32 %v1939, %v2077
      %v2181 = vadd.f32 %v1940, %v2080
      %v2182 = vadd.f32 %v1941, %v2082
      %v2183 = vadd.f32 %v1942, %v2085
      %v2184 = vadd.f32 %v1943, %v2087
      %v2185 = vadd.f32 %v1944, %v2090
      %v2186 = vadd.f32 %v1945, %v2092
      %v2187 = vadd.f32 %v1946, %v2095
      %v2188 = vadd.f32 %v1947, %v2097
      %v2189 = vadd.f32 %v1948, %v2100
      %v2190 = vadd.f32 %v1949, %v2102
      %v2191 = vadd.f32 %v1950, %v2105
      %v2192 = vadd.f32 %v1951, %v2107
      %v2193 = vadd.f32 %v1952, %v2110
      %v2194 = vadd.f32 %v1953, %v2112
      %v2195 = vadd.f32 %v1954, %v2115
      %v2196 = vadd.f32 %v1955, %v2117
      %v2197 = vadd.f32 %v1956, %v2120
      %v2198 = vadd.f32 %v1957, %v2122
      %v2199 = vadd.f32 %v1958, %v2125
      %v2200 = vadd.f32 %v1959, %v2127
      %v2201 = vadd.f32 %v1960, %v2130
      %v2202 = vadd.f32 %v1961, %v2132
      %v2203 = vadd.f32 %v1962, %v2135
      %v2204 = vadd.f32 %v1963, %v2137
      %v2205 = vadd.f32 %v1964, %v2140
      %v2206 = vadd.f32 %v1965, %v2142
      %v2207 = vld [vmem:[%s4] sm:$0x1]
      %v2209 = vperm.slane %v2207, 0
      %v2211 = vadd.f32 %v2175, %v2209
      %v2212 = vadd.f32 %v2176, %v2209
      %v2213 = vadd.f32 %v2177, %v2209
      %v2214 = vadd.f32 %v2178, %v2209
      %v2215 = vadd.f32 %v2179, %v2209
      %v2216 = vadd.f32 %v2180, %v2209
      %v2217 = vadd.f32 %v2181, %v2209
      %v2218 = vadd.f32 %v2182, %v2209
      %v2219 = vadd.f32 %v2183, %v2209
      %v2220 = vadd.f32 %v2184, %v2209
      %v2221 = vadd.f32 %v2185, %v2209
      %v2222 = vadd.f32 %v2186, %v2209
      %v2223 = vadd.f32 %v2187, %v2209
      %v2224 = vadd.f32 %v2188, %v2209
      %v2225 = vadd.f32 %v2189, %v2209
      %v2226 = vadd.f32 %v2190, %v2209
      %v2227 = vadd.f32 %v2191, %v2209
      %v2228 = vadd.f32 %v2192, %v2209
      %v2229 = vadd.f32 %v2193, %v2209
      %v2230 = vadd.f32 %v2194, %v2209
      %v2231 = vadd.f32 %v2195, %v2209
      %v2232 = vadd.f32 %v2196, %v2209
      %v2233 = vadd.f32 %v2197, %v2209
      %v2234 = vadd.f32 %v2198, %v2209
      %v2235 = vadd.f32 %v2199, %v2209
      %v2236 = vadd.f32 %v2200, %v2209
      %v2237 = vadd.f32 %v2201, %v2209
      %v2238 = vadd.f32 %v2202, %v2209
      %v2239 = vadd.f32 %v2203, %v2209
      %v2240 = vadd.f32 %v2204, %v2209
      %v2241 = vadd.f32 %v2205, %v2209
      %v2242 = vadd.f32 %v2206, %v2209
      %v2243 = vpack.c.bf16 %v2211, %v2211
      %v2244 = vpack.c.bf16 %v2212, %v2212
      %v2245 = vpack.c.bf16 %v2213, %v2213
      %v2246 = vpack.c.bf16 %v2214, %v2214
      %v2247 = vpack.c.bf16 %v2215, %v2215
      %v2248 = vpack.c.bf16 %v2216, %v2216
      %v2249 = vpack.c.bf16 %v2217, %v2217
      %v2250 = vpack.c.bf16 %v2218, %v2218
      %v2251 = vpack.c.bf16 %v2219, %v2219
      %v2252 = vpack.c.bf16 %v2220, %v2220
      %v2253 = vpack.c.bf16 %v2221, %v2221
      %v2254 = vpack.c.bf16 %v2222, %v2222
      %v2255 = vpack.c.bf16 %v2223, %v2223
      %v2256 = vpack.c.bf16 %v2224, %v2224
      %v2257 = vpack.c.bf16 %v2225, %v2225
      %v2258 = vpack.c.bf16 %v2226, %v2226
      %v2259 = vpack.c.bf16 %v2227, %v2227
      %v2260 = vpack.c.bf16 %v2228, %v2228
      %v2261 = vpack.c.bf16 %v2229, %v2229
      %v2262 = vpack.c.bf16 %v2230, %v2230
      %v2263 = vpack.c.bf16 %v2231, %v2231
      %v2264 = vpack.c.bf16 %v2232, %v2232
      %v2265 = vpack.c.bf16 %v2233, %v2233
      %v2266 = vpack.c.bf16 %v2234, %v2234
      %v2267 = vpack.c.bf16 %v2235, %v2235
      %v2268 = vpack.c.bf16 %v2236, %v2236
      %v2269 = vpack.c.bf16 %v2237, %v2237
      %v2270 = vpack.c.bf16 %v2238, %v2238
      %v2271 = vpack.c.bf16 %v2239, %v2239
      %v2272 = vpack.c.bf16 %v2240, %v2240
      %v2273 = vpack.c.bf16 %v2241, %v2241
      %v2274 = vpack.c.bf16 %v2242, %v2242
      %vm2275 = vcmask 257024
      %2276 = vst.msk [vmem:[%s224] sm:$0xf] %vm2275, %v2243
      %2277 = vst.msk [vmem:[%s224 + $0x4] sm:$0xf] %vm2275, %v2244
      %2278 = vst.msk [vmem:[%s224 + $0x8] sm:$0xf] %vm2275, %v2245
      %2279 = vst.msk [vmem:[%s224 + $0xc] sm:$0xf] %vm2275, %v2246
      %2280 = vst.msk [vmem:[%s224 + $0x10] sm:$0xf] %vm2275, %v2247
      %2281 = vst.msk [vmem:[%s224 + $0x14] sm:$0xf] %vm2275, %v2248
      %2282 = vst.msk [vmem:[%s224 + $0x18] sm:$0xf] %vm2275, %v2249
      %2283 = vst.msk [vmem:[%s224 + $0x1c] sm:$0xf] %vm2275, %v2250
      %2284 = vst.msk [vmem:[%s224 + $0x20] sm:$0xf] %vm2275, %v2251
      %2285 = vst.msk [vmem:[%s224 + $0x24] sm:$0xf] %vm2275, %v2252
      %2286 = vst.msk [vmem:[%s224 + $0x28] sm:$0xf] %vm2275, %v2253
      %2287 = vst.msk [vmem:[%s224 + $0x2c] sm:$0xf] %vm2275, %v2254
      %2288 = vst.msk [vmem:[%s224 + $0x30] sm:$0xf] %vm2275, %v2255
      %2289 = vst.msk [vmem:[%s224 + $0x34] sm:$0xf] %vm2275, %v2256
      %2290 = vst.msk [vmem:[%s224 + $0x38] sm:$0xf] %vm2275, %v2257
      %2291 = vst.msk [vmem:[%s224 + $0x3c] sm:$0xf] %vm2275, %v2258
      %2292 = vst.msk [vmem:[%s224 + $0x40] sm:$0xf] %vm2275, %v2259
      %2293 = vst.msk [vmem:[%s224 + $0x44] sm:$0xf] %vm2275, %v2260
      %2294 = vst.msk [vmem:[%s224 + $0x48] sm:$0xf] %vm2275, %v2261
      %2295 = vst.msk [vmem:[%s224 + $0x4c] sm:$0xf] %vm2275, %v2262
      %2296 = vst.msk [vmem:[%s224 + $0x50] sm:$0xf] %vm2275, %v2263
      %2297 = vst.msk [vmem:[%s224 + $0x54] sm:$0xf] %vm2275, %v2264
      %2298 = vst.msk [vmem:[%s224 + $0x58] sm:$0xf] %vm2275, %v2265
      %2299 = vst.msk [vmem:[%s224 + $0x5c] sm:$0xf] %vm2275, %v2266
      %2300 = vst.msk [vmem:[%s224 + $0x60] sm:$0xf] %vm2275, %v2267
      %2301 = vst.msk [vmem:[%s224 + $0x64] sm:$0xf] %vm2275, %v2268
      %2302 = vst.msk [vmem:[%s224 + $0x68] sm:$0xf] %vm2275, %v2269
      %2303 = vst.msk [vmem:[%s224 + $0x6c] sm:$0xf] %vm2275, %v2270
      %2304 = vst.msk [vmem:[%s224 + $0x70] sm:$0xf] %vm2275, %v2271
      %2305 = vst.msk [vmem:[%s224 + $0x74] sm:$0xf] %vm2275, %v2272
      %2306 = vst.msk [vmem:[%s224 + $0x78] sm:$0xf] %vm2275, %v2273
      %2307 = vst.msk [vmem:[%s224 + $0x7c] sm:$0xf] %vm2275, %v2274
      %p2308 = scmp.lt.s32.totalorder %s16, 1
      %s2309 = scalar_select %p2308, %s16, 1
      %s2310 = smul.addr %s2309, 32
      %s2311 = smul.addr %s2310, 4
      %s2312 = scalar_lea.vmem %s5, %s2311
      // Predicated region
      $region41: #{chanel_cross_attention.4} parent=39 // pred_check
        %p2313 = pneg %p144
      $region42: #{chanel_cross_attention.4} parent=39 // pred_check_branch
        %2315 = sbr.rel (%p2313) target = $region44
      $region43: #{chanel_cross_attention.4} parent=39 // pred_region
        _
      $region44: #{chanel_cross_attention.4} parent=39 // pred_fallthru
        _
    $region40: #{chanel_cross_attention.4} parent=5 // pred_fallthru
      _
    %p2316 = scmp.le.s32.totalorder 2, %s11
    // Predicated region
    $region45: #{chanel_cross_attention.4} parent=5 // pred_check
      %p2317 = pneg %p2316
    $region46: #{chanel_cross_attention.4} parent=5 // pred_check_branch
      %2319 = sbr.rel (%p2317) target = $region48
    $region47: #{chanel_cross_attention.4} parent=5 // pred_region
      %s2320 = ssub.s32 %s11, 2
      // Predicated region
      $region49: #{chanel_cross_attention.4} parent=47 // pred_check
        %p2321 = pneg %p150
      $region50: #{chanel_cross_attention.4} parent=47 // pred_check_branch
        %2323 = sbr.rel (%p2321) target = $region52
      $region51: #{chanel_cross_attention.4} parent=47 // pred_region
        %p2324 = scmp.lt.s32.totalorder %s17, 1
        %s2325 = scalar_select %p2324, %s17, 1
        %s2326 = smul.addr %s2325, 32
        %s2327 = smul.addr %s2326, 4
        %s2328 = scalar_lea.vmem %s5, %s2327
      $region52: #{chanel_cross_attention.4} parent=47 // pred_fallthru
        _
    $region48: #{chanel_cross_attention.4} parent=5 // pred_fallthru
      _
  $region6: #{chanel_cross_attention.4} parent=0 // loop_footer
    %s15 = sadd.s32 1, %s11
  $region7: #{chanel_cross_attention.4} parent=0 // loop_footer_branch
    %10 = sbr.rel target = $region3
  $region8: #{chanel_cross_attention.4} parent=0 // loop_exit
    _

// kernel: chanel_cross_attention.5
$region0: #{chanel_cross_attention.5}
  #allocation0 [shape = 'u32[]', space=smem, size = 0x4, offset = 0x4, fixed_abs, tag = 'smem constant byte address 0x4 - core index']
  #allocation1 [shape = 'u32[72,128]{1,0:T(1,128)}', space=vmem, size = 0x9000, scoped, tag = 'internal scratch']
  %s0 = inlined_call_operand.vmem [shape: f32[4], index: 0, kind: input, shape index: {}]
  %s1 = inlined_call_operand.vmem [shape: bf16[2,256,16], index: 1, kind: input, shape index: {}]
  %s2 = inlined_call_operand.vmem [shape: bf16[2,256,32], index: 2, kind: input, shape index: {}]
  %s3 = inlined_call_operand.vmem [shape: f32[16,16], index: 3, kind: input, shape index: {}]
  %s4 = inlined_call_operand.vmem [shape: f32[1,16], index: 4, kind: input, shape index: {}]
  %s5 = inlined_call_operand.vmem [shape: f32[2,256,16], index: 5, kind: output, shape index: {}]
  %s6 = sld [smem:[#allocation0]]
  $region57: #{chanel_cross_attention.5} parent=0
    _
  %s8 = ssub.s32 1, %s6
  %s9 = scalar_select 0, %s8, %s6
  $region1: #{chanel_cross_attention.5} parent=0
    #allocation2 [shape = 'u8[512]{0}', space=smem, size = 0x200, scoped, tag = 'input window, operand 0, single buffered']
    #allocation3 [shape = 's32[2]{0}', space=sflag, size = 0x8, scoped, tag = 'scoped memory for chanel_cross_attention.5']
    %10 = vsyncpa [#allocation3], 0
    loop: start=0, step=1, limit=4
    $region2: #{chanel_cross_attention.5} parent=1 // loop_pre_header
      _
    $region3: #{chanel_cross_attention.5} parent=1 // loop_header
      %s12 = sphi 0, %s16
      %p13 = scmp.ge.s32.totalorder %s12, 4
      %s20 = sphi 0, %s20
      %s22 = sphi 0, %s20
      %s23 = sphi 0, %s22
      %s37 = sphi 0, %s23
      %s43 = sphi 0, %s45
      %s46 = sphi 0, %s43
      %s47 = sphi 0, %s46
      %s63 = sphi 0, %s47
      %s69 = sphi 0, %s71
      %s72 = sphi 0, %s69
      %s73 = sphi 0, %s72
      %s89 = sphi 0, %s73
      %s93 = sphi 0, %s93
      %s95 = sphi 0, %s93
      %s96 = sphi 0, %s95
      %s110 = sphi 0, %s96
      %s114 = sphi 0, %s114
      %s116 = sphi 0, %s114
      %s117 = sphi 0, %s116
      %s131 = sphi 0, %s117
      %s137 = sphi 0, %s139
      %s140 = sphi 0, %s137
      %s141 = sphi 0, %s140
      %s157 = sphi 0, %s141
    $region4: #{chanel_cross_attention.5} parent=1 // loop_header_branch
      %15 = sbr.rel (%p13) target = $region8
    $region5: #{chanel_cross_attention.5} parent=1 // loop_body
      %s17 = ssub.s32 %s12, 1
      %s18 = ssub.s32 %s12, 2
      %s19 = sadd.s32 %s12, 1
      %s21 = sadd.s32 %s20, 1
      %p24 = scmp.eq.s32.totalorder %s12, 1
      %p25 = scmp.ne.s32.totalorder %s20, %s22
      %p26 = scmp.eq.s32.totalorder %s12, 0
      %p27 = por %p25, %p26
      %p28 = scmp.ne.s32.totalorder %s20, %s22
      %p29 = scmp.eq.s32.totalorder %s17, 1
      %p30 = por %p28, %p29
      %p31 = scmp.ne.s32.totalorder %s22, %s23
      %p32 = scmp.eq.s32.totalorder %s17, 0
      %p33 = por %p31, %p32
      %p34 = scmp.ne.s32.totalorder %s22, %s23
      %p35 = scmp.eq.s32.totalorder %s18, 1
      %p36 = por %p34, %p35
      %p38 = scmp.ne.s32.totalorder %s23, %s37
      %p39 = scmp.eq.s32.totalorder %s18, 0
      %p40 = por %p38, %p39
      %s41 = ssub.s32 %s12, %s19
      %p42 = scmp.eq.s32.totalorder %s41, 0
      %s44 = sadd.s32 %s43, 1
      %s45 = scalar_select %p42, %s43, %s44
      %p48 = pneg %p42
      %p49 = scmp.eq.s32.totalorder %s12, 1
      %p50 = por %p48, %p49
      %p51 = scmp.ne.s32.totalorder %s43, %s46
      %p52 = scmp.eq.s32.totalorder %s12, 0
      %p53 = por %p51, %p52
      %p54 = scmp.ne.s32.totalorder %s43, %s46
      %p55 = scmp.eq.s32.totalorder %s17, 1
      %p56 = por %p54, %p55
      %p57 = scmp.ne.s32.totalorder %s46, %s47
      %p58 = scmp.eq.s32.totalorder %s17, 0
      %p59 = por %p57, %p58
      %p60 = scmp.ne.s32.totalorder %s46, %s47
      %p61 = scmp.eq.s32.totalorder %s18, 1
      %p62 = por %p60, %p61
      %p64 = scmp.ne.s32.totalorder %s47, %s63
      %p65 = scmp.eq.s32.totalorder %s18, 0
      %p66 = por %p64, %p65
      %s67 = ssub.s32 %s12, %s19
      %p68 = scmp.eq.s32.totalorder %s67, 0
      %s70 = sadd.s32 %s69, 1
      %s71 = scalar_select %p68, %s69, %s70
      %p74 = pneg %p68
      %p75 = scmp.eq.s32.totalorder %s12, 1
      %p76 = por %p74, %p75
      %p77 = scmp.ne.s32.totalorder %s69, %s72
      %p78 = scmp.eq.s32.totalorder %s12, 0
      %p79 = por %p77, %p78
      %p80 = scmp.ne.s32.totalorder %s69, %s72
      %p81 = scmp.eq.s32.totalorder %s17, 1
      %p82 = por %p80, %p81
      %p83 = scmp.ne.s32.totalorder %s72, %s73
      %p84 = scmp.eq.s32.totalorder %s17, 0
      %p85 = por %p83, %p84
      %p86 = scmp.ne.s32.totalorder %s72, %s73
      %p87 = scmp.eq.s32.totalorder %s18, 1
      %p88 = por %p86, %p87
      %p90 = scmp.ne.s32.totalorder %s73, %s89
      %p91 = scmp.eq.s32.totalorder %s18, 0
      %p92 = por %p90, %p91
      %s94 = sadd.s32 %s93, 1
      %p97 = scmp.eq.s32.totalorder %s12, 1
      %p98 = scmp.ne.s32.totalorder %s93, %s95
      %p99 = scmp.eq.s32.totalorder %s12, 0
      %p100 = por %p98, %p99
      %p101 = scmp.ne.s32.totalorder %s93, %s95
      %p102 = scmp.eq.s32.totalorder %s17, 1
      %p103 = por %p101, %p102
      %p104 = scmp.ne.s32.totalorder %s95, %s96
      %p105 = scmp.eq.s32.totalorder %s17, 0
      %p106 = por %p104, %p105
      %p107 = scmp.ne.s32.totalorder %s95, %s96
      %p108 = scmp.eq.s32.totalorder %s18, 1
      %p109 = por %p107, %p108
      %p111 = scmp.ne.s32.totalorder %s96, %s110
      %p112 = scmp.eq.s32.totalorder %s18, 0
      %p113 = por %p111, %p112
      %s115 = sadd.s32 %s114, 1
      %p118 = scmp.eq.s32.totalorder %s12, 1
      %p119 = scmp.ne.s32.totalorder %s114, %s116
      %p120 = scmp.eq.s32.totalorder %s12, 0
      %p121 = por %p119, %p120
      %p122 = scmp.ne.s32.totalorder %s114, %s116
      %p123 = scmp.eq.s32.totalorder %s17, 1
      %p124 = por %p122, %p123
      %p125 = scmp.ne.s32.totalorder %s116, %s117
      %p126 = scmp.eq.s32.totalorder %s17, 0
      %p127 = por %p125, %p126
      %p128 = scmp.ne.s32.totalorder %s116, %s117
      %p129 = scmp.eq.s32.totalorder %s18, 1
      %p130 = por %p128, %p129
      %p132 = scmp.ne.s32.totalorder %s117, %s131
      %p133 = scmp.eq.s32.totalorder %s18, 0
      %p134 = por %p132, %p133
      %s135 = ssub.s32 %s12, %s19
      %p136 = scmp.eq.s32.totalorder %s135, 0
      %s138 = sadd.s32 %s137, 1
      %s139 = scalar_select %p136, %s137, %s138
      %p142 = pneg %p136
      %p143 = scmp.eq.s32.totalorder %s12, 1
      %p144 = por %p142, %p143
      %p145 = scmp.ne.s32.totalorder %s137, %s140
      %p146 = scmp.eq.s32.totalorder %s12, 0
      %p147 = por %p145, %p146
      %p148 = scmp.ne.s32.totalorder %s137, %s140
      %p149 = scmp.eq.s32.totalorder %s17, 1
      %p150 = por %p148, %p149
      %p151 = scmp.ne.s32.totalorder %s140, %s141
      %p152 = scmp.eq.s32.totalorder %s17, 0
      %p153 = por %p151, %p152
      %p154 = scmp.ne.s32.totalorder %s140, %s141
      %p155 = scmp.eq.s32.totalorder %s18, 1
      %p156 = por %p154, %p155
      %p158 = scmp.ne.s32.totalorder %s141, %s157
      %p159 = scmp.eq.s32.totalorder %s18, 0
      %p160 = por %p158, %p159
      %p161 = scmp.le.s32.totalorder 1, %s12
      %p162 = scmp.lt.s32.totalorder %s12, 3
      %p163 = pnand %p161, %p162
      %p164 = pneg %p163
      // Predicated region
      $region9: #{chanel_cross_attention.5} parent=5 // pred_check
        _
      $region10: #{chanel_cross_attention.5} parent=5 // pred_check_branch
        %166 = sbr.rel (%p163) target = $region12
      $region11: #{chanel_cross_attention.5} parent=5 // pred_region
        %s167 = ssub.s32 %s12, 1
        // Predicated region
        $region13: #{chanel_cross_attention.5} parent=11 // pred_check
          %p168 = pneg %p33
        $region14: #{chanel_cross_attention.5} parent=11 // pred_check_branch
          %170 = sbr.rel (%p168) target = $region16
        $region15: #{chanel_cross_attention.5} parent=11 // pred_region
          %172 = vsyncadd [#allocation3], 0
          %s174 = sshll.u32 %s0, 4
          %s175 = int_to_ptr.vmem [resolvable:$true] %s174
          %177 = dma.vmem_to_smem %s175, 16, [#allocation2], [#allocation3]
        $region16: #{chanel_cross_attention.5} parent=11 // pred_fallthru
          _
        // Predicated region
        $region17: #{chanel_cross_attention.5} parent=11 // pred_check
          %p178 = pneg %p106
        $region18: #{chanel_cross_attention.5} parent=11 // pred_check_branch
          %180 = sbr.rel (%p178) target = $region20
        $region19: #{chanel_cross_attention.5} parent=11 // pred_region
          _
        $region20: #{chanel_cross_attention.5} parent=11 // pred_fallthru
          _
        // Predicated region
        $region21: #{chanel_cross_attention.5} parent=11 // pred_check
          %p181 = pneg %p127
        $region22: #{chanel_cross_attention.5} parent=11 // pred_check_branch
          %183 = sbr.rel (%p181) target = $region24
        $region23: #{chanel_cross_attention.5} parent=11 // pred_region
          _
        $region24: #{chanel_cross_attention.5} parent=11 // pred_fallthru
          _
      $region12: #{chanel_cross_attention.5} parent=5 // pred_fallthru
        _
      %p184 = scmp.lt.s32.totalorder %s12, 2
      // Predicated region
      $region25: #{chanel_cross_attention.5} parent=5 // pred_check
        %p185 = pneg %p184
      $region26: #{chanel_cross_attention.5} parent=5 // pred_check_branch
        %187 = sbr.rel (%p185) target = $region28
      $region27: #{chanel_cross_attention.5} parent=5 // pred_region
        // Predicated region
        $region29: #{chanel_cross_attention.5} parent=27 // pred_check
          %p188 = pneg %p53
        $region30: #{chanel_cross_attention.5} parent=27 // pred_check_branch
          %190 = sbr.rel (%p188) target = $region32
        $region31: #{chanel_cross_attention.5} parent=27 // pred_region
          %p191 = scmp.lt.s32.totalorder %s12, 1
          %s192 = scalar_select %p191, %s12, 1
          %s193 = smul.addr %s192, 32
          %s194 = smul.addr %s193, 4
          %s195 = scalar_lea.vmem %s1, %s194
        $region32: #{chanel_cross_attention.5} parent=27 // pred_fallthru
          _
        // Predicated region
        $region33: #{chanel_cross_attention.5} parent=27 // pred_check
          %p196 = pneg %p79
        $region34: #{chanel_cross_attention.5} parent=27 // pred_check_branch
          %198 = sbr.rel (%p196) target = $region36
        $region35: #{chanel_cross_attention.5} parent=27 // pred_region
          %p199 = scmp.lt.s32.totalorder %s12, 1
          %s200 = scalar_select %p199, %s12, 1
          %s201 = smul.addr %s200, 32
          %s202 = smul.addr %s201, 4
          %s203 = scalar_lea.vmem %s2, %s202
        $region36: #{chanel_cross_attention.5} parent=27 // pred_fallthru
          _
      $region28: #{chanel_cross_attention.5} parent=5 // pred_fallthru
        _
      %p204 = scmp.le.s32.totalorder 1, %s12
      %p205 = scmp.lt.s32.totalorder %s12, 3
      %p206 = pnand %p204, %p205
      %p207 = pneg %p206
      // Predicated region
      $region37: #{chanel_cross_attention.5} parent=5 // pred_check
        _
      $region38: #{chanel_cross_attention.5} parent=5 // pred_check_branch
        %209 = sbr.rel (%p206) target = $region40
      $region39: #{chanel_cross_attention.5} parent=5 // pred_region
        %s210 = ssub.s32 %s12, 1
        // Predicated region
        $region41: #{chanel_cross_attention.5} parent=39 // pred_check
          %p211 = pneg %p33
        $region42: #{chanel_cross_attention.5} parent=39 // pred_check_branch
          %213 = sbr.rel (%p211) target = $region44
        $region43: #{chanel_cross_attention.5} parent=39 // pred_region
          %215 = dma.done [#allocation3], 16
        $region44: #{chanel_cross_attention.5} parent=39 // pred_fallthru
          _
        %216 = sfence
        %p217 = pneg %p33
        %p218 = pneg %p30
        %p219 = scmp.lt.s32.totalorder %s17, 1
        %s220 = scalar_select %p219, %s17, 1
        %s221 = smul.addr %s220, 32
        %s222 = smul.addr %s221, 4
        %s223 = scalar_lea.vmem %s1, %s222
        %p224 = pneg %p59
        %p225 = pneg %p56
        %p226 = scmp.lt.s32.totalorder %s17, 1
        %s227 = scalar_select %p226, %s17, 1
        %s228 = smul.addr %s227, 32
        %s229 = smul.addr %s228, 4
        %s230 = scalar_lea.vmem %s2, %s229
        %p231 = pneg %p85
        %p232 = pneg %p82
        %p233 = pneg %p106
        %p234 = pneg %p103
        %p235 = pneg %p127
        %p236 = pneg %p124
        %p237 = pneg %p153
        %p238 = pneg %p150
        %p239 = scmp.lt.s32.totalorder %s17, 1
        %s240 = scalar_select %p239, %s17, 1
        %s241 = smul.addr %s240, 32
        %s242 = smul.addr %s241, 8
        %s243 = scalar_lea.vmem %s5, %s242
        %p244 = scmp.lt.s32.totalorder %s17, 1
        %s245 = scalar_select %p244, %s17, 1
        %s246 = smul.addr %s245, 32
        %s247 = smul.addr %s246, 4
        %s248 = scalar_lea.vmem %s1, %s247
        %p249 = scmp.lt.s32.totalorder %s17, 1
        %s250 = scalar_select %p249, %s17, 1
        %s251 = smul.addr %s250, 32
        %s252 = smul.addr %s251, 4
        %s253 = scalar_lea.vmem %s2, %s252
        %p254 = scmp.lt.s32.totalorder %s17, 1
        %s255 = scalar_select %p254, %s17, 1
        %s256 = smul.addr %s255, 32
        %s257 = smul.addr %s256, 8
        %s258 = scalar_lea.vmem %s5, %s257
        %v260 = vld [vmem:[%s248] sm:$0xf]
        %v261 = vld [vmem:[%s248 + $0x4] sm:$0xf]
        %v262 = vld [vmem:[%s248 + $0x8] sm:$0xf]
        %v263 = vld [vmem:[%s248 + $0xc] sm:$0xf]
        %v264 = vld [vmem:[%s248 + $0x10] sm:$0xf]
        %v265 = vld [vmem:[%s248 + $0x14] sm:$0xf]
        %v266 = vld [vmem:[%s248 + $0x18] sm:$0xf]
        %v267 = vld [vmem:[%s248 + $0x1c] sm:$0xf]
        %v268 = vld [vmem:[%s248 + $0x20] sm:$0xf]
        %v269 = vld [vmem:[%s248 + $0x24] sm:$0xf]
        %v270 = vld [vmem:[%s248 + $0x28] sm:$0xf]
        %v271 = vld [vmem:[%s248 + $0x2c] sm:$0xf]
        %v272 = vld [vmem:[%s248 + $0x30] sm:$0xf]
        %v273 = vld [vmem:[%s248 + $0x34] sm:$0xf]
        %v274 = vld [vmem:[%s248 + $0x38] sm:$0xf]
        %v275 = vld [vmem:[%s248 + $0x3c] sm:$0xf]
        %v276 = vld [vmem:[%s248 + $0x40] sm:$0xf]
        %v277 = vld [vmem:[%s248 + $0x44] sm:$0xf]
        %v278 = vld [vmem:[%s248 + $0x48] sm:$0xf]
        %v279 = vld [vmem:[%s248 + $0x4c] sm:$0xf]
        %v280 = vld [vmem:[%s248 + $0x50] sm:$0xf]
        %v281 = vld [vmem:[%s248 + $0x54] sm:$0xf]
        %v282 = vld [vmem:[%s248 + $0x58] sm:$0xf]
        %v283 = vld [vmem:[%s248 + $0x5c] sm:$0xf]
        %v284 = vld [vmem:[%s248 + $0x60] sm:$0xf]
        %v285 = vld [vmem:[%s248 + $0x64] sm:$0xf]
        %v286 = vld [vmem:[%s248 + $0x68] sm:$0xf]
        %v287 = vld [vmem:[%s248 + $0x6c] sm:$0xf]
        %v288 = vld [vmem:[%s248 + $0x70] sm:$0xf]
        %v289 = vld [vmem:[%s248 + $0x74] sm:$0xf]
        %v290 = vld [vmem:[%s248 + $0x78] sm:$0xf]
        %v291 = vld [vmem:[%s248 + $0x7c] sm:$0xf]
        %v292 = vld [vmem:[%s253] sm:$0xf]
        %v293 = vld [vmem:[%s253 + $0x4] sm:$0xf]
        %v294 = vld [vmem:[%s253 + $0x8] sm:$0xf]
        %v295 = vld [vmem:[%s253 + $0xc] sm:$0xf]
        %v296 = vld [vmem:[%s253 + $0x10] sm:$0xf]
        %v297 = vld [vmem:[%s253 + $0x14] sm:$0xf]
        %v298 = vld [vmem:[%s253 + $0x18] sm:$0xf]
        %v299 = vld [vmem:[%s253 + $0x1c] sm:$0xf]
        %v300 = vld [vmem:[%s253 + $0x20] sm:$0xf]
        %v301 = vld [vmem:[%s253 + $0x24] sm:$0xf]
        %v302 = vld [vmem:[%s253 + $0x28] sm:$0xf]
        %v303 = vld [vmem:[%s253 + $0x2c] sm:$0xf]
        %v304 = vld [vmem:[%s253 + $0x30] sm:$0xf]
        %v305 = vld [vmem:[%s253 + $0x34] sm:$0xf]
        %v306 = vld [vmem:[%s253 + $0x38] sm:$0xf]
        %v307 = vld [vmem:[%s253 + $0x3c] sm:$0xf]
        %v308 = vld [vmem:[%s253 + $0x40] sm:$0xf]
        %v309 = vld [vmem:[%s253 + $0x44] sm:$0xf]
        %v310 = vld [vmem:[%s253 + $0x48] sm:$0xf]
        %v311 = vld [vmem:[%s253 + $0x4c] sm:$0xf]
        %v312 = vld [vmem:[%s253 + $0x50] sm:$0xf]
        %v313 = vld [vmem:[%s253 + $0x54] sm:$0xf]
        %v314 = vld [vmem:[%s253 + $0x58] sm:$0xf]
        %v315 = vld [vmem:[%s253 + $0x5c] sm:$0xf]
        %v316 = vld [vmem:[%s253 + $0x60] sm:$0xf]
        %v317 = vld [vmem:[%s253 + $0x64] sm:$0xf]
        %v318 = vld [vmem:[%s253 + $0x68] sm:$0xf]
        %v319 = vld [vmem:[%s253 + $0x6c] sm:$0xf]
        %v320 = vld [vmem:[%s253 + $0x70] sm:$0xf]
        %v321 = vld [vmem:[%s253 + $0x74] sm:$0xf]
        %v322 = vld [vmem:[%s253 + $0x78] sm:$0xf]
        %v323 = vld [vmem:[%s253 + $0x7c] sm:$0xf]
        %v324 = vunpack.c.l.bf16 %v260
        %v325 = vunpack.c.l.bf16 %v261
        %v326 = vunpack.c.l.bf16 %v262
        %v327 = vunpack.c.l.bf16 %v263
        %v328 = vunpack.c.l.bf16 %v264
        %v329 = vunpack.c.l.bf16 %v265
        %v330 = vunpack.c.l.bf16 %v266
        %v331 = vunpack.c.l.bf16 %v267
        %v332 = vunpack.c.l.bf16 %v268
        %v333 = vunpack.c.l.bf16 %v269
        %v334 = vunpack.c.l.bf16 %v270
        %v335 = vunpack.c.l.bf16 %v271
        %v336 = vunpack.c.l.bf16 %v272
        %v337 = vunpack.c.l.bf16 %v273
        %v338 = vunpack.c.l.bf16 %v274
        %v339 = vunpack.c.l.bf16 %v275
        %v340 = vunpack.c.l.bf16 %v276
        %v341 = vunpack.c.l.bf16 %v277
        %v342 = vunpack.c.l.bf16 %v278
        %v343 = vunpack.c.l.bf16 %v279
        %v344 = vunpack.c.l.bf16 %v280
        %v345 = vunpack.c.l.bf16 %v281
        %v346 = vunpack.c.l.bf16 %v282
        %v347 = vunpack.c.l.bf16 %v283
        %v348 = vunpack.c.l.bf16 %v284
        %v349 = vunpack.c.l.bf16 %v285
        %v350 = vunpack.c.l.bf16 %v286
        %v351 = vunpack.c.l.bf16 %v287
        %v352 = vunpack.c.l.bf16 %v288
        %v353 = vunpack.c.l.bf16 %v289
        %v354 = vunpack.c.l.bf16 %v290
        %v355 = vunpack.c.l.bf16 %v291
        %v356 = vunpack.c.l.bf16 %v292
        %v357 = vunpack.c.l.bf16 %v293
        %v358 = vunpack.c.l.bf16 %v294
        %v359 = vunpack.c.l.bf16 %v295
        %v360 = vunpack.c.l.bf16 %v296
        %v361 = vunpack.c.l.bf16 %v297
        %v362 = vunpack.c.l.bf16 %v298
        %v363 = vunpack.c.l.bf16 %v299
        %v364 = vunpack.c.l.bf16 %v300
        %v365 = vunpack.c.l.bf16 %v301
        %v366 = vunpack.c.l.bf16 %v302
        %v367 = vunpack.c.l.bf16 %v303
        %v368 = vunpack.c.l.bf16 %v304
        %v369 = vunpack.c.l.bf16 %v305
        %v370 = vunpack.c.l.bf16 %v306
        %v371 = vunpack.c.l.bf16 %v307
        %v372 = vunpack.c.l.bf16 %v308
        %v373 = vunpack.c.l.bf16 %v309
        %v374 = vunpack.c.l.bf16 %v310
        %v375 = vunpack.c.l.bf16 %v311
        %v376 = vunpack.c.l.bf16 %v312
        %v377 = vunpack.c.l.bf16 %v313
        %v378 = vunpack.c.l.bf16 %v314
        %v379 = vunpack.c.l.bf16 %v315
        %v380 = vunpack.c.l.bf16 %v316
        %v381 = vunpack.c.l.bf16 %v317
        %v382 = vunpack.c.l.bf16 %v318
        %v383 = vunpack.c.l.bf16 %v319
        %v384 = vunpack.c.l.bf16 %v320
        %v385 = vunpack.c.l.bf16 %v321
        %v386 = vunpack.c.l.bf16 %v322
        %v387 = vunpack.c.l.bf16 %v323
        %v388 = vmul.f32 %v324, %v324
        %v389 = vmul.f32 %v325, %v325
        %v390 = vmul.f32 %v326, %v326
        %v391 = vmul.f32 %v327, %v327
        %v392 = vmul.f32 %v328, %v328
        %v393 = vmul.f32 %v329, %v329
        %v394 = vmul.f32 %v330, %v330
        %v395 = vmul.f32 %v331, %v331
        %v396 = vmul.f32 %v332, %v332
        %v397 = vmul.f32 %v333, %v333
        %v398 = vmul.f32 %v334, %v334
        %v399 = vmul.f32 %v335, %v335
        %v400 = vmul.f32 %v336, %v336
        %v401 = vmul.f32 %v337, %v337
        %v402 = vmul.f32 %v338, %v338
        %v403 = vmul.f32 %v339, %v339
        %v404 = vmul.f32 %v340, %v340
        %v405 = vmul.f32 %v341, %v341
        %v406 = vmul.f32 %v342, %v342
        %v407 = vmul.f32 %v343, %v343
        %v408 = vmul.f32 %v344, %v344
        %v409 = vmul.f32 %v345, %v345
        %v410 = vmul.f32 %v346, %v346
        %v411 = vmul.f32 %v347, %v347
        %v412 = vmul.f32 %v348, %v348
        %v413 = vmul.f32 %v349, %v349
        %v414 = vmul.f32 %v350, %v350
        %v415 = vmul.f32 %v351, %v351
        %v416 = vmul.f32 %v352, %v352
        %v417 = vmul.f32 %v353, %v353
        %v418 = vmul.f32 %v354, %v354
        %v419 = vmul.f32 %v355, %v355
        %vm420 = vcmask 31744
        %v421 = vsel %vm420, %v388, 0.0
        %v422 = vsel %vm420, %v389, 0.0
        %v423 = vadd.f32 %v421, %v422
        %v424 = vsel %vm420, %v390, 0.0
        %v425 = vadd.f32 %v423, %v424
        %v426 = vsel %vm420, %v391, 0.0
        %v427 = vadd.f32 %v425, %v426
        %v428 = vsel %vm420, %v392, 0.0
        %v429 = vadd.f32 %v427, %v428
        %v430 = vsel %vm420, %v393, 0.0
        %v431 = vadd.f32 %v429, %v430
        %v432 = vsel %vm420, %v394, 0.0
        %v433 = vadd.f32 %v431, %v432
        %v434 = vsel %vm420, %v395, 0.0
        %v435 = vadd.f32 %v433, %v434
        %v436 = vsel %vm420, %v396, 0.0
        %v437 = vadd.f32 %v435, %v436
        %v438 = vsel %vm420, %v397, 0.0
        %v439 = vadd.f32 %v437, %v438
        %v440 = vsel %vm420, %v398, 0.0
        %v441 = vadd.f32 %v439, %v440
        %v442 = vsel %vm420, %v399, 0.0
        %v443 = vadd.f32 %v441, %v442
        %v444 = vsel %vm420, %v400, 0.0
        %v445 = vadd.f32 %v443, %v444
        %v446 = vsel %vm420, %v401, 0.0
        %v447 = vadd.f32 %v445, %v446
        %v448 = vsel %vm420, %v402, 0.0
        %v449 = vadd.f32 %v447, %v448
        %v450 = vsel %vm420, %v403, 0.0
        %v451 = vadd.f32 %v449, %v450
        %v452 = vsel %vm420, %v404, 0.0
        %v453 = vadd.f32 %v451, %v452
        %v454 = vsel %vm420, %v405, 0.0
        %v455 = vadd.f32 %v453, %v454
        %v456 = vsel %vm420, %v406, 0.0
        %v457 = vadd.f32 %v455, %v456
        %v458 = vsel %vm420, %v407, 0.0
        %v459 = vadd.f32 %v457, %v458
        %v460 = vsel %vm420, %v408, 0.0
        %v461 = vadd.f32 %v459, %v460
        %v462 = vsel %vm420, %v409, 0.0
        %v463 = vadd.f32 %v461, %v462
        %v464 = vsel %vm420, %v410, 0.0
        %v465 = vadd.f32 %v463, %v464
        %v466 = vsel %vm420, %v411, 0.0
        %v467 = vadd.f32 %v465, %v466
        %v468 = vsel %vm420, %v412, 0.0
        %v469 = vadd.f32 %v467, %v468
        %v470 = vsel %vm420, %v413, 0.0
        %v471 = vadd.f32 %v469, %v470
        %v472 = vsel %vm420, %v414, 0.0
        %v473 = vadd.f32 %v471, %v472
        %v474 = vsel %vm420, %v415, 0.0
        %v475 = vadd.f32 %v473, %v474
        %v476 = vsel %vm420, %v416, 0.0
        %v477 = vadd.f32 %v475, %v476
        %v478 = vsel %vm420, %v417, 0.0
        %v479 = vadd.f32 %v477, %v478
        %v480 = vsel %vm420, %v418, 0.0
        %v481 = vadd.f32 %v479, %v480
        %v482 = vsel %vm420, %v419, 0.0
        %v483 = vadd.f32 %v481, %v482
        %v484 = vrot.slane %v483, 4
        %v485 = vadd.f32 %v483, %v484
        %v486 = vrot.slane %v485, 2
        %v487 = vadd.f32 %v485, %v486
        %v488 = vrot.slane %v487, 1
        %v489 = vadd.f32 %v487, %v488
        %v490 = vmax.f32 %v489, 1e-24
        %v491 = vrsqrt.pop %v490
        %v492 = vmul.f32 %v491, %v490
        %v493 = vmul.f32 %v492, %v491
        %v494 = vmul.f32 0.5, %v493
        %v495 = vsub.f32 1.5, %v494
        %v496 = vmul.f32 %v491, %v495
        %vm497 = vweird.f32 %v490
        %vm498 = vweird.f32 %v491
        %vm499 = vmor %vm497, %vm498
        %v500 = vsel %vm499, %v491, %v496
        %v501 = vmul.f32 %v356, %v356
        %v502 = vmul.f32 %v357, %v357
        %v503 = vmul.f32 %v358, %v358
        %v504 = vmul.f32 %v359, %v359
        %v505 = vmul.f32 %v360, %v360
        %v506 = vmul.f32 %v361, %v361
        %v507 = vmul.f32 %v362, %v362
        %v508 = vmul.f32 %v363, %v363
        %v509 = vmul.f32 %v364, %v364
        %v510 = vmul.f32 %v365, %v365
        %v511 = vmul.f32 %v366, %v366
        %v512 = vmul.f32 %v367, %v367
        %v513 = vmul.f32 %v368, %v368
        %v514 = vmul.f32 %v369, %v369
        %v515 = vmul.f32 %v370, %v370
        %v516 = vmul.f32 %v371, %v371
        %v517 = vmul.f32 %v372, %v372
        %v518 = vmul.f32 %v373, %v373
        %v519 = vmul.f32 %v374, %v374
        %v520 = vmul.f32 %v375, %v375
        %v521 = vmul.f32 %v376, %v376
        %v522 = vmul.f32 %v377, %v377
        %v523 = vmul.f32 %v378, %v378
        %v524 = vmul.f32 %v379, %v379
        %v525 = vmul.f32 %v380, %v380
        %v526 = vmul.f32 %v381, %v381
        %v527 = vmul.f32 %v382, %v382
        %v528 = vmul.f32 %v383, %v383
        %v529 = vmul.f32 %v384, %v384
        %v530 = vmul.f32 %v385, %v385
        %v531 = vmul.f32 %v386, %v386
        %v532 = vmul.f32 %v387, %v387
        %v533 = vsel %vm420, %v501, 0.0
        %v534 = vsel %vm420, %v502, 0.0
        %v535 = vadd.f32 %v533, %v534
        %v536 = vsel %vm420, %v503, 0.0
        %v537 = vadd.f32 %v535, %v536
        %v538 = vsel %vm420, %v504, 0.0
        %v539 = vadd.f32 %v537, %v538
        %v540 = vsel %vm420, %v505, 0.0
        %v541 = vadd.f32 %v539, %v540
        %v542 = vsel %vm420, %v506, 0.0
        %v543 = vadd.f32 %v541, %v542
        %v544 = vsel %vm420, %v507, 0.0
        %v545 = vadd.f32 %v543, %v544
        %v546 = vsel %vm420, %v508, 0.0
        %v547 = vadd.f32 %v545, %v546
        %v548 = vsel %vm420, %v509, 0.0
        %v549 = vadd.f32 %v547, %v548
        %v550 = vsel %vm420, %v510, 0.0
        %v551 = vadd.f32 %v549, %v550
        %v552 = vsel %vm420, %v511, 0.0
        %v553 = vadd.f32 %v551, %v552
        %v554 = vsel %vm420, %v512, 0.0
        %v555 = vadd.f32 %v553, %v554
        %v556 = vsel %vm420, %v513, 0.0
        %v557 = vadd.f32 %v555, %v556
        %v558 = vsel %vm420, %v514, 0.0
        %v559 = vadd.f32 %v557, %v558
        %v560 = vsel %vm420, %v515, 0.0
        %v561 = vadd.f32 %v559, %v560
        %v562 = vsel %vm420, %v516, 0.0
        %v563 = vadd.f32 %v561, %v562
        %v564 = vsel %vm420, %v517, 0.0
        %v565 = vadd.f32 %v563, %v564
        %v566 = vsel %vm420, %v518, 0.0
        %v567 = vadd.f32 %v565, %v566
        %v568 = vsel %vm420, %v519, 0.0
        %v569 = vadd.f32 %v567, %v568
        %v570 = vsel %vm420, %v520, 0.0
        %v571 = vadd.f32 %v569, %v570
        %v572 = vsel %vm420, %v521, 0.0
        %v573 = vadd.f32 %v571, %v572
        %v574 = vsel %vm420, %v522, 0.0
        %v575 = vadd.f32 %v573, %v574
        %v576 = vsel %vm420, %v523, 0.0
        %v577 = vadd.f32 %v575, %v576
        %v578 = vsel %vm420, %v524, 0.0
        %v579 = vadd.f32 %v577, %v578
        %v580 = vsel %vm420, %v525, 0.0
        %v581 = vadd.f32 %v579, %v580
        %v582 = vsel %vm420, %v526, 0.0
        %v583 = vadd.f32 %v581, %v582
        %v584 = vsel %vm420, %v527, 0.0
        %v585 = vadd.f32 %v583, %v584
        %v586 = vsel %vm420, %v528, 0.0
        %v587 = vadd.f32 %v585, %v586
        %v588 = vsel %vm420, %v529, 0.0
        %v589 = vadd.f32 %v587, %v588
        %v590 = vsel %vm420, %v530, 0.0
        %v591 = vadd.f32 %v589, %v590
        %v592 = vsel %vm420, %v531, 0.0
        %v593 = vadd.f32 %v591, %v592
        %v594 = vsel %vm420, %v532, 0.0
        %v595 = vadd.f32 %v593, %v594
        %v596 = vrot.slane %v595, 4
        %v597 = vadd.f32 %v595, %v596
        %v598 = vrot.slane %v597, 2
        %v599 = vadd.f32 %v597, %v598
        %v600 = vrot.slane %v599, 1
        %v601 = vadd.f32 %v599, %v600
        %v602 = vmax.f32 %v601, 1e-24
        %v603 = vrsqrt.pop %v602
        %v604 = vmul.f32 %v603, %v602
        %v605 = vmul.f32 %v604, %v603
        %v606 = vmul.f32 0.5, %v605
        %v607 = vsub.f32 1.5, %v606
        %v608 = vmul.f32 %v603, %v607
        %vm609 = vweird.f32 %v602
        %vm610 = vweird.f32 %v603
        %vm611 = vmor %vm609, %vm610
        %v612 = vsel %vm611, %v603, %v608
        %s613 = sld [smem:[#allocation2]]
        %v614 = vstv %s613
        %v615 = vmul.f32 %v500, %v614
        %v616 = vmul.f32 %v324, %v615
        %v617 = vmul.f32 %v325, %v615
        %v618 = vmul.f32 %v326, %v615
        %v619 = vmul.f32 %v327, %v615
        %v620 = vmul.f32 %v328, %v615
        %v621 = vmul.f32 %v329, %v615
        %v622 = vmul.f32 %v330, %v615
        %v623 = vmul.f32 %v331, %v615
        %v624 = vmul.f32 %v332, %v615
        %v625 = vmul.f32 %v333, %v615
        %v626 = vmul.f32 %v334, %v615
        %v627 = vmul.f32 %v335, %v615
        %v628 = vmul.f32 %v336, %v615
        %v629 = vmul.f32 %v337, %v615
        %v630 = vmul.f32 %v338, %v615
        %v631 = vmul.f32 %v339, %v615
        %v632 = vmul.f32 %v340, %v615
        %v633 = vmul.f32 %v341, %v615
        %v634 = vmul.f32 %v342, %v615
        %v635 = vmul.f32 %v343, %v615
        %v636 = vmul.f32 %v344, %v615
        %v637 = vmul.f32 %v345, %v615
        %v638 = vmul.f32 %v346, %v615
        %v639 = vmul.f32 %v347, %v615
        %v640 = vmul.f32 %v348, %v615
        %v641 = vmul.f32 %v349, %v615
        %v642 = vmul.f32 %v350, %v615
        %v643 = vmul.f32 %v351, %v615
        %v644 = vmul.f32 %v352, %v615
        %v645 = vmul.f32 %v353, %v615
        %v646 = vmul.f32 %v354, %v615
        %v647 = vmul.f32 %v355, %v615
        %v648 = vpack.c.bf16 %v617, %v616
        %v649 = vpack.c.bf16 %v619, %v618
        %v650 = vpack.c.bf16 %v621, %v620
        %v651 = vpack.c.bf16 %v623, %v622
        %v652 = vpack.c.bf16 %v625, %v624
        %v653 = vpack.c.bf16 %v627, %v626
        %v654 = vpack.c.bf16 %v629, %v628
        %v655 = vpack.c.bf16 %v631, %v630
        %v656 = vpack.c.bf16 %v633, %v632
        %v657 = vpack.c.bf16 %v635, %v634
        %v658 = vpack.c.bf16 %v637, %v636
        %v659 = vpack.c.bf16 %v639, %v638
        %v660 = vpack.c.bf16 %v641, %v640
        %v661 = vpack.c.bf16 %v643, %v642
        %v662 = vpack.c.bf16 %v645, %v644
        %v663 = vpack.c.bf16 %v647, %v646
        %664 = vxpose.xlu0.c.b16.start [1/8] %v648, 128
        %665 = vxpose.xlu0.c.b16.cont [2/8] %v649, 128
        %666 = vxpose.xlu0.c.b16.cont [3/8] %v650, 128
        %667 = vxpose.xlu0.c.b16.cont [4/8] %v651, 128
        %668 = vxpose.xlu0.c.b16.cont [5/8] %v652, 128
        %669 = vxpose.xlu0.c.b16.cont [6/8] %v653, 128
        %670 = vxpose.xlu0.c.b16.cont [7/8] %v654, 128
        %671 = vxpose.xlu0.c.b16.end [8/8] %v655, 128
        %v672 = vpop.trf.xlu0
        %v673 = vpop.trf.xlu0
        %v674 = vpop.trf.xlu0
        %v675 = vpop.trf.xlu0
        %v676 = vpop.trf.xlu0
        %v677 = vpop.trf.xlu0
        %v678 = vpop.trf.xlu0
        %v679 = vpop.trf.xlu0
        %680 = vxpose.xlu0.c.b16.start [1/8] %v656, 128
        %681 = vxpose.xlu0.c.b16.cont [2/8] %v657, 128
        %682 = vxpose.xlu0.c.b16.cont [3/8] %v658, 128
        %683 = vxpose.xlu0.c.b16.cont [4/8] %v659, 128
        %684 = vxpose.xlu0.c.b16.cont [5/8] %v660, 128
        %685 = vxpose.xlu0.c.b16.cont [6/8] %v661, 128
        %686 = vxpose.xlu0.c.b16.cont [7/8] %v662, 128
        %687 = vxpose.xlu0.c.b16.end [8/8] %v663, 128
        %v688 = vpop.trf.xlu0
        %v689 = vpop.trf.xlu0
        %v690 = vpop.trf.xlu0
        %v691 = vpop.trf.xlu0
        %v692 = vpop.trf.xlu0
        %v693 = vpop.trf.xlu0
        %v694 = vpop.trf.xlu0
        %v695 = vpop.trf.xlu0
        %v728 = vunpack.c.l.b16 %v292
        %v729 = vunpack.c.l.b16 %v293
        %v730 = vunpack.c.l.b16 %v294
        %v731 = vunpack.c.l.b16 %v295
        %v732 = vunpack.c.l.b16 %v296
        %v733 = vunpack.c.l.b16 %v297
        %v734 = vunpack.c.l.b16 %v298
        %v735 = vunpack.c.l.b16 %v299
        %v736 = vunpack.c.l.b16 %v300
        %v737 = vunpack.c.l.b16 %v301
        %v738 = vunpack.c.l.b16 %v302
        %v739 = vunpack.c.l.b16 %v303
        %v740 = vunpack.c.l.b16 %v304
        %v741 = vunpack.c.l.b16 %v305
        %v742 = vunpack.c.l.b16 %v306
        %v743 = vunpack.c.l.b16 %v307
        %v744 = vunpack.c.l.b16 %v308
        %v745 = vunpack.c.l.b16 %v309
        %v746 = vunpack.c.l.b16 %v310
        %v747 = vunpack.c.l.b16 %v311
        %v748 = vunpack.c.l.b16 %v312
        %v749 = vunpack.c.l.b16 %v313
        %v750 = vunpack.c.l.b16 %v314
        %v751 = vunpack.c.l.b16 %v315
        %v752 = vunpack.c.l.b16 %v316
        %v753 = vunpack.c.l.b16 %v317
        %v754 = vunpack.c.l.b16 %v318
        %v755 = vunpack.c.l.b16 %v319
        %v756 = vunpack.c.l.b16 %v320
        %v757 = vunpack.c.l.b16 %v321
        %v758 = vunpack.c.l.b16 %v322
        %v759 = vunpack.c.l.b16 %v323
        %v760 = vpack.c.b16 %v729, %v728
        %v761 = vpack.c.b16 %v731, %v730
        %v762 = vpack.c.b16 %v733, %v732
        %v763 = vpack.c.b16 %v735, %v734
        %v764 = vpack.c.b16 %v737, %v736
        %v765 = vpack.c.b16 %v739, %v738
        %v766 = vpack.c.b16 %v741, %v740
        %v767 = vpack.c.b16 %v743, %v742
        %v768 = vpack.c.b16 %v745, %v744
        %v769 = vpack.c.b16 %v747, %v746
        %v770 = vpack.c.b16 %v749, %v748
        %v771 = vpack.c.b16 %v751, %v750
        %v772 = vpack.c.b16 %v753, %v752
        %v773 = vpack.c.b16 %v755, %v754
        %v774 = vpack.c.b16 %v757, %v756
        %v775 = vpack.c.b16 %v759, %v758
        %792 = vmatpush.bf16.msra.mxu0 %v767
        %793 = vmatpush.bf16.msra.mxu0 %v766
        %794 = vmatpush.bf16.msra.mxu0 %v765
        %795 = vmatpush.bf16.msra.mxu0 %v764
        %796 = vmatpush.bf16.msra.mxu0 %v763
        %797 = vmatpush.bf16.msra.mxu0 %v762
        %798 = vmatpush.bf16.msra.mxu0 %v761
        %799 = vmatpush.bf16.msra.mxu0 %v760
        %800 = vmatmul.bf16.gmra.mxu0 %v672
        %v801 = vpop.f32.mrf.mxu0
        %v802 = vadd.f32 0.0, %v801
        %v803 = vpop.f32.mrf.mxu0
        %804 = vdwg.mxu0
        %805 = vmatpush.bf16.msra.mxu0 %v775
        %806 = vmatpush.bf16.msra.mxu0 %v774
        %807 = vmatpush.bf16.msra.mxu0 %v773
        %808 = vmatpush.bf16.msra.mxu0 %v772
        %809 = vmatpush.bf16.msra.mxu0 %v771
        %810 = vmatpush.bf16.msra.mxu0 %v770
        %811 = vmatpush.bf16.msra.mxu0 %v769
        %812 = vmatpush.bf16.msra.mxu0 %v768
        %813 = vmatmul.bf16.gmra.mxu0 %v688
        %v814 = vpop.f32.mrf.mxu0
        %v815 = vadd.f32 %v802, %v814
        %v816 = vpop.f32.mrf.mxu0
        %817 = vdwg.mxu0
        %v818 = vmul.f32 %v815, %v612
        %vm819 = vcmask 27648
        %v820 = vsel %vm819, %v818, -inf
        %821 = vmax.xlane.f32.xlu0 %v820
        %v822 = vpop.xlane.xlu0 %821
        %v823 = vsub.f32 %v818, %v822
        %v824 = vmul.f32 %v823, 1.442695
        %v825 = vpow.pop %v824
        %v826 = vsel %vm819, %v825, 0.0
        %827 = vadd.xlane.f32.xlu0 %v826
        %v828 = vpop.xlane.xlu0 %827
        %v829 = vrcp.pop %v828
        %v830 = vmul.f32 %v825, %v829
        %v831 = vpack.c.bf16 %v830, %v830
        %832 = vrot.lane.b32.xlu0 %v760, 112
        %v833 = vpop.permute.xlu0 %832
        %834 = vrot.lane.b32.xlu0 %v761, 112
        %v835 = vpop.permute.xlu0 %834
        %836 = vrot.lane.b32.xlu0 %v762, 112
        %v837 = vpop.permute.xlu0 %836
        %838 = vrot.lane.b32.xlu0 %v763, 112
        %v839 = vpop.permute.xlu0 %838
        %840 = vrot.lane.b32.xlu0 %v764, 112
        %v841 = vpop.permute.xlu0 %840
        %842 = vrot.lane.b32.xlu0 %v765, 112
        %v843 = vpop.permute.xlu0 %842
        %844 = vrot.lane.b32.xlu0 %v766, 112
        %v845 = vpop.permute.xlu0 %844
        %846 = vrot.lane.b32.xlu0 %v767, 112
        %v847 = vpop.permute.xlu0 %846
        %848 = vrot.lane.b32.xlu0 %v768, 112
        %v849 = vpop.permute.xlu0 %848
        %850 = vrot.lane.b32.xlu0 %v769, 112
        %v851 = vpop.permute.xlu0 %850
        %852 = vrot.lane.b32.xlu0 %v770, 112
        %v853 = vpop.permute.xlu0 %852
        %854 = vrot.lane.b32.xlu0 %v771, 112
        %v855 = vpop.permute.xlu0 %854
        %856 = vrot.lane.b32.xlu0 %v772, 112
        %v857 = vpop.permute.xlu0 %856
        %858 = vrot.lane.b32.xlu0 %v773, 112
        %v859 = vpop.permute.xlu0 %858
        %860 = vrot.lane.b32.xlu0 %v774, 112
        %v861 = vpop.permute.xlu0 %860
        %862 = vrot.lane.b32.xlu0 %v775, 112
        %v863 = vpop.permute.xlu0 %862
        %v865 = vsel %vm420, %v833, 0
        %v868 = vsel %vm420, %v835, 0
        %v871 = vsel %vm420, %v837, 0
        %v874 = vsel %vm420, %v839, 0
        %v877 = vsel %vm420, %v841, 0
        %v880 = vsel %vm420, %v843, 0
        %v883 = vsel %vm420, %v845, 0
        %v886 = vsel %vm420, %v847, 0
        %v889 = vsel %vm420, %v849, 0
        %v892 = vsel %vm420, %v851, 0
        %v895 = vsel %vm420, %v853, 0
        %v898 = vsel %vm420, %v855, 0
        %v901 = vsel %vm420, %v857, 0
        %v904 = vsel %vm420, %v859, 0
        %v907 = vsel %vm420, %v861, 0
        %v910 = vsel %vm420, %v863, 0
        %v913 = vsel %vm420, %v831, 0
        %915 = vmatpush.bf16.xpose.msra.mxu0 0
        %916 = vmatpush.bf16.xpose.msra.mxu0 0
        %917 = vmatpush.bf16.xpose.msra.mxu0 0
        %918 = vmatpush.bf16.xpose.msra.mxu0 0
        %919 = vmatpush.bf16.xpose.msra.mxu0 0
        %920 = vmatpush.bf16.xpose.msra.mxu0 0
        %921 = vmatpush.bf16.xpose.msra.mxu0 0
        %922 = vmatpush.bf16.xpose.msra.mxu0 %v913
        %923 = vmatmul.bf16.gmra.mxu0 %v865
        %v924 = vpop.f32.mrf.mxu0
        %v925 = vadd.f32 0.0, %v924
        %v926 = vpop.f32.mrf.mxu0
        %v927 = vadd.f32 0.0, %v926
        %928 = vmatmul.bf16.gmra.mxu0 %v868
        %v929 = vpop.f32.mrf.mxu0
        %v930 = vadd.f32 0.0, %v929
        %v931 = vpop.f32.mrf.mxu0
        %v932 = vadd.f32 0.0, %v931
        %933 = vmatmul.bf16.gmra.mxu0 %v871
        %v934 = vpop.f32.mrf.mxu0
        %v935 = vadd.f32 0.0, %v934
        %v936 = vpop.f32.mrf.mxu0
        %v937 = vadd.f32 0.0, %v936
        %938 = vmatmul.bf16.gmra.mxu0 %v874
        %v939 = vpop.f32.mrf.mxu0
        %v940 = vadd.f32 0.0, %v939
        %v941 = vpop.f32.mrf.mxu0
        %v942 = vadd.f32 0.0, %v941
        %943 = vmatmul.bf16.gmra.mxu0 %v877
        %v944 = vpop.f32.mrf.mxu0
        %v945 = vadd.f32 0.0, %v944
        %v946 = vpop.f32.mrf.mxu0
        %v947 = vadd.f32 0.0, %v946
        %948 = vmatmul.bf16.gmra.mxu0 %v880
        %v949 = vpop.f32.mrf.mxu0
        %v950 = vadd.f32 0.0, %v949
        %v951 = vpop.f32.mrf.mxu0
        %v952 = vadd.f32 0.0, %v951
        %953 = vmatmul.bf16.gmra.mxu0 %v883
        %v954 = vpop.f32.mrf.mxu0
        %v955 = vadd.f32 0.0, %v954
        %v956 = vpop.f32.mrf.mxu0
        %v957 = vadd.f32 0.0, %v956
        %958 = vmatmul.bf16.gmra.mxu0 %v886
        %v959 = vpop.f32.mrf.mxu0
        %v960 = vadd.f32 0.0, %v959
        %v961 = vpop.f32.mrf.mxu0
        %v962 = vadd.f32 0.0, %v961
        %963 = vmatmul.bf16.gmra.mxu0 %v889
        %v964 = vpop.f32.mrf.mxu0
        %v965 = vadd.f32 0.0, %v964
        %v966 = vpop.f32.mrf.mxu0
        %v967 = vadd.f32 0.0, %v966
        %968 = vmatmul.bf16.gmra.mxu0 %v892
        %v969 = vpop.f32.mrf.mxu0
        %v970 = vadd.f32 0.0, %v969
        %v971 = vpop.f32.mrf.mxu0
        %v972 = vadd.f32 0.0, %v971
        %973 = vmatmul.bf16.gmra.mxu0 %v895
        %v974 = vpop.f32.mrf.mxu0
        %v975 = vadd.f32 0.0, %v974
        %v976 = vpop.f32.mrf.mxu0
        %v977 = vadd.f32 0.0, %v976
        %978 = vmatmul.bf16.gmra.mxu0 %v898
        %v979 = vpop.f32.mrf.mxu0
        %v980 = vadd.f32 0.0, %v979
        %v981 = vpop.f32.mrf.mxu0
        %v982 = vadd.f32 0.0, %v981
        %983 = vmatmul.bf16.gmra.mxu0 %v901
        %v984 = vpop.f32.mrf.mxu0
        %v985 = vadd.f32 0.0, %v984
        %v986 = vpop.f32.mrf.mxu0
        %v987 = vadd.f32 0.0, %v986
        %988 = vmatmul.bf16.gmra.mxu0 %v904
        %v989 = vpop.f32.mrf.mxu0
        %v990 = vadd.f32 0.0, %v989
        %v991 = vpop.f32.mrf.mxu0
        %v992 = vadd.f32 0.0, %v991
        %993 = vmatmul.bf16.gmra.mxu0 %v907
        %v994 = vpop.f32.mrf.mxu0
        %v995 = vadd.f32 0.0, %v994
        %v996 = vpop.f32.mrf.mxu0
        %v997 = vadd.f32 0.0, %v996
        %998 = vmatmul.bf16.gmra.mxu0 %v910
        %v999 = vpop.f32.mrf.mxu0
        %v1000 = vadd.f32 0.0, %v999
        %v1001 = vpop.f32.mrf.mxu0
        %v1002 = vadd.f32 0.0, %v1001
        %1003 = vdwg.mxu0
        %vm1004 = vcmask 64544
        %v1005 = vsel %vm1004, %v388, 0.0
        %v1006 = vsel %vm1004, %v389, 0.0
        %v1007 = vadd.f32 %v1005, %v1006
        %v1008 = vsel %vm1004, %v390, 0.0
        %v1009 = vadd.f32 %v1007, %v1008
        %v1010 = vsel %vm1004, %v391, 0.0
        %v1011 = vadd.f32 %v1009, %v1010
        %v1012 = vsel %vm1004, %v392, 0.0
        %v1013 = vadd.f32 %v1011, %v1012
        %v1014 = vsel %vm1004, %v393, 0.0
        %v1015 = vadd.f32 %v1013, %v1014
        %v1016 = vsel %vm1004, %v394, 0.0
        %v1017 = vadd.f32 %v1015, %v1016
        %v1018 = vsel %vm1004, %v395, 0.0
        %v1019 = vadd.f32 %v1017, %v1018
        %v1020 = vsel %vm1004, %v396, 0.0
        %v1021 = vadd.f32 %v1019, %v1020
        %v1022 = vsel %vm1004, %v397, 0.0
        %v1023 = vadd.f32 %v1021, %v1022
        %v1024 = vsel %vm1004, %v398, 0.0
        %v1025 = vadd.f32 %v1023, %v1024
        %v1026 = vsel %vm1004, %v399, 0.0
        %v1027 = vadd.f32 %v1025, %v1026
        %v1028 = vsel %vm1004, %v400, 0.0
        %v1029 = vadd.f32 %v1027, %v1028
        %v1030 = vsel %vm1004, %v401, 0.0
        %v1031 = vadd.f32 %v1029, %v1030
        %v1032 = vsel %vm1004, %v402, 0.0
        %v1033 = vadd.f32 %v1031, %v1032
        %v1034 = vsel %vm1004, %v403, 0.0
        %v1035 = vadd.f32 %v1033, %v1034
        %v1036 = vsel %vm1004, %v404, 0.0
        %v1037 = vadd.f32 %v1035, %v1036
        %v1038 = vsel %vm1004, %v405, 0.0
        %v1039 = vadd.f32 %v1037, %v1038
        %v1040 = vsel %vm1004, %v406, 0.0
        %v1041 = vadd.f32 %v1039, %v1040
        %v1042 = vsel %vm1004, %v407, 0.0
        %v1043 = vadd.f32 %v1041, %v1042
        %v1044 = vsel %vm1004, %v408, 0.0
        %v1045 = vadd.f32 %v1043, %v1044
        %v1046 = vsel %vm1004, %v409, 0.0
        %v1047 = vadd.f32 %v1045, %v1046
        %v1048 = vsel %vm1004, %v410, 0.0
        %v1049 = vadd.f32 %v1047, %v1048
        %v1050 = vsel %vm1004, %v411, 0.0
        %v1051 = vadd.f32 %v1049, %v1050
        %v1052 = vsel %vm1004, %v412, 0.0
        %v1053 = vadd.f32 %v1051, %v1052
        %v1054 = vsel %vm1004, %v413, 0.0
        %v1055 = vadd.f32 %v1053, %v1054
        %v1056 = vsel %vm1004, %v414, 0.0
        %v1057 = vadd.f32 %v1055, %v1056
        %v1058 = vsel %vm1004, %v415, 0.0
        %v1059 = vadd.f32 %v1057, %v1058
        %v1060 = vsel %vm1004, %v416, 0.0
        %v1061 = vadd.f32 %v1059, %v1060
        %v1062 = vsel %vm1004, %v417, 0.0
        %v1063 = vadd.f32 %v1061, %v1062
        %v1064 = vsel %vm1004, %v418, 0.0
        %v1065 = vadd.f32 %v1063, %v1064
        %v1066 = vsel %vm1004, %v419, 0.0
        %v1067 = vadd.f32 %v1065, %v1066
        %v1068 = vrot.slane %v1067, 4
        %v1069 = vadd.f32 %v1067, %v1068
        %v1070 = vrot.slane %v1069, 2
        %v1071 = vadd.f32 %v1069, %v1070
        %v1072 = vrot.slane %v1071, 1
        %v1073 = vadd.f32 %v1071, %v1072
        %v1074 = vmax.f32 %v1073, 1e-24
        %v1075 = vrsqrt.pop %v1074
        %v1076 = vmul.f32 %v1075, %v1074
        %v1077 = vmul.f32 %v1076, %v1075
        %v1078 = vmul.f32 0.5, %v1077
        %v1079 = vsub.f32 1.5, %v1078
        %v1080 = vmul.f32 %v1075, %v1079
        %vm1081 = vweird.f32 %v1074
        %vm1082 = vweird.f32 %v1075
        %vm1083 = vmor %vm1081, %vm1082
        %v1084 = vsel %vm1083, %v1075, %v1080
        %v1085 = vsel %vm1004, %v501, 0.0
        %v1086 = vsel %vm1004, %v502, 0.0
        %v1087 = vadd.f32 %v1085, %v1086
        %v1088 = vsel %vm1004, %v503, 0.0
        %v1089 = vadd.f32 %v1087, %v1088
        %v1090 = vsel %vm1004, %v504, 0.0
        %v1091 = vadd.f32 %v1089, %v1090
        %v1092 = vsel %vm1004, %v505, 0.0
        %v1093 = vadd.f32 %v1091, %v1092
        %v1094 = vsel %vm1004, %v506, 0.0
        %v1095 = vadd.f32 %v1093, %v1094
        %v1096 = vsel %vm1004, %v507, 0.0
        %v1097 = vadd.f32 %v1095, %v1096
        %v1098 = vsel %vm1004, %v508, 0.0
        %v1099 = vadd.f32 %v1097, %v1098
        %v1100 = vsel %vm1004, %v509, 0.0
        %v1101 = vadd.f32 %v1099, %v1100
        %v1102 = vsel %vm1004, %v510, 0.0
        %v1103 = vadd.f32 %v1101, %v1102
        %v1104 = vsel %vm1004, %v511, 0.0
        %v1105 = vadd.f32 %v1103, %v1104
        %v1106 = vsel %vm1004, %v512, 0.0
        %v1107 = vadd.f32 %v1105, %v1106
        %v1108 = vsel %vm1004, %v513, 0.0
        %v1109 = vadd.f32 %v1107, %v1108
        %v1110 = vsel %vm1004, %v514, 0.0
        %v1111 = vadd.f32 %v1109, %v1110
        %v1112 = vsel %vm1004, %v515, 0.0
        %v1113 = vadd.f32 %v1111, %v1112
        %v1114 = vsel %vm1004, %v516, 0.0
        %v1115 = vadd.f32 %v1113, %v1114
        %v1116 = vsel %vm1004, %v517, 0.0
        %v1117 = vadd.f32 %v1115, %v1116
        %v1118 = vsel %vm1004, %v518, 0.0
        %v1119 = vadd.f32 %v1117, %v1118
        %v1120 = vsel %vm1004, %v519, 0.0
        %v1121 = vadd.f32 %v1119, %v1120
        %v1122 = vsel %vm1004, %v520, 0.0
        %v1123 = vadd.f32 %v1121, %v1122
        %v1124 = vsel %vm1004, %v521, 0.0
        %v1125 = vadd.f32 %v1123, %v1124
        %v1126 = vsel %vm1004, %v522, 0.0
        %v1127 = vadd.f32 %v1125, %v1126
        %v1128 = vsel %vm1004, %v523, 0.0
        %v1129 = vadd.f32 %v1127, %v1128
        %v1130 = vsel %vm1004, %v524, 0.0
        %v1131 = vadd.f32 %v1129, %v1130
        %v1132 = vsel %vm1004, %v525, 0.0
        %v1133 = vadd.f32 %v1131, %v1132
        %v1134 = vsel %vm1004, %v526, 0.0
        %v1135 = vadd.f32 %v1133, %v1134
        %v1136 = vsel %vm1004, %v527, 0.0
        %v1137 = vadd.f32 %v1135, %v1136
        %v1138 = vsel %vm1004, %v528, 0.0
        %v1139 = vadd.f32 %v1137, %v1138
        %v1140 = vsel %vm1004, %v529, 0.0
        %v1141 = vadd.f32 %v1139, %v1140
        %v1142 = vsel %vm1004, %v530, 0.0
        %v1143 = vadd.f32 %v1141, %v1142
        %v1144 = vsel %vm1004, %v531, 0.0
        %v1145 = vadd.f32 %v1143, %v1144
        %v1146 = vsel %vm1004, %v532, 0.0
        %v1147 = vadd.f32 %v1145, %v1146
        %v1148 = vrot.slane %v1147, 4
        %v1149 = vadd.f32 %v1147, %v1148
        %v1150 = vrot.slane %v1149, 2
        %v1151 = vadd.f32 %v1149, %v1150
        %v1152 = vrot.slane %v1151, 1
        %v1153 = vadd.f32 %v1151, %v1152
        %v1154 = vmax.f32 %v1153, 1e-24
        %v1155 = vrsqrt.pop %v1154
        %v1156 = vmul.f32 %v1155, %v1154
        %v1157 = vmul.f32 %v1156, %v1155
        %v1158 = vmul.f32 0.5, %v1157
        %v1159 = vsub.f32 1.5, %v1158
        %v1160 = vmul.f32 %v1155, %v1159
        %vm1161 = vweird.f32 %v1154
        %vm1162 = vweird.f32 %v1155
        %vm1163 = vmor %vm1161, %vm1162
        %v1164 = vsel %vm1163, %v1155, %v1160
        %s1165 = sld [smem:[#allocation2 + $0x1]]
        %v1166 = vstv %s1165
        %v1167 = vmul.f32 %v1084, %v1166
        %v1168 = vmul.f32 %v324, %v1167
        %v1169 = vmul.f32 %v325, %v1167
        %v1170 = vmul.f32 %v326, %v1167
        %v1171 = vmul.f32 %v327, %v1167
        %v1172 = vmul.f32 %v328, %v1167
        %v1173 = vmul.f32 %v329, %v1167
        %v1174 = vmul.f32 %v330, %v1167
        %v1175 = vmul.f32 %v331, %v1167
        %v1176 = vmul.f32 %v332, %v1167
        %v1177 = vmul.f32 %v333, %v1167
        %v1178 = vmul.f32 %v334, %v1167
        %v1179 = vmul.f32 %v335, %v1167
        %v1180 = vmul.f32 %v336, %v1167
        %v1181 = vmul.f32 %v337, %v1167
        %v1182 = vmul.f32 %v338, %v1167
        %v1183 = vmul.f32 %v339, %v1167
        %v1184 = vmul.f32 %v340, %v1167
        %v1185 = vmul.f32 %v341, %v1167
        %v1186 = vmul.f32 %v342, %v1167
        %v1187 = vmul.f32 %v343, %v1167
        %v1188 = vmul.f32 %v344, %v1167
        %v1189 = vmul.f32 %v345, %v1167
        %v1190 = vmul.f32 %v346, %v1167
        %v1191 = vmul.f32 %v347, %v1167
        %v1192 = vmul.f32 %v348, %v1167
        %v1193 = vmul.f32 %v349, %v1167
        %v1194 = vmul.f32 %v350, %v1167
        %v1195 = vmul.f32 %v351, %v1167
        %v1196 = vmul.f32 %v352, %v1167
        %v1197 = vmul.f32 %v353, %v1167
        %v1198 = vmul.f32 %v354, %v1167
        %v1199 = vmul.f32 %v355, %v1167
        %v1200 = vpack.c.bf16 %v1169, %v1168
        %v1201 = vpack.c.bf16 %v1171, %v1170
        %v1202 = vpack.c.bf16 %v1173, %v1172
        %v1203 = vpack.c.bf16 %v1175, %v1174
        %v1204 = vpack.c.bf16 %v1177, %v1176
        %v1205 = vpack.c.bf16 %v1179, %v1178
        %v1206 = vpack.c.bf16 %v1181, %v1180
        %v1207 = vpack.c.bf16 %v1183, %v1182
        %v1208 = vpack.c.bf16 %v1185, %v1184
        %v1209 = vpack.c.bf16 %v1187, %v1186
        %v1210 = vpack.c.bf16 %v1189, %v1188
        %v1211 = vpack.c.bf16 %v1191, %v1190
        %v1212 = vpack.c.bf16 %v1193, %v1192
        %v1213 = vpack.c.bf16 %v1195, %v1194
        %v1214 = vpack.c.bf16 %v1197, %v1196
        %v1215 = vpack.c.bf16 %v1199, %v1198
        %1232 = vrot.lane.b32.xlu0 %v1200, 124
        %v1233 = vpop.permute.xlu0 %1232
        %1234 = vrot.lane.b32.xlu0 %v1201, 124
        %v1235 = vpop.permute.xlu0 %1234
        %1236 = vrot.lane.b32.xlu0 %v1202, 124
        %v1237 = vpop.permute.xlu0 %1236
        %1238 = vrot.lane.b32.xlu0 %v1203, 124
        %v1239 = vpop.permute.xlu0 %1238
        %1240 = vrot.lane.b32.xlu0 %v1204, 124
        %v1241 = vpop.permute.xlu0 %1240
        %1242 = vrot.lane.b32.xlu0 %v1205, 124
        %v1243 = vpop.permute.xlu0 %1242
        %1244 = vrot.lane.b32.xlu0 %v1206, 124
        %v1245 = vpop.permute.xlu0 %1244
        %1246 = vrot.lane.b32.xlu0 %v1207, 124
        %v1247 = vpop.permute.xlu0 %1246
        %1248 = vrot.lane.b32.xlu0 %v1208, 124
        %v1249 = vpop.permute.xlu0 %1248
        %1250 = vrot.lane.b32.xlu0 %v1209, 124
        %v1251 = vpop.permute.xlu0 %1250
        %1252 = vrot.lane.b32.xlu0 %v1210, 124
        %v1253 = vpop.permute.xlu0 %1252
        %1254 = vrot.lane.b32.xlu0 %v1211, 124
        %v1255 = vpop.permute.xlu0 %1254
        %1256 = vrot.lane.b32.xlu0 %v1212, 124
        %v1257 = vpop.permute.xlu0 %1256
        %1258 = vrot.lane.b32.xlu0 %v1213, 124
        %v1259 = vpop.permute.xlu0 %1258
        %1260 = vrot.lane.b32.xlu0 %v1214, 124
        %v1261 = vpop.permute.xlu0 %1260
        %1262 = vrot.lane.b32.xlu0 %v1215, 124
        %v1263 = vpop.permute.xlu0 %1262
        %1280 = vxpose.xlu0.c.b16.start [1/8] %v1233, 128
        %1281 = vxpose.xlu0.c.b16.cont [2/8] %v1235, 128
        %1282 = vxpose.xlu0.c.b16.cont [3/8] %v1237, 128
        %1283 = vxpose.xlu0.c.b16.cont [4/8] %v1239, 128
        %1284 = vxpose.xlu0.c.b16.cont [5/8] %v1241, 128
        %1285 = vxpose.xlu0.c.b16.cont [6/8] %v1243, 128
        %1286 = vxpose.xlu0.c.b16.cont [7/8] %v1245, 128
        %1287 = vxpose.xlu0.c.b16.end [8/8] %v1247, 128
        %v1288 = vpop.trf.xlu0
        %v1289 = vpop.trf.xlu0
        %v1290 = vpop.trf.xlu0
        %v1291 = vpop.trf.xlu0
        %v1292 = vpop.trf.xlu0
        %v1293 = vpop.trf.xlu0
        %v1294 = vpop.trf.xlu0
        %v1295 = vpop.trf.xlu0
        %1296 = vxpose.xlu0.c.b16.start [1/8] %v1249, 128
        %1297 = vxpose.xlu0.c.b16.cont [2/8] %v1251, 128
        %1298 = vxpose.xlu0.c.b16.cont [3/8] %v1253, 128
        %1299 = vxpose.xlu0.c.b16.cont [4/8] %v1255, 128
        %1300 = vxpose.xlu0.c.b16.cont [5/8] %v1257, 128
        %1301 = vxpose.xlu0.c.b16.cont [6/8] %v1259, 128
        %1302 = vxpose.xlu0.c.b16.cont [7/8] %v1261, 128
        %1303 = vxpose.xlu0.c.b16.end [8/8] %v1263, 128
        %v1304 = vpop.trf.xlu0
        %v1305 = vpop.trf.xlu0
        %v1306 = vpop.trf.xlu0
        %v1307 = vpop.trf.xlu0
        %v1308 = vpop.trf.xlu0
        %v1309 = vpop.trf.xlu0
        %v1310 = vpop.trf.xlu0
        %v1311 = vpop.trf.xlu0
        %1312 = vrot.lane.b32.xlu0 %v760, 124
        %v1313 = vpop.permute.xlu0 %1312
        %1314 = vrot.lane.b32.xlu0 %v761, 124
        %v1315 = vpop.permute.xlu0 %1314
        %1316 = vrot.lane.b32.xlu0 %v762, 124
        %v1317 = vpop.permute.xlu0 %1316
        %1318 = vrot.lane.b32.xlu0 %v763, 124
        %v1319 = vpop.permute.xlu0 %1318
        %1320 = vrot.lane.b32.xlu0 %v764, 124
        %v1321 = vpop.permute.xlu0 %1320
        %1322 = vrot.lane.b32.xlu0 %v765, 124
        %v1323 = vpop.permute.xlu0 %1322
        %1324 = vrot.lane.b32.xlu0 %v766, 124
        %v1325 = vpop.permute.xlu0 %1324
        %1326 = vrot.lane.b32.xlu0 %v767, 124
        %v1327 = vpop.permute.xlu0 %1326
        %1328 = vrot.lane.b32.xlu0 %v768, 124
        %v1329 = vpop.permute.xlu0 %1328
        %1330 = vrot.lane.b32.xlu0 %v769, 124
        %v1331 = vpop.permute.xlu0 %1330
        %1332 = vrot.lane.b32.xlu0 %v770, 124
        %v1333 = vpop.permute.xlu0 %1332
        %1334 = vrot.lane.b32.xlu0 %v771, 124
        %v1335 = vpop.permute.xlu0 %1334
        %1336 = vrot.lane.b32.xlu0 %v772, 124
        %v1337 = vpop.permute.xlu0 %1336
        %1338 = vrot.lane.b32.xlu0 %v773, 124
        %v1339 = vpop.permute.xlu0 %1338
        %1340 = vrot.lane.b32.xlu0 %v774, 124
        %v1341 = vpop.permute.xlu0 %1340
        %1342 = vrot.lane.b32.xlu0 %v775, 124
        %v1343 = vpop.permute.xlu0 %1342
        %1360 = vmatpush.bf16.msra.mxu0 %v1327
        %1361 = vmatpush.bf16.msra.mxu0 %v1325
        %1362 = vmatpush.bf16.msra.mxu0 %v1323
        %1363 = vmatpush.bf16.msra.mxu0 %v1321
        %1364 = vmatpush.bf16.msra.mxu0 %v1319
        %1365 = vmatpush.bf16.msra.mxu0 %v1317
        %1366 = vmatpush.bf16.msra.mxu0 %v1315
        %1367 = vmatpush.bf16.msra.mxu0 %v1313
        %1368 = vmatmul.bf16.gmra.mxu0 %v1288
        %v1369 = vpop.f32.mrf.mxu0
        %v1370 = vadd.f32 0.0, %v1369
        %v1371 = vpop.f32.mrf.mxu0
        %1372 = vdwg.mxu0
        %1373 = vmatpush.bf16.msra.mxu0 %v1343
        %1374 = vmatpush.bf16.msra.mxu0 %v1341
        %1375 = vmatpush.bf16.msra.mxu0 %v1339
        %1376 = vmatpush.bf16.msra.mxu0 %v1337
        %1377 = vmatpush.bf16.msra.mxu0 %v1335
        %1378 = vmatpush.bf16.msra.mxu0 %v1333
        %1379 = vmatpush.bf16.msra.mxu0 %v1331
        %1380 = vmatpush.bf16.msra.mxu0 %v1329
        %1381 = vmatmul.bf16.gmra.mxu0 %v1304
        %v1382 = vpop.f32.mrf.mxu0
        %v1383 = vadd.f32 %v1370, %v1382
        %v1384 = vpop.f32.mrf.mxu0
        %1385 = vdwg.mxu0
        %1387 = vrot.lane.b32.xlu0 %v1164, 124
        %v1388 = vpop.permute.xlu0 %1387
        %v1390 = vmul.f32 %v1383, %v1388
        %v1391 = vsel %vm819, %v1390, -inf
        %1392 = vmax.xlane.f32.xlu0 %v1391
        %v1393 = vpop.xlane.xlu0 %1392
        %v1394 = vsub.f32 %v1390, %v1393
        %v1395 = vmul.f32 %v1394, 1.442695
        %v1396 = vpow.pop %v1395
        %v1397 = vsel %vm819, %v1396, 0.0
        %1398 = vadd.xlane.f32.xlu0 %v1397
        %v1399 = vpop.xlane.xlu0 %1398
        %v1400 = vrcp.pop %v1399
        %v1401 = vmul.f32 %v1396, %v1400
        %v1402 = vpack.c.bf16 %v1401, %v1401
        %1403 = vrot.lane.b32.xlu0 %v760, 108
        %v1404 = vpop.permute.xlu0 %1403
        %1405 = vrot.lane.b32.xlu0 %v761, 108
        %v1406 = vpop.permute.xlu0 %1405
        %1407 = vrot.lane.b32.xlu0 %v762, 108
        %v1408 = vpop.permute.xlu0 %1407
        %1409 = vrot.lane.b32.xlu0 %v763, 108
        %v1410 = vpop.permute.xlu0 %1409
        %1411 = vrot.lane.b32.xlu0 %v764, 108
        %v1412 = vpop.permute.xlu0 %1411
        %1413 = vrot.lane.b32.xlu0 %v765, 108
        %v1414 = vpop.permute.xlu0 %1413
        %1415 = vrot.lane.b32.xlu0 %v766, 108
        %v1416 = vpop.permute.xlu0 %1415
        %1417 = vrot.lane.b32.xlu0 %v767, 108
        %v1418 = vpop.permute.xlu0 %1417
        %1419 = vrot.lane.b32.xlu0 %v768, 108
        %v1420 = vpop.permute.xlu0 %1419
        %1421 = vrot.lane.b32.xlu0 %v769, 108
        %v1422 = vpop.permute.xlu0 %1421
        %1423 = vrot.lane.b32.xlu0 %v770, 108
        %v1424 = vpop.permute.xlu0 %1423
        %1425 = vrot.lane.b32.xlu0 %v771, 108
        %v1426 = vpop.permute.xlu0 %1425
        %1427 = vrot.lane.b32.xlu0 %v772, 108
        %v1428 = vpop.permute.xlu0 %1427
        %1429 = vrot.lane.b32.xlu0 %v773, 108
        %v1430 = vpop.permute.xlu0 %1429
        %1431 = vrot.lane.b32.xlu0 %v774, 108
        %v1432 = vpop.permute.xlu0 %1431
        %1433 = vrot.lane.b32.xlu0 %v775, 108
        %v1434 = vpop.permute.xlu0 %1433
        %v1436 = vsel %vm420, %v1404, 0
        %v1439 = vsel %vm420, %v1406, 0
        %v1442 = vsel %vm420, %v1408, 0
        %v1445 = vsel %vm420, %v1410, 0
        %v1448 = vsel %vm420, %v1412, 0
        %v1451 = vsel %vm420, %v1414, 0
        %v1454 = vsel %vm420, %v1416, 0
        %v1457 = vsel %vm420, %v1418, 0
        %v1460 = vsel %vm420, %v1420, 0
        %v1463 = vsel %vm420, %v1422, 0
        %v1466 = vsel %vm420, %v1424, 0
        %v1469 = vsel %vm420, %v1426, 0
        %v1472 = vsel %vm420, %v1428, 0
        %v1475 = vsel %vm420, %v1430, 0
        %v1478 = vsel %vm420, %v1432, 0
        %v1481 = vsel %vm420, %v1434, 0
        %v1484 = vsel %vm420, %v1402, 0
        %1486 = vmatpush.bf16.xpose.msra.mxu0 0
        %1487 = vmatpush.bf16.xpose.msra.mxu0 0
        %1488 = vmatpush.bf16.xpose.msra.mxu0 0
        %1489 = vmatpush.bf16.xpose.msra.mxu0 0
        %1490 = vmatpush.bf16.xpose.msra.mxu0 0
        %1491 = vmatpush.bf16.xpose.msra.mxu0 0
        %1492 = vmatpush.bf16.xpose.msra.mxu0 0
        %1493 = vmatpush.bf16.xpose.msra.mxu0 %v1484
        %1494 = vmatmul.bf16.gmra.mxu0 %v1436
        %v1495 = vpop.f32.mrf.mxu0
        %v1496 = vadd.f32 0.0, %v1495
        %v1497 = vpop.f32.mrf.mxu0
        %v1498 = vadd.f32 0.0, %v1497
        %1499 = vmatmul.bf16.gmra.mxu0 %v1439
        %v1500 = vpop.f32.mrf.mxu0
        %v1501 = vadd.f32 0.0, %v1500
        %v1502 = vpop.f32.mrf.mxu0
        %v1503 = vadd.f32 0.0, %v1502
        %1504 = vmatmul.bf16.gmra.mxu0 %v1442
        %v1505 = vpop.f32.mrf.mxu0
        %v1506 = vadd.f32 0.0, %v1505
        %v1507 = vpop.f32.mrf.mxu0
        %v1508 = vadd.f32 0.0, %v1507
        %1509 = vmatmul.bf16.gmra.mxu0 %v1445
        %v1510 = vpop.f32.mrf.mxu0
        %v1511 = vadd.f32 0.0, %v1510
        %v1512 = vpop.f32.mrf.mxu0
        %v1513 = vadd.f32 0.0, %v1512
        %1514 = vmatmul.bf16.gmra.mxu0 %v1448
        %v1515 = vpop.f32.mrf.mxu0
        %v1516 = vadd.f32 0.0, %v1515
        %v1517 = vpop.f32.mrf.mxu0
        %v1518 = vadd.f32 0.0, %v1517
        %1519 = vmatmul.bf16.gmra.mxu0 %v1451
        %v1520 = vpop.f32.mrf.mxu0
        %v1521 = vadd.f32 0.0, %v1520
        %v1522 = vpop.f32.mrf.mxu0
        %v1523 = vadd.f32 0.0, %v1522
        %1524 = vmatmul.bf16.gmra.mxu0 %v1454
        %v1525 = vpop.f32.mrf.mxu0
        %v1526 = vadd.f32 0.0, %v1525
        %v1527 = vpop.f32.mrf.mxu0
        %v1528 = vadd.f32 0.0, %v1527
        %1529 = vmatmul.bf16.gmra.mxu0 %v1457
        %v1530 = vpop.f32.mrf.mxu0
        %v1531 = vadd.f32 0.0, %v1530
        %v1532 = vpop.f32.mrf.mxu0
        %v1533 = vadd.f32 0.0, %v1532
        %1534 = vmatmul.bf16.gmra.mxu0 %v1460
        %v1535 = vpop.f32.mrf.mxu0
        %v1536 = vadd.f32 0.0, %v1535
        %v1537 = vpop.f32.mrf.mxu0
        %v1538 = vadd.f32 0.0, %v1537
        %1539 = vmatmul.bf16.gmra.mxu0 %v1463
        %v1540 = vpop.f32.mrf.mxu0
        %v1541 = vadd.f32 0.0, %v1540
        %v1542 = vpop.f32.mrf.mxu0
        %v1543 = vadd.f32 0.0, %v1542
        %1544 = vmatmul.bf16.gmra.mxu0 %v1466
        %v1545 = vpop.f32.mrf.mxu0
        %v1546 = vadd.f32 0.0, %v1545
        %v1547 = vpop.f32.mrf.mxu0
        %v1548 = vadd.f32 0.0, %v1547
        %1549 = vmatmul.bf16.gmra.mxu0 %v1469
        %v1550 = vpop.f32.mrf.mxu0
        %v1551 = vadd.f32 0.0, %v1550
        %v1552 = vpop.f32.mrf.mxu0
        %v1553 = vadd.f32 0.0, %v1552
        %1554 = vmatmul.bf16.gmra.mxu0 %v1472
        %v1555 = vpop.f32.mrf.mxu0
        %v1556 = vadd.f32 0.0, %v1555
        %v1557 = vpop.f32.mrf.mxu0
        %v1558 = vadd.f32 0.0, %v1557
        %1559 = vmatmul.bf16.gmra.mxu0 %v1475
        %v1560 = vpop.f32.mrf.mxu0
        %v1561 = vadd.f32 0.0, %v1560
        %v1562 = vpop.f32.mrf.mxu0
        %v1563 = vadd.f32 0.0, %v1562
        %1564 = vmatmul.bf16.gmra.mxu0 %v1478
        %v1565 = vpop.f32.mrf.mxu0
        %v1566 = vadd.f32 0.0, %v1565
        %v1567 = vpop.f32.mrf.mxu0
        %v1568 = vadd.f32 0.0, %v1567
        %1569 = vmatmul.bf16.gmra.mxu0 %v1481
        %v1570 = vpop.f32.mrf.mxu0
        %v1571 = vadd.f32 0.0, %v1570
        %v1572 = vpop.f32.mrf.mxu0
        %v1573 = vadd.f32 0.0, %v1572
        %1574 = vdwg.mxu0
        %vm1575 = vcmask 97344
        %v1576 = vsel %vm1575, %v388, 0.0
        %v1577 = vsel %vm1575, %v389, 0.0
        %v1578 = vadd.f32 %v1576, %v1577
        %v1579 = vsel %vm1575, %v390, 0.0
        %v1580 = vadd.f32 %v1578, %v1579
        %v1581 = vsel %vm1575, %v391, 0.0
        %v1582 = vadd.f32 %v1580, %v1581
        %v1583 = vsel %vm1575, %v392, 0.0
        %v1584 = vadd.f32 %v1582, %v1583
        %v1585 = vsel %vm1575, %v393, 0.0
        %v1586 = vadd.f32 %v1584, %v1585
        %v1587 = vsel %vm1575, %v394, 0.0
        %v1588 = vadd.f32 %v1586, %v1587
        %v1589 = vsel %vm1575, %v395, 0.0
        %v1590 = vadd.f32 %v1588, %v1589
        %v1591 = vsel %vm1575, %v396, 0.0
        %v1592 = vadd.f32 %v1590, %v1591
        %v1593 = vsel %vm1575, %v397, 0.0
        %v1594 = vadd.f32 %v1592, %v1593
        %v1595 = vsel %vm1575, %v398, 0.0
        %v1596 = vadd.f32 %v1594, %v1595
        %v1597 = vsel %vm1575, %v399, 0.0
        %v1598 = vadd.f32 %v1596, %v1597
        %v1599 = vsel %vm1575, %v400, 0.0
        %v1600 = vadd.f32 %v1598, %v1599
        %v1601 = vsel %vm1575, %v401, 0.0
        %v1602 = vadd.f32 %v1600, %v1601
        %v1603 = vsel %vm1575, %v402, 0.0
        %v1604 = vadd.f32 %v1602, %v1603
        %v1605 = vsel %vm1575, %v403, 0.0
        %v1606 = vadd.f32 %v1604, %v1605
        %v1607 = vsel %vm1575, %v404, 0.0
        %v1608 = vadd.f32 %v1606, %v1607
        %v1609 = vsel %vm1575, %v405, 0.0
        %v1610 = vadd.f32 %v1608, %v1609
        %v1611 = vsel %vm1575, %v406, 0.0
        %v1612 = vadd.f32 %v1610, %v1611
        %v1613 = vsel %vm1575, %v407, 0.0
        %v1614 = vadd.f32 %v1612, %v1613
        %v1615 = vsel %vm1575, %v408, 0.0
        %v1616 = vadd.f32 %v1614, %v1615
        %v1617 = vsel %vm1575, %v409, 0.0
        %v1618 = vadd.f32 %v1616, %v1617
        %v1619 = vsel %vm1575, %v410, 0.0
        %v1620 = vadd.f32 %v1618, %v1619
        %v1621 = vsel %vm1575, %v411, 0.0
        %v1622 = vadd.f32 %v1620, %v1621
        %v1623 = vsel %vm1575, %v412, 0.0
        %v1624 = vadd.f32 %v1622, %v1623
        %v1625 = vsel %vm1575, %v413, 0.0
        %v1626 = vadd.f32 %v1624, %v1625
        %v1627 = vsel %vm1575, %v414, 0.0
        %v1628 = vadd.f32 %v1626, %v1627
        %v1629 = vsel %vm1575, %v415, 0.0
        %v1630 = vadd.f32 %v1628, %v1629
        %v1631 = vsel %vm1575, %v416, 0.0
        %v1632 = vadd.f32 %v1630, %v1631
        %v1633 = vsel %vm1575, %v417, 0.0
        %v1634 = vadd.f32 %v1632, %v1633
        %v1635 = vsel %vm1575, %v418, 0.0
        %v1636 = vadd.f32 %v1634, %v1635
        %v1637 = vsel %vm1575, %v419, 0.0
        %v1638 = vadd.f32 %v1636, %v1637
        %v1639 = vrot.slane %v1638, 4
        %v1640 = vadd.f32 %v1638, %v1639
        %v1641 = vrot.slane %v1640, 2
        %v1642 = vadd.f32 %v1640, %v1641
        %v1643 = vrot.slane %v1642, 1
        %v1644 = vadd.f32 %v1642, %v1643
        %v1645 = vmax.f32 %v1644, 1e-24
        %v1646 = vrsqrt.pop %v1645
        %v1647 = vmul.f32 %v1646, %v1645
        %v1648 = vmul.f32 %v1647, %v1646
        %v1649 = vmul.f32 0.5, %v1648
        %v1650 = vsub.f32 1.5, %v1649
        %v1651 = vmul.f32 %v1646, %v1650
        %vm1652 = vweird.f32 %v1645
        %vm1653 = vweird.f32 %v1646
        %vm1654 = vmor %vm1652, %vm1653
        %v1655 = vsel %vm1654, %v1646, %v1651
        %v1656 = vsel %vm1575, %v501, 0.0
        %v1657 = vsel %vm1575, %v502, 0.0
        %v1658 = vadd.f32 %v1656, %v1657
        %v1659 = vsel %vm1575, %v503, 0.0
        %v1660 = vadd.f32 %v1658, %v1659
        %v1661 = vsel %vm1575, %v504, 0.0
        %v1662 = vadd.f32 %v1660, %v1661
        %v1663 = vsel %vm1575, %v505, 0.0
        %v1664 = vadd.f32 %v1662, %v1663
        %v1665 = vsel %vm1575, %v506, 0.0
        %v1666 = vadd.f32 %v1664, %v1665
        %v1667 = vsel %vm1575, %v507, 0.0
        %v1668 = vadd.f32 %v1666, %v1667
        %v1669 = vsel %vm1575, %v508, 0.0
        %v1670 = vadd.f32 %v1668, %v1669
        %v1671 = vsel %vm1575, %v509, 0.0
        %v1672 = vadd.f32 %v1670, %v1671
        %v1673 = vsel %vm1575, %v510, 0.0
        %v1674 = vadd.f32 %v1672, %v1673
        %v1675 = vsel %vm1575, %v511, 0.0
        %v1676 = vadd.f32 %v1674, %v1675
        %v1677 = vsel %vm1575, %v512, 0.0
        %v1678 = vadd.f32 %v1676, %v1677
        %v1679 = vsel %vm1575, %v513, 0.0
        %v1680 = vadd.f32 %v1678, %v1679
        %v1681 = vsel %vm1575, %v514, 0.0
        %v1682 = vadd.f32 %v1680, %v1681
        %v1683 = vsel %vm1575, %v515, 0.0
        %v1684 = vadd.f32 %v1682, %v1683
        %v1685 = vsel %vm1575, %v516, 0.0
        %v1686 = vadd.f32 %v1684, %v1685
        %v1687 = vsel %vm1575, %v517, 0.0
        %v1688 = vadd.f32 %v1686, %v1687
        %v1689 = vsel %vm1575, %v518, 0.0
        %v1690 = vadd.f32 %v1688, %v1689
        %v1691 = vsel %vm1575, %v519, 0.0
        %v1692 = vadd.f32 %v1690, %v1691
        %v1693 = vsel %vm1575, %v520, 0.0
        %v1694 = vadd.f32 %v1692, %v1693
        %v1695 = vsel %vm1575, %v521, 0.0
        %v1696 = vadd.f32 %v1694, %v1695
        %v1697 = vsel %vm1575, %v522, 0.0
        %v1698 = vadd.f32 %v1696, %v1697
        %v1699 = vsel %vm1575, %v523, 0.0
        %v1700 = vadd.f32 %v1698, %v1699
        %v1701 = vsel %vm1575, %v524, 0.0
        %v1702 = vadd.f32 %v1700, %v1701
        %v1703 = vsel %vm1575, %v525, 0.0
        %v1704 = vadd.f32 %v1702, %v1703
        %v1705 = vsel %vm1575, %v526, 0.0
        %v1706 = vadd.f32 %v1704, %v1705
        %v1707 = vsel %vm1575, %v527, 0.0
        %v1708 = vadd.f32 %v1706, %v1707
        %v1709 = vsel %vm1575, %v528, 0.0
        %v1710 = vadd.f32 %v1708, %v1709
        %v1711 = vsel %vm1575, %v529, 0.0
        %v1712 = vadd.f32 %v1710, %v1711
        %v1713 = vsel %vm1575, %v530, 0.0
        %v1714 = vadd.f32 %v1712, %v1713
        %v1715 = vsel %vm1575, %v531, 0.0
        %v1716 = vadd.f32 %v1714, %v1715
        %v1717 = vsel %vm1575, %v532, 0.0
        %v1718 = vadd.f32 %v1716, %v1717
        %v1719 = vrot.slane %v1718, 4
        %v1720 = vadd.f32 %v1718, %v1719
        %v1721 = vrot.slane %v1720, 2
        %v1722 = vadd.f32 %v1720, %v1721
        %v1723 = vrot.slane %v1722, 1
        %v1724 = vadd.f32 %v1722, %v1723
        %v1725 = vmax.f32 %v1724, 1e-24
        %v1726 = vrsqrt.pop %v1725
        %v1727 = vmul.f32 %v1726, %v1725
        %v1728 = vmul.f32 %v1727, %v1726
        %v1729 = vmul.f32 0.5, %v1728
        %v1730 = vsub.f32 1.5, %v1729
        %v1731 = vmul.f32 %v1726, %v1730
        %vm1732 = vweird.f32 %v1725
        %vm1733 = vweird.f32 %v1726
        %vm1734 = vmor %vm1732, %vm1733
        %v1735 = vsel %vm1734, %v1726, %v1731
        %s1736 = sld [smem:[#allocation2 + $0x2]]
        %v1737 = vstv %s1736
        %v1738 = vmul.f32 %v1655, %v1737
        %v1739 = vmul.f32 %v324, %v1738
        %v1740 = vmul.f32 %v325, %v1738
        %v1741 = vmul.f32 %v326, %v1738
        %v1742 = vmul.f32 %v327, %v1738
        %v1743 = vmul.f32 %v328, %v1738
        %v1744 = vmul.f32 %v329, %v1738
        %v1745 = vmul.f32 %v330, %v1738
        %v1746 = vmul.f32 %v331, %v1738
        %v1747 = vmul.f32 %v332, %v1738
        %v1748 = vmul.f32 %v333, %v1738
        %v1749 = vmul.f32 %v334, %v1738
        %v1750 = vmul.f32 %v335, %v1738
        %v1751 = vmul.f32 %v336, %v1738
        %v1752 = vmul.f32 %v337, %v1738
        %v1753 = vmul.f32 %v338, %v1738
        %v1754 = vmul.f32 %v339, %v1738
        %v1755 = vmul.f32 %v340, %v1738
        %v1756 = vmul.f32 %v341, %v1738
        %v1757 = vmul.f32 %v342, %v1738
        %v1758 = vmul.f32 %v343, %v1738
        %v1759 = vmul.f32 %v344, %v1738
        %v1760 = vmul.f32 %v345, %v1738
        %v1761 = vmul.f32 %v346, %v1738
        %v1762 = vmul.f32 %v347, %v1738
        %v1763 = vmul.f32 %v348, %v1738
        %v1764 = vmul.f32 %v349, %v1738
        %v1765 = vmul.f32 %v350, %v1738
        %v1766 = vmul.f32 %v351, %v1738
        %v1767 = vmul.f32 %v352, %v1738
        %v1768 = vmul.f32 %v353, %v1738
        %v1769 = vmul.f32 %v354, %v1738
        %v1770 = vmul.f32 %v355, %v1738
        %v1771 = vpack.c.bf16 %v1740, %v1739
        %v1772 = vpack.c.bf16 %v1742, %v1741
        %v1773 = vpack.c.bf16 %v1744, %v1743
        %v1774 = vpack.c.bf16 %v1746, %v1745
        %v1775 = vpack.c.bf16 %v1748, %v1747
        %v1776 = vpack.c.bf16 %v1750, %v1749
        %v1777 = vpack.c.bf16 %v1752, %v1751
        %v1778 = vpack.c.bf16 %v1754, %v1753
        %v1779 = vpack.c.bf16 %v1756, %v1755
        %v1780 = vpack.c.bf16 %v1758, %v1757
        %v1781 = vpack.c.bf16 %v1760, %v1759
        %v1782 = vpack.c.bf16 %v1762, %v1761
        %v1783 = vpack.c.bf16 %v1764, %v1763
        %v1784 = vpack.c.bf16 %v1766, %v1765
        %v1785 = vpack.c.bf16 %v1768, %v1767
        %v1786 = vpack.c.bf16 %v1770, %v1769
        %1803 = vrot.lane.b32.xlu0 %v1771, 120
        %v1804 = vpop.permute.xlu0 %1803
        %1805 = vrot.lane.b32.xlu0 %v1772, 120
        %v1806 = vpop.permute.xlu0 %1805
        %1807 = vrot.lane.b32.xlu0 %v1773, 120
        %v1808 = vpop.permute.xlu0 %1807
        %1809 = vrot.lane.b32.xlu0 %v1774, 120
        %v1810 = vpop.permute.xlu0 %1809
        %1811 = vrot.lane.b32.xlu0 %v1775, 120
        %v1812 = vpop.permute.xlu0 %1811
        %1813 = vrot.lane.b32.xlu0 %v1776, 120
        %v1814 = vpop.permute.xlu0 %1813
        %1815 = vrot.lane.b32.xlu0 %v1777, 120
        %v1816 = vpop.permute.xlu0 %1815
        %1817 = vrot.lane.b32.xlu0 %v1778, 120
        %v1818 = vpop.permute.xlu0 %1817
        %1819 = vrot.lane.b32.xlu0 %v1779, 120
        %v1820 = vpop.permute.xlu0 %1819
        %1821 = vrot.lane.b32.xlu0 %v1780, 120
        %v1822 = vpop.permute.xlu0 %1821
        %1823 = vrot.lane.b32.xlu0 %v1781, 120
        %v1824 = vpop.permute.xlu0 %1823
        %1825 = vrot.lane.b32.xlu0 %v1782, 120
        %v1826 = vpop.permute.xlu0 %1825
        %1827 = vrot.lane.b32.xlu0 %v1783, 120
        %v1828 = vpop.permute.xlu0 %1827
        %1829 = vrot.lane.b32.xlu0 %v1784, 120
        %v1830 = vpop.permute.xlu0 %1829
        %1831 = vrot.lane.b32.xlu0 %v1785, 120
        %v1832 = vpop.permute.xlu0 %1831
        %1833 = vrot.lane.b32.xlu0 %v1786, 120
        %v1834 = vpop.permute.xlu0 %1833
        %1851 = vxpose.xlu0.c.b16.start [1/8] %v1804, 128
        %1852 = vxpose.xlu0.c.b16.cont [2/8] %v1806, 128
        %1853 = vxpose.xlu0.c.b16.cont [3/8] %v1808, 128
        %1854 = vxpose.xlu0.c.b16.cont [4/8] %v1810, 128
        %1855 = vxpose.xlu0.c.b16.cont [5/8] %v1812, 128
        %1856 = vxpose.xlu0.c.b16.cont [6/8] %v1814, 128
        %1857 = vxpose.xlu0.c.b16.cont [7/8] %v1816, 128
        %1858 = vxpose.xlu0.c.b16.end [8/8] %v1818, 128
        %v1859 = vpop.trf.xlu0
        %v1860 = vpop.trf.xlu0
        %v1861 = vpop.trf.xlu0
        %v1862 = vpop.trf.xlu0
        %v1863 = vpop.trf.xlu0
        %v1864 = vpop.trf.xlu0
        %v1865 = vpop.trf.xlu0
        %v1866 = vpop.trf.xlu0
        %1867 = vxpose.xlu0.c.b16.start [1/8] %v1820, 128
        %1868 = vxpose.xlu0.c.b16.cont [2/8] %v1822, 128
        %1869 = vxpose.xlu0.c.b16.cont [3/8] %v1824, 128
        %1870 = vxpose.xlu0.c.b16.cont [4/8] %v1826, 128
        %1871 = vxpose.xlu0.c.b16.cont [5/8] %v1828, 128
        %1872 = vxpose.xlu0.c.b16.cont [6/8] %v1830, 128
        %1873 = vxpose.xlu0.c.b16.cont [7/8] %v1832, 128
        %1874 = vxpose.xlu0.c.b16.end [8/8] %v1834, 128
        %v1875 = vpop.trf.xlu0
        %v1876 = vpop.trf.xlu0
        %v1877 = vpop.trf.xlu0
        %v1878 = vpop.trf.xlu0
        %v1879 = vpop.trf.xlu0
        %v1880 = vpop.trf.xlu0
        %v1881 = vpop.trf.xlu0
        %v1882 = vpop.trf.xlu0
        %1883 = vrot.lane.b32.xlu0 %v760, 120
        %v1884 = vpop.permute.xlu0 %1883
        %1885 = vrot.lane.b32.xlu0 %v761, 120
        %v1886 = vpop.permute.xlu0 %1885
        %1887 = vrot.lane.b32.xlu0 %v762, 120
        %v1888 = vpop.permute.xlu0 %1887
        %1889 = vrot.lane.b32.xlu0 %v763, 120
        %v1890 = vpop.permute.xlu0 %1889
        %1891 = vrot.lane.b32.xlu0 %v764, 120
        %v1892 = vpop.permute.xlu0 %1891
        %1893 = vrot.lane.b32.xlu0 %v765, 120
        %v1894 = vpop.permute.xlu0 %1893
        %1895 = vrot.lane.b32.xlu0 %v766, 120
        %v1896 = vpop.permute.xlu0 %1895
        %1897 = vrot.lane.b32.xlu0 %v767, 120
        %v1898 = vpop.permute.xlu0 %1897
        %1899 = vrot.lane.b32.xlu0 %v768, 120
        %v1900 = vpop.permute.xlu0 %1899
        %1901 = vrot.lane.b32.xlu0 %v769, 120
        %v1902 = vpop.permute.xlu0 %1901
        %1903 = vrot.lane.b32.xlu0 %v770, 120
        %v1904 = vpop.permute.xlu0 %1903
        %1905 = vrot.lane.b32.xlu0 %v771, 120
        %v1906 = vpop.permute.xlu0 %1905
        %1907 = vrot.lane.b32.xlu0 %v772, 120
        %v1908 = vpop.permute.xlu0 %1907
        %1909 = vrot.lane.b32.xlu0 %v773, 120
        %v1910 = vpop.permute.xlu0 %1909
        %1911 = vrot.lane.b32.xlu0 %v774, 120
        %v1912 = vpop.permute.xlu0 %1911
        %1913 = vrot.lane.b32.xlu0 %v775, 120
        %v1914 = vpop.permute.xlu0 %1913
        %1931 = vmatpush.bf16.msra.mxu0 %v1898
        %1932 = vmatpush.bf16.msra.mxu0 %v1896
        %1933 = vmatpush.bf16.msra.mxu0 %v1894
        %1934 = vmatpush.bf16.msra.mxu0 %v1892
        %1935 = vmatpush.bf16.msra.mxu0 %v1890
        %1936 = vmatpush.bf16.msra.mxu0 %v1888
        %1937 = vmatpush.bf16.msra.mxu0 %v1886
        %1938 = vmatpush.bf16.msra.mxu0 %v1884
        %1939 = vmatmul.bf16.gmra.mxu0 %v1859
        %v1940 = vpop.f32.mrf.mxu0
        %v1941 = vadd.f32 0.0, %v1940
        %v1942 = vpop.f32.mrf.mxu0
        %1943 = vdwg.mxu0
        %1944 = vmatpush.bf16.msra.mxu0 %v1914
        %1945 = vmatpush.bf16.msra.mxu0 %v1912
        %1946 = vmatpush.bf16.msra.mxu0 %v1910
        %1947 = vmatpush.bf16.msra.mxu0 %v1908
        %1948 = vmatpush.bf16.msra.mxu0 %v1906
        %1949 = vmatpush.bf16.msra.mxu0 %v1904
        %1950 = vmatpush.bf16.msra.mxu0 %v1902
        %1951 = vmatpush.bf16.msra.mxu0 %v1900
        %1952 = vmatmul.bf16.gmra.mxu0 %v1875
        %v1953 = vpop.f32.mrf.mxu0
        %v1954 = vadd.f32 %v1941, %v1953
        %v1955 = vpop.f32.mrf.mxu0
        %1956 = vdwg.mxu0
        %1958 = vrot.lane.b32.xlu0 %v1735, 120
        %v1959 = vpop.permute.xlu0 %1958
        %v1961 = vmul.f32 %v1954, %v1959
        %v1962 = vsel %vm819, %v1961, -inf
        %1963 = vmax.xlane.f32.xlu0 %v1962
        %v1964 = vpop.xlane.xlu0 %1963
        %v1965 = vsub.f32 %v1961, %v1964
        %v1966 = vmul.f32 %v1965, 1.442695
        %v1967 = vpow.pop %v1966
        %v1968 = vsel %vm819, %v1967, 0.0
        %1969 = vadd.xlane.f32.xlu0 %v1968
        %v1970 = vpop.xlane.xlu0 %1969
        %v1971 = vrcp.pop %v1970
        %v1972 = vmul.f32 %v1967, %v1971
        %v1973 = vpack.c.bf16 %v1972, %v1972
        %1974 = vrot.lane.b32.xlu0 %v760, 104
        %v1975 = vpop.permute.xlu0 %1974
        %1976 = vrot.lane.b32.xlu0 %v761, 104
        %v1977 = vpop.permute.xlu0 %1976
        %1978 = vrot.lane.b32.xlu0 %v762, 104
        %v1979 = vpop.permute.xlu0 %1978
        %1980 = vrot.lane.b32.xlu0 %v763, 104
        %v1981 = vpop.permute.xlu0 %1980
        %1982 = vrot.lane.b32.xlu0 %v764, 104
        %v1983 = vpop.permute.xlu0 %1982
        %1984 = vrot.lane.b32.xlu0 %v765, 104
        %v1985 = vpop.permute.xlu0 %1984
        %1986 = vrot.lane.b32.xlu0 %v766, 104
        %v1987 = vpop.permute.xlu0 %1986
        %1988 = vrot.lane.b32.xlu0 %v767, 104
        %v1989 = vpop.permute.xlu0 %1988
        %1990 = vrot.lane.b32.xlu0 %v768, 104
        %v1991 = vpop.permute.xlu0 %1990
        %1992 = vrot.lane.b32.xlu0 %v769, 104
        %v1993 = vpop.permute.xlu0 %1992
        %1994 = vrot.lane.b32.xlu0 %v770, 104
        %v1995 = vpop.permute.xlu0 %1994
        %1996 = vrot.lane.b32.xlu0 %v771, 104
        %v1997 = vpop.permute.xlu0 %1996
        %1998 = vrot.lane.b32.xlu0 %v772, 104
        %v1999 = vpop.permute.xlu0 %1998
        %2000 = vrot.lane.b32.xlu0 %v773, 104
        %v2001 = vpop.permute.xlu0 %2000
        %2002 = vrot.lane.b32.xlu0 %v774, 104
        %v2003 = vpop.permute.xlu0 %2002
        %2004 = vrot.lane.b32.xlu0 %v775, 104
        %v2005 = vpop.permute.xlu0 %2004
        %v2007 = vsel %vm420, %v1975, 0
        %v2010 = vsel %vm420, %v1977, 0
        %v2013 = vsel %vm420, %v1979, 0
        %v2016 = vsel %vm420, %v1981, 0
        %v2019 = vsel %vm420, %v1983, 0
        %v2022 = vsel %vm420, %v1985, 0
        %v2025 = vsel %vm420, %v1987, 0
        %v2028 = vsel %vm420, %v1989, 0
        %v2031 = vsel %vm420, %v1991, 0
        %v2034 = vsel %vm420, %v1993, 0
        %v2037 = vsel %vm420, %v1995, 0
        %v2040 = vsel %vm420, %v1997, 0
        %v2043 = vsel %vm420, %v1999, 0
        %v2046 = vsel %vm420, %v2001, 0
        %v2049 = vsel %vm420, %v2003, 0
        %v2052 = vsel %vm420, %v2005, 0
        %v2055 = vsel %vm420, %v1973, 0
        %2057 = vmatpush.bf16.xpose.msra.mxu0 0
        %2058 = vmatpush.bf16.xpose.msra.mxu0 0
        %2059 = vmatpush.bf16.xpose.msra.mxu0 0
        %2060 = vmatpush.bf16.xpose.msra.mxu0 0
        %2061 = vmatpush.bf16.xpose.msra.mxu0 0
        %2062 = vmatpush.bf16.xpose.msra.mxu0 0
        %2063 = vmatpush.bf16.xpose.msra.mxu0 0
        %2064 = vmatpush.bf16.xpose.msra.mxu0 %v2055
        %2065 = vmatmul.bf16.gmra.mxu0 %v2007
        %v2066 = vpop.f32.mrf.mxu0
        %v2067 = vadd.f32 0.0, %v2066
        %v2068 = vpop.f32.mrf.mxu0
        %v2069 = vadd.f32 0.0, %v2068
        %2070 = vmatmul.bf16.gmra.mxu0 %v2010
        %v2071 = vpop.f32.mrf.mxu0
        %v2072 = vadd.f32 0.0, %v2071
        %v2073 = vpop.f32.mrf.mxu0
        %v2074 = vadd.f32 0.0, %v2073
        %2075 = vmatmul.bf16.gmra.mxu0 %v2013
        %v2076 = vpop.f32.mrf.mxu0
        %v2077 = vadd.f32 0.0, %v2076
        %v2078 = vpop.f32.mrf.mxu0
        %v2079 = vadd.f32 0.0, %v2078
        %2080 = vmatmul.bf16.gmra.mxu0 %v2016
        %v2081 = vpop.f32.mrf.mxu0
        %v2082 = vadd.f32 0.0, %v2081
        %v2083 = vpop.f32.mrf.mxu0
        %v2084 = vadd.f32 0.0, %v2083
        %2085 = vmatmul.bf16.gmra.mxu0 %v2019
        %v2086 = vpop.f32.mrf.mxu0
        %v2087 = vadd.f32 0.0, %v2086
        %v2088 = vpop.f32.mrf.mxu0
        %v2089 = vadd.f32 0.0, %v2088
        %2090 = vmatmul.bf16.gmra.mxu0 %v2022
        %v2091 = vpop.f32.mrf.mxu0
        %v2092 = vadd.f32 0.0, %v2091
        %v2093 = vpop.f32.mrf.mxu0
        %v2094 = vadd.f32 0.0, %v2093
        %2095 = vmatmul.bf16.gmra.mxu0 %v2025
        %v2096 = vpop.f32.mrf.mxu0
        %v2097 = vadd.f32 0.0, %v2096
        %v2098 = vpop.f32.mrf.mxu0
        %v2099 = vadd.f32 0.0, %v2098
        %2100 = vmatmul.bf16.gmra.mxu0 %v2028
        %v2101 = vpop.f32.mrf.mxu0
        %v2102 = vadd.f32 0.0, %v2101
        %v2103 = vpop.f32.mrf.mxu0
        %v2104 = vadd.f32 0.0, %v2103
        %2105 = vmatmul.bf16.gmra.mxu0 %v2031
        %v2106 = vpop.f32.mrf.mxu0
        %v2107 = vadd.f32 0.0, %v2106
        %v2108 = vpop.f32.mrf.mxu0
        %v2109 = vadd.f32 0.0, %v2108
        %2110 = vmatmul.bf16.gmra.mxu0 %v2034
        %v2111 = vpop.f32.mrf.mxu0
        %v2112 = vadd.f32 0.0, %v2111
        %v2113 = vpop.f32.mrf.mxu0
        %v2114 = vadd.f32 0.0, %v2113
        %2115 = vmatmul.bf16.gmra.mxu0 %v2037
        %v2116 = vpop.f32.mrf.mxu0
        %v2117 = vadd.f32 0.0, %v2116
        %v2118 = vpop.f32.mrf.mxu0
        %v2119 = vadd.f32 0.0, %v2118
        %2120 = vmatmul.bf16.gmra.mxu0 %v2040
        %v2121 = vpop.f32.mrf.mxu0
        %v2122 = vadd.f32 0.0, %v2121
        %v2123 = vpop.f32.mrf.mxu0
        %v2124 = vadd.f32 0.0, %v2123
        %2125 = vmatmul.bf16.gmra.mxu0 %v2043
        %v2126 = vpop.f32.mrf.mxu0
        %v2127 = vadd.f32 0.0, %v2126
        %v2128 = vpop.f32.mrf.mxu0
        %v2129 = vadd.f32 0.0, %v2128
        %2130 = vmatmul.bf16.gmra.mxu0 %v2046
        %v2131 = vpop.f32.mrf.mxu0
        %v2132 = vadd.f32 0.0, %v2131
        %v2133 = vpop.f32.mrf.mxu0
        %v2134 = vadd.f32 0.0, %v2133
        %2135 = vmatmul.bf16.gmra.mxu0 %v2049
        %v2136 = vpop.f32.mrf.mxu0
        %v2137 = vadd.f32 0.0, %v2136
        %v2138 = vpop.f32.mrf.mxu0
        %v2139 = vadd.f32 0.0, %v2138
        %2140 = vmatmul.bf16.gmra.mxu0 %v2052
        %v2141 = vpop.f32.mrf.mxu0
        %v2142 = vadd.f32 0.0, %v2141
        %v2143 = vpop.f32.mrf.mxu0
        %v2144 = vadd.f32 0.0, %v2143
        %2145 = vdwg.mxu0
        %vm2146 = vcmask 130144
        %v2147 = vsel %vm2146, %v388, 0.0
        %v2148 = vsel %vm2146, %v389, 0.0
        %v2149 = vadd.f32 %v2147, %v2148
        %v2150 = vsel %vm2146, %v390, 0.0
        %v2151 = vadd.f32 %v2149, %v2150
        %v2152 = vsel %vm2146, %v391, 0.0
        %v2153 = vadd.f32 %v2151, %v2152
        %v2154 = vsel %vm2146, %v392, 0.0
        %v2155 = vadd.f32 %v2153, %v2154
        %v2156 = vsel %vm2146, %v393, 0.0
        %v2157 = vadd.f32 %v2155, %v2156
        %v2158 = vsel %vm2146, %v394, 0.0
        %v2159 = vadd.f32 %v2157, %v2158
        %v2160 = vsel %vm2146, %v395, 0.0
        %v2161 = vadd.f32 %v2159, %v2160
        %v2162 = vsel %vm2146, %v396, 0.0
        %v2163 = vadd.f32 %v2161, %v2162
        %v2164 = vsel %vm2146, %v397, 0.0
        %v2165 = vadd.f32 %v2163, %v2164
        %v2166 = vsel %vm2146, %v398, 0.0
        %v2167 = vadd.f32 %v2165, %v2166
        %v2168 = vsel %vm2146, %v399, 0.0
        %v2169 = vadd.f32 %v2167, %v2168
        %v2170 = vsel %vm2146, %v400, 0.0
        %v2171 = vadd.f32 %v2169, %v2170
        %v2172 = vsel %vm2146, %v401, 0.0
        %v2173 = vadd.f32 %v2171, %v2172
        %v2174 = vsel %vm2146, %v402, 0.0
        %v2175 = vadd.f32 %v2173, %v2174
        %v2176 = vsel %vm2146, %v403, 0.0
        %v2177 = vadd.f32 %v2175, %v2176
        %v2178 = vsel %vm2146, %v404, 0.0
        %v2179 = vadd.f32 %v2177, %v2178
        %v2180 = vsel %vm2146, %v405, 0.0
        %v2181 = vadd.f32 %v2179, %v2180
        %v2182 = vsel %vm2146, %v406, 0.0
        %v2183 = vadd.f32 %v2181, %v2182
        %v2184 = vsel %vm2146, %v407, 0.0
        %v2185 = vadd.f32 %v2183, %v2184
        %v2186 = vsel %vm2146, %v408, 0.0
        %v2187 = vadd.f32 %v2185, %v2186
        %v2188 = vsel %vm2146, %v409, 0.0
        %v2189 = vadd.f32 %v2187, %v2188
        %v2190 = vsel %vm2146, %v410, 0.0
        %v2191 = vadd.f32 %v2189, %v2190
        %v2192 = vsel %vm2146, %v411, 0.0
        %v2193 = vadd.f32 %v2191, %v2192
        %v2194 = vsel %vm2146, %v412, 0.0
        %v2195 = vadd.f32 %v2193, %v2194
        %v2196 = vsel %vm2146, %v413, 0.0
        %v2197 = vadd.f32 %v2195, %v2196
        %v2198 = vsel %vm2146, %v414, 0.0
        %v2199 = vadd.f32 %v2197, %v2198
        %v2200 = vsel %vm2146, %v415, 0.0
        %v2201 = vadd.f32 %v2199, %v2200
        %v2202 = vsel %vm2146, %v416, 0.0
        %v2203 = vadd.f32 %v2201, %v2202
        %v2204 = vsel %vm2146, %v417, 0.0
        %v2205 = vadd.f32 %v2203, %v2204
        %v2206 = vsel %vm2146, %v418, 0.0
        %v2207 = vadd.f32 %v2205, %v2206
        %v2208 = vsel %vm2146, %v419, 0.0
        %v2209 = vadd.f32 %v2207, %v2208
        %v2210 = vrot.slane %v2209, 4
        %v2211 = vadd.f32 %v2209, %v2210
        %v2212 = vrot.slane %v2211, 2
        %v2213 = vadd.f32 %v2211, %v2212
        %v2214 = vrot.slane %v2213, 1
        %v2215 = vadd.f32 %v2213, %v2214
        %v2216 = vmax.f32 %v2215, 1e-24
        %v2217 = vrsqrt.pop %v2216
        %v2218 = vmul.f32 %v2217, %v2216
        %v2219 = vmul.f32 %v2218, %v2217
        %v2220 = vmul.f32 0.5, %v2219
        %v2221 = vsub.f32 1.5, %v2220
        %v2222 = vmul.f32 %v2217, %v2221
        %vm2223 = vweird.f32 %v2216
        %vm2224 = vweird.f32 %v2217
        %vm2225 = vmor %vm2223, %vm2224
        %v2226 = vsel %vm2225, %v2217, %v2222
        %v2227 = vsel %vm2146, %v501, 0.0
        %v2228 = vsel %vm2146, %v502, 0.0
        %v2229 = vadd.f32 %v2227, %v2228
        %v2230 = vsel %vm2146, %v503, 0.0
        %v2231 = vadd.f32 %v2229, %v2230
        %v2232 = vsel %vm2146, %v504, 0.0
        %v2233 = vadd.f32 %v2231, %v2232
        %v2234 = vsel %vm2146, %v505, 0.0
        %v2235 = vadd.f32 %v2233, %v2234
        %v2236 = vsel %vm2146, %v506, 0.0
        %v2237 = vadd.f32 %v2235, %v2236
        %v2238 = vsel %vm2146, %v507, 0.0
        %v2239 = vadd.f32 %v2237, %v2238
        %v2240 = vsel %vm2146, %v508, 0.0
        %v2241 = vadd.f32 %v2239, %v2240
        %v2242 = vsel %vm2146, %v509, 0.0
        %v2243 = vadd.f32 %v2241, %v2242
        %v2244 = vsel %vm2146, %v510, 0.0
        %v2245 = vadd.f32 %v2243, %v2244
        %v2246 = vsel %vm2146, %v511, 0.0
        %v2247 = vadd.f32 %v2245, %v2246
        %v2248 = vsel %vm2146, %v512, 0.0
        %v2249 = vadd.f32 %v2247, %v2248
        %v2250 = vsel %vm2146, %v513, 0.0
        %v2251 = vadd.f32 %v2249, %v2250
        %v2252 = vsel %vm2146, %v514, 0.0
        %v2253 = vadd.f32 %v2251, %v2252
        %v2254 = vsel %vm2146, %v515, 0.0
        %v2255 = vadd.f32 %v2253, %v2254
        %v2256 = vsel %vm2146, %v516, 0.0
        %v2257 = vadd.f32 %v2255, %v2256
        %v2258 = vsel %vm2146, %v517, 0.0
        %v2259 = vadd.f32 %v2257, %v2258
        %v2260 = vsel %vm2146, %v518, 0.0
        %v2261 = vadd.f32 %v2259, %v2260
        %v2262 = vsel %vm2146, %v519, 0.0
        %v2263 = vadd.f32 %v2261, %v2262
        %v2264 = vsel %vm2146, %v520, 0.0
        %v2265 = vadd.f32 %v2263, %v2264
        %v2266 = vsel %vm2146, %v521, 0.0
        %v2267 = vadd.f32 %v2265, %v2266
        %v2268 = vsel %vm2146, %v522, 0.0
        %v2269 = vadd.f32 %v2267, %v2268
        %v2270 = vsel %vm2146, %v523, 0.0
        %v2271 = vadd.f32 %v2269, %v2270
        %v2272 = vsel %vm2146, %v524, 0.0
        %v2273 = vadd.f32 %v2271, %v2272
        %v2274 = vsel %vm2146, %v525, 0.0
        %v2275 = vadd.f32 %v2273, %v2274
        %v2276 = vsel %vm2146, %v526, 0.0
        %v2277 = vadd.f32 %v2275, %v2276
        %v2278 = vsel %vm2146, %v527, 0.0
        %v2279 = vadd.f32 %v2277, %v2278
        %v2280 = vsel %vm2146, %v528, 0.0
        %v2281 = vadd.f32 %v2279, %v2280
        %v2282 = vsel %vm2146, %v529, 0.0
        %v2283 = vadd.f32 %v2281, %v2282
        %v2284 = vsel %vm2146, %v530, 0.0
        %v2285 = vadd.f32 %v2283, %v2284
        %v2286 = vsel %vm2146, %v531, 0.0
        %v2287 = vadd.f32 %v2285, %v2286
        %v2288 = vsel %vm2146, %v532, 0.0
        %v2289 = vadd.f32 %v2287, %v2288
        %v2290 = vrot.slane %v2289, 4
        %v2291 = vadd.f32 %v2289, %v2290
        %v2292 = vrot.slane %v2291, 2
        %v2293 = vadd.f32 %v2291, %v2292
        %v2294 = vrot.slane %v2293, 1
        %v2295 = vadd.f32 %v2293, %v2294
        %v2296 = vmax.f32 %v2295, 1e-24
        %v2297 = vrsqrt.pop %v2296
        %v2298 = vmul.f32 %v2297, %v2296
        %v2299 = vmul.f32 %v2298, %v2297
        %v2300 = vmul.f32 0.5, %v2299
        %v2301 = vsub.f32 1.5, %v2300
        %v2302 = vmul.f32 %v2297, %v2301
        %vm2303 = vweird.f32 %v2296
        %vm2304 = vweird.f32 %v2297
        %vm2305 = vmor %vm2303, %vm2304
        %v2306 = vsel %vm2305, %v2297, %v2302
        %s2307 = sld [smem:[#allocation2 + $0x3]]
        %v2308 = vstv %s2307
        %v2309 = vmul.f32 %v2226, %v2308
        %v2310 = vmul.f32 %v324, %v2309
        %v2311 = vmul.f32 %v325, %v2309
        %v2312 = vmul.f32 %v326, %v2309
        %v2313 = vmul.f32 %v327, %v2309
        %v2314 = vmul.f32 %v328, %v2309
        %v2315 = vmul.f32 %v329, %v2309
        %v2316 = vmul.f32 %v330, %v2309
        %v2317 = vmul.f32 %v331, %v2309
        %v2318 = vmul.f32 %v332, %v2309
        %v2319 = vmul.f32 %v333, %v2309
        %v2320 = vmul.f32 %v334, %v2309
        %v2321 = vmul.f32 %v335, %v2309
        %v2322 = vmul.f32 %v336, %v2309
        %v2323 = vmul.f32 %v337, %v2309
        %v2324 = vmul.f32 %v338, %v2309
        %v2325 = vmul.f32 %v339, %v2309
        %v2326 = vmul.f32 %v340, %v2309
        %v2327 = vmul.f32 %v341, %v2309
        %v2328 = vmul.f32 %v342, %v2309
        %v2329 = vmul.f32 %v343, %v2309
        %v2330 = vmul.f32 %v344, %v2309
        %v2331 = vmul.f32 %v345, %v2309
        %v2332 = vmul.f32 %v346, %v2309
        %v2333 = vmul.f32 %v347, %v2309
        %v2334 = vmul.f32 %v348, %v2309
        %v2335 = vmul.f32 %v349, %v2309
        %v2336 = vmul.f32 %v350, %v2309
        %v2337 = vmul.f32 %v351, %v2309
        %v2338 = vmul.f32 %v352, %v2309
        %v2339 = vmul.f32 %v353, %v2309
        %v2340 = vmul.f32 %v354, %v2309
        %v2341 = vmul.f32 %v355, %v2309
        %v2342 = vpack.c.bf16 %v2311, %v2310
        %v2343 = vpack.c.bf16 %v2313, %v2312
        %v2344 = vpack.c.bf16 %v2315, %v2314
        %v2345 = vpack.c.bf16 %v2317, %v2316
        %v2346 = vpack.c.bf16 %v2319, %v2318
        %v2347 = vpack.c.bf16 %v2321, %v2320
        %v2348 = vpack.c.bf16 %v2323, %v2322
        %v2349 = vpack.c.bf16 %v2325, %v2324
        %v2350 = vpack.c.bf16 %v2327, %v2326
        %v2351 = vpack.c.bf16 %v2329, %v2328
        %v2352 = vpack.c.bf16 %v2331, %v2330
        %v2353 = vpack.c.bf16 %v2333, %v2332
        %v2354 = vpack.c.bf16 %v2335, %v2334
        %v2355 = vpack.c.bf16 %v2337, %v2336
        %v2356 = vpack.c.bf16 %v2339, %v2338
        %v2357 = vpack.c.bf16 %v2341, %v2340
        %2374 = vrot.lane.b32.xlu0 %v2342, 116
        %v2375 = vpop.permute.xlu0 %2374
        %2376 = vrot.lane.b32.xlu0 %v2343, 116
        %v2377 = vpop.permute.xlu0 %2376
        %2378 = vrot.lane.b32.xlu0 %v2344, 116
        %v2379 = vpop.permute.xlu0 %2378
        %2380 = vrot.lane.b32.xlu0 %v2345, 116
        %v2381 = vpop.permute.xlu0 %2380
        %2382 = vrot.lane.b32.xlu0 %v2346, 116
        %v2383 = vpop.permute.xlu0 %2382
        %2384 = vrot.lane.b32.xlu0 %v2347, 116
        %v2385 = vpop.permute.xlu0 %2384
        %2386 = vrot.lane.b32.xlu0 %v2348, 116
        %v2387 = vpop.permute.xlu0 %2386
        %2388 = vrot.lane.b32.xlu0 %v2349, 116
        %v2389 = vpop.permute.xlu0 %2388
        %2390 = vrot.lane.b32.xlu0 %v2350, 116
        %v2391 = vpop.permute.xlu0 %2390
        %2392 = vrot.lane.b32.xlu0 %v2351, 116
        %v2393 = vpop.permute.xlu0 %2392
        %2394 = vrot.lane.b32.xlu0 %v2352, 116
        %v2395 = vpop.permute.xlu0 %2394
        %2396 = vrot.lane.b32.xlu0 %v2353, 116
        %v2397 = vpop.permute.xlu0 %2396
        %2398 = vrot.lane.b32.xlu0 %v2354, 116
        %v2399 = vpop.permute.xlu0 %2398
        %2400 = vrot.lane.b32.xlu0 %v2355, 116
        %v2401 = vpop.permute.xlu0 %2400
        %2402 = vrot.lane.b32.xlu0 %v2356, 116
        %v2403 = vpop.permute.xlu0 %2402
        %2404 = vrot.lane.b32.xlu0 %v2357, 116
        %v2405 = vpop.permute.xlu0 %2404
        %2422 = vxpose.xlu0.c.b16.start [1/8] %v2375, 128
        %2423 = vxpose.xlu0.c.b16.cont [2/8] %v2377, 128
        %2424 = vxpose.xlu0.c.b16.cont [3/8] %v2379, 128
        %2425 = vxpose.xlu0.c.b16.cont [4/8] %v2381, 128
        %2426 = vxpose.xlu0.c.b16.cont [5/8] %v2383, 128
        %2427 = vxpose.xlu0.c.b16.cont [6/8] %v2385, 128
        %2428 = vxpose.xlu0.c.b16.cont [7/8] %v2387, 128
        %2429 = vxpose.xlu0.c.b16.end [8/8] %v2389, 128
        %v2430 = vpop.trf.xlu0
        %v2431 = vpop.trf.xlu0
        %v2432 = vpop.trf.xlu0
        %v2433 = vpop.trf.xlu0
        %v2434 = vpop.trf.xlu0
        %v2435 = vpop.trf.xlu0
        %v2436 = vpop.trf.xlu0
        %v2437 = vpop.trf.xlu0
        %2438 = vxpose.xlu0.c.b16.start [1/8] %v2391, 128
        %2439 = vxpose.xlu0.c.b16.cont [2/8] %v2393, 128
        %2440 = vxpose.xlu0.c.b16.cont [3/8] %v2395, 128
        %2441 = vxpose.xlu0.c.b16.cont [4/8] %v2397, 128
        %2442 = vxpose.xlu0.c.b16.cont [5/8] %v2399, 128
        %2443 = vxpose.xlu0.c.b16.cont [6/8] %v2401, 128
        %2444 = vxpose.xlu0.c.b16.cont [7/8] %v2403, 128
        %2445 = vxpose.xlu0.c.b16.end [8/8] %v2405, 128
        %v2446 = vpop.trf.xlu0
        %v2447 = vpop.trf.xlu0
        %v2448 = vpop.trf.xlu0
        %v2449 = vpop.trf.xlu0
        %v2450 = vpop.trf.xlu0
        %v2451 = vpop.trf.xlu0
        %v2452 = vpop.trf.xlu0
        %v2453 = vpop.trf.xlu0
        %2454 = vrot.lane.b32.xlu0 %v760, 116
        %v2455 = vpop.permute.xlu0 %2454
        %2456 = vrot.lane.b32.xlu0 %v761, 116
        %v2457 = vpop.permute.xlu0 %2456
        %2458 = vrot.lane.b32.xlu0 %v762, 116
        %v2459 = vpop.permute.xlu0 %2458
        %2460 = vrot.lane.b32.xlu0 %v763, 116
        %v2461 = vpop.permute.xlu0 %2460
        %2462 = vrot.lane.b32.xlu0 %v764, 116
        %v2463 = vpop.permute.xlu0 %2462
        %2464 = vrot.lane.b32.xlu0 %v765, 116
        %v2465 = vpop.permute.xlu0 %2464
        %2466 = vrot.lane.b32.xlu0 %v766, 116
        %v2467 = vpop.permute.xlu0 %2466
        %2468 = vrot.lane.b32.xlu0 %v767, 116
        %v2469 = vpop.permute.xlu0 %2468
        %2470 = vrot.lane.b32.xlu0 %v768, 116
        %v2471 = vpop.permute.xlu0 %2470
        %2472 = vrot.lane.b32.xlu0 %v769, 116
        %v2473 = vpop.permute.xlu0 %2472
        %2474 = vrot.lane.b32.xlu0 %v770, 116
        %v2475 = vpop.permute.xlu0 %2474
        %2476 = vrot.lane.b32.xlu0 %v771, 116
        %v2477 = vpop.permute.xlu0 %2476
        %2478 = vrot.lane.b32.xlu0 %v772, 116
        %v2479 = vpop.permute.xlu0 %2478
        %2480 = vrot.lane.b32.xlu0 %v773, 116
        %v2481 = vpop.permute.xlu0 %2480
        %2482 = vrot.lane.b32.xlu0 %v774, 116
        %v2483 = vpop.permute.xlu0 %2482
        %2484 = vrot.lane.b32.xlu0 %v775, 116
        %v2485 = vpop.permute.xlu0 %2484
        %2502 = vmatpush.bf16.msra.mxu0 %v2469
        %2503 = vmatpush.bf16.msra.mxu0 %v2467
        %2504 = vmatpush.bf16.msra.mxu0 %v2465
        %2505 = vmatpush.bf16.msra.mxu0 %v2463
        %2506 = vmatpush.bf16.msra.mxu0 %v2461
        %2507 = vmatpush.bf16.msra.mxu0 %v2459
        %2508 = vmatpush.bf16.msra.mxu0 %v2457
        %2509 = vmatpush.bf16.msra.mxu0 %v2455
        %2510 = vmatmul.bf16.gmra.mxu0 %v2430
        %v2511 = vpop.f32.mrf.mxu0
        %v2512 = vadd.f32 0.0, %v2511
        %v2513 = vpop.f32.mrf.mxu0
        %2514 = vdwg.mxu0
        %2515 = vmatpush.bf16.msra.mxu0 %v2485
        %2516 = vmatpush.bf16.msra.mxu0 %v2483
        %2517 = vmatpush.bf16.msra.mxu0 %v2481
        %2518 = vmatpush.bf16.msra.mxu0 %v2479
        %2519 = vmatpush.bf16.msra.mxu0 %v2477
        %2520 = vmatpush.bf16.msra.mxu0 %v2475
        %2521 = vmatpush.bf16.msra.mxu0 %v2473
        %2522 = vmatpush.bf16.msra.mxu0 %v2471
        %2523 = vmatmul.bf16.gmra.mxu0 %v2446
        %v2524 = vpop.f32.mrf.mxu0
        %v2525 = vadd.f32 %v2512, %v2524
        %v2526 = vpop.f32.mrf.mxu0
        %2527 = vdwg.mxu0
        %2529 = vrot.lane.b32.xlu0 %v2306, 116
        %v2530 = vpop.permute.xlu0 %2529
        %v2532 = vmul.f32 %v2525, %v2530
        %v2533 = vsel %vm819, %v2532, -inf
        %2534 = vmax.xlane.f32.xlu0 %v2533
        %v2535 = vpop.xlane.xlu0 %2534
        %v2536 = vsub.f32 %v2532, %v2535
        %v2537 = vmul.f32 %v2536, 1.442695
        %v2538 = vpow.pop %v2537
        %v2539 = vsel %vm819, %v2538, 0.0
        %2540 = vadd.xlane.f32.xlu0 %v2539
        %v2541 = vpop.xlane.xlu0 %2540
        %v2542 = vrcp.pop %v2541
        %v2543 = vmul.f32 %v2538, %v2542
        %v2544 = vpack.c.bf16 %v2543, %v2543
        %2545 = vrot.lane.b32.xlu0 %v760, 100
        %v2546 = vpop.permute.xlu0 %2545
        %2547 = vrot.lane.b32.xlu0 %v761, 100
        %v2548 = vpop.permute.xlu0 %2547
        %2549 = vrot.lane.b32.xlu0 %v762, 100
        %v2550 = vpop.permute.xlu0 %2549
        %2551 = vrot.lane.b32.xlu0 %v763, 100
        %v2552 = vpop.permute.xlu0 %2551
        %2553 = vrot.lane.b32.xlu0 %v764, 100
        %v2554 = vpop.permute.xlu0 %2553
        %2555 = vrot.lane.b32.xlu0 %v765, 100
        %v2556 = vpop.permute.xlu0 %2555
        %2557 = vrot.lane.b32.xlu0 %v766, 100
        %v2558 = vpop.permute.xlu0 %2557
        %2559 = vrot.lane.b32.xlu0 %v767, 100
        %v2560 = vpop.permute.xlu0 %2559
        %2561 = vrot.lane.b32.xlu0 %v768, 100
        %v2562 = vpop.permute.xlu0 %2561
        %2563 = vrot.lane.b32.xlu0 %v769, 100
        %v2564 = vpop.permute.xlu0 %2563
        %2565 = vrot.lane.b32.xlu0 %v770, 100
        %v2566 = vpop.permute.xlu0 %2565
        %2567 = vrot.lane.b32.xlu0 %v771, 100
        %v2568 = vpop.permute.xlu0 %2567
        %2569 = vrot.lane.b32.xlu0 %v772, 100
        %v2570 = vpop.permute.xlu0 %2569
        %2571 = vrot.lane.b32.xlu0 %v773, 100
        %v2572 = vpop.permute.xlu0 %2571
        %2573 = vrot.lane.b32.xlu0 %v774, 100
        %v2574 = vpop.permute.xlu0 %2573
        %2575 = vrot.lane.b32.xlu0 %v775, 100
        %v2576 = vpop.permute.xlu0 %2575
        %v2578 = vsel %vm420, %v2546, 0
        %v2581 = vsel %vm420, %v2548, 0
        %v2584 = vsel %vm420, %v2550, 0
        %v2587 = vsel %vm420, %v2552, 0
        %v2590 = vsel %vm420, %v2554, 0
        %v2593 = vsel %vm420, %v2556, 0
        %v2596 = vsel %vm420, %v2558, 0
        %v2599 = vsel %vm420, %v2560, 0
        %v2602 = vsel %vm420, %v2562, 0
        %v2605 = vsel %vm420, %v2564, 0
        %v2608 = vsel %vm420, %v2566, 0
        %v2611 = vsel %vm420, %v2568, 0
        %v2614 = vsel %vm420, %v2570, 0
        %v2617 = vsel %vm420, %v2572, 0
        %v2620 = vsel %vm420, %v2574, 0
        %v2623 = vsel %vm420, %v2576, 0
        %v2626 = vsel %vm420, %v2544, 0
        %2628 = vmatpush.bf16.xpose.msra.mxu0 0
        %2629 = vmatpush.bf16.xpose.msra.mxu0 0
        %2630 = vmatpush.bf16.xpose.msra.mxu0 0
        %2631 = vmatpush.bf16.xpose.msra.mxu0 0
        %2632 = vmatpush.bf16.xpose.msra.mxu0 0
        %2633 = vmatpush.bf16.xpose.msra.mxu0 0
        %2634 = vmatpush.bf16.xpose.msra.mxu0 0
        %2635 = vmatpush.bf16.xpose.msra.mxu0 %v2626
        %2636 = vmatmul.bf16.gmra.mxu0 %v2578
        %v2637 = vpop.f32.mrf.mxu0
        %v2638 = vadd.f32 0.0, %v2637
        %v2639 = vpop.f32.mrf.mxu0
        %v2640 = vadd.f32 0.0, %v2639
        %2641 = vmatmul.bf16.gmra.mxu0 %v2581
        %v2642 = vpop.f32.mrf.mxu0
        %v2643 = vadd.f32 0.0, %v2642
        %v2644 = vpop.f32.mrf.mxu0
        %v2645 = vadd.f32 0.0, %v2644
        %2646 = vmatmul.bf16.gmra.mxu0 %v2584
        %v2647 = vpop.f32.mrf.mxu0
        %v2648 = vadd.f32 0.0, %v2647
        %v2649 = vpop.f32.mrf.mxu0
        %v2650 = vadd.f32 0.0, %v2649
        %2651 = vmatmul.bf16.gmra.mxu0 %v2587
        %v2652 = vpop.f32.mrf.mxu0
        %v2653 = vadd.f32 0.0, %v2652
        %v2654 = vpop.f32.mrf.mxu0
        %v2655 = vadd.f32 0.0, %v2654
        %2656 = vmatmul.bf16.gmra.mxu0 %v2590
        %v2657 = vpop.f32.mrf.mxu0
        %v2658 = vadd.f32 0.0, %v2657
        %v2659 = vpop.f32.mrf.mxu0
        %v2660 = vadd.f32 0.0, %v2659
        %2661 = vmatmul.bf16.gmra.mxu0 %v2593
        %v2662 = vpop.f32.mrf.mxu0
        %v2663 = vadd.f32 0.0, %v2662
        %v2664 = vpop.f32.mrf.mxu0
        %v2665 = vadd.f32 0.0, %v2664
        %2666 = vmatmul.bf16.gmra.mxu0 %v2596
        %v2667 = vpop.f32.mrf.mxu0
        %v2668 = vadd.f32 0.0, %v2667
        %v2669 = vpop.f32.mrf.mxu0
        %v2670 = vadd.f32 0.0, %v2669
        %2671 = vmatmul.bf16.gmra.mxu0 %v2599
        %v2672 = vpop.f32.mrf.mxu0
        %v2673 = vadd.f32 0.0, %v2672
        %v2674 = vpop.f32.mrf.mxu0
        %v2675 = vadd.f32 0.0, %v2674
        %2676 = vmatmul.bf16.gmra.mxu0 %v2602
        %v2677 = vpop.f32.mrf.mxu0
        %v2678 = vadd.f32 0.0, %v2677
        %v2679 = vpop.f32.mrf.mxu0
        %v2680 = vadd.f32 0.0, %v2679
        %2681 = vmatmul.bf16.gmra.mxu0 %v2605
        %v2682 = vpop.f32.mrf.mxu0
        %v2683 = vadd.f32 0.0, %v2682
        %v2684 = vpop.f32.mrf.mxu0
        %v2685 = vadd.f32 0.0, %v2684
        %2686 = vmatmul.bf16.gmra.mxu0 %v2608
        %v2687 = vpop.f32.mrf.mxu0
        %v2688 = vadd.f32 0.0, %v2687
        %v2689 = vpop.f32.mrf.mxu0
        %v2690 = vadd.f32 0.0, %v2689
        %2691 = vmatmul.bf16.gmra.mxu0 %v2611
        %v2692 = vpop.f32.mrf.mxu0
        %v2693 = vadd.f32 0.0, %v2692
        %v2694 = vpop.f32.mrf.mxu0
        %v2695 = vadd.f32 0.0, %v2694
        %2696 = vmatmul.bf16.gmra.mxu0 %v2614
        %v2697 = vpop.f32.mrf.mxu0
        %v2698 = vadd.f32 0.0, %v2697
        %v2699 = vpop.f32.mrf.mxu0
        %v2700 = vadd.f32 0.0, %v2699
        %2701 = vmatmul.bf16.gmra.mxu0 %v2617
        %v2702 = vpop.f32.mrf.mxu0
        %v2703 = vadd.f32 0.0, %v2702
        %v2704 = vpop.f32.mrf.mxu0
        %v2705 = vadd.f32 0.0, %v2704
        %2706 = vmatmul.bf16.gmra.mxu0 %v2620
        %v2707 = vpop.f32.mrf.mxu0
        %v2708 = vadd.f32 0.0, %v2707
        %v2709 = vpop.f32.mrf.mxu0
        %v2710 = vadd.f32 0.0, %v2709
        %2711 = vmatmul.bf16.gmra.mxu0 %v2623
        %v2712 = vpop.f32.mrf.mxu0
        %v2713 = vadd.f32 0.0, %v2712
        %v2714 = vpop.f32.mrf.mxu0
        %v2715 = vadd.f32 0.0, %v2714
        %2716 = vdwg.mxu0
        %2749 = vrot.lane.b32.xlu0 %v1496, 4
        %v2750 = vpop.permute.xlu0 %2749
        %2751 = vrot.lane.b32.xlu0 %v1498, 4
        %v2752 = vpop.permute.xlu0 %2751
        %2753 = vrot.lane.b32.xlu0 %v1501, 4
        %v2754 = vpop.permute.xlu0 %2753
        %2755 = vrot.lane.b32.xlu0 %v1503, 4
        %v2756 = vpop.permute.xlu0 %2755
        %2757 = vrot.lane.b32.xlu0 %v1506, 4
        %v2758 = vpop.permute.xlu0 %2757
        %2759 = vrot.lane.b32.xlu0 %v1508, 4
        %v2760 = vpop.permute.xlu0 %2759
        %2761 = vrot.lane.b32.xlu0 %v1511, 4
        %v2762 = vpop.permute.xlu0 %2761
        %2763 = vrot.lane.b32.xlu0 %v1513, 4
        %v2764 = vpop.permute.xlu0 %2763
        %2765 = vrot.lane.b32.xlu0 %v1516, 4
        %v2766 = vpop.permute.xlu0 %2765
        %2767 = vrot.lane.b32.xlu0 %v1518, 4
        %v2768 = vpop.permute.xlu0 %2767
        %2769 = vrot.lane.b32.xlu0 %v1521, 4
        %v2770 = vpop.permute.xlu0 %2769
        %2771 = vrot.lane.b32.xlu0 %v1523, 4
        %v2772 = vpop.permute.xlu0 %2771
        %2773 = vrot.lane.b32.xlu0 %v1526, 4
        %v2774 = vpop.permute.xlu0 %2773
        %2775 = vrot.lane.b32.xlu0 %v1528, 4
        %v2776 = vpop.permute.xlu0 %2775
        %2777 = vrot.lane.b32.xlu0 %v1531, 4
        %v2778 = vpop.permute.xlu0 %2777
        %2779 = vrot.lane.b32.xlu0 %v1533, 4
        %v2780 = vpop.permute.xlu0 %2779
        %2781 = vrot.lane.b32.xlu0 %v1536, 4
        %v2782 = vpop.permute.xlu0 %2781
        %2783 = vrot.lane.b32.xlu0 %v1538, 4
        %v2784 = vpop.permute.xlu0 %2783
        %2785 = vrot.lane.b32.xlu0 %v1541, 4
        %v2786 = vpop.permute.xlu0 %2785
        %2787 = vrot.lane.b32.xlu0 %v1543, 4
        %v2788 = vpop.permute.xlu0 %2787
        %2789 = vrot.lane.b32.xlu0 %v1546, 4
        %v2790 = vpop.permute.xlu0 %2789
        %2791 = vrot.lane.b32.xlu0 %v1548, 4
        %v2792 = vpop.permute.xlu0 %2791
        %2793 = vrot.lane.b32.xlu0 %v1551, 4
        %v2794 = vpop.permute.xlu0 %2793
        %2795 = vrot.lane.b32.xlu0 %v1553, 4
        %v2796 = vpop.permute.xlu0 %2795
        %2797 = vrot.lane.b32.xlu0 %v1556, 4
        %v2798 = vpop.permute.xlu0 %2797
        %2799 = vrot.lane.b32.xlu0 %v1558, 4
        %v2800 = vpop.permute.xlu0 %2799
        %2801 = vrot.lane.b32.xlu0 %v1561, 4
        %v2802 = vpop.permute.xlu0 %2801
        %2803 = vrot.lane.b32.xlu0 %v1563, 4
        %v2804 = vpop.permute.xlu0 %2803
        %2805 = vrot.lane.b32.xlu0 %v1566, 4
        %v2806 = vpop.permute.xlu0 %2805
        %2807 = vrot.lane.b32.xlu0 %v1568, 4
        %v2808 = vpop.permute.xlu0 %2807
        %2809 = vrot.lane.b32.xlu0 %v1571, 4
        %v2810 = vpop.permute.xlu0 %2809
        %2811 = vrot.lane.b32.xlu0 %v1573, 4
        %v2812 = vpop.permute.xlu0 %2811
        %2877 = vrot.lane.b32.xlu0 %v2067, 8
        %v2878 = vpop.permute.xlu0 %2877
        %2879 = vrot.lane.b32.xlu0 %v2069, 8
        %v2880 = vpop.permute.xlu0 %2879
        %2881 = vrot.lane.b32.xlu0 %v2072, 8
        %v2882 = vpop.permute.xlu0 %2881
        %2883 = vrot.lane.b32.xlu0 %v2074, 8
        %v2884 = vpop.permute.xlu0 %2883
        %2885 = vrot.lane.b32.xlu0 %v2077, 8
        %v2886 = vpop.permute.xlu0 %2885
        %2887 = vrot.lane.b32.xlu0 %v2079, 8
        %v2888 = vpop.permute.xlu0 %2887
        %2889 = vrot.lane.b32.xlu0 %v2082, 8
        %v2890 = vpop.permute.xlu0 %2889
        %2891 = vrot.lane.b32.xlu0 %v2084, 8
        %v2892 = vpop.permute.xlu0 %2891
        %2893 = vrot.lane.b32.xlu0 %v2087, 8
        %v2894 = vpop.permute.xlu0 %2893
        %2895 = vrot.lane.b32.xlu0 %v2089, 8
        %v2896 = vpop.permute.xlu0 %2895
        %2897 = vrot.lane.b32.xlu0 %v2092, 8
        %v2898 = vpop.permute.xlu0 %2897
        %2899 = vrot.lane.b32.xlu0 %v2094, 8
        %v2900 = vpop.permute.xlu0 %2899
        %2901 = vrot.lane.b32.xlu0 %v2097, 8
        %v2902 = vpop.permute.xlu0 %2901
        %2903 = vrot.lane.b32.xlu0 %v2099, 8
        %v2904 = vpop.permute.xlu0 %2903
        %2905 = vrot.lane.b32.xlu0 %v2102, 8
        %v2906 = vpop.permute.xlu0 %2905
        %2907 = vrot.lane.b32.xlu0 %v2104, 8
        %v2908 = vpop.permute.xlu0 %2907
        %2909 = vrot.lane.b32.xlu0 %v2107, 8
        %v2910 = vpop.permute.xlu0 %2909
        %2911 = vrot.lane.b32.xlu0 %v2109, 8
        %v2912 = vpop.permute.xlu0 %2911
        %2913 = vrot.lane.b32.xlu0 %v2112, 8
        %v2914 = vpop.permute.xlu0 %2913
        %2915 = vrot.lane.b32.xlu0 %v2114, 8
        %v2916 = vpop.permute.xlu0 %2915
        %2917 = vrot.lane.b32.xlu0 %v2117, 8
        %v2918 = vpop.permute.xlu0 %2917
        %2919 = vrot.lane.b32.xlu0 %v2119, 8
        %v2920 = vpop.permute.xlu0 %2919
        %2921 = vrot.lane.b32.xlu0 %v2122, 8
        %v2922 = vpop.permute.xlu0 %2921
        %2923 = vrot.lane.b32.xlu0 %v2124, 8
        %v2924 = vpop.permute.xlu0 %2923
        %2925 = vrot.lane.b32.xlu0 %v2127, 8
        %v2926 = vpop.permute.xlu0 %2925
        %2927 = vrot.lane.b32.xlu0 %v2129, 8
        %v2928 = vpop.permute.xlu0 %2927
        %2929 = vrot.lane.b32.xlu0 %v2132, 8
        %v2930 = vpop.permute.xlu0 %2929
        %2931 = vrot.lane.b32.xlu0 %v2134, 8
        %v2932 = vpop.permute.xlu0 %2931
        %2933 = vrot.lane.b32.xlu0 %v2137, 8
        %v2934 = vpop.permute.xlu0 %2933
        %2935 = vrot.lane.b32.xlu0 %v2139, 8
        %v2936 = vpop.permute.xlu0 %2935
        %2937 = vrot.lane.b32.xlu0 %v2142, 8
        %v2938 = vpop.permute.xlu0 %2937
        %2939 = vrot.lane.b32.xlu0 %v2144, 8
        %v2940 = vpop.permute.xlu0 %2939
        %3005 = vrot.lane.b32.xlu0 %v2638, 12
        %v3006 = vpop.permute.xlu0 %3005
        %3007 = vrot.lane.b32.xlu0 %v2640, 12
        %v3008 = vpop.permute.xlu0 %3007
        %3009 = vrot.lane.b32.xlu0 %v2643, 12
        %v3010 = vpop.permute.xlu0 %3009
        %3011 = vrot.lane.b32.xlu0 %v2645, 12
        %v3012 = vpop.permute.xlu0 %3011
        %3013 = vrot.lane.b32.xlu0 %v2648, 12
        %v3014 = vpop.permute.xlu0 %3013
        %3015 = vrot.lane.b32.xlu0 %v2650, 12
        %v3016 = vpop.permute.xlu0 %3015
        %3017 = vrot.lane.b32.xlu0 %v2653, 12
        %v3018 = vpop.permute.xlu0 %3017
        %3019 = vrot.lane.b32.xlu0 %v2655, 12
        %v3020 = vpop.permute.xlu0 %3019
        %3021 = vrot.lane.b32.xlu0 %v2658, 12
        %v3022 = vpop.permute.xlu0 %3021
        %3023 = vrot.lane.b32.xlu0 %v2660, 12
        %v3024 = vpop.permute.xlu0 %3023
        %3025 = vrot.lane.b32.xlu0 %v2663, 12
        %v3026 = vpop.permute.xlu0 %3025
        %3027 = vrot.lane.b32.xlu0 %v2665, 12
        %v3028 = vpop.permute.xlu0 %3027
        %3029 = vrot.lane.b32.xlu0 %v2668, 12
        %v3030 = vpop.permute.xlu0 %3029
        %3031 = vrot.lane.b32.xlu0 %v2670, 12
        %v3032 = vpop.permute.xlu0 %3031
        %3033 = vrot.lane.b32.xlu0 %v2673, 12
        %v3034 = vpop.permute.xlu0 %3033
        %3035 = vrot.lane.b32.xlu0 %v2675, 12
        %v3036 = vpop.permute.xlu0 %3035
        %3037 = vrot.lane.b32.xlu0 %v2678, 12
        %v3038 = vpop.permute.xlu0 %3037
        %3039 = vrot.lane.b32.xlu0 %v2680, 12
        %v3040 = vpop.permute.xlu0 %3039
        %3041 = vrot.lane.b32.xlu0 %v2683, 12
        %v3042 = vpop.permute.xlu0 %3041
        %3043 = vrot.lane.b32.xlu0 %v2685, 12
        %v3044 = vpop.permute.xlu0 %3043
        %3045 = vrot.lane.b32.xlu0 %v2688, 12
        %v3046 = vpop.permute.xlu0 %3045
        %3047 = vrot.lane.b32.xlu0 %v2690, 12
        %v3048 = vpop.permute.xlu0 %3047
        %3049 = vrot.lane.b32.xlu0 %v2693, 12
        %v3050 = vpop.permute.xlu0 %3049
        %3051 = vrot.lane.b32.xlu0 %v2695, 12
        %v3052 = vpop.permute.xlu0 %3051
        %3053 = vrot.lane.b32.xlu0 %v2698, 12
        %v3054 = vpop.permute.xlu0 %3053
        %3055 = vrot.lane.b32.xlu0 %v2700, 12
        %v3056 = vpop.permute.xlu0 %3055
        %3057 = vrot.lane.b32.xlu0 %v2703, 12
        %v3058 = vpop.permute.xlu0 %3057
        %3059 = vrot.lane.b32.xlu0 %v2705, 12
        %v3060 = vpop.permute.xlu0 %3059
        %3061 = vrot.lane.b32.xlu0 %v2708, 12
        %v3062 = vpop.permute.xlu0 %3061
        %3063 = vrot.lane.b32.xlu0 %v2710, 12
        %v3064 = vpop.permute.xlu0 %3063
        %3065 = vrot.lane.b32.xlu0 %v2713, 12
        %v3066 = vpop.permute.xlu0 %3065
        %3067 = vrot.lane.b32.xlu0 %v2715, 12
        %v3068 = vpop.permute.xlu0 %3067
        %v3101 = vsel %vm420, %v925, %v2750
        %v3102 = vsel %vm420, %v927, %v2752
        %v3103 = vsel %vm420, %v930, %v2754
        %v3104 = vsel %vm420, %v932, %v2756
        %v3105 = vsel %vm420, %v935, %v2758
        %v3106 = vsel %vm420, %v937, %v2760
        %v3107 = vsel %vm420, %v940, %v2762
        %v3108 = vsel %vm420, %v942, %v2764
        %v3109 = vsel %vm420, %v945, %v2766
        %v3110 = vsel %vm420, %v947, %v2768
        %v3111 = vsel %vm420, %v950, %v2770
        %v3112 = vsel %vm420, %v952, %v2772
        %v3113 = vsel %vm420, %v955, %v2774
        %v3114 = vsel %vm420, %v957, %v2776
        %v3115 = vsel %vm420, %v960, %v2778
        %v3116 = vsel %vm420, %v962, %v2780
        %v3117 = vsel %vm420, %v965, %v2782
        %v3118 = vsel %vm420, %v967, %v2784
        %v3119 = vsel %vm420, %v970, %v2786
        %v3120 = vsel %vm420, %v972, %v2788
        %v3121 = vsel %vm420, %v975, %v2790
        %v3122 = vsel %vm420, %v977, %v2792
        %v3123 = vsel %vm420, %v980, %v2794
        %v3124 = vsel %vm420, %v982, %v2796
        %v3125 = vsel %vm420, %v985, %v2798
        %v3126 = vsel %vm420, %v987, %v2800
        %v3127 = vsel %vm420, %v990, %v2802
        %v3128 = vsel %vm420, %v992, %v2804
        %v3129 = vsel %vm420, %v995, %v2806
        %v3130 = vsel %vm420, %v997, %v2808
        %v3131 = vsel %vm420, %v1000, %v2810
        %v3132 = vsel %vm420, %v1002, %v2812
        %vm3133 = vcmask 64512
        %v3134 = vsel %vm3133, %v3101, %v2878
        %v3135 = vsel %vm3133, %v3102, %v2880
        %v3136 = vsel %vm3133, %v3103, %v2882
        %v3137 = vsel %vm3133, %v3104, %v2884
        %v3138 = vsel %vm3133, %v3105, %v2886
        %v3139 = vsel %vm3133, %v3106, %v2888
        %v3140 = vsel %vm3133, %v3107, %v2890
        %v3141 = vsel %vm3133, %v3108, %v2892
        %v3142 = vsel %vm3133, %v3109, %v2894
        %v3143 = vsel %vm3133, %v3110, %v2896
        %v3144 = vsel %vm3133, %v3111, %v2898
        %v3145 = vsel %vm3133, %v3112, %v2900
        %v3146 = vsel %vm3133, %v3113, %v2902
        %v3147 = vsel %vm3133, %v3114, %v2904
        %v3148 = vsel %vm3133, %v3115, %v2906
        %v3149 = vsel %vm3133, %v3116, %v2908
        %v3150 = vsel %vm3133, %v3117, %v2910
        %v3151 = vsel %vm3133, %v3118, %v2912
        %v3152 = vsel %vm3133, %v3119, %v2914
        %v3153 = vsel %vm3133, %v3120, %v2916
        %v3154 = vsel %vm3133, %v3121, %v2918
        %v3155 = vsel %vm3133, %v3122, %v2920
        %v3156 = vsel %vm3133, %v3123, %v2922
        %v3157 = vsel %vm3133, %v3124, %v2924
        %v3158 = vsel %vm3133, %v3125, %v2926
        %v3159 = vsel %vm3133, %v3126, %v2928
        %v3160 = vsel %vm3133, %v3127, %v2930
        %v3161 = vsel %vm3133, %v3128, %v2932
        %v3162 = vsel %vm3133, %v3129, %v2934
        %v3163 = vsel %vm3133, %v3130, %v2936
        %v3164 = vsel %vm3133, %v3131, %v2938
        %v3165 = vsel %vm3133, %v3132, %v2940
        %vm3166 = vcmask 97280
        %v3167 = vsel %vm3166, %v3134, %v3006
        %v3168 = vsel %vm3166, %v3135, %v3008
        %v3169 = vsel %vm3166, %v3136, %v3010
        %v3170 = vsel %vm3166, %v3137, %v3012
        %v3171 = vsel %vm3166, %v3138, %v3014
        %v3172 = vsel %vm3166, %v3139, %v3016
        %v3173 = vsel %vm3166, %v3140, %v3018
        %v3174 = vsel %vm3166, %v3141, %v3020
        %v3175 = vsel %vm3166, %v3142, %v3022
        %v3176 = vsel %vm3166, %v3143, %v3024
        %v3177 = vsel %vm3166, %v3144, %v3026
        %v3178 = vsel %vm3166, %v3145, %v3028
        %v3179 = vsel %vm3166, %v3146, %v3030
        %v3180 = vsel %vm3166, %v3147, %v3032
        %v3181 = vsel %vm3166, %v3148, %v3034
        %v3182 = vsel %vm3166, %v3149, %v3036
        %v3183 = vsel %vm3166, %v3150, %v3038
        %v3184 = vsel %vm3166, %v3151, %v3040
        %v3185 = vsel %vm3166, %v3152, %v3042
        %v3186 = vsel %vm3166, %v3153, %v3044
        %v3187 = vsel %vm3166, %v3154, %v3046
        %v3188 = vsel %vm3166, %v3155, %v3048
        %v3189 = vsel %vm3166, %v3156, %v3050
        %v3190 = vsel %vm3166, %v3157, %v3052
        %v3191 = vsel %vm3166, %v3158, %v3054
        %v3192 = vsel %vm3166, %v3159, %v3056
        %v3193 = vsel %vm3166, %v3160, %v3058
        %v3194 = vsel %vm3166, %v3161, %v3060
        %v3195 = vsel %vm3166, %v3162, %v3062
        %v3196 = vsel %vm3166, %v3163, %v3064
        %v3197 = vsel %vm3166, %v3164, %v3066
        %v3198 = vsel %vm3166, %v3165, %v3068
        %v3199 = vpack.c.bf16 %v3168, %v3167
        %v3200 = vpack.c.bf16 %v3170, %v3169
        %v3201 = vpack.c.bf16 %v3172, %v3171
        %v3202 = vpack.c.bf16 %v3174, %v3173
        %v3203 = vpack.c.bf16 %v3176, %v3175
        %v3204 = vpack.c.bf16 %v3178, %v3177
        %v3205 = vpack.c.bf16 %v3180, %v3179
        %v3206 = vpack.c.bf16 %v3182, %v3181
        %v3207 = vpack.c.bf16 %v3184, %v3183
        %v3208 = vpack.c.bf16 %v3186, %v3185
        %v3209 = vpack.c.bf16 %v3188, %v3187
        %v3210 = vpack.c.bf16 %v3190, %v3189
        %v3211 = vpack.c.bf16 %v3192, %v3191
        %v3212 = vpack.c.bf16 %v3194, %v3193
        %v3213 = vpack.c.bf16 %v3196, %v3195
        %v3214 = vpack.c.bf16 %v3198, %v3197
        %v3215 = vld [vmem:[%s3] sm:$0xff]
        %v3216 = vld [vmem:[%s3 + $0x8] sm:$0xff]
        %v3217 = vpack.c.bf16 %v3216, %v3215
        %v3218 = vld [vmem:[%s4] sm:$0x1]
        %v3220 = vperm.slane %v3218, 0
        %vm3222 = vcmask 130048
        %v3224 = vsel %vm3222, %v3199, 0
        %v3227 = vsel %vm3222, %v3200, 0
        %v3230 = vsel %vm3222, %v3201, 0
        %v3233 = vsel %vm3222, %v3202, 0
        %v3236 = vsel %vm3222, %v3203, 0
        %v3239 = vsel %vm3222, %v3204, 0
        %v3242 = vsel %vm3222, %v3205, 0
        %v3245 = vsel %vm3222, %v3206, 0
        %v3248 = vsel %vm3222, %v3207, 0
        %v3251 = vsel %vm3222, %v3208, 0
        %v3254 = vsel %vm3222, %v3209, 0
        %v3257 = vsel %vm3222, %v3210, 0
        %v3260 = vsel %vm3222, %v3211, 0
        %v3263 = vsel %vm3222, %v3212, 0
        %v3266 = vsel %vm3222, %v3213, 0
        %v3269 = vsel %vm3222, %v3214, 0
        %3271 = vmatpush.bf16.msra.mxu0 0
        %3272 = vmatpush.bf16.msra.mxu0 0
        %3273 = vmatpush.bf16.msra.mxu0 0
        %3274 = vmatpush.bf16.msra.mxu0 0
        %3275 = vmatpush.bf16.msra.mxu0 0
        %3276 = vmatpush.bf16.msra.mxu0 0
        %3277 = vmatpush.bf16.msra.mxu0 0
        %3278 = vmatpush.bf16.msra.mxu0 %v3217
        %3279 = vmatmul.bf16.gmra.mxu0 %v3224
        %v3280 = vpop.f32.mrf.mxu0
        %v3281 = vadd.f32 %v3220, %v3280
        %v3282 = vpop.f32.mrf.mxu0
        %v3283 = vadd.f32 %v3220, %v3282
        %3284 = vmatmul.bf16.gmra.mxu0 %v3227
        %v3285 = vpop.f32.mrf.mxu0
        %v3286 = vadd.f32 %v3220, %v3285
        %v3287 = vpop.f32.mrf.mxu0
        %v3288 = vadd.f32 %v3220, %v3287
        %3289 = vmatmul.bf16.gmra.mxu0 %v3230
        %v3290 = vpop.f32.mrf.mxu0
        %v3291 = vadd.f32 %v3220, %v3290
        %v3292 = vpop.f32.mrf.mxu0
        %v3293 = vadd.f32 %v3220, %v3292
        %3294 = vmatmul.bf16.gmra.mxu0 %v3233
        %v3295 = vpop.f32.mrf.mxu0
        %v3296 = vadd.f32 %v3220, %v3295
        %v3297 = vpop.f32.mrf.mxu0
        %v3298 = vadd.f32 %v3220, %v3297
        %3299 = vmatmul.bf16.gmra.mxu0 %v3236
        %v3300 = vpop.f32.mrf.mxu0
        %v3301 = vadd.f32 %v3220, %v3300
        %v3302 = vpop.f32.mrf.mxu0
        %v3303 = vadd.f32 %v3220, %v3302
        %3304 = vmatmul.bf16.gmra.mxu0 %v3239
        %v3305 = vpop.f32.mrf.mxu0
        %v3306 = vadd.f32 %v3220, %v3305
        %v3307 = vpop.f32.mrf.mxu0
        %v3308 = vadd.f32 %v3220, %v3307
        %3309 = vmatmul.bf16.gmra.mxu0 %v3242
        %v3310 = vpop.f32.mrf.mxu0
        %v3311 = vadd.f32 %v3220, %v3310
        %v3312 = vpop.f32.mrf.mxu0
        %v3313 = vadd.f32 %v3220, %v3312
        %3314 = vmatmul.bf16.gmra.mxu0 %v3245
        %v3315 = vpop.f32.mrf.mxu0
        %v3316 = vadd.f32 %v3220, %v3315
        %v3317 = vpop.f32.mrf.mxu0
        %v3318 = vadd.f32 %v3220, %v3317
        %3319 = vmatmul.bf16.gmra.mxu0 %v3248
        %v3320 = vpop.f32.mrf.mxu0
        %v3321 = vadd.f32 %v3220, %v3320
        %v3322 = vpop.f32.mrf.mxu0
        %v3323 = vadd.f32 %v3220, %v3322
        %3324 = vmatmul.bf16.gmra.mxu0 %v3251
        %v3325 = vpop.f32.mrf.mxu0
        %v3326 = vadd.f32 %v3220, %v3325
        %v3327 = vpop.f32.mrf.mxu0
        %v3328 = vadd.f32 %v3220, %v3327
        %3329 = vmatmul.bf16.gmra.mxu0 %v3254
        %v3330 = vpop.f32.mrf.mxu0
        %v3331 = vadd.f32 %v3220, %v3330
        %v3332 = vpop.f32.mrf.mxu0
        %v3333 = vadd.f32 %v3220, %v3332
        %3334 = vmatmul.bf16.gmra.mxu0 %v3257
        %v3335 = vpop.f32.mrf.mxu0
        %v3336 = vadd.f32 %v3220, %v3335
        %v3337 = vpop.f32.mrf.mxu0
        %v3338 = vadd.f32 %v3220, %v3337
        %3339 = vmatmul.bf16.gmra.mxu0 %v3260
        %v3340 = vpop.f32.mrf.mxu0
        %v3341 = vadd.f32 %v3220, %v3340
        %v3342 = vpop.f32.mrf.mxu0
        %v3343 = vadd.f32 %v3220, %v3342
        %3344 = vmatmul.bf16.gmra.mxu0 %v3263
        %v3345 = vpop.f32.mrf.mxu0
        %v3346 = vadd.f32 %v3220, %v3345
        %v3347 = vpop.f32.mrf.mxu0
        %v3348 = vadd.f32 %v3220, %v3347
        %3349 = vmatmul.bf16.gmra.mxu0 %v3266
        %v3350 = vpop.f32.mrf.mxu0
        %v3351 = vadd.f32 %v3220, %v3350
        %v3352 = vpop.f32.mrf.mxu0
        %v3353 = vadd.f32 %v3220, %v3352
        %3354 = vmatmul.bf16.gmra.mxu0 %v3269
        %v3355 = vpop.f32.mrf.mxu0
        %v3356 = vadd.f32 %v3220, %v3355
        %v3357 = vpop.f32.mrf.mxu0
        %v3358 = vadd.f32 %v3220, %v3357
        %3359 = vdwg.mxu0
        %3360 = vst.msk [vmem:[%s258] sm:$0xff] %vm3222, %v3281
        %3361 = vst.msk [vmem:[%s258 + $0x8] sm:$0xff] %vm3222, %v3283
        %3362 = vst.msk [vmem:[%s258 + $0x10] sm:$0xff] %vm3222, %v3286
        %3363 = vst.msk [vmem:[%s258 + $0x18] sm:$0xff] %vm3222, %v3288
        %3364 = vst.msk [vmem:[%s258 + $0x20] sm:$0xff] %vm3222, %v3291
        %3365 = vst.msk [vmem:[%s258 + $0x28] sm:$0xff] %vm3222, %v3293
        %3366 = vst.msk [vmem:[%s258 + $0x30] sm:$0xff] %vm3222, %v3296
        %3367 = vst.msk [vmem:[%s258 + $0x38] sm:$0xff] %vm3222, %v3298
        %3368 = vst.msk [vmem:[%s258 + $0x40] sm:$0xff] %vm3222, %v3301
        %3369 = vst.msk [vmem:[%s258 + $0x48] sm:$0xff] %vm3222, %v3303
        %3370 = vst.msk [vmem:[%s258 + $0x50] sm:$0xff] %vm3222, %v3306
        %3371 = vst.msk [vmem:[%s258 + $0x58] sm:$0xff] %vm3222, %v3308
        %3372 = vst.msk [vmem:[%s258 + $0x60] sm:$0xff] %vm3222, %v3311
        %3373 = vst.msk [vmem:[%s258 + $0x68] sm:$0xff] %vm3222, %v3313
        %3374 = vst.msk [vmem:[%s258 + $0x70] sm:$0xff] %vm3222, %v3316
        %3375 = vst.msk [vmem:[%s258 + $0x78] sm:$0xff] %vm3222, %v3318
        %3376 = vst.msk [vmem:[%s258 + $0x80] sm:$0xff] %vm3222, %v3321
        %3377 = vst.msk [vmem:[%s258 + $0x88] sm:$0xff] %vm3222, %v3323
        %3378 = vst.msk [vmem:[%s258 + $0x90] sm:$0xff] %vm3222, %v3326
        %3379 = vst.msk [vmem:[%s258 + $0x98] sm:$0xff] %vm3222, %v3328
        %3380 = vst.msk [vmem:[%s258 + $0xa0] sm:$0xff] %vm3222, %v3331
        %3381 = vst.msk [vmem:[%s258 + $0xa8] sm:$0xff] %vm3222, %v3333
        %3382 = vst.msk [vmem:[%s258 + $0xb0] sm:$0xff] %vm3222, %v3336
        %3383 = vst.msk [vmem:[%s258 + $0xb8] sm:$0xff] %vm3222, %v3338
        %3384 = vst.msk [vmem:[%s258 + $0xc0] sm:$0xff] %vm3222, %v3341
        %3385 = vst.msk [vmem:[%s258 + $0xc8] sm:$0xff] %vm3222, %v3343
        %3386 = vst.msk [vmem:[%s258 + $0xd0] sm:$0xff] %vm3222, %v3346
        %3387 = vst.msk [vmem:[%s258 + $0xd8] sm:$0xff] %vm3222, %v3348
        %3388 = vst.msk [vmem:[%s258 + $0xe0] sm:$0xff] %vm3222, %v3351
        %3389 = vst.msk [vmem:[%s258 + $0xe8] sm:$0xff] %vm3222, %v3353
        %3390 = vst.msk [vmem:[%s258 + $0xf0] sm:$0xff] %vm3222, %v3356
        %3391 = vst.msk [vmem:[%s258 + $0xf8] sm:$0xff] %vm3222, %v3358
        %p3392 = scmp.lt.s32.totalorder %s17, 1
        %s3393 = scalar_select %p3392, %s17, 1
        %s3394 = smul.addr %s3393, 32
        %s3395 = smul.addr %s3394, 8
        %s3396 = scalar_lea.vmem %s5, %s3395
        // Predicated region
        $region45: #{chanel_cross_attention.5} parent=39 // pred_check
          %p3397 = pneg %p150
        $region46: #{chanel_cross_attention.5} parent=39 // pred_check_branch
          %3399 = sbr.rel (%p3397) target = $region48
        $region47: #{chanel_cross_attention.5} parent=39 // pred_region
          _
        $region48: #{chanel_cross_attention.5} parent=39 // pred_fallthru
          _
      $region40: #{chanel_cross_attention.5} parent=5 // pred_fallthru
        _
      %p3400 = scmp.le.s32.totalorder 2, %s12
      // Predicated region
      $region49: #{chanel_cross_attention.5} parent=5 // pred_check
        %p3401 = pneg %p3400
      $region50: #{chanel_cross_attention.5} parent=5 // pred_check_branch
        %3403 = sbr.rel (%p3401) target = $region52
      $region51: #{chanel_cross_attention.5} parent=5 // pred_region
        %s3404 = ssub.s32 %s12, 2
        // Predicated region
        $region53: #{chanel_cross_attention.5} parent=51 // pred_check
          %p3405 = pneg %p156
        $region54: #{chanel_cross_attention.5} parent=51 // pred_check_branch
          %3407 = sbr.rel (%p3405) target = $region56
        $region55: #{chanel_cross_attention.5} parent=51 // pred_region
          %p3408 = scmp.lt.s32.totalorder %s18, 1
          %s3409 = scalar_select %p3408, %s18, 1
          %s3410 = smul.addr %s3409, 32
          %s3411 = smul.addr %s3410, 8
          %s3412 = scalar_lea.vmem %s5, %s3411
        $region56: #{chanel_cross_attention.5} parent=51 // pred_fallthru
          _
      $region52: #{chanel_cross_attention.5} parent=5 // pred_fallthru
        _
    $region6: #{chanel_cross_attention.5} parent=1 // loop_footer
      %s16 = sadd.s32 1, %s12
    $region7: #{chanel_cross_attention.5} parent=1 // loop_footer_branch
      %11 = sbr.rel target = $region3
    $region8: #{chanel_cross_attention.5} parent=1 // loop_exit
      _
    %3413 = vsyncpa [#allocation3], 1
    %s3414 = scalar_lea.sflag [#allocation3], 1
    %3415 = vsyncpa %s3414, 1

</llo_original>
